<compile_context>
chip_gen: v6e
topology: v6e:2x2x1
jax: 0.10.0
libtpu: 0.0.40
codegen_flags: <defaults>
</compile_context>

<pallas_src>
import functools

import jax
import jax.numpy as jnp
from jax import lax
from jax.experimental import pallas as pl
from jax.experimental.pallas import tpu as pltpu

# Review item 4: cap below v7x's 64 MiB physical per-TC VMEM; v5e/v6e unaffected.
_VMEM_LIMIT = 48 * 1024 * 1024


def _round_up(x, m):
    return ((x + m - 1) // m) * m


def _pick_row_tile(rows, candidates=(1024, 512, 256, 128, 64, 32, 16, 8)):
    """Largest candidate row tile that exactly divides `rows` (rows is a multiple of 8)."""
    for c in candidates:
        if rows % c == 0:
            return c
    return rows


# ----------------------------- Pallas kernels ------------------------------

def _linear_kernel(x_ref, w_ref, b_ref, o_ref, *, relu):
    acc = jnp.dot(x_ref[...], w_ref[...], preferred_element_type=jnp.float32) + b_ref[...]
    if relu:
        acc = jnp.maximum(acc, 0.0)
    o_ref[...] = acc.astype(o_ref.dtype)


def linear_pallas(x2d, w, b, relu=False, tile_rows=256):
    """y = x2d @ w + b (optional ReLU). x2d: (R, Cin), w: (Cin, Cout), b: (1, Cout)."""
    R, Cin = x2d.shape
    Cout = w.shape[1]
    assert R % tile_rows == 0, (R, tile_rows)
    return pl.pallas_call(
        functools.partial(_linear_kernel, relu=relu),
        out_shape=jax.ShapeDtypeStruct((R, Cout), x2d.dtype),
        grid=(R // tile_rows,),
        in_specs=[
            pl.BlockSpec((tile_rows, Cin), lambda i: (i, 0)),
            pl.BlockSpec((Cin, Cout), lambda i: (0, 0)),
            pl.BlockSpec((1, Cout), lambda i: (0, 0)),
        ],
        out_specs=pl.BlockSpec((tile_rows, Cout), lambda i: (i, 0)),
        compiler_params=pltpu.CompilerParams(
            dimension_semantics=("parallel",), vmem_limit_bytes=_VMEM_LIMIT),
    )(x2d, w, b)


def _mlp2_kernel(x_ref, w1_ref, b1_ref, w2_ref, b2_ref, o_ref):
    # Fused Linear -> ReLU -> Linear; hidden activation stays in VMEM/vregs.
    # Output head kept in f32 end-to-end for output numerics.
    h = jnp.dot(x_ref[...], w1_ref[...], preferred_element_type=jnp.float32) + b1_ref[...]
    h = jnp.maximum(h, 0.0)
    o = jnp.dot(h, w2_ref[...], preferred_element_type=jnp.float32) + b2_ref[...]
    o_ref[...] = o.astype(o_ref.dtype)


def mlp2_pallas(x2d, w1, b1, w2, b2, tile_rows=256):
    R, Cin = x2d.shape
    H = w1.shape[1]
    Cout = w2.shape[1]
    assert R % tile_rows == 0, (R, tile_rows)
    return pl.pallas_call(
        _mlp2_kernel,
        out_shape=jax.ShapeDtypeStruct((R, Cout), x2d.dtype),
        grid=(R // tile_rows,),
        in_specs=[
            pl.BlockSpec((tile_rows, Cin), lambda i: (i, 0)),
            pl.BlockSpec((Cin, H), lambda i: (0, 0)),
            pl.BlockSpec((1, H), lambda i: (0, 0)),
            pl.BlockSpec((H, Cout), lambda i: (0, 0)),
            pl.BlockSpec((1, Cout), lambda i: (0, 0)),
        ],
        out_specs=pl.BlockSpec((tile_rows, Cout), lambda i: (i, 0)),
        compiler_params=pltpu.CompilerParams(
            dimension_semantics=("parallel",), vmem_limit_bytes=_VMEM_LIMIT),
    )(x2d, w1, b1, w2, b2)


def _qkv_kernel(x_ref, w1_ref, b1_ref, wq2_ref, bq2_ref, wk2_ref, bk2_ref,
                wv2_ref, bv2_ref, q_ref, k_ref, v_ref, *, hidden):
    # Shared fc1 for q/k/v (concatenated bf16 weights -> one wide MXU matmul, x read
    # once), then three fc2 matmuls on hidden slices.  No HBM round-trip for the hidden.
    # k/v are stored in bf16 so the downstream gather writeback + attention DMA halve.
    xb = x_ref[...].astype(jnp.bfloat16)
    h = jnp.dot(xb, w1_ref[...], preferred_element_type=jnp.float32) + b1_ref[...]
    h = jnp.maximum(h, 0.0)
    hq = h[:, :hidden].astype(jnp.bfloat16)
    hk = h[:, hidden:2 * hidden].astype(jnp.bfloat16)
    hv = h[:, 2 * hidden:].astype(jnp.bfloat16)
    q = jnp.dot(hq, wq2_ref[...], preferred_element_type=jnp.float32) + bq2_ref[...]
    k = jnp.dot(hk, wk2_ref[...], preferred_element_type=jnp.float32) + bk2_ref[...]
    v = jnp.dot(hv, wv2_ref[...], preferred_element_type=jnp.float32) + bv2_ref[...]
    q_ref[...] = q.astype(q_ref.dtype)   # f32 (residual path)
    k_ref[...] = k.astype(k_ref.dtype)   # bf16
    v_ref[...] = v.astype(v_ref.dtype)   # bf16


def qkv_pallas(x2d, qkv_p, tile_rows=256):
    R, Cin = x2d.shape
    H = qkv_p["wq2"].shape[0]
    C = qkv_p["wq2"].shape[1]
    assert R % tile_rows == 0, (R, tile_rows)
    row_spec = pl.BlockSpec((tile_rows, C), lambda i: (i, 0))
    out_shape = (jax.ShapeDtypeStruct((R, C), jnp.float32),
                 jax.ShapeDtypeStruct((R, C), jnp.bfloat16),
                 jax.ShapeDtypeStruct((R, C), jnp.bfloat16))
    bf16 = jnp.bfloat16
    return pl.pallas_call(
        functools.partial(_qkv_kernel, hidden=H),
        out_shape=out_shape,
        grid=(R // tile_rows,),
        in_specs=[
            pl.BlockSpec((tile_rows, Cin), lambda i: (i, 0)),
            pl.BlockSpec((Cin, 3 * H), lambda i: (0, 0)),
            pl.BlockSpec((1, 3 * H), lambda i: (0, 0)),
            pl.BlockSpec((H, C), lambda i: (0, 0)),
            pl.BlockSpec((1, C), lambda i: (0, 0)),
            pl.BlockSpec((H, C), lambda i: (0, 0)),
            pl.BlockSpec((1, C), lambda i: (0, 0)),
            pl.BlockSpec((H, C), lambda i: (0, 0)),
            pl.BlockSpec((1, C), lambda i: (0, 0)),
        ],
        out_specs=(row_spec, row_spec, row_spec),
        compiler_params=pltpu.CompilerParams(
            dimension_semantics=("parallel",), vmem_limit_bytes=_VMEM_LIMIT),
    )(x2d, qkv_p["w1"].astype(bf16), qkv_p["b1"],
      qkv_p["wq2"].astype(bf16), qkv_p["bq2"],
      qkv_p["wk2"].astype(bf16), qkv_p["bk2"],
      qkv_p["wv2"].astype(bf16), qkv_p["bv2"])


def _attn_block_kernel(q_ref, kg_ref, vg_ref, polar_ref,
                       wpe1_ref, bpe1_ref, wpe2_ref, bpe2_ref,
                       wo1_ref, bo1_ref, wo2_ref, bo2_ref,
                       g_ref, bln_ref, o_ref, *, eps, k_chunk):
    q = q_ref[0]                          # (tn, C) f32
    tn, C = q.shape
    K = kg_ref.shape[2]
    scale = 1.0 / (float(C) ** 0.5)       # torch: / np.sqrt(k.shape[-1])

    # positional-encoding weights. Linear(2, C): contraction dim 2 is too small for the
    # MXU -> two broadcast FMAs on the VPU (f32).  Linear(C, C) runs on the MXU (bf16
    # operands, f32 accumulation).
    wpe1 = wpe1_ref[...]                                   # (2, C) f32
    w0 = wpe1[0:1, :].reshape(1, 1, C)
    w1 = wpe1[1:2, :].reshape(1, 1, C)
    bpe1 = bpe1_ref[...].reshape(1, 1, C)
    wpe2 = wpe2_ref[...]                                   # (C, C) bf16
    bpe2 = bpe2_ref[...]                                   # (1, C) f32

    # --- K-axis chunked online-softmax attention (review item 5) -------------
    # Only one (tn, k_chunk, C) set of pe/kmat/vmat temporaries is live at a time.
    m = None
    l = None
    acc = None
    c0 = 0
    while c0 < K:                     # static Python loop (K, k_chunk compile-time)
        csz = min(k_chunk, K - c0)
        kg_c = kg_ref[0, :, c0:c0 + csz, :].astype(jnp.float32)   # bf16 -> f32
        vg_c = vg_ref[0, :, c0:c0 + csz, :].astype(jnp.float32)
        polar_c = polar_ref[0, :, c0:c0 + csz, :]                 # (tn, csz, 2) f32

        peh = polar_c[:, :, 0:1] * w0 + polar_c[:, :, 1:2] * w1 + bpe1
        peh = jnp.maximum(peh, 0.0)
        pe = jnp.dot(peh.reshape(tn * csz, C).astype(jnp.bfloat16), wpe2,
                     preferred_element_type=jnp.float32) + bpe2
        pe = pe.reshape(tn, csz, C)

        kmat = kg_c + pe                                          # f32 elementwise
        vmat = vg_c + pe

        # Per-row dot over C (lane reduce, XLU).  csz is small.
        s = jnp.sum(q[:, None, :] * kmat, axis=-1) * scale        # (tn, csz) f32
        c_max = jnp.max(s, axis=-1, keepdims=True)
        if m is None:
            m = c_max
            p = jnp.exp(s - m)
            l = jnp.sum(p, axis=-1, keepdims=True)
            acc = p[:, 0:1] * vmat[:, 0, :]
            for j in range(1, csz):
                acc = acc + p[:, j:j + 1] * vmat[:, j, :]
        else:
            m_new = jnp.maximum(m, c_max)
            alpha = jnp.exp(m - m_new)
            p = jnp.exp(s - m_new)
            l = alpha * l + jnp.sum(p, axis=-1, keepdims=True)
            acc = alpha * acc
            for j in range(csz):
                acc = acc + p[:, j:j + 1] * vmat[:, j, :]
            m = m_new
        c0 += csz

    # torch builds an (N,K,K) attn with identical rows; sum(matmul(attn, v), dim=2)/K
    # collapses exactly to this single weighted sum over neighbors (no residual 1/K).
    out = acc * pl.reciprocal(l, approx=False)   # exact recip (EUP) for closer parity

    # --- fc_out MLP (C -> H -> C), dropout_out is eval-mode identity ---------
    h = jnp.dot(out.astype(jnp.bfloat16), wo1_ref[...],
                preferred_element_type=jnp.float32) + bo1_ref[...]
    h = jnp.maximum(h, 0.0)
    o = jnp.dot(h.astype(jnp.bfloat16), wo2_ref[...],
                preferred_element_type=jnp.float32) + bo2_ref[...]

    # --- residual + LayerNorm (f32; eps matches torch nn.LayerNorm(C, eps=1e-6)) ---
    y = o + q
    mu = jnp.mean(y, axis=-1, keepdims=True)
    var = jnp.mean(jnp.square(y - mu), axis=-1, keepdims=True)
    yn = (y - mu) * lax.rsqrt(var + eps)
    o_ref[0] = (yn * g_ref[...] + bln_ref[...]).astype(o_ref.dtype)


def attention_block_pallas(q, kg, vg, polar, p, tile_n):
    B, N, C = q.shape
    K = kg.shape[2]
    H = p["fc_out"]["w1"].shape[1]
    assert N % tile_n == 0, (N, tile_n)
    k_chunk = 8 if K > 8 else K
    bf16 = jnp.bfloat16

    def pt_map(b, i):
        return (b, i, 0)

    def nb_map(b, i):
        return (b, i, 0, 0)

    def w_map(b, i):
        return (0, 0)

    # TODO(synk): if xprof shows exposed DMA on kg/vg (v5e/v6e), add
    #             pipeline_mode=pl.Buffered(3) to their BlockSpecs (128 MiB VMEM there).
    return pl.pallas_call(
        functools.partial(_attn_block_kernel, eps=1e-6, k_chunk=k_chunk),
        out_shape=jax.ShapeDtypeStruct((B, N, C), q.dtype),
        grid=(B, N // tile_n),
        in_specs=[
            pl.BlockSpec((1, tile_n, C), pt_map),
            pl.BlockSpec((1, tile_n, K, C), nb_map),
            pl.BlockSpec((1, tile_n, K, C), nb_map),
            pl.BlockSpec((1, tile_n, K, 2), nb_map),
            pl.BlockSpec((2, C), w_map),
            pl.BlockSpec((1, C), w_map),
            pl.BlockSpec((C, C), w_map),
            pl.BlockSpec((1, C), w_map),
            pl.BlockSpec((C, H), w_map),
            pl.BlockSpec((1, H), w_map),
            pl.BlockSpec((H, C), w_map),
            pl.BlockSpec((1, C), w_map),
            pl.BlockSpec((1, C), w_map),
            pl.BlockSpec((1, C), w_map),
        ],
        out_specs=pl.BlockSpec((1, tile_n, C), pt_map),
        compiler_params=pltpu.CompilerParams(
            dimension_semantics=("parallel", "parallel"),
            vmem_limit_bytes=_VMEM_LIMIT),
    )(q, kg, vg, polar,
      p["pe1"]["w"], p["pe1"]["b"], p["pe2"]["w"].astype(bf16), p["pe2"]["b"],
      p["fc_out"]["w1"].astype(bf16), p["fc_out"]["b1"],
      p["fc_out"]["w2"].astype(bf16), p["fc_out"]["b2"],
      p["ln_g"], p["ln_b"])


# ------------------------------ parameters ---------------------------------

def init_linear(key, fan_in, fan_out):
    kw, kb = jax.random.split(key)
    bound = fan_in ** -0.5
    return {
        "w": jax.random.uniform(kw, (fan_in, fan_out), jnp.float32, -bound, bound),
        "b": jax.random.uniform(kb, (1, fan_out), jnp.float32, -bound, bound),
    }


def init_layer(key, c, hidden=256):
    ks = jax.random.split(key, 10)
    q1, k1, v1 = (init_linear(ks[i], c, hidden) for i in range(3))
    q2, k2, v2 = (init_linear(ks[i], hidden, c) for i in range(3, 6))
    o1 = init_linear(ks[6], c, hidden)
    o2 = init_linear(ks[7], hidden, c)
    return {
        "qkv": {
            "w1": jnp.concatenate([q1["w"], k1["w"], v1["w"]], axis=1),  # (c, 3H)
            "b1": jnp.concatenate([q1["b"], k1["b"], v1["b"]], axis=1),  # (1, 3H)
            "wq2": q2["w"], "bq2": q2["b"],
            "wk2": k2["w"], "bk2": k2["b"],
            "wv2": v2["w"], "bv2": v2["b"],
        },
        "pe1": init_linear(ks[8], 2, c),
        "pe2": init_linear(ks[9], c, c),
        "fc_out": {"w1": o1["w"], "b1": o1["b"], "w2": o2["w"], "b2": o2["b"]},
        "ln_g": jnp.ones((1, c), jnp.float32),
        "ln_b": jnp.zeros((1, c), jnp.float32),
    }


def init_params(key, input_dim, hidden_dim, output_dim):
    ks = jax.random.split(key, 6)
    return {
        "fc_in": init_linear(ks[0], input_dim, hidden_dim),
        "layer1": init_layer(ks[1], hidden_dim),
        "layer2": init_layer(ks[2], hidden_dim),
        "layer3": init_layer(ks[3], hidden_dim),
        "out1": init_linear(ks[4], hidden_dim, 256),
        "out2": init_linear(ks[5], 256, output_dim),
    }


# ------------------------------ model (JAX glue) ---------------------------

def knn_and_polar(pos, normal, mask, k):
    """k-NN selection + polar features; identical for all three layers -> computed once.

    Gram-form squared distance (|a|^2+|b|^2-2ab) and no sqrt before top_k (monotone);
    mask is bool (review item 7).
    """
    sq = jnp.sum(pos * pos, axis=-1)                            # (B, N)
    gram = jnp.einsum("bnd,bmd->bnm", pos, pos)                 # (B, N, N)
    d2 = jnp.maximum(sq[:, :, None] + sq[:, None, :] - 2.0 * gram, 0.0)
    d2 = jnp.where(mask == 0, jnp.inf, d2)
    # TODO(synk): tie-breaking order of lax.top_k may differ from torch.topk.
    _, idx = lax.top_k(-d2, k)

    gather = jax.vmap(lambda a, i: a[i])                        # per-batch gather (glue)
    pos_nb = gather(pos, idx)                                   # (B, N, k, 3)
    pos_rel = pos[:, :, None, :] - pos_nb

    normal_n = normal / jnp.maximum(jnp.linalg.norm(normal, axis=-1, keepdims=True), 1e-12)
    radial = jnp.linalg.norm(pos_rel, axis=-1, keepdims=True)                   # (B,N,k,1)
    dotn = jnp.sum(pos_rel * normal_n[:, :, None, :], axis=-1, keepdims=True)
    # clamp to [-1,1]: fp rounding could push |cos| slightly past 1 (torch would NaN);
    # exact self-neighbors (radial==0, dotn==0) give theta=pi/2 in both implementations.
    cosang = jnp.clip(dotn / (radial + 1e-8), -1.0, 1.0)
    theta = jnp.arccos(cosang)
    return idx, jnp.concatenate([radial, theta], axis=-1)       # idx, (B,N,k,2)


def transformer_layer(p, x, idx, polar, tile_n, row_tile):
    B, N, C = x.shape  # N already padded to a multiple of tile_n

    # fused q/k/v MLPs (one pallas_call, shared input read; k/v emitted in bf16)
    q, kf, vf = qkv_pallas(x.reshape(B * N, C), p["qkv"], tile_rows=row_tile)
    q = q.reshape(B, N, C)
    kf = kf.reshape(B, N, C)
    vf = vf.reshape(B, N, C)

    gather = jax.vmap(lambda a, i: a[i])       # per-batch neighbor gather (glue, bf16)
    kg = gather(kf, idx)                       # (B, N, k, C) bf16
    vg = gather(vf, idx)                       # (B, N, k, C) bf16

    # fused: pos_encoding + k-NN attention + fc_out MLP + residual + LayerNorm
    return attention_block_pallas(q, kg, vg, polar, p, tile_n)


def point_transformer_apply(p, x, pos, normal, mask, k, tile_n_target=256):
    B, N, F = x.shape
    # Pad the point axis ONCE to the attention tile size.
    tile_n = min(tile_n_target, _round_up(N, 8))
    N_pad = _round_up(N, tile_n)
    if N_pad != N:
        pad = N_pad - N
        x = jnp.pad(x, ((0, 0), (0, pad), (0, 0)))
        pos = jnp.pad(pos, ((0, 0), (0, pad), (0, 0)))
        normal = jnp.pad(normal, ((0, 0), (0, pad), (0, 0)))
        mask = jnp.pad(mask, ((0, 0), (0, pad), (0, pad)))

    # Row tile of the streaming linears decoupled from the attention tile (item 1).
    row_tile = _pick_row_tile(B * N_pad)

    # k-NN indices & polar coords depend only on (pos, normal, mask): compute once,
    # reuse for all three transformer layers (torch recomputes identical values).
    idx, polar = knn_and_polar(pos, normal, mask, k)

    h = linear_pallas(x.reshape(B * N_pad, F), p["fc_in"]["w"], p["fc_in"]["b"],
                      relu=False, tile_rows=row_tile).reshape(B, N_pad, -1)
    h = transformer_layer(p["layer1"], h, idx, polar, tile_n, row_tile)
    h = transformer_layer(p["layer2"], h, idx, polar, tile_n, row_tile)
    h = transformer_layer(p["layer3"], h, idx, polar, tile_n, row_tile)
    C = h.shape[-1]
    o = mlp2_pallas(h.reshape(B * N_pad, C), p["out1"]["w"], p["out1"]["b"],
                    p["out2"]["w"], p["out2"]["b"], tile_rows=row_tile)
    return o.reshape(B, N_pad, -1)[:, :N]


def point_cloud_mapping_forward(params, x, pos, normal, index, feat, mask, k):
    b, m, f = x.shape
    n = index.shape[1]
    index_valid = jnp.where(index == -1, 0, index)
    sel = jnp.take_along_axis(
        x, jnp.broadcast_to(index_valid[:, :, None], (b, n, f)), axis=1)
    sel = jnp.where((index == -1)[:, :, None], jnp.float32(0.0), sel)
    if feat is not None:
        sel = jnp.concatenate([sel, feat], axis=2)
    return point_transformer_apply(params, sel, pos, normal, mask, k)


# ----------------------------------- main -----------------------------------

if __name__ == "__main__":
    # Small but lane-dense config: channel widths are multiples of 128 so every
    # matmul output is a full-lane store.
    B, M, N = 2, 12, 8
    INPUT_DIM, HIDDEN_DIM, OUTPUT_DIM, K = 128, 128, 128, 4

    params = init_params(jax.random.PRNGKey(42), INPUT_DIM, HIDDEN_DIM, OUTPUT_DIM)

    key = jax.random.PRNGKey(0)
    kx, kp, kn, ki = jax.random.split(key, 4)
    x = jax.random.normal(kx, (B, M, INPUT_DIM), jnp.float32)
    pos = jax.random.normal(kp, (B, N, 3), jnp.float32)
    normal = jax.random.normal(kn, (B, N, 3), jnp.float32)
    index = jax.random.randint(ki, (B, N), -1, M)          # includes -1 (masked) entries
    mask = jnp.ones((B, N, N), jnp.bool_)                  # bool mask (review item 7)

    @jax.jit
    def fwd(params_, x_, pos_, normal_, index_, mask_):
        # feat=None (transformer dim_in == INPUT_DIM); k closed over as a static int.
        return point_cloud_mapping_forward(params_, x_, pos_, normal_, index_, None, mask_, K)

    out = fwd(params, x, pos, normal, index, mask)
    out = jax.block_until_ready(out)
    assert out.shape == (B, N, OUTPUT_DIM), out.shape
    assert bool(jnp.all(jnp.isfinite(out)))
    print("KERNEL_OK")
</pallas_src>

<mosaic_0001>
module attributes {stable_mosaic.version = 11 : i64} {
  func.func @_linear_kernel(%arg0: i32, %arg1: memref<16x128xf32, #tpu.memory_space<vmem>>, %arg2: memref<128x128xf32, #tpu.memory_space<vmem>>, %arg3: memref<1x128xf32, #tpu.memory_space<vmem>>, %arg4: memref<16x128xf32, #tpu.memory_space<vmem>>) attributes {dimension_semantics = [#tpu.dimension_semantics<parallel>], iteration_bounds = array<i64: 1>, scalar_prefetch = 0 : i64, scratch_operands = 0 : i64, tpu.core_type = #tpu.core_type<tc>, window_params = [{transform_indices = @transform_0, window_bounds = array<i64: 16, 128>}, {pipeline_mode = #tpu.pipeline_mode<synchronous>, transform_indices = @transform_1, window_bounds = array<i64: 128, 128>}, {pipeline_mode = #tpu.pipeline_mode<synchronous>, transform_indices = @transform_2, window_bounds = array<i64: 1, 128>}, {transform_indices = @transform_3, window_bounds = array<i64: 16, 128>}]} {
    %c0 = arith.constant 0 : index
    %c0_0 = arith.constant 0 : index
    %0 = vector.load %arg1[%c0, %c0_0] : memref<16x128xf32, #tpu.memory_space<vmem>>, vector<16x128xf32>
    %c0_1 = arith.constant 0 : index
    %c0_2 = arith.constant 0 : index
    %1 = vector.load %arg2[%c0_1, %c0_2] : memref<128x128xf32, #tpu.memory_space<vmem>>, vector<128x128xf32>
    %cst = arith.constant dense<0.000000e+00> : vector<16x128xf32>
    %2 = tpu.matmul %0, %1, %cst {dimension_numbers = #tpu.dot_dimension_numbers<[1], [0], [0], [1], [0, 0, 1, 1], [], []>} : vector<16x128xf32>, vector<128x128xf32>, vector<16x128xf32> -> vector<16x128xf32>
    %c0_3 = arith.constant 0 : index
    %c0_4 = arith.constant 0 : index
    %3 = vector.load %arg3[%c0_3, %c0_4] : memref<1x128xf32, #tpu.memory_space<vmem>>, vector<1x128xf32>
    %4 = vector.broadcast %3 : vector<1x128xf32> to vector<16x128xf32>
    %5 = arith.addf %2, %4 : vector<16x128xf32>
    %c0_5 = arith.constant 0 : index
    %c0_6 = arith.constant 0 : index
    %6 = vector.load %arg4[%c0_5, %c0_6] : memref<16x128xf32, #tpu.memory_space<vmem>>, vector<16x128xf32>
    tpu.vector_store %arg4[%c0_5, %c0_6], %5 {strides = array<i32>} : memref<16x128xf32, #tpu.memory_space<vmem>>, vector<16x128xf32>,
    return
  }
  func.func @transform_0(%arg0: i32) -> (i32, i32) {
    %c0_i32 = arith.constant 0 : i32
    %c0_i32_0 = arith.constant 0 : i32
    return %arg0, %c0_i32 : i32, i32
  }
  func.func @transform_1(%arg0: i32) -> (i32, i32) {
    %c0_i32 = arith.constant 0 : i32
    %c0_i32_0 = arith.constant 0 : i32
    %c0_i32_1 = arith.constant 0 : i32
    return %c0_i32, %c0_i32_0 : i32, i32
  }
  func.func @transform_2(%arg0: i32) -> (i32, i32) {
    %c0_i32 = arith.constant 0 : i32
    %c0_i32_0 = arith.constant 0 : i32
    %c0_i32_1 = arith.constant 0 : i32
    return %c0_i32, %c0_i32_0 : i32, i32
  }
  func.func @transform_3(%arg0: i32) -> (i32, i32) {
    %c0_i32 = arith.constant 0 : i32
    %c0_i32_0 = arith.constant 0 : i32
    return %arg0, %c0_i32 : i32, i32
  }
}

module attributes {stable_mosaic.version = 11 : i64} {
  func.func @_qkv_kernel(%arg0: i32, %arg1: memref<16x128xf32, #tpu.memory_space<vmem>>, %arg2: memref<128x768xbf16, #tpu.memory_space<vmem>>, %arg3: memref<1x768xf32, #tpu.memory_space<vmem>>, %arg4: memref<256x128xbf16, #tpu.memory_space<vmem>>, %arg5: memref<1x128xf32, #tpu.memory_space<vmem>>, %arg6: memref<256x128xbf16, #tpu.memory_space<vmem>>, %arg7: memref<1x128xf32, #tpu.memory_space<vmem>>, %arg8: memref<256x128xbf16, #tpu.memory_space<vmem>>, %arg9: memref<1x128xf32, #tpu.memory_space<vmem>>, %arg10: memref<16x128xf32, #tpu.memory_space<vmem>>, %arg11: memref<16x128xbf16, #tpu.memory_space<vmem>>, %arg12: memref<16x128xbf16, #tpu.memory_space<vmem>>) attributes {dimension_semantics = [#tpu.dimension_semantics<parallel>], iteration_bounds = array<i64: 1>, scalar_prefetch = 0 : i64, scratch_operands = 0 : i64, tpu.core_type = #tpu.core_type<tc>, window_params = [{transform_indices = @transform_0, window_bounds = array<i64: 16, 128>}, {pipeline_mode = #tpu.pipeline_mode<synchronous>, transform_indices = @transform_1, window_bounds = array<i64: 128, 768>}, {pipeline_mode = #tpu.pipeline_mode<synchronous>, transform_indices = @transform_2, window_bounds = array<i64: 1, 768>}, {pipeline_mode = #tpu.pipeline_mode<synchronous>, transform_indices = @transform_3, window_bounds = array<i64: 256, 128>}, {pipeline_mode = #tpu.pipeline_mode<synchronous>, transform_indices = @transform_4, window_bounds = array<i64: 1, 128>}, {pipeline_mode = #tpu.pipeline_mode<synchronous>, transform_indices = @transform_5, window_bounds = array<i64: 256, 128>}, {pipeline_mode = #tpu.pipeline_mode<synchronous>, transform_indices = @transform_6, window_bounds = array<i64: 1, 128>}, {pipeline_mode = #tpu.pipeline_mode<synchronous>, transform_indices = @transform_7, window_bounds = array<i64: 256, 128>}, {pipeline_mode = #tpu.pipeline_mode<synchronous>, transform_indices = @transform_8, window_bounds = array<i64: 1, 128>}, {transform_indices = @transform_9, window_bounds = array<i64: 16, 128>}, {transform_indices = @transform_10, window_bounds = array<i64: 16, 128>}, {transform_indices = @transform_11, window_bounds = array<i64: 16, 128>}]} {
    %c0 = arith.constant 0 : index
    %c0_0 = arith.constant 0 : index
    %0 = vector.load %arg1[%c0, %c0_0] : memref<16x128xf32, #tpu.memory_space<vmem>>, vector<16x128xf32>
    %1 = arith.truncf %0 : vector<16x128xf32> to vector<16x128xbf16>
    %c0_1 = arith.constant 0 : index
    %c0_2 = arith.constant 0 : index
    %2 = vector.load %arg2[%c0_1, %c0_2] : memref<128x768xbf16, #tpu.memory_space<vmem>>, vector<128x768xbf16>
    %cst = arith.constant dense<0.000000e+00> : vector<16x768xf32>
    %3 = tpu.matmul %1, %2, %cst {dimension_numbers = #tpu.dot_dimension_numbers<[1], [0], [0], [1], [0, 0, 1, 1], [], []>} : vector<16x128xbf16>, vector<128x768xbf16>, vector<16x768xf32> -> vector<16x768xf32>
    %c0_3 = arith.constant 0 : index
    %c0_4 = arith.constant 0 : index
    %4 = vector.load %arg3[%c0_3, %c0_4] : memref<1x768xf32, #tpu.memory_space<vmem>>, vector<1x768xf32>
    %5 = vector.broadcast %4 : vector<1x768xf32> to vector<16x768xf32>
    %6 = arith.addf %3, %5 : vector<16x768xf32>
    %cst_5 = arith.constant 0.000000e+00 : f32
    %7 = vector.broadcast %cst_5 : f32 to vector<16x768xf32>
    %8 = arith.maximumf %6, %7 : vector<16x768xf32>
    %9 = vector.extract_strided_slice %8 {offsets = [0, 0], sizes = [16, 256], strides = [1, 1]} : vector<16x768xf32> to vector<16x256xf32>
    %10 = arith.truncf %9 : vector<16x256xf32> to vector<16x256xbf16>
    %11 = vector.extract_strided_slice %8 {offsets = [0, 256], sizes = [16, 256], strides = [1, 1]} : vector<16x768xf32> to vector<16x256xf32>
    %12 = arith.truncf %11 : vector<16x256xf32> to vector<16x256xbf16>
    %13 = vector.extract_strided_slice %8 {offsets = [0, 512], sizes = [16, 256], strides = [1, 1]} : vector<16x768xf32> to vector<16x256xf32>
    %14 = arith.truncf %13 : vector<16x256xf32> to vector<16x256xbf16>
    %c0_6 = arith.constant 0 : index
    %c0_7 = arith.constant 0 : index
    %15 = vector.load %arg4[%c0_6, %c0_7] : memref<256x128xbf16, #tpu.memory_space<vmem>>, vector<256x128xbf16>
    %cst_8 = arith.constant dense<0.000000e+00> : vector<16x128xf32>
    %16 = tpu.matmul %10, %15, %cst_8 {dimension_numbers = #tpu.dot_dimension_numbers<[1], [0], [0], [1], [0, 0, 1, 1], [], []>} : vector<16x256xbf16>, vector<256x128xbf16>, vector<16x128xf32> -> vector<16x128xf32>
    %c0_9 = arith.constant 0 : index
    %c0_10 = arith.constant 0 : index
    %17 = vector.load %arg5[%c0_9, %c0_10] : memref<1x128xf32, #tpu.memory_space<vmem>>, vector<1x128xf32>
    %18 = vector.broadcast %17 : vector<1x128xf32> to vector<16x128xf32>
    %19 = arith.addf %16, %18 : vector<16x128xf32>
    %c0_11 = arith.constant 0 : index
    %c0_12 = arith.constant 0 : index
    %20 = vector.load %arg6[%c0_11, %c0_12] : memref<256x128xbf16, #tpu.memory_space<vmem>>, vector<256x128xbf16>
    %cst_13 = arith.constant dense<0.000000e+00> : vector<16x128xf32>
    %21 = tpu.matmul %12, %20, %cst_13 {dimension_numbers = #tpu.dot_dimension_numbers<[1], [0], [0], [1], [0, 0, 1, 1], [], []>} : vector<16x256xbf16>, vector<256x128xbf16>, vector<16x128xf32> -> vector<16x128xf32>
    %c0_14 = arith.constant 0 : index
    %c0_15 = arith.constant 0 : index
    %22 = vector.load %arg7[%c0_14, %c0_15] : memref<1x128xf32, #tpu.memory_space<vmem>>, vector<1x128xf32>
    %23 = vector.broadcast %22 : vector<1x128xf32> to vector<16x128xf32>
    %24 = arith.addf %21, %23 : vector<16x128xf32>
    %c0_16 = arith.constant 0 : index
    %c0_17 = arith.constant 0 : index
    %25 = vector.load %arg8[%c0_16, %c0_17] : memref<256x128xbf16, #tpu.memory_space<vmem>>, vector<256x128xbf16>
    %cst_18 = arith.constant dense<0.000000e+00> : vector<16x128xf32>
    %26 = tpu.matmul %14, %25, %cst_18 {dimension_numbers = #tpu.dot_dimension_numbers<[1], [0], [0], [1], [0, 0, 1, 1], [], []>} : vector<16x256xbf16>, vector<256x128xbf16>, vector<16x128xf32> -> vector<16x128xf32>
    %c0_19 = arith.constant 0 : index
    %c0_20 = arith.constant 0 : index
    %27 = vector.load %arg9[%c0_19, %c0_20] : memref<1x128xf32, #tpu.memory_space<vmem>>, vector<1x128xf32>
    %28 = vector.broadcast %27 : vector<1x128xf32> to vector<16x128xf32>
    %29 = arith.addf %26, %28 : vector<16x128xf32>
    %c0_21 = arith.constant 0 : index
    %c0_22 = arith.constant 0 : index
    %30 = vector.load %arg10[%c0_21, %c0_22] : memref<16x128xf32, #tpu.memory_space<vmem>>, vector<16x128xf32>
    tpu.vector_store %arg10[%c0_21, %c0_22], %19 {strides = array<i32>} : memref<16x128xf32, #tpu.memory_space<vmem>>, vector<16x128xf32>,
    %31 = arith.truncf %24 : vector<16x128xf32> to vector<16x128xbf16>
    %c0_23 = arith.constant 0 : index
    %c0_24 = arith.constant 0 : index
    %32 = vector.load %arg11[%c0_23, %c0_24] : memref<16x128xbf16, #tpu.memory_space<vmem>>, vector<16x128xbf16>
    tpu.vector_store %arg11[%c0_23, %c0_24], %31 {strides = array<i32>} : memref<16x128xbf16, #tpu.memory_space<vmem>>, vector<16x128xbf16>,
    %33 = arith.truncf %29 : vector<16x128xf32> to vector<16x128xbf16>
    %c0_25 = arith.constant 0 : index
    %c0_26 = arith.constant 0 : index
    %34 = vector.load %arg12[%c0_25, %c0_26] : memref<16x128xbf16, #tpu.memory_space<vmem>>, vector<16x128xbf16>
    tpu.vector_store %arg12[%c0_25, %c0_26], %33 {strides = array<i32>} : memref<16x128xbf16, #tpu.memory_space<vmem>>, vector<16x128xbf16>,
    return
  }
  func.func @transform_0(%arg0: i32) -> (i32, i32) {
    %c0_i32 = arith.constant 0 : i32
    %c0_i32_0 = arith.constant 0 : i32
    return %arg0, %c0_i32 : i32, i32
  }
  func.func @transform_1(%arg0: i32) -> (i32, i32) {
    %c0_i32 = arith.constant 0 : i32
    %c0_i32_0 = arith.constant 0 : i32
    %c0_i32_1 = arith.constant 0 : i32
    return %c0_i32, %c0_i32_0 : i32, i32
  }
  func.func @transform_2(%arg0: i32) -> (i32, i32) {
    %c0_i32 = arith.constant 0 : i32
    %c0_i32_0 = arith.constant 0 : i32
    %c0_i32_1 = arith.constant 0 : i32
    return %c0_i32, %c0_i32_0 : i32, i32
  }
  func.func @transform_3(%arg0: i32) -> (i32, i32) {
    %c0_i32 = arith.constant 0 : i32
    %c0_i32_0 = arith.constant 0 : i32
    %c0_i32_1 = arith.constant 0 : i32
    return %c0_i32, %c0_i32_0 : i32, i32
  }
  func.func @transform_4(%arg0: i32) -> (i32, i32) {
    %c0_i32 = arith.constant 0 : i32
    %c0_i32_0 = arith.constant 0 : i32
    %c0_i32_1 = arith.constant 0 : i32
    return %c0_i32, %c0_i32_0 : i32, i32
  }
  func.func @transform_5(%arg0: i32) -> (i32, i32) {
    %c0_i32 = arith.constant 0 : i32
    %c0_i32_0 = arith.constant 0 : i32
    %c0_i32_1 = arith.constant 0 : i32
    return %c0_i32, %c0_i32_0 : i32, i32
  }
  func.func @transform_6(%arg0: i32) -> (i32, i32) {
    %c0_i32 = arith.constant 0 : i32
    %c0_i32_0 = arith.constant 0 : i32
    %c0_i32_1 = arith.constant 0 : i32
    return %c0_i32, %c0_i32_0 : i32, i32
  }
  func.func @transform_7(%arg0: i32) -> (i32, i32) {
    %c0_i32 = arith.constant 0 : i32
    %c0_i32_0 = arith.constant 0 : i32
    %c0_i32_1 = arith.constant 0 : i32
    return %c0_i32, %c0_i32_0 : i32, i32
  }
  func.func @transform_8(%arg0: i32) -> (i32, i32) {
    %c0_i32 = arith.constant 0 : i32
    %c0_i32_0 = arith.constant 0 : i32
    %c0_i32_1 = arith.constant 0 : i32
    return %c0_i32, %c0_i32_0 : i32, i32
  }
  func.func @transform_9(%arg0: i32) -> (i32, i32) {
    %c0_i32 = arith.constant 0 : i32
    %c0_i32_0 = arith.constant 0 : i32
    return %arg0, %c0_i32 : i32, i32
  }
  func.func @transform_10(%arg0: i32) -> (i32, i32) {
    %c0_i32 = arith.constant 0 : i32
    %c0_i32_0 = arith.constant 0 : i32
    return %arg0, %c0_i32 : i32, i32
  }
  func.func @transform_11(%arg0: i32) -> (i32, i32) {
    %c0_i32 = arith.constant 0 : i32
    %c0_i32_0 = arith.constant 0 : i32
    return %arg0, %c0_i32 : i32, i32
  }
}

module attributes {stable_mosaic.version = 11 : i64} {
  func.func @_attn_block_kernel(%arg0: i32, %arg1: i32, %arg2: memref<1x8x128xf32, #tpu.memory_space<vmem>>, %arg3: memref<1x8x4x128xbf16, #tpu.memory_space<vmem>>, %arg4: memref<1x8x4x128xbf16, #tpu.memory_space<vmem>>, %arg5: memref<1x8x4x2xf32, #tpu.memory_space<vmem>>, %arg6: memref<2x128xf32, #tpu.memory_space<vmem>>, %arg7: memref<1x128xf32, #tpu.memory_space<vmem>>, %arg8: memref<128x128xbf16, #tpu.memory_space<vmem>>, %arg9: memref<1x128xf32, #tpu.memory_space<vmem>>, %arg10: memref<128x256xbf16, #tpu.memory_space<vmem>>, %arg11: memref<1x256xf32, #tpu.memory_space<vmem>>, %arg12: memref<256x128xbf16, #tpu.memory_space<vmem>>, %arg13: memref<1x128xf32, #tpu.memory_space<vmem>>, %arg14: memref<1x128xf32, #tpu.memory_space<vmem>>, %arg15: memref<1x128xf32, #tpu.memory_space<vmem>>, %arg16: memref<1x8x128xf32, #tpu.memory_space<vmem>>) attributes {dimension_semantics = [#tpu.dimension_semantics<parallel>, #tpu.dimension_semantics<parallel>], iteration_bounds = array<i64: 2, 1>, scalar_prefetch = 0 : i64, scratch_operands = 0 : i64, tpu.core_type = #tpu.core_type<tc>, window_params = [{transform_indices = @transform_0, window_bounds = array<i64: 1, 8, 128>}, {transform_indices = @transform_1, window_bounds = array<i64: 1, 8, 4, 128>}, {transform_indices = @transform_2, window_bounds = array<i64: 1, 8, 4, 128>}, {transform_indices = @transform_3, window_bounds = array<i64: 1, 8, 4, 2>}, {pipeline_mode = #tpu.pipeline_mode<synchronous>, transform_indices = @transform_4, window_bounds = array<i64: 2, 128>}, {pipeline_mode = #tpu.pipeline_mode<synchronous>, transform_indices = @transform_5, window_bounds = array<i64: 1, 128>}, {pipeline_mode = #tpu.pipeline_mode<synchronous>, transform_indices = @transform_6, window_bounds = array<i64: 128, 128>}, {pipeline_mode = #tpu.pipeline_mode<synchronous>, transform_indices = @transform_7, window_bounds = array<i64: 1, 128>}, {pipeline_mode = #tpu.pipeline_mode<synchronous>, transform_indices = @transform_8, window_bounds = array<i64: 128, 256>}, {pipeline_mode = #tpu.pipeline_mode<synchronous>, transform_indices = @transform_9, window_bounds = array<i64: 1, 256>}, {pipeline_mode = #tpu.pipeline_mode<synchronous>, transform_indices = @transform_10, window_bounds = array<i64: 256, 128>}, {pipeline_mode = #tpu.pipeline_mode<synchronous>, transform_indices = @transform_11, window_bounds = array<i64: 1, 128>}, {pipeline_mode = #tpu.pipeline_mode<synchronous>, transform_indices = @transform_12, window_bounds = array<i64: 1, 128>}, {pipeline_mode = #tpu.pipeline_mode<synchronous>, transform_indices = @transform_13, window_bounds = array<i64: 1, 128>}, {transform_indices = @transform_14, window_bounds = array<i64: 1, 8, 128>}]} {
    %c0 = arith.constant 0 : index
    %c0_0 = arith.constant 0 : index
    %c0_1 = arith.constant 0 : index
    %0 = vector.load %arg2[%c0, %c0_0, %c0_1] : memref<1x8x128xf32, #tpu.memory_space<vmem>>, vector<1x8x128xf32>
    %1 = vector.shape_cast %0 : vector<1x8x128xf32> to vector<8x128xf32>
    %c0_2 = arith.constant 0 : index
    %c0_3 = arith.constant 0 : index
    %2 = vector.load %arg6[%c0_2, %c0_3] : memref<2x128xf32, #tpu.memory_space<vmem>>, vector<2x128xf32>
    %3 = vector.extract_strided_slice %2 {offsets = [0, 0], sizes = [1, 128], strides = [1, 1]} : vector<2x128xf32> to vector<1x128xf32>
    %4 = vector.shape_cast %3 : vector<1x128xf32> to vector<1x1x128xf32>
    %5 = vector.extract_strided_slice %2 {offsets = [1, 0], sizes = [1, 128], strides = [1, 1]} : vector<2x128xf32> to vector<1x128xf32>
    %6 = vector.shape_cast %5 : vector<1x128xf32> to vector<1x1x128xf32>
    %c0_4 = arith.constant 0 : index
    %c0_5 = arith.constant 0 : index
    %7 = vector.load %arg7[%c0_4, %c0_5] : memref<1x128xf32, #tpu.memory_space<vmem>>, vector<1x128xf32>
    %8 = vector.shape_cast %7 : vector<1x128xf32> to vector<1x1x128xf32>
    %c0_6 = arith.constant 0 : index
    %c0_7 = arith.constant 0 : index
    %9 = vector.load %arg8[%c0_6, %c0_7] : memref<128x128xbf16, #tpu.memory_space<vmem>>, vector<128x128xbf16>
    %c0_8 = arith.constant 0 : index
    %c0_9 = arith.constant 0 : index
    %10 = vector.load %arg9[%c0_8, %c0_9] : memref<1x128xf32, #tpu.memory_space<vmem>>, vector<1x128xf32>
    %c0_10 = arith.constant 0 : index
    %c0_11 = arith.constant 0 : index
    %c0_12 = arith.constant 0 : index
    %c0_13 = arith.constant 0 : index
    %11 = vector.load %arg3[%c0_10, %c0_11, %c0_12, %c0_13] : memref<1x8x4x128xbf16, #tpu.memory_space<vmem>>, vector<1x8x4x128xbf16>
    %12 = vector.shape_cast %11 : vector<1x8x4x128xbf16> to vector<8x4x128xbf16>
    %13 = arith.extf %12 : vector<8x4x128xbf16> to vector<8x4x128xf32>
    %c0_14 = arith.constant 0 : index
    %c0_15 = arith.constant 0 : index
    %c0_16 = arith.constant 0 : index
    %c0_17 = arith.constant 0 : index
    %14 = vector.load %arg4[%c0_14, %c0_15, %c0_16, %c0_17] : memref<1x8x4x128xbf16, #tpu.memory_space<vmem>>, vector<1x8x4x128xbf16>
    %15 = vector.shape_cast %14 : vector<1x8x4x128xbf16> to vector<8x4x128xbf16>
    %16 = arith.extf %15 : vector<8x4x128xbf16> to vector<8x4x128xf32>
    %c0_18 = arith.constant 0 : index
    %c0_19 = arith.constant 0 : index
    %c0_20 = arith.constant 0 : index
    %c0_21 = arith.constant 0 : index
    %17 = vector.load %arg5[%c0_18, %c0_19, %c0_20, %c0_21] : memref<1x8x4x2xf32, #tpu.memory_space<vmem>>, vector<1x8x4x2xf32>
    %18 = vector.shape_cast %17 : vector<1x8x4x2xf32> to vector<8x4x2xf32>
    %19 = vector.extract_strided_slice %18 {offsets = [0, 0, 0], sizes = [8, 4, 1], strides = [1, 1, 1]} : vector<8x4x2xf32> to vector<8x4x1xf32>
    %20 = vector.broadcast %19 : vector<8x4x1xf32> to vector<8x4x128xf32>
    %21 = vector.broadcast %4 : vector<1x1x128xf32> to vector<8x4x128xf32>
    %22 = arith.mulf %20, %21 : vector<8x4x128xf32>
    %23 = vector.extract_strided_slice %18 {offsets = [0, 0, 1], sizes = [8, 4, 1], strides = [1, 1, 1]} : vector<8x4x2xf32> to vector<8x4x1xf32>
    %24 = vector.broadcast %23 : vector<8x4x1xf32> to vector<8x4x128xf32>
    %25 = vector.broadcast %6 : vector<1x1x128xf32> to vector<8x4x128xf32>
    %26 = arith.mulf %24, %25 : vector<8x4x128xf32>
    %27 = arith.addf %22, %26 : vector<8x4x128xf32>
    %28 = vector.broadcast %8 : vector<1x1x128xf32> to vector<8x4x128xf32>
    %29 = arith.addf %27, %28 : vector<8x4x128xf32>
    %cst = arith.constant 0.000000e+00 : f32
    %30 = vector.broadcast %cst : f32 to vector<8x4x128xf32>
    %31 = arith.maximumf %29, %30 : vector<8x4x128xf32>
    %32 = vector.shape_cast %31 : vector<8x4x128xf32> to vector<32x128xf32>
    %33 = arith.truncf %32 : vector<32x128xf32> to vector<32x128xbf16>
    %cst_22 = arith.constant dense<0.000000e+00> : vector<32x128xf32>
    %34 = tpu.matmul %33, %9, %cst_22 {dimension_numbers = #tpu.dot_dimension_numbers<[1], [0], [0], [1], [0, 0, 1, 1], [], []>} : vector<32x128xbf16>, vector<128x128xbf16>, vector<32x128xf32> -> vector<32x128xf32>
    %35 = vector.broadcast %10 : vector<1x128xf32> to vector<32x128xf32>
    %36 = arith.addf %34, %35 : vector<32x128xf32>
    %37 = vector.shape_cast %36 : vector<32x128xf32> to vector<8x4x128xf32>
    %38 = arith.addf %13, %37 : vector<8x4x128xf32>
    %39 = arith.addf %16, %37 : vector<8x4x128xf32>
    %40 = vector.shape_cast %1 : vector<8x128xf32> to vector<8x1x128xf32>
    %41 = vector.broadcast %40 : vector<8x1x128xf32> to vector<8x4x128xf32>
    %42 = arith.mulf %41, %38 : vector<8x4x128xf32>
    %cst_23 = arith.constant dense<0.000000e+00> : vector<8x4xf32>
    %43 = vector.multi_reduction <add>, %42, %cst_23 [2] : vector<8x4x128xf32> to vector<8x4xf32>
    %cst_24 = arith.constant 0.0883883461 : f32
    %44 = vector.broadcast %cst_24 : f32 to vector<8x4xf32>
    %45 = arith.mulf %43, %44 : vector<8x4xf32>
    %cst_25 = arith.constant dense<0xFF800000> : vector<8xf32>
    %46 = vector.multi_reduction <maximumf>, %45, %cst_25 [1] : vector<8x4xf32> to vector<8xf32>
    %47 = vector.shape_cast %46 : vector<8xf32> to vector<8x1xf32>
    %48 = vector.broadcast %47 : vector<8x1xf32> to vector<8x4xf32>
    %49 = arith.subf %45, %48 : vector<8x4xf32>
    %50 = math.exp %49 : vector<8x4xf32>
    %cst_26 = arith.constant dense<0.000000e+00> : vector<8xf32>
    %51 = vector.multi_reduction <add>, %50, %cst_26 [1] : vector<8x4xf32> to vector<8xf32>
    %52 = vector.shape_cast %51 : vector<8xf32> to vector<8x1xf32>
    %53 = vector.extract_strided_slice %50 {offsets = [0, 0], sizes = [8, 1], strides = [1, 1]} : vector<8x4xf32> to vector<8x1xf32>
    %54 = vector.extract_strided_slice %39 {offsets = [0, 0, 0], sizes = [8, 1, 128], strides = [1, 1, 1]} : vector<8x4x128xf32> to vector<8x1x128xf32>
    %55 = vector.shape_cast %54 : vector<8x1x128xf32> to vector<8x128xf32>
    %56 = vector.broadcast %53 : vector<8x1xf32> to vector<8x128xf32>
    %57 = arith.mulf %56, %55 : vector<8x128xf32>
    %58 = vector.extract_strided_slice %50 {offsets = [0, 1], sizes = [8, 1], strides = [1, 1]} : vector<8x4xf32> to vector<8x1xf32>
    %59 = vector.extract_strided_slice %39 {offsets = [0, 1, 0], sizes = [8, 1, 128], strides = [1, 1, 1]} : vector<8x4x128xf32> to vector<8x1x128xf32>
    %60 = vector.shape_cast %59 : vector<8x1x128xf32> to vector<8x128xf32>
    %61 = vector.broadcast %58 : vector<8x1xf32> to vector<8x128xf32>
    %62 = arith.mulf %61, %60 : vector<8x128xf32>
    %63 = arith.addf %57, %62 : vector<8x128xf32>
    %64 = vector.extract_strided_slice %50 {offsets = [0, 2], sizes = [8, 1], strides = [1, 1]} : vector<8x4xf32> to vector<8x1xf32>
    %65 = vector.extract_strided_slice %39 {offsets = [0, 2, 0], sizes = [8, 1, 128], strides = [1, 1, 1]} : vector<8x4x128xf32> to vector<8x1x128xf32>
    %66 = vector.shape_cast %65 : vector<8x1x128xf32> to vector<8x128xf32>
    %67 = vector.broadcast %64 : vector<8x1xf32> to vector<8x128xf32>
    %68 = arith.mulf %67, %66 : vector<8x128xf32>
    %69 = arith.addf %63, %68 : vector<8x128xf32>
    %70 = vector.extract_strided_slice %50 {offsets = [0, 3], sizes = [8, 1], strides = [1, 1]} : vector<8x4xf32> to vector<8x1xf32>
    %71 = vector.extract_strided_slice %39 {offsets = [0, 3, 0], sizes = [8, 1, 128], strides = [1, 1, 1]} : vector<8x4x128xf32> to vector<8x1x128xf32>
    %72 = vector.shape_cast %71 : vector<8x1x128xf32> to vector<8x128xf32>
    %73 = vector.broadcast %70 : vector<8x1xf32> to vector<8x128xf32>
    %74 = arith.mulf %73, %72 : vector<8x128xf32>
    %75 = arith.addf %69, %74 : vector<8x128xf32>
    %76 = tpu.reciprocal %52 : vector<8x1xf32> -> vector<8x1xf32>
    %77 = vector.broadcast %76 : vector<8x1xf32> to vector<8x128xf32>
    %78 = arith.mulf %75, %77 : vector<8x128xf32>
    %79 = arith.truncf %78 : vector<8x128xf32> to vector<8x128xbf16>
    %c0_27 = arith.constant 0 : index
    %c0_28 = arith.constant 0 : index
    %80 = vector.load %arg10[%c0_27, %c0_28] : memref<128x256xbf16, #tpu.memory_space<vmem>>, vector<128x256xbf16>
    %cst_29 = arith.constant dense<0.000000e+00> : vector<8x256xf32>
    %81 = tpu.matmul %79, %80, %cst_29 {dimension_numbers = #tpu.dot_dimension_numbers<[1], [0], [0], [1], [0, 0, 1, 1], [], []>} : vector<8x128xbf16>, vector<128x256xbf16>, vector<8x256xf32> -> vector<8x256xf32>
    %c0_30 = arith.constant 0 : index
    %c0_31 = arith.constant 0 : index
    %82 = vector.load %arg11[%c0_30, %c0_31] : memref<1x256xf32, #tpu.memory_space<vmem>>, vector<1x256xf32>
    %83 = vector.broadcast %82 : vector<1x256xf32> to vector<8x256xf32>
    %84 = arith.addf %81, %83 : vector<8x256xf32>
    %cst_32 = arith.constant 0.000000e+00 : f32
    %85 = vector.broadcast %cst_32 : f32 to vector<8x256xf32>
    %86 = arith.maximumf %84, %85 : vector<8x256xf32>
    %87 = arith.truncf %86 : vector<8x256xf32> to vector<8x256xbf16>
    %c0_33 = arith.constant 0 : index
    %c0_34 = arith.constant 0 : index
    %88 = vector.load %arg12[%c0_33, %c0_34] : memref<256x128xbf16, #tpu.memory_space<vmem>>, vector<256x128xbf16>
    %cst_35 = arith.constant dense<0.000000e+00> : vector<8x128xf32>
    %89 = tpu.matmul %87, %88, %cst_35 {dimension_numbers = #tpu.dot_dimension_numbers<[1], [0], [0], [1], [0, 0, 1, 1], [], []>} : vector<8x256xbf16>, vector<256x128xbf16>, vector<8x128xf32> -> vector<8x128xf32>
    %c0_36 = arith.constant 0 : index
    %c0_37 = arith.constant 0 : index
    %90 = vector.load %arg13[%c0_36, %c0_37] : memref<1x128xf32, #tpu.memory_space<vmem>>, vector<1x128xf32>
    %91 = vector.broadcast %90 : vector<1x128xf32> to vector<8x128xf32>
    %92 = arith.addf %89, %91 : vector<8x128xf32>
    %93 = arith.addf %92, %1 : vector<8x128xf32>
    %cst_38 = arith.constant dense<0.000000e+00> : vector<8xf32>
    %94 = vector.multi_reduction <add>, %93, %cst_38 [1] : vector<8x128xf32> to vector<8xf32>
    %95 = vector.shape_cast %94 : vector<8xf32> to vector<8x1xf32>
    %cst_39 = arith.constant 1.280000e+02 : f32
    %96 = vector.broadcast %cst_39 : f32 to vector<8x1xf32>
    %97 = arith.divf %95, %96 : vector<8x1xf32>
    %98 = vector.broadcast %97 : vector<8x1xf32> to vector<8x128xf32>
    %99 = arith.subf %93, %98 : vector<8x128xf32>
    %100 = arith.mulf %99, %99 : vector<8x128xf32>
    %cst_40 = arith.constant dense<0.000000e+00> : vector<8xf32>
    %101 = vector.multi_reduction <add>, %100, %cst_40 [1] : vector<8x128xf32> to vector<8xf32>
    %102 = vector.shape_cast %101 : vector<8xf32> to vector<8x1xf32>
    %cst_41 = arith.constant 1.280000e+02 : f32
    %103 = vector.broadcast %cst_41 : f32 to vector<8x1xf32>
    %104 = arith.divf %102, %103 : vector<8x1xf32>
    %105 = vector.broadcast %97 : vector<8x1xf32> to vector<8x128xf32>
    %106 = arith.subf %93, %105 : vector<8x128xf32>
    %cst_42 = arith.constant 9.99999997E-7 : f32
    %107 = vector.broadcast %cst_42 : f32 to vector<8x1xf32>
    %108 = arith.addf %104, %107 : vector<8x1xf32>
    %109 = math.rsqrt %108 : vector<8x1xf32>
    %110 = vector.broadcast %109 : vector<8x1xf32> to vector<8x128xf32>
    %111 = arith.mulf %106, %110 : vector<8x128xf32>
    %c0_43 = arith.constant 0 : index
    %c0_44 = arith.constant 0 : index
    %112 = vector.load %arg14[%c0_43, %c0_44] : memref<1x128xf32, #tpu.memory_space<vmem>>, vector<1x128xf32>
    %113 = vector.broadcast %112 : vector<1x128xf32> to vector<8x128xf32>
    %114 = arith.mulf %111, %113 : vector<8x128xf32>
    %c0_45 = arith.constant 0 : index
    %c0_46 = arith.constant 0 : index
    %115 = vector.load %arg15[%c0_45, %c0_46] : memref<1x128xf32, #tpu.memory_space<vmem>>, vector<1x128xf32>
    %116 = vector.broadcast %115 : vector<1x128xf32> to vector<8x128xf32>
    %117 = arith.addf %114, %116 : vector<8x128xf32>
    %c0_47 = arith.constant 0 : index
    %c0_48 = arith.constant 0 : index
    %c0_49 = arith.constant 0 : index
    %118 = vector.load %arg16[%c0_47, %c0_48, %c0_49] : memref<1x8x128xf32, #tpu.memory_space<vmem>>, vector<1x8x128xf32>
    %119 = vector.shape_cast %118 : vector<1x8x128xf32> to vector<8x128xf32>
    %120 = vector.shape_cast %117 : vector<8x128xf32> to vector<1x8x128xf32>
    tpu.vector_store %arg16[%c0_47, %c0_48, %c0_49], %120 {strides = array<i32>} : memref<1x8x128xf32, #tpu.memory_space<vmem>>, vector<1x8x128xf32>,
    return
  }
  func.func @transform_0(%arg0: i32, %arg1: i32) -> (i32, i32, i32) {
    %c0_i32 = arith.constant 0 : i32
    %c0_i32_0 = arith.constant 0 : i32
    return %arg0, %arg1, %c0_i32 : i32, i32, i32
  }
  func.func @transform_1(%arg0: i32, %arg1: i32) -> (i32, i32, i32, i32) {
    %c0_i32 = arith.constant 0 : i32
    %c0_i32_0 = arith.constant 0 : i32
    %c0_i32_1 = arith.constant 0 : i32
    return %arg0, %arg1, %c0_i32, %c0_i32_0 : i32, i32, i32, i32
  }
  func.func @transform_2(%arg0: i32, %arg1: i32) -> (i32, i32, i32, i32) {
    %c0_i32 = arith.constant 0 : i32
    %c0_i32_0 = arith.constant 0 : i32
    %c0_i32_1 = arith.constant 0 : i32
    return %arg0, %arg1, %c0_i32, %c0_i32_0 : i32, i32, i32, i32
  }
  func.func @transform_3(%arg0: i32, %arg1: i32) -> (i32, i32, i32, i32) {
    %c0_i32 = arith.constant 0 : i32
    %c0_i32_0 = arith.constant 0 : i32
    %c0_i32_1 = arith.constant 0 : i32
    return %arg0, %arg1, %c0_i32, %c0_i32_0 : i32, i32, i32, i32
  }
  func.func @transform_4(%arg0: i32, %arg1: i32) -> (i32, i32) {
    %c0_i32 = arith.constant 0 : i32
    %c0_i32_0 = arith.constant 0 : i32
    %c0_i32_1 = arith.constant 0 : i32
    return %c0_i32, %c0_i32_0 : i32, i32
  }
  func.func @transform_5(%arg0: i32, %arg1: i32) -> (i32, i32) {
    %c0_i32 = arith.constant 0 : i32
    %c0_i32_0 = arith.constant 0 : i32
    %c0_i32_1 = arith.constant 0 : i32
    return %c0_i32, %c0_i32_0 : i32, i32
  }
  func.func @transform_6(%arg0: i32, %arg1: i32) -> (i32, i32) {
    %c0_i32 = arith.constant 0 : i32
    %c0_i32_0 = arith.constant 0 : i32
    %c0_i32_1 = arith.constant 0 : i32
    return %c0_i32, %c0_i32_0 : i32, i32
  }
  func.func @transform_7(%arg0: i32, %arg1: i32) -> (i32, i32) {
    %c0_i32 = arith.constant 0 : i32
    %c0_i32_0 = arith.constant 0 : i32
    %c0_i32_1 = arith.constant 0 : i32
    return %c0_i32, %c0_i32_0 : i32, i32
  }
  func.func @transform_8(%arg0: i32, %arg1: i32) -> (i32, i32) {
    %c0_i32 = arith.constant 0 : i32
    %c0_i32_0 = arith.constant 0 : i32
    %c0_i32_1 = arith.constant 0 : i32
    return %c0_i32, %c0_i32_0 : i32, i32
  }
  func.func @transform_9(%arg0: i32, %arg1: i32) -> (i32, i32) {
    %c0_i32 = arith.constant 0 : i32
    %c0_i32_0 = arith.constant 0 : i32
    %c0_i32_1 = arith.constant 0 : i32
    return %c0_i32, %c0_i32_0 : i32, i32
  }
  func.func @transform_10(%arg0: i32, %arg1: i32) -> (i32, i32) {
    %c0_i32 = arith.constant 0 : i32
    %c0_i32_0 = arith.constant 0 : i32
    %c0_i32_1 = arith.constant 0 : i32
    return %c0_i32, %c0_i32_0 : i32, i32
  }
  func.func @transform_11(%arg0: i32, %arg1: i32) -> (i32, i32) {
    %c0_i32 = arith.constant 0 : i32
    %c0_i32_0 = arith.constant 0 : i32
    %c0_i32_1 = arith.constant 0 : i32
    return %c0_i32, %c0_i32_0 : i32, i32
  }
  func.func @transform_12(%arg0: i32, %arg1: i32) -> (i32, i32) {
    %c0_i32 = arith.constant 0 : i32
    %c0_i32_0 = arith.constant 0 : i32
    %c0_i32_1 = arith.constant 0 : i32
    return %c0_i32, %c0_i32_0 : i32, i32
  }
  func.func @transform_13(%arg0: i32, %arg1: i32) -> (i32, i32) {
    %c0_i32 = arith.constant 0 : i32
    %c0_i32_0 = arith.constant 0 : i32
    %c0_i32_1 = arith.constant 0 : i32
    return %c0_i32, %c0_i32_0 : i32, i32
  }
  func.func @transform_14(%arg0: i32, %arg1: i32) -> (i32, i32, i32) {
    %c0_i32 = arith.constant 0 : i32
    %c0_i32_0 = arith.constant 0 : i32
    return %arg0, %arg1, %c0_i32 : i32, i32, i32
  }
}

module attributes {stable_mosaic.version = 11 : i64} {
  func.func @_mlp2_kernel(%arg0: i32, %arg1: memref<16x128xf32, #tpu.memory_space<vmem>>, %arg2: memref<128x256xf32, #tpu.memory_space<vmem>>, %arg3: memref<1x256xf32, #tpu.memory_space<vmem>>, %arg4: memref<256x128xf32, #tpu.memory_space<vmem>>, %arg5: memref<1x128xf32, #tpu.memory_space<vmem>>, %arg6: memref<16x128xf32, #tpu.memory_space<vmem>>) attributes {dimension_semantics = [#tpu.dimension_semantics<parallel>], iteration_bounds = array<i64: 1>, scalar_prefetch = 0 : i64, scratch_operands = 0 : i64, tpu.core_type = #tpu.core_type<tc>, window_params = [{transform_indices = @transform_0, window_bounds = array<i64: 16, 128>}, {pipeline_mode = #tpu.pipeline_mode<synchronous>, transform_indices = @transform_1, window_bounds = array<i64: 128, 256>}, {pipeline_mode = #tpu.pipeline_mode<synchronous>, transform_indices = @transform_2, window_bounds = array<i64: 1, 256>}, {pipeline_mode = #tpu.pipeline_mode<synchronous>, transform_indices = @transform_3, window_bounds = array<i64: 256, 128>}, {pipeline_mode = #tpu.pipeline_mode<synchronous>, transform_indices = @transform_4, window_bounds = array<i64: 1, 128>}, {transform_indices = @transform_5, window_bounds = array<i64: 16, 128>}]} {
    %c0 = arith.constant 0 : index
    %c0_0 = arith.constant 0 : index
    %0 = vector.load %arg1[%c0, %c0_0] : memref<16x128xf32, #tpu.memory_space<vmem>>, vector<16x128xf32>
    %c0_1 = arith.constant 0 : index
    %c0_2 = arith.constant 0 : index
    %1 = vector.load %arg2[%c0_1, %c0_2] : memref<128x256xf32, #tpu.memory_space<vmem>>, vector<128x256xf32>
    %cst = arith.constant dense<0.000000e+00> : vector<16x256xf32>
    %2 = tpu.matmul %0, %1, %cst {dimension_numbers = #tpu.dot_dimension_numbers<[1], [0], [0], [1], [0, 0, 1, 1], [], []>} : vector<16x128xf32>, vector<128x256xf32>, vector<16x256xf32> -> vector<16x256xf32>
    %c0_3 = arith.constant 0 : index
    %c0_4 = arith.constant 0 : index
    %3 = vector.load %arg3[%c0_3, %c0_4] : memref<1x256xf32, #tpu.memory_space<vmem>>, vector<1x256xf32>
    %4 = vector.broadcast %3 : vector<1x256xf32> to vector<16x256xf32>
    %5 = arith.addf %2, %4 : vector<16x256xf32>
    %cst_5 = arith.constant 0.000000e+00 : f32
    %6 = vector.broadcast %cst_5 : f32 to vector<16x256xf32>
    %7 = arith.maximumf %5, %6 : vector<16x256xf32>
    %c0_6 = arith.constant 0 : index
    %c0_7 = arith.constant 0 : index
    %8 = vector.load %arg4[%c0_6, %c0_7] : memref<256x128xf32, #tpu.memory_space<vmem>>, vector<256x128xf32>
    %cst_8 = arith.constant dense<0.000000e+00> : vector<16x128xf32>
    %9 = tpu.matmul %7, %8, %cst_8 {dimension_numbers = #tpu.dot_dimension_numbers<[1], [0], [0], [1], [0, 0, 1, 1], [], []>} : vector<16x256xf32>, vector<256x128xf32>, vector<16x128xf32> -> vector<16x128xf32>
    %c0_9 = arith.constant 0 : index
    %c0_10 = arith.constant 0 : index
    %10 = vector.load %arg5[%c0_9, %c0_10] : memref<1x128xf32, #tpu.memory_space<vmem>>, vector<1x128xf32>
    %11 = vector.broadcast %10 : vector<1x128xf32> to vector<16x128xf32>
    %12 = arith.addf %9, %11 : vector<16x128xf32>
    %c0_11 = arith.constant 0 : index
    %c0_12 = arith.constant 0 : index
    %13 = vector.load %arg6[%c0_11, %c0_12] : memref<16x128xf32, #tpu.memory_space<vmem>>, vector<16x128xf32>
    tpu.vector_store %arg6[%c0_11, %c0_12], %12 {strides = array<i32>} : memref<16x128xf32, #tpu.memory_space<vmem>>, vector<16x128xf32>,
    return
  }
  func.func @transform_0(%arg0: i32) -> (i32, i32) {
    %c0_i32 = arith.constant 0 : i32
    %c0_i32_0 = arith.constant 0 : i32
    return %arg0, %c0_i32 : i32, i32
  }
  func.func @transform_1(%arg0: i32) -> (i32, i32) {
    %c0_i32 = arith.constant 0 : i32
    %c0_i32_0 = arith.constant 0 : i32
    %c0_i32_1 = arith.constant 0 : i32
    return %c0_i32, %c0_i32_0 : i32, i32
  }
  func.func @transform_2(%arg0: i32) -> (i32, i32) {
    %c0_i32 = arith.constant 0 : i32
    %c0_i32_0 = arith.constant 0 : i32
    %c0_i32_1 = arith.constant 0 : i32
    return %c0_i32, %c0_i32_0 : i32, i32
  }
  func.func @transform_3(%arg0: i32) -> (i32, i32) {
    %c0_i32 = arith.constant 0 : i32
    %c0_i32_0 = arith.constant 0 : i32
    %c0_i32_1 = arith.constant 0 : i32
    return %c0_i32, %c0_i32_0 : i32, i32
  }
  func.func @transform_4(%arg0: i32) -> (i32, i32) {
    %c0_i32 = arith.constant 0 : i32
    %c0_i32_0 = arith.constant 0 : i32
    %c0_i32_1 = arith.constant 0 : i32
    return %c0_i32, %c0_i32_0 : i32, i32
  }
  func.func @transform_5(%arg0: i32) -> (i32, i32) {
    %c0_i32 = arith.constant 0 : i32
    %c0_i32_0 = arith.constant 0 : i32
    return %arg0, %c0_i32 : i32, i32
  }
}

</mosaic_0001>

<llo_original>
// kernel: fwd.8
$region0: #{fwd.8}
  #allocation0 [shape = 'u32[]', space=smem, size = 0x4, offset = 0x4, fixed_abs, tag = 'smem constant byte address 0x4 - core index']
  #allocation1 [shape = 'u32[144,128]{1,0:T(1,128)}', space=vmem, size = 0x12000, scoped, tag = 'internal scratch']
  %s0 = inlined_call_operand.vmem [shape: f32[16,128], index: 0, kind: input, shape index: {}]
  %s1 = inlined_call_operand.vmem [shape: f32[128,128], index: 1, kind: input, shape index: {}]
  %s2 = inlined_call_operand.vmem [shape: f32[1,128], index: 2, kind: input, shape index: {}]
  %s3 = inlined_call_operand.vmem [shape: f32[16,128], index: 3, kind: output, shape index: {}]
  %s4 = sld [smem:[#allocation0]]
  $region22: #{fwd.8} parent=0
    _
  %s6 = ssub.s32 1, %s4
  %s7 = scalar_select 0, %s6, %s4
  // Predicated region
  $region2: #{fwd.8} parent=0 // pred_check
    _
  $region3: #{fwd.8} parent=0 // pred_check_branch
    %9 = sbr.rel (0) target = $region5
  $region4: #{fwd.8} parent=0 // pred_region
    _
  $region5: #{fwd.8} parent=0 // pred_fallthru
    _
  // Predicated region
  $region6: #{fwd.8} parent=0 // pred_check
    _
  $region7: #{fwd.8} parent=0 // pred_check_branch
    %11 = sbr.rel (0) target = $region9
  $region8: #{fwd.8} parent=0 // pred_region
    _
  $region9: #{fwd.8} parent=0 // pred_fallthru
    _
  // Predicated region
  $region10: #{fwd.8} parent=0 // pred_check
    _
  $region11: #{fwd.8} parent=0 // pred_check_branch
    %13 = sbr.rel (0) target = $region13
  $region12: #{fwd.8} parent=0 // pred_region
    _
  $region13: #{fwd.8} parent=0 // pred_fallthru
    _
  %v14 = vld [vmem:[%s0] sm:$0xff]
  %v15 = vld [vmem:[%s0 + $0x8] sm:$0xff]
  %v16 = vld [vmem:[%s1] sm:$0xff]
  %v17 = vld [vmem:[%s1 + $0x8] sm:$0xff]
  %v18 = vld [vmem:[%s1 + $0x10] sm:$0xff]
  %v19 = vld [vmem:[%s1 + $0x18] sm:$0xff]
  %v20 = vld [vmem:[%s1 + $0x20] sm:$0xff]
  %v21 = vld [vmem:[%s1 + $0x28] sm:$0xff]
  %v22 = vld [vmem:[%s1 + $0x30] sm:$0xff]
  %v23 = vld [vmem:[%s1 + $0x38] sm:$0xff]
  %v24 = vld [vmem:[%s1 + $0x40] sm:$0xff]
  %v25 = vld [vmem:[%s1 + $0x48] sm:$0xff]
  %v26 = vld [vmem:[%s1 + $0x50] sm:$0xff]
  %v27 = vld [vmem:[%s1 + $0x58] sm:$0xff]
  %v28 = vld [vmem:[%s1 + $0x60] sm:$0xff]
  %v29 = vld [vmem:[%s1 + $0x68] sm:$0xff]
  %v30 = vld [vmem:[%s1 + $0x70] sm:$0xff]
  %v31 = vld [vmem:[%s1 + $0x78] sm:$0xff]
  %v32 = vld [vmem:[%s2] sm:$0x1]
  %v34 = vlaneseq
  %v35 = vshrl.u32 %v34, 7
  %v36 = vsub.s32 0, %v35
  %v37 = vrot.slane %v32, %v36
  %39 = vmatprep.subr.mxu0 0.0
  %40 = vmatpush1.msra.mxu0 %v31
  %41 = vmatprep.subr.mxu0 0.0
  %42 = vmatpush1.msra.mxu0 %v30
  %43 = vmatprep.subr.mxu0 0.0
  %44 = vmatpush1.msra.mxu0 %v29
  %45 = vmatprep.subr.mxu0 0.0
  %46 = vmatpush1.msra.mxu0 %v28
  %47 = vmatprep.subr.mxu0 0.0
  %48 = vmatpush1.msra.mxu0 %v27
  %49 = vmatprep.subr.mxu0 0.0
  %50 = vmatpush1.msra.mxu0 %v26
  %51 = vmatprep.subr.mxu0 0.0
  %52 = vmatpush1.msra.mxu0 %v25
  %53 = vmatprep.subr.mxu0 0.0
  %54 = vmatpush1.msra.mxu0 %v24
  %55 = vmatprep.subr.mxu0 0.0
  %56 = vmatpush1.msra.mxu0 %v23
  %57 = vmatprep.subr.mxu0 0.0
  %58 = vmatpush1.msra.mxu0 %v22
  %59 = vmatprep.subr.mxu0 0.0
  %60 = vmatpush1.msra.mxu0 %v21
  %61 = vmatprep.subr.mxu0 0.0
  %62 = vmatpush1.msra.mxu0 %v20
  %63 = vmatprep.subr.mxu0 0.0
  %64 = vmatpush1.msra.mxu0 %v19
  %65 = vmatprep.subr.mxu0 0.0
  %66 = vmatpush1.msra.mxu0 %v18
  %67 = vmatprep.subr.mxu0 0.0
  %68 = vmatpush1.msra.mxu0 %v17
  %69 = vmatprep.subr.mxu0 0.0
  %70 = vmatpush1.msra.mxu0 %v16
  %71 = vmatprep.subr.mxu0 0.0
  %72 = vmatpush2.msra.mxu0 0.0
  %73 = vmatprep.subr.mxu0 0.0
  %74 = vmatpush2.msra.mxu0 0.0
  %75 = vmatprep.subr.mxu0 0.0
  %76 = vmatpush2.msra.mxu0 0.0
  %77 = vmatprep.subr.mxu0 0.0
  %78 = vmatpush2.msra.mxu0 0.0
  %79 = vmatprep.subr.mxu0 0.0
  %80 = vmatpush2.msra.mxu0 0.0
  %81 = vmatprep.subr.mxu0 0.0
  %82 = vmatpush2.msra.mxu0 0.0
  %83 = vmatprep.subr.mxu0 0.0
  %84 = vmatpush2.msra.mxu0 0.0
  %85 = vmatprep.subr.mxu0 0.0
  %86 = vmatpush2.msra.mxu0 0.0
  %87 = vmatprep.subr.mxu0 0.0
  %88 = vmatpush2.msra.mxu0 0.0
  %89 = vmatprep.subr.mxu0 0.0
  %90 = vmatpush2.msra.mxu0 0.0
  %91 = vmatprep.subr.mxu0 0.0
  %92 = vmatpush2.msra.mxu0 0.0
  %93 = vmatprep.subr.mxu0 0.0
  %94 = vmatpush2.msra.mxu0 0.0
  %95 = vmatprep.subr.mxu0 0.0
  %96 = vmatpush2.msra.mxu0 0.0
  %97 = vmatprep.subr.mxu0 0.0
  %98 = vmatpush2.msra.mxu0 0.0
  %99 = vmatprep.subr.mxu0 0.0
  %100 = vmatpush2.msra.mxu0 0.0
  %101 = vmatprep.subr.mxu0 0.0
  %102 = vmatpush2.msra.mxu0 0.0
  %103 = vmatprep.mubr.f32.mxu0 0.0
  %104 = vmatmul.mubr.f32.gmra.mxu0 %v14
  %v105 = vpop.f32.mrf.mxu0
  %v106 = vadd.f32 %v37, %v105
  %v107 = vpop.f32.mrf.mxu0
  %108 = vmatprep.mubr.f32.mxu0 0.0
  %109 = vmatmul.mubr.f32.gmra.mxu0 %v15
  %v110 = vpop.f32.mrf.mxu0
  %v111 = vadd.f32 %v37, %v110
  %v112 = vpop.f32.mrf.mxu0
  %113 = vdwg.mxu0
  %114 = vst [vmem:[%s3] sm:$0xff] %v106
  %115 = vst [vmem:[%s3 + $0x8] sm:$0xff] %v111
  // Predicated region
  $region14: #{fwd.8} parent=0 // pred_check
    _
  $region15: #{fwd.8} parent=0 // pred_check_branch
    %117 = sbr.rel (0) target = $region17
  $region16: #{fwd.8} parent=0 // pred_region
    _
  $region17: #{fwd.8} parent=0 // pred_fallthru
    _
  // Predicated region
  $region18: #{fwd.8} parent=0 // pred_check
    _
  $region19: #{fwd.8} parent=0 // pred_check_branch
    %119 = sbr.rel (0) target = $region21
  $region20: #{fwd.8} parent=0 // pred_region
    _
  $region21: #{fwd.8} parent=0 // pred_fallthru
    _

// kernel: fwd.9
$region0: #{fwd.9}
  #allocation0 [shape = 'u32[]', space=smem, size = 0x4, offset = 0x4, fixed_abs, tag = 'smem constant byte address 0x4 - core index']
  #allocation1 [shape = 'u32[144,128]{1,0:T(1,128)}', space=vmem, size = 0x12000, scoped, tag = 'internal scratch']
  %s0 = inlined_call_operand.vmem [shape: f32[16,128], index: 0, kind: input, shape index: {}]
  %s1 = inlined_call_operand.vmem [shape: bf16[128,768], index: 1, kind: input, shape index: {}]
  %s2 = inlined_call_operand.vmem [shape: f32[1,768], index: 2, kind: input, shape index: {}]
  %s3 = inlined_call_operand.vmem [shape: bf16[256,128], index: 3, kind: input, shape index: {}]
  %s4 = inlined_call_operand.vmem [shape: f32[1,128], index: 4, kind: input, shape index: {}]
  %s5 = inlined_call_operand.vmem [shape: bf16[256,128], index: 5, kind: input, shape index: {}]
  %s6 = inlined_call_operand.vmem [shape: f32[1,128], index: 6, kind: input, shape index: {}]
  %s7 = inlined_call_operand.vmem [shape: bf16[256,128], index: 7, kind: input, shape index: {}]
  %s8 = inlined_call_operand.vmem [shape: f32[1,128], index: 8, kind: input, shape index: {}]
  %s9 = inlined_call_operand.vmem [shape: f32[16,128], index: 9, kind: output, shape index: {0}]
  %s10 = inlined_call_operand.vmem [shape: bf16[16,128], index: 10, kind: output, shape index: {1}]
  %s11 = inlined_call_operand.vmem [shape: bf16[16,128], index: 11, kind: output, shape index: {2}]
  %12 = xla_tuple %s9, %s10, %s11
  %s13 = sld [smem:[#allocation0]]
  $region62: #{fwd.9} parent=0
    _
  %s15 = ssub.s32 1, %s13
  %s16 = scalar_select 0, %s15, %s13
  // Predicated region
  $region2: #{fwd.9} parent=0 // pred_check
    _
  $region3: #{fwd.9} parent=0 // pred_check_branch
    %18 = sbr.rel (0) target = $region5
  $region4: #{fwd.9} parent=0 // pred_region
    _
  $region5: #{fwd.9} parent=0 // pred_fallthru
    _
  // Predicated region
  $region6: #{fwd.9} parent=0 // pred_check
    _
  $region7: #{fwd.9} parent=0 // pred_check_branch
    %20 = sbr.rel (0) target = $region9
  $region8: #{fwd.9} parent=0 // pred_region
    _
  $region9: #{fwd.9} parent=0 // pred_fallthru
    _
  // Predicated region
  $region10: #{fwd.9} parent=0 // pred_check
    _
  $region11: #{fwd.9} parent=0 // pred_check_branch
    %22 = sbr.rel (0) target = $region13
  $region12: #{fwd.9} parent=0 // pred_region
    _
  $region13: #{fwd.9} parent=0 // pred_fallthru
    _
  // Predicated region
  $region14: #{fwd.9} parent=0 // pred_check
    _
  $region15: #{fwd.9} parent=0 // pred_check_branch
    %24 = sbr.rel (0) target = $region17
  $region16: #{fwd.9} parent=0 // pred_region
    _
  $region17: #{fwd.9} parent=0 // pred_fallthru
    _
  // Predicated region
  $region18: #{fwd.9} parent=0 // pred_check
    _
  $region19: #{fwd.9} parent=0 // pred_check_branch
    %26 = sbr.rel (0) target = $region21
  $region20: #{fwd.9} parent=0 // pred_region
    _
  $region21: #{fwd.9} parent=0 // pred_fallthru
    _
  // Predicated region
  $region22: #{fwd.9} parent=0 // pred_check
    _
  $region23: #{fwd.9} parent=0 // pred_check_branch
    %28 = sbr.rel (0) target = $region25
  $region24: #{fwd.9} parent=0 // pred_region
    _
  $region25: #{fwd.9} parent=0 // pred_fallthru
    _
  // Predicated region
  $region26: #{fwd.9} parent=0 // pred_check
    _
  $region27: #{fwd.9} parent=0 // pred_check_branch
    %30 = sbr.rel (0) target = $region29
  $region28: #{fwd.9} parent=0 // pred_region
    _
  $region29: #{fwd.9} parent=0 // pred_fallthru
    _
  // Predicated region
  $region30: #{fwd.9} parent=0 // pred_check
    _
  $region31: #{fwd.9} parent=0 // pred_check_branch
    %32 = sbr.rel (0) target = $region33
  $region32: #{fwd.9} parent=0 // pred_region
    _
  $region33: #{fwd.9} parent=0 // pred_fallthru
    _
  // Predicated region
  $region34: #{fwd.9} parent=0 // pred_check
    _
  $region35: #{fwd.9} parent=0 // pred_check_branch
    %34 = sbr.rel (0) target = $region37
  $region36: #{fwd.9} parent=0 // pred_region
    _
  $region37: #{fwd.9} parent=0 // pred_fallthru
    _
  %v36 = vld [vmem:[%s0] sm:$0xff]
  %v37 = vld [vmem:[%s0 + $0x8] sm:$0xff]
  %v38 = vpack.c.bf16 %v37, %v36
  %v39 = vld [vmem:[%s1] sm:$0xff]
  %v40 = vld [vmem:[%s1 + $0x8] sm:$0xff]
  %v41 = vld [vmem:[%s1 + $0x10] sm:$0xff]
  %v42 = vld [vmem:[%s1 + $0x18] sm:$0xff]
  %v43 = vld [vmem:[%s1 + $0x20] sm:$0xff]
  %v44 = vld [vmem:[%s1 + $0x28] sm:$0xff]
  %v45 = vld [vmem:[%s1 + $0x30] sm:$0xff]
  %v46 = vld [vmem:[%s1 + $0x38] sm:$0xff]
  %v47 = vld [vmem:[%s1 + $0x40] sm:$0xff]
  %v48 = vld [vmem:[%s1 + $0x48] sm:$0xff]
  %v49 = vld [vmem:[%s1 + $0x50] sm:$0xff]
  %v50 = vld [vmem:[%s1 + $0x58] sm:$0xff]
  %v51 = vld [vmem:[%s1 + $0x60] sm:$0xff]
  %v52 = vld [vmem:[%s1 + $0x68] sm:$0xff]
  %v53 = vld [vmem:[%s1 + $0x70] sm:$0xff]
  %v54 = vld [vmem:[%s1 + $0x78] sm:$0xff]
  %v55 = vld [vmem:[%s1 + $0x80] sm:$0xff]
  %v56 = vld [vmem:[%s1 + $0x88] sm:$0xff]
  %v57 = vld [vmem:[%s1 + $0x90] sm:$0xff]
  %v58 = vld [vmem:[%s1 + $0x98] sm:$0xff]
  %v59 = vld [vmem:[%s1 + $0xa0] sm:$0xff]
  %v60 = vld [vmem:[%s1 + $0xa8] sm:$0xff]
  %v61 = vld [vmem:[%s1 + $0xb0] sm:$0xff]
  %v62 = vld [vmem:[%s1 + $0xb8] sm:$0xff]
  %v63 = vld [vmem:[%s1 + $0xc0] sm:$0xff]
  %v64 = vld [vmem:[%s1 + $0xc8] sm:$0xff]
  %v65 = vld [vmem:[%s1 + $0xd0] sm:$0xff]
  %v66 = vld [vmem:[%s1 + $0xd8] sm:$0xff]
  %v67 = vld [vmem:[%s1 + $0xe0] sm:$0xff]
  %v68 = vld [vmem:[%s1 + $0xe8] sm:$0xff]
  %v69 = vld [vmem:[%s1 + $0xf0] sm:$0xff]
  %v70 = vld [vmem:[%s1 + $0xf8] sm:$0xff]
  %v71 = vld [vmem:[%s1 + $0x100] sm:$0xff]
  %v72 = vld [vmem:[%s1 + $0x108] sm:$0xff]
  %v73 = vld [vmem:[%s1 + $0x110] sm:$0xff]
  %v74 = vld [vmem:[%s1 + $0x118] sm:$0xff]
  %v75 = vld [vmem:[%s1 + $0x120] sm:$0xff]
  %v76 = vld [vmem:[%s1 + $0x128] sm:$0xff]
  %v77 = vld [vmem:[%s1 + $0x130] sm:$0xff]
  %v78 = vld [vmem:[%s1 + $0x138] sm:$0xff]
  %v79 = vld [vmem:[%s1 + $0x140] sm:$0xff]
  %v80 = vld [vmem:[%s1 + $0x148] sm:$0xff]
  %v81 = vld [vmem:[%s1 + $0x150] sm:$0xff]
  %v82 = vld [vmem:[%s1 + $0x158] sm:$0xff]
  %v83 = vld [vmem:[%s1 + $0x160] sm:$0xff]
  %v84 = vld [vmem:[%s1 + $0x168] sm:$0xff]
  %v85 = vld [vmem:[%s1 + $0x170] sm:$0xff]
  %v86 = vld [vmem:[%s1 + $0x178] sm:$0xff]
  %v87 = vld [vmem:[%s2] sm:$0x3f]
  %v89 = vlaneseq
  %v90 = vshrl.u32 %v89, 7
  %v91 = vsub.s32 0, %v90
  %v92 = vrot.slane %v87, %v91
  %v93 = vlaneseq
  %v94 = vshrl.u32 %v93, 7
  %v95 = vsub.s32 1, %v94
  %v96 = vrot.slane %v87, %v95
  %v97 = vlaneseq
  %v98 = vshrl.u32 %v97, 7
  %v99 = vsub.s32 2, %v98
  %v100 = vrot.slane %v87, %v99
  %v101 = vlaneseq
  %v102 = vshrl.u32 %v101, 7
  %v103 = vsub.s32 3, %v102
  %v104 = vrot.slane %v87, %v103
  %v105 = vlaneseq
  %v106 = vshrl.u32 %v105, 7
  %v107 = vsub.s32 4, %v106
  %v108 = vrot.slane %v87, %v107
  %v109 = vlaneseq
  %v110 = vshrl.u32 %v109, 7
  %v111 = vsub.s32 5, %v110
  %v112 = vrot.slane %v87, %v111
  %v167 = vunpack.c.l.b16 %v39
  %v168 = vunpack.c.h.b16 %v39
  %v169 = vunpack.c.l.b16 %v40
  %v170 = vunpack.c.h.b16 %v40
  %v171 = vunpack.c.l.b16 %v41
  %v172 = vunpack.c.h.b16 %v41
  %v173 = vunpack.c.l.b16 %v42
  %v174 = vunpack.c.h.b16 %v42
  %v175 = vunpack.c.l.b16 %v43
  %v176 = vunpack.c.h.b16 %v43
  %v177 = vunpack.c.l.b16 %v44
  %v178 = vunpack.c.h.b16 %v44
  %v179 = vunpack.c.l.b16 %v45
  %v180 = vunpack.c.h.b16 %v45
  %v181 = vunpack.c.l.b16 %v46
  %v182 = vunpack.c.h.b16 %v46
  %v183 = vunpack.c.l.b16 %v47
  %v184 = vunpack.c.h.b16 %v47
  %v185 = vunpack.c.l.b16 %v48
  %v186 = vunpack.c.h.b16 %v48
  %v187 = vunpack.c.l.b16 %v49
  %v188 = vunpack.c.h.b16 %v49
  %v189 = vunpack.c.l.b16 %v50
  %v190 = vunpack.c.h.b16 %v50
  %v191 = vunpack.c.l.b16 %v51
  %v192 = vunpack.c.h.b16 %v51
  %v193 = vunpack.c.l.b16 %v52
  %v194 = vunpack.c.h.b16 %v52
  %v195 = vunpack.c.l.b16 %v53
  %v196 = vunpack.c.h.b16 %v53
  %v197 = vunpack.c.l.b16 %v54
  %v198 = vunpack.c.h.b16 %v54
  %v199 = vunpack.c.l.b16 %v55
  %v200 = vunpack.c.h.b16 %v55
  %v201 = vunpack.c.l.b16 %v56
  %v202 = vunpack.c.h.b16 %v56
  %v203 = vunpack.c.l.b16 %v57
  %v204 = vunpack.c.h.b16 %v57
  %v205 = vunpack.c.l.b16 %v58
  %v206 = vunpack.c.h.b16 %v58
  %v207 = vunpack.c.l.b16 %v59
  %v208 = vunpack.c.h.b16 %v59
  %v209 = vunpack.c.l.b16 %v60
  %v210 = vunpack.c.h.b16 %v60
  %v211 = vunpack.c.l.b16 %v61
  %v212 = vunpack.c.h.b16 %v61
  %v213 = vunpack.c.l.b16 %v62
  %v214 = vunpack.c.h.b16 %v62
  %v215 = vunpack.c.l.b16 %v63
  %v216 = vunpack.c.h.b16 %v63
  %v217 = vunpack.c.l.b16 %v64
  %v218 = vunpack.c.h.b16 %v64
  %v219 = vunpack.c.l.b16 %v65
  %v220 = vunpack.c.h.b16 %v65
  %v221 = vunpack.c.l.b16 %v66
  %v222 = vunpack.c.h.b16 %v66
  %v223 = vunpack.c.l.b16 %v67
  %v224 = vunpack.c.h.b16 %v67
  %v225 = vunpack.c.l.b16 %v68
  %v226 = vunpack.c.h.b16 %v68
  %v227 = vunpack.c.l.b16 %v69
  %v228 = vunpack.c.h.b16 %v69
  %v229 = vunpack.c.l.b16 %v70
  %v230 = vunpack.c.h.b16 %v70
  %v231 = vunpack.c.l.b16 %v71
  %v232 = vunpack.c.h.b16 %v71
  %v233 = vunpack.c.l.b16 %v72
  %v234 = vunpack.c.h.b16 %v72
  %v235 = vunpack.c.l.b16 %v73
  %v236 = vunpack.c.h.b16 %v73
  %v237 = vunpack.c.l.b16 %v74
  %v238 = vunpack.c.h.b16 %v74
  %v239 = vunpack.c.l.b16 %v75
  %v240 = vunpack.c.h.b16 %v75
  %v241 = vunpack.c.l.b16 %v76
  %v242 = vunpack.c.h.b16 %v76
  %v243 = vunpack.c.l.b16 %v77
  %v244 = vunpack.c.h.b16 %v77
  %v245 = vunpack.c.l.b16 %v78
  %v246 = vunpack.c.h.b16 %v78
  %v247 = vunpack.c.l.b16 %v79
  %v248 = vunpack.c.h.b16 %v79
  %v249 = vunpack.c.l.b16 %v80
  %v250 = vunpack.c.h.b16 %v80
  %v251 = vunpack.c.l.b16 %v81
  %v252 = vunpack.c.h.b16 %v81
  %v253 = vunpack.c.l.b16 %v82
  %v254 = vunpack.c.h.b16 %v82
  %v255 = vunpack.c.l.b16 %v83
  %v256 = vunpack.c.h.b16 %v83
  %v257 = vunpack.c.l.b16 %v84
  %v258 = vunpack.c.h.b16 %v84
  %v259 = vunpack.c.l.b16 %v85
  %v260 = vunpack.c.h.b16 %v85
  %v261 = vunpack.c.l.b16 %v86
  %v262 = vunpack.c.h.b16 %v86
  %v263 = vpack.c.b16 %v173, %v167
  %v264 = vpack.c.b16 %v174, %v168
  %v265 = vpack.c.b16 %v175, %v169
  %v266 = vpack.c.b16 %v176, %v170
  %v267 = vpack.c.b16 %v177, %v171
  %v268 = vpack.c.b16 %v178, %v172
  %v269 = vpack.c.b16 %v185, %v179
  %v270 = vpack.c.b16 %v186, %v180
  %v271 = vpack.c.b16 %v187, %v181
  %v272 = vpack.c.b16 %v188, %v182
  %v273 = vpack.c.b16 %v189, %v183
  %v274 = vpack.c.b16 %v190, %v184
  %v275 = vpack.c.b16 %v197, %v191
  %v276 = vpack.c.b16 %v198, %v192
  %v277 = vpack.c.b16 %v199, %v193
  %v278 = vpack.c.b16 %v200, %v194
  %v279 = vpack.c.b16 %v201, %v195
  %v280 = vpack.c.b16 %v202, %v196
  %v281 = vpack.c.b16 %v209, %v203
  %v282 = vpack.c.b16 %v210, %v204
  %v283 = vpack.c.b16 %v211, %v205
  %v284 = vpack.c.b16 %v212, %v206
  %v285 = vpack.c.b16 %v213, %v207
  %v286 = vpack.c.b16 %v214, %v208
  %v287 = vpack.c.b16 %v221, %v215
  %v288 = vpack.c.b16 %v222, %v216
  %v289 = vpack.c.b16 %v223, %v217
  %v290 = vpack.c.b16 %v224, %v218
  %v291 = vpack.c.b16 %v225, %v219
  %v292 = vpack.c.b16 %v226, %v220
  %v293 = vpack.c.b16 %v233, %v227
  %v294 = vpack.c.b16 %v234, %v228
  %v295 = vpack.c.b16 %v235, %v229
  %v296 = vpack.c.b16 %v236, %v230
  %v297 = vpack.c.b16 %v237, %v231
  %v298 = vpack.c.b16 %v238, %v232
  %v299 = vpack.c.b16 %v245, %v239
  %v300 = vpack.c.b16 %v246, %v240
  %v301 = vpack.c.b16 %v247, %v241
  %v302 = vpack.c.b16 %v248, %v242
  %v303 = vpack.c.b16 %v249, %v243
  %v304 = vpack.c.b16 %v250, %v244
  %v305 = vpack.c.b16 %v257, %v251
  %v306 = vpack.c.b16 %v258, %v252
  %v307 = vpack.c.b16 %v259, %v253
  %v308 = vpack.c.b16 %v260, %v254
  %v309 = vpack.c.b16 %v261, %v255
  %v310 = vpack.c.b16 %v262, %v256
  %359 = vmatprep.subr.bf16.mxu0 %v306
  %360 = vmatpush1.bf16.msra.mxu0 %v305
  %361 = vmatprep.subr.bf16.mxu0 %v300
  %362 = vmatpush1.bf16.msra.mxu0 %v299
  %363 = vmatprep.subr.bf16.mxu0 %v294
  %364 = vmatpush1.bf16.msra.mxu0 %v293
  %365 = vmatprep.subr.bf16.mxu0 %v288
  %366 = vmatpush1.bf16.msra.mxu0 %v287
  %367 = vmatprep.subr.bf16.mxu0 %v282
  %368 = vmatpush1.bf16.msra.mxu0 %v281
  %369 = vmatprep.subr.bf16.mxu0 %v276
  %370 = vmatpush1.bf16.msra.mxu0 %v275
  %371 = vmatprep.subr.bf16.mxu0 %v270
  %372 = vmatpush1.bf16.msra.mxu0 %v269
  %373 = vmatprep.subr.bf16.mxu0 %v264
  %374 = vmatpush1.bf16.msra.mxu0 %v263
  %375 = vmatprep.subr.bf16.mxu0 0
  %376 = vmatpush2.bf16.msra.mxu0 0
  %377 = vmatprep.subr.bf16.mxu0 0
  %378 = vmatpush2.bf16.msra.mxu0 0
  %379 = vmatprep.subr.bf16.mxu0 0
  %380 = vmatpush2.bf16.msra.mxu0 0
  %381 = vmatprep.subr.bf16.mxu0 0
  %382 = vmatpush2.bf16.msra.mxu0 0
  %383 = vmatprep.subr.bf16.mxu0 0
  %384 = vmatpush2.bf16.msra.mxu0 0
  %385 = vmatprep.subr.bf16.mxu0 0
  %386 = vmatpush2.bf16.msra.mxu0 0
  %387 = vmatprep.subr.bf16.mxu0 0
  %388 = vmatpush2.bf16.msra.mxu0 0
  %389 = vmatprep.subr.bf16.mxu0 0
  %390 = vmatpush2.bf16.msra.mxu0 0
  %391 = vmatprep.mubr.bf16.mxu0 0
  %392 = vmatmul.mubr.bf16.gmra.mxu0 %v38
  %v393 = vpop.f32.mrf.mxu0
  %v394 = vadd.f32 %v92, %v393
  %v395 = vpop.f32.mrf.mxu0
  %v396 = vadd.f32 %v96, %v395
  %v397 = vpop.f32.mrf.mxu0
  %v398 = vadd.f32 %v92, %v397
  %v399 = vpop.f32.mrf.mxu0
  %v400 = vadd.f32 %v96, %v399
  %401 = vdwg.mxu0
  %402 = vmatprep.subr.bf16.mxu0 %v308
  %403 = vmatpush1.bf16.msra.mxu0 %v307
  %404 = vmatprep.subr.bf16.mxu0 %v302
  %405 = vmatpush1.bf16.msra.mxu0 %v301
  %406 = vmatprep.subr.bf16.mxu0 %v296
  %407 = vmatpush1.bf16.msra.mxu0 %v295
  %408 = vmatprep.subr.bf16.mxu0 %v290
  %409 = vmatpush1.bf16.msra.mxu0 %v289
  %410 = vmatprep.subr.bf16.mxu0 %v284
  %411 = vmatpush1.bf16.msra.mxu0 %v283
  %412 = vmatprep.subr.bf16.mxu0 %v278
  %413 = vmatpush1.bf16.msra.mxu0 %v277
  %414 = vmatprep.subr.bf16.mxu0 %v272
  %415 = vmatpush1.bf16.msra.mxu0 %v271
  %416 = vmatprep.subr.bf16.mxu0 %v266
  %417 = vmatpush1.bf16.msra.mxu0 %v265
  %418 = vmatprep.subr.bf16.mxu0 0
  %419 = vmatpush2.bf16.msra.mxu0 0
  %420 = vmatprep.subr.bf16.mxu0 0
  %421 = vmatpush2.bf16.msra.mxu0 0
  %422 = vmatprep.subr.bf16.mxu0 0
  %423 = vmatpush2.bf16.msra.mxu0 0
  %424 = vmatprep.subr.bf16.mxu0 0
  %425 = vmatpush2.bf16.msra.mxu0 0
  %426 = vmatprep.subr.bf16.mxu0 0
  %427 = vmatpush2.bf16.msra.mxu0 0
  %428 = vmatprep.subr.bf16.mxu0 0
  %429 = vmatpush2.bf16.msra.mxu0 0
  %430 = vmatprep.subr.bf16.mxu0 0
  %431 = vmatpush2.bf16.msra.mxu0 0
  %432 = vmatprep.subr.bf16.mxu0 0
  %433 = vmatpush2.bf16.msra.mxu0 0
  %434 = vmatprep.mubr.bf16.mxu0 0
  %435 = vmatmul.mubr.bf16.gmra.mxu0 %v38
  %v436 = vpop.f32.mrf.mxu0
  %v437 = vadd.f32 %v100, %v436
  %v438 = vpop.f32.mrf.mxu0
  %v439 = vadd.f32 %v104, %v438
  %v440 = vpop.f32.mrf.mxu0
  %v441 = vadd.f32 %v100, %v440
  %v442 = vpop.f32.mrf.mxu0
  %v443 = vadd.f32 %v104, %v442
  %444 = vdwg.mxu0
  %445 = vmatprep.subr.bf16.mxu0 %v310
  %446 = vmatpush1.bf16.msra.mxu0 %v309
  %447 = vmatprep.subr.bf16.mxu0 %v304
  %448 = vmatpush1.bf16.msra.mxu0 %v303
  %449 = vmatprep.subr.bf16.mxu0 %v298
  %450 = vmatpush1.bf16.msra.mxu0 %v297
  %451 = vmatprep.subr.bf16.mxu0 %v292
  %452 = vmatpush1.bf16.msra.mxu0 %v291
  %453 = vmatprep.subr.bf16.mxu0 %v286
  %454 = vmatpush1.bf16.msra.mxu0 %v285
  %455 = vmatprep.subr.bf16.mxu0 %v280
  %456 = vmatpush1.bf16.msra.mxu0 %v279
  %457 = vmatprep.subr.bf16.mxu0 %v274
  %458 = vmatpush1.bf16.msra.mxu0 %v273
  %459 = vmatprep.subr.bf16.mxu0 %v268
  %460 = vmatpush1.bf16.msra.mxu0 %v267
  %461 = vmatprep.subr.bf16.mxu0 0
  %462 = vmatpush2.bf16.msra.mxu0 0
  %463 = vmatprep.subr.bf16.mxu0 0
  %464 = vmatpush2.bf16.msra.mxu0 0
  %465 = vmatprep.subr.bf16.mxu0 0
  %466 = vmatpush2.bf16.msra.mxu0 0
  %467 = vmatprep.subr.bf16.mxu0 0
  %468 = vmatpush2.bf16.msra.mxu0 0
  %469 = vmatprep.subr.bf16.mxu0 0
  %470 = vmatpush2.bf16.msra.mxu0 0
  %471 = vmatprep.subr.bf16.mxu0 0
  %472 = vmatpush2.bf16.msra.mxu0 0
  %473 = vmatprep.subr.bf16.mxu0 0
  %474 = vmatpush2.bf16.msra.mxu0 0
  %475 = vmatprep.subr.bf16.mxu0 0
  %476 = vmatpush2.bf16.msra.mxu0 0
  %477 = vmatprep.mubr.bf16.mxu0 0
  %478 = vmatmul.mubr.bf16.gmra.mxu0 %v38
  %v479 = vpop.f32.mrf.mxu0
  %v480 = vadd.f32 %v108, %v479
  %v481 = vpop.f32.mrf.mxu0
  %v482 = vadd.f32 %v112, %v481
  %v483 = vpop.f32.mrf.mxu0
  %v484 = vadd.f32 %v108, %v483
  %v485 = vpop.f32.mrf.mxu0
  %v486 = vadd.f32 %v112, %v485
  %487 = vdwg.mxu0
  %v488 = vmax.f32 %v394, 0.0
  %v489 = vmax.f32 %v396, 0.0
  %v490 = vmax.f32 %v437, 0.0
  %v491 = vmax.f32 %v439, 0.0
  %v492 = vmax.f32 %v480, 0.0
  %v493 = vmax.f32 %v482, 0.0
  %v494 = vmax.f32 %v398, 0.0
  %v495 = vmax.f32 %v400, 0.0
  %v496 = vmax.f32 %v441, 0.0
  %v497 = vmax.f32 %v443, 0.0
  %v498 = vmax.f32 %v484, 0.0
  %v499 = vmax.f32 %v486, 0.0
  %v500 = vpack.c.bf16 %v494, %v488
  %v501 = vpack.c.bf16 %v495, %v489
  %v502 = vpack.c.bf16 %v496, %v490
  %v503 = vpack.c.bf16 %v497, %v491
  %v504 = vpack.c.bf16 %v498, %v492
  %v505 = vpack.c.bf16 %v499, %v493
  %v506 = vld [vmem:[%s3] sm:$0xf]
  %v507 = vld [vmem:[%s3 + $0x4] sm:$0xf]
  %v508 = vld [vmem:[%s3 + $0x8] sm:$0xf]
  %v509 = vld [vmem:[%s3 + $0xc] sm:$0xf]
  %v510 = vld [vmem:[%s3 + $0x10] sm:$0xf]
  %v511 = vld [vmem:[%s3 + $0x14] sm:$0xf]
  %v512 = vld [vmem:[%s3 + $0x18] sm:$0xf]
  %v513 = vld [vmem:[%s3 + $0x1c] sm:$0xf]
  %v514 = vld [vmem:[%s3 + $0x20] sm:$0xf]
  %v515 = vld [vmem:[%s3 + $0x24] sm:$0xf]
  %v516 = vld [vmem:[%s3 + $0x28] sm:$0xf]
  %v517 = vld [vmem:[%s3 + $0x2c] sm:$0xf]
  %v518 = vld [vmem:[%s3 + $0x30] sm:$0xf]
  %v519 = vld [vmem:[%s3 + $0x34] sm:$0xf]
  %v520 = vld [vmem:[%s3 + $0x38] sm:$0xf]
  %v521 = vld [vmem:[%s3 + $0x3c] sm:$0xf]
  %v522 = vld [vmem:[%s3 + $0x40] sm:$0xf]
  %v523 = vld [vmem:[%s3 + $0x44] sm:$0xf]
  %v524 = vld [vmem:[%s3 + $0x48] sm:$0xf]
  %v525 = vld [vmem:[%s3 + $0x4c] sm:$0xf]
  %v526 = vld [vmem:[%s3 + $0x50] sm:$0xf]
  %v527 = vld [vmem:[%s3 + $0x54] sm:$0xf]
  %v528 = vld [vmem:[%s3 + $0x58] sm:$0xf]
  %v529 = vld [vmem:[%s3 + $0x5c] sm:$0xf]
  %v530 = vld [vmem:[%s3 + $0x60] sm:$0xf]
  %v531 = vld [vmem:[%s3 + $0x64] sm:$0xf]
  %v532 = vld [vmem:[%s3 + $0x68] sm:$0xf]
  %v533 = vld [vmem:[%s3 + $0x6c] sm:$0xf]
  %v534 = vld [vmem:[%s3 + $0x70] sm:$0xf]
  %v535 = vld [vmem:[%s3 + $0x74] sm:$0xf]
  %v536 = vld [vmem:[%s3 + $0x78] sm:$0xf]
  %v537 = vld [vmem:[%s3 + $0x7c] sm:$0xf]
  %v538 = vld [vmem:[%s4] sm:$0x1]
  %v540 = vlaneseq
  %v541 = vshrl.u32 %v540, 7
  %v542 = vsub.s32 0, %v541
  %v543 = vrot.slane %v538, %v542
  %v577 = vunpack.c.l.b16 %v506
  %v578 = vunpack.c.l.b16 %v507
  %v579 = vunpack.c.l.b16 %v508
  %v580 = vunpack.c.l.b16 %v509
  %v581 = vunpack.c.l.b16 %v510
  %v582 = vunpack.c.l.b16 %v511
  %v583 = vunpack.c.l.b16 %v512
  %v584 = vunpack.c.l.b16 %v513
  %v585 = vunpack.c.l.b16 %v514
  %v586 = vunpack.c.l.b16 %v515
  %v587 = vunpack.c.l.b16 %v516
  %v588 = vunpack.c.l.b16 %v517
  %v589 = vunpack.c.l.b16 %v518
  %v590 = vunpack.c.l.b16 %v519
  %v591 = vunpack.c.l.b16 %v520
  %v592 = vunpack.c.l.b16 %v521
  %v593 = vunpack.c.l.b16 %v522
  %v594 = vunpack.c.l.b16 %v523
  %v595 = vunpack.c.l.b16 %v524
  %v596 = vunpack.c.l.b16 %v525
  %v597 = vunpack.c.l.b16 %v526
  %v598 = vunpack.c.l.b16 %v527
  %v599 = vunpack.c.l.b16 %v528
  %v600 = vunpack.c.l.b16 %v529
  %v601 = vunpack.c.l.b16 %v530
  %v602 = vunpack.c.l.b16 %v531
  %v603 = vunpack.c.l.b16 %v532
  %v604 = vunpack.c.l.b16 %v533
  %v605 = vunpack.c.l.b16 %v534
  %v606 = vunpack.c.l.b16 %v535
  %v607 = vunpack.c.l.b16 %v536
  %v608 = vunpack.c.l.b16 %v537
  %v609 = vpack.c.b16 %v578, %v577
  %v610 = vpack.c.b16 %v580, %v579
  %v611 = vpack.c.b16 %v582, %v581
  %v612 = vpack.c.b16 %v584, %v583
  %v613 = vpack.c.b16 %v586, %v585
  %v614 = vpack.c.b16 %v588, %v587
  %v615 = vpack.c.b16 %v590, %v589
  %v616 = vpack.c.b16 %v592, %v591
  %v617 = vpack.c.b16 %v594, %v593
  %v618 = vpack.c.b16 %v596, %v595
  %v619 = vpack.c.b16 %v598, %v597
  %v620 = vpack.c.b16 %v600, %v599
  %v621 = vpack.c.b16 %v602, %v601
  %v622 = vpack.c.b16 %v604, %v603
  %v623 = vpack.c.b16 %v606, %v605
  %v624 = vpack.c.b16 %v608, %v607
  %641 = vmatprep.subr.bf16.mxu0 0
  %642 = vmatpush1.bf16.msra.mxu0 %v616
  %643 = vmatprep.subr.bf16.mxu0 0
  %644 = vmatpush1.bf16.msra.mxu0 %v615
  %645 = vmatprep.subr.bf16.mxu0 0
  %646 = vmatpush1.bf16.msra.mxu0 %v614
  %647 = vmatprep.subr.bf16.mxu0 0
  %648 = vmatpush1.bf16.msra.mxu0 %v613
  %649 = vmatprep.subr.bf16.mxu0 0
  %650 = vmatpush1.bf16.msra.mxu0 %v612
  %651 = vmatprep.subr.bf16.mxu0 0
  %652 = vmatpush1.bf16.msra.mxu0 %v611
  %653 = vmatprep.subr.bf16.mxu0 0
  %654 = vmatpush1.bf16.msra.mxu0 %v610
  %655 = vmatprep.subr.bf16.mxu0 0
  %656 = vmatpush1.bf16.msra.mxu0 %v609
  %657 = vmatprep.subr.bf16.mxu0 0
  %658 = vmatpush2.bf16.msra.mxu0 %v624
  %659 = vmatprep.subr.bf16.mxu0 0
  %660 = vmatpush2.bf16.msra.mxu0 %v623
  %661 = vmatprep.subr.bf16.mxu0 0
  %662 = vmatpush2.bf16.msra.mxu0 %v622
  %663 = vmatprep.subr.bf16.mxu0 0
  %664 = vmatpush2.bf16.msra.mxu0 %v621
  %665 = vmatprep.subr.bf16.mxu0 0
  %666 = vmatpush2.bf16.msra.mxu0 %v620
  %667 = vmatprep.subr.bf16.mxu0 0
  %668 = vmatpush2.bf16.msra.mxu0 %v619
  %669 = vmatprep.subr.bf16.mxu0 0
  %670 = vmatpush2.bf16.msra.mxu0 %v618
  %671 = vmatprep.subr.bf16.mxu0 0
  %672 = vmatpush2.bf16.msra.mxu0 %v617
  %673 = vmatprep.mubr.bf16.mxu0 %v501
  %674 = vmatmul.mubr.bf16.gmra.mxu0 %v500
  %v675 = vpop.f32.mrf.mxu0
  %v676 = vadd.f32 %v543, %v675
  %v677 = vpop.f32.mrf.mxu0
  %v678 = vpop.f32.mrf.mxu0
  %v679 = vadd.f32 %v543, %v678
  %v680 = vpop.f32.mrf.mxu0
  %681 = vdwg.mxu0
  %v682 = vld [vmem:[%s5] sm:$0xf]
  %v683 = vld [vmem:[%s5 + $0x4] sm:$0xf]
  %v684 = vld [vmem:[%s5 + $0x8] sm:$0xf]
  %v685 = vld [vmem:[%s5 + $0xc] sm:$0xf]
  %v686 = vld [vmem:[%s5 + $0x10] sm:$0xf]
  %v687 = vld [vmem:[%s5 + $0x14] sm:$0xf]
  %v688 = vld [vmem:[%s5 + $0x18] sm:$0xf]
  %v689 = vld [vmem:[%s5 + $0x1c] sm:$0xf]
  %v690 = vld [vmem:[%s5 + $0x20] sm:$0xf]
  %v691 = vld [vmem:[%s5 + $0x24] sm:$0xf]
  %v692 = vld [vmem:[%s5 + $0x28] sm:$0xf]
  %v693 = vld [vmem:[%s5 + $0x2c] sm:$0xf]
  %v694 = vld [vmem:[%s5 + $0x30] sm:$0xf]
  %v695 = vld [vmem:[%s5 + $0x34] sm:$0xf]
  %v696 = vld [vmem:[%s5 + $0x38] sm:$0xf]
  %v697 = vld [vmem:[%s5 + $0x3c] sm:$0xf]
  %v698 = vld [vmem:[%s5 + $0x40] sm:$0xf]
  %v699 = vld [vmem:[%s5 + $0x44] sm:$0xf]
  %v700 = vld [vmem:[%s5 + $0x48] sm:$0xf]
  %v701 = vld [vmem:[%s5 + $0x4c] sm:$0xf]
  %v702 = vld [vmem:[%s5 + $0x50] sm:$0xf]
  %v703 = vld [vmem:[%s5 + $0x54] sm:$0xf]
  %v704 = vld [vmem:[%s5 + $0x58] sm:$0xf]
  %v705 = vld [vmem:[%s5 + $0x5c] sm:$0xf]
  %v706 = vld [vmem:[%s5 + $0x60] sm:$0xf]
  %v707 = vld [vmem:[%s5 + $0x64] sm:$0xf]
  %v708 = vld [vmem:[%s5 + $0x68] sm:$0xf]
  %v709 = vld [vmem:[%s5 + $0x6c] sm:$0xf]
  %v710 = vld [vmem:[%s5 + $0x70] sm:$0xf]
  %v711 = vld [vmem:[%s5 + $0x74] sm:$0xf]
  %v712 = vld [vmem:[%s5 + $0x78] sm:$0xf]
  %v713 = vld [vmem:[%s5 + $0x7c] sm:$0xf]
  %v714 = vld [vmem:[%s6] sm:$0x1]
  %v716 = vlaneseq
  %v717 = vshrl.u32 %v716, 7
  %v718 = vsub.s32 0, %v717
  %v719 = vrot.slane %v714, %v718
  %v753 = vunpack.c.l.b16 %v682
  %v754 = vunpack.c.l.b16 %v683
  %v755 = vunpack.c.l.b16 %v684
  %v756 = vunpack.c.l.b16 %v685
  %v757 = vunpack.c.l.b16 %v686
  %v758 = vunpack.c.l.b16 %v687
  %v759 = vunpack.c.l.b16 %v688
  %v760 = vunpack.c.l.b16 %v689
  %v761 = vunpack.c.l.b16 %v690
  %v762 = vunpack.c.l.b16 %v691
  %v763 = vunpack.c.l.b16 %v692
  %v764 = vunpack.c.l.b16 %v693
  %v765 = vunpack.c.l.b16 %v694
  %v766 = vunpack.c.l.b16 %v695
  %v767 = vunpack.c.l.b16 %v696
  %v768 = vunpack.c.l.b16 %v697
  %v769 = vunpack.c.l.b16 %v698
  %v770 = vunpack.c.l.b16 %v699
  %v771 = vunpack.c.l.b16 %v700
  %v772 = vunpack.c.l.b16 %v701
  %v773 = vunpack.c.l.b16 %v702
  %v774 = vunpack.c.l.b16 %v703
  %v775 = vunpack.c.l.b16 %v704
  %v776 = vunpack.c.l.b16 %v705
  %v777 = vunpack.c.l.b16 %v706
  %v778 = vunpack.c.l.b16 %v707
  %v779 = vunpack.c.l.b16 %v708
  %v780 = vunpack.c.l.b16 %v709
  %v781 = vunpack.c.l.b16 %v710
  %v782 = vunpack.c.l.b16 %v711
  %v783 = vunpack.c.l.b16 %v712
  %v784 = vunpack.c.l.b16 %v713
  %v785 = vpack.c.b16 %v754, %v753
  %v786 = vpack.c.b16 %v756, %v755
  %v787 = vpack.c.b16 %v758, %v757
  %v788 = vpack.c.b16 %v760, %v759
  %v789 = vpack.c.b16 %v762, %v761
  %v790 = vpack.c.b16 %v764, %v763
  %v791 = vpack.c.b16 %v766, %v765
  %v792 = vpack.c.b16 %v768, %v767
  %v793 = vpack.c.b16 %v770, %v769
  %v794 = vpack.c.b16 %v772, %v771
  %v795 = vpack.c.b16 %v774, %v773
  %v796 = vpack.c.b16 %v776, %v775
  %v797 = vpack.c.b16 %v778, %v777
  %v798 = vpack.c.b16 %v780, %v779
  %v799 = vpack.c.b16 %v782, %v781
  %v800 = vpack.c.b16 %v784, %v783
  %817 = vmatprep.subr.bf16.mxu0 0
  %818 = vmatpush1.bf16.msra.mxu0 %v792
  %819 = vmatprep.subr.bf16.mxu0 0
  %820 = vmatpush1.bf16.msra.mxu0 %v791
  %821 = vmatprep.subr.bf16.mxu0 0
  %822 = vmatpush1.bf16.msra.mxu0 %v790
  %823 = vmatprep.subr.bf16.mxu0 0
  %824 = vmatpush1.bf16.msra.mxu0 %v789
  %825 = vmatprep.subr.bf16.mxu0 0
  %826 = vmatpush1.bf16.msra.mxu0 %v788
  %827 = vmatprep.subr.bf16.mxu0 0
  %828 = vmatpush1.bf16.msra.mxu0 %v787
  %829 = vmatprep.subr.bf16.mxu0 0
  %830 = vmatpush1.bf16.msra.mxu0 %v786
  %831 = vmatprep.subr.bf16.mxu0 0
  %832 = vmatpush1.bf16.msra.mxu0 %v785
  %833 = vmatprep.subr.bf16.mxu0 0
  %834 = vmatpush2.bf16.msra.mxu0 %v800
  %835 = vmatprep.subr.bf16.mxu0 0
  %836 = vmatpush2.bf16.msra.mxu0 %v799
  %837 = vmatprep.subr.bf16.mxu0 0
  %838 = vmatpush2.bf16.msra.mxu0 %v798
  %839 = vmatprep.subr.bf16.mxu0 0
  %840 = vmatpush2.bf16.msra.mxu0 %v797
  %841 = vmatprep.subr.bf16.mxu0 0
  %842 = vmatpush2.bf16.msra.mxu0 %v796
  %843 = vmatprep.subr.bf16.mxu0 0
  %844 = vmatpush2.bf16.msra.mxu0 %v795
  %845 = vmatprep.subr.bf16.mxu0 0
  %846 = vmatpush2.bf16.msra.mxu0 %v794
  %847 = vmatprep.subr.bf16.mxu0 0
  %848 = vmatpush2.bf16.msra.mxu0 %v793
  %849 = vmatprep.mubr.bf16.mxu0 %v503
  %850 = vmatmul.mubr.bf16.gmra.mxu0 %v502
  %v851 = vpop.f32.mrf.mxu0
  %v852 = vadd.f32 %v719, %v851
  %v853 = vpop.f32.mrf.mxu0
  %v854 = vpop.f32.mrf.mxu0
  %v855 = vadd.f32 %v719, %v854
  %v856 = vpop.f32.mrf.mxu0
  %857 = vdwg.mxu0
  %v858 = vld [vmem:[%s7] sm:$0xf]
  %v859 = vld [vmem:[%s7 + $0x4] sm:$0xf]
  %v860 = vld [vmem:[%s7 + $0x8] sm:$0xf]
  %v861 = vld [vmem:[%s7 + $0xc] sm:$0xf]
  %v862 = vld [vmem:[%s7 + $0x10] sm:$0xf]
  %v863 = vld [vmem:[%s7 + $0x14] sm:$0xf]
  %v864 = vld [vmem:[%s7 + $0x18] sm:$0xf]
  %v865 = vld [vmem:[%s7 + $0x1c] sm:$0xf]
  %v866 = vld [vmem:[%s7 + $0x20] sm:$0xf]
  %v867 = vld [vmem:[%s7 + $0x24] sm:$0xf]
  %v868 = vld [vmem:[%s7 + $0x28] sm:$0xf]
  %v869 = vld [vmem:[%s7 + $0x2c] sm:$0xf]
  %v870 = vld [vmem:[%s7 + $0x30] sm:$0xf]
  %v871 = vld [vmem:[%s7 + $0x34] sm:$0xf]
  %v872 = vld [vmem:[%s7 + $0x38] sm:$0xf]
  %v873 = vld [vmem:[%s7 + $0x3c] sm:$0xf]
  %v874 = vld [vmem:[%s7 + $0x40] sm:$0xf]
  %v875 = vld [vmem:[%s7 + $0x44] sm:$0xf]
  %v876 = vld [vmem:[%s7 + $0x48] sm:$0xf]
  %v877 = vld [vmem:[%s7 + $0x4c] sm:$0xf]
  %v878 = vld [vmem:[%s7 + $0x50] sm:$0xf]
  %v879 = vld [vmem:[%s7 + $0x54] sm:$0xf]
  %v880 = vld [vmem:[%s7 + $0x58] sm:$0xf]
  %v881 = vld [vmem:[%s7 + $0x5c] sm:$0xf]
  %v882 = vld [vmem:[%s7 + $0x60] sm:$0xf]
  %v883 = vld [vmem:[%s7 + $0x64] sm:$0xf]
  %v884 = vld [vmem:[%s7 + $0x68] sm:$0xf]
  %v885 = vld [vmem:[%s7 + $0x6c] sm:$0xf]
  %v886 = vld [vmem:[%s7 + $0x70] sm:$0xf]
  %v887 = vld [vmem:[%s7 + $0x74] sm:$0xf]
  %v888 = vld [vmem:[%s7 + $0x78] sm:$0xf]
  %v889 = vld [vmem:[%s7 + $0x7c] sm:$0xf]
  %v890 = vld [vmem:[%s8] sm:$0x1]
  %v892 = vlaneseq
  %v893 = vshrl.u32 %v892, 7
  %v894 = vsub.s32 0, %v893
  %v895 = vrot.slane %v890, %v894
  %v929 = vunpack.c.l.b16 %v858
  %v930 = vunpack.c.l.b16 %v859
  %v931 = vunpack.c.l.b16 %v860
  %v932 = vunpack.c.l.b16 %v861
  %v933 = vunpack.c.l.b16 %v862
  %v934 = vunpack.c.l.b16 %v863
  %v935 = vunpack.c.l.b16 %v864
  %v936 = vunpack.c.l.b16 %v865
  %v937 = vunpack.c.l.b16 %v866
  %v938 = vunpack.c.l.b16 %v867
  %v939 = vunpack.c.l.b16 %v868
  %v940 = vunpack.c.l.b16 %v869
  %v941 = vunpack.c.l.b16 %v870
  %v942 = vunpack.c.l.b16 %v871
  %v943 = vunpack.c.l.b16 %v872
  %v944 = vunpack.c.l.b16 %v873
  %v945 = vunpack.c.l.b16 %v874
  %v946 = vunpack.c.l.b16 %v875
  %v947 = vunpack.c.l.b16 %v876
  %v948 = vunpack.c.l.b16 %v877
  %v949 = vunpack.c.l.b16 %v878
  %v950 = vunpack.c.l.b16 %v879
  %v951 = vunpack.c.l.b16 %v880
  %v952 = vunpack.c.l.b16 %v881
  %v953 = vunpack.c.l.b16 %v882
  %v954 = vunpack.c.l.b16 %v883
  %v955 = vunpack.c.l.b16 %v884
  %v956 = vunpack.c.l.b16 %v885
  %v957 = vunpack.c.l.b16 %v886
  %v958 = vunpack.c.l.b16 %v887
  %v959 = vunpack.c.l.b16 %v888
  %v960 = vunpack.c.l.b16 %v889
  %v961 = vpack.c.b16 %v930, %v929
  %v962 = vpack.c.b16 %v932, %v931
  %v963 = vpack.c.b16 %v934, %v933
  %v964 = vpack.c.b16 %v936, %v935
  %v965 = vpack.c.b16 %v938, %v937
  %v966 = vpack.c.b16 %v940, %v939
  %v967 = vpack.c.b16 %v942, %v941
  %v968 = vpack.c.b16 %v944, %v943
  %v969 = vpack.c.b16 %v946, %v945
  %v970 = vpack.c.b16 %v948, %v947
  %v971 = vpack.c.b16 %v950, %v949
  %v972 = vpack.c.b16 %v952, %v951
  %v973 = vpack.c.b16 %v954, %v953
  %v974 = vpack.c.b16 %v956, %v955
  %v975 = vpack.c.b16 %v958, %v957
  %v976 = vpack.c.b16 %v960, %v959
  %993 = vmatprep.subr.bf16.mxu0 0
  %994 = vmatpush1.bf16.msra.mxu0 %v968
  %995 = vmatprep.subr.bf16.mxu0 0
  %996 = vmatpush1.bf16.msra.mxu0 %v967
  %997 = vmatprep.subr.bf16.mxu0 0
  %998 = vmatpush1.bf16.msra.mxu0 %v966
  %999 = vmatprep.subr.bf16.mxu0 0
  %1000 = vmatpush1.bf16.msra.mxu0 %v965
  %1001 = vmatprep.subr.bf16.mxu0 0
  %1002 = vmatpush1.bf16.msra.mxu0 %v964
  %1003 = vmatprep.subr.bf16.mxu0 0
  %1004 = vmatpush1.bf16.msra.mxu0 %v963
  %1005 = vmatprep.subr.bf16.mxu0 0
  %1006 = vmatpush1.bf16.msra.mxu0 %v962
  %1007 = vmatprep.subr.bf16.mxu0 0
  %1008 = vmatpush1.bf16.msra.mxu0 %v961
  %1009 = vmatprep.subr.bf16.mxu0 0
  %1010 = vmatpush2.bf16.msra.mxu0 %v976
  %1011 = vmatprep.subr.bf16.mxu0 0
  %1012 = vmatpush2.bf16.msra.mxu0 %v975
  %1013 = vmatprep.subr.bf16.mxu0 0
  %1014 = vmatpush2.bf16.msra.mxu0 %v974
  %1015 = vmatprep.subr.bf16.mxu0 0
  %1016 = vmatpush2.bf16.msra.mxu0 %v973
  %1017 = vmatprep.subr.bf16.mxu0 0
  %1018 = vmatpush2.bf16.msra.mxu0 %v972
  %1019 = vmatprep.subr.bf16.mxu0 0
  %1020 = vmatpush2.bf16.msra.mxu0 %v971
  %1021 = vmatprep.subr.bf16.mxu0 0
  %1022 = vmatpush2.bf16.msra.mxu0 %v970
  %1023 = vmatprep.subr.bf16.mxu0 0
  %1024 = vmatpush2.bf16.msra.mxu0 %v969
  %1025 = vmatprep.mubr.bf16.mxu0 %v505
  %1026 = vmatmul.mubr.bf16.gmra.mxu0 %v504
  %v1027 = vpop.f32.mrf.mxu0
  %v1028 = vadd.f32 %v895, %v1027
  %v1029 = vpop.f32.mrf.mxu0
  %v1030 = vpop.f32.mrf.mxu0
  %v1031 = vadd.f32 %v895, %v1030
  %v1032 = vpop.f32.mrf.mxu0
  %1033 = vdwg.mxu0
  %1034 = vst [vmem:[%s9] sm:$0xff] %v676
  %1035 = vst [vmem:[%s9 + $0x8] sm:$0xff] %v679
  %v1036 = vpack.c.bf16 %v855, %v852
  %v1038 = vunpack.c.l.b16 %v1036
  %v1039 = vunpack.c.h.b16 %v1036
  %v1040 = vpack.c.b16 %v1038, %v1038
  %v1041 = vpack.c.b16 %v1039, %v1039
  %1044 = vst [vmem:[%s10] sm:$0xf] %v1040
  %1045 = vst [vmem:[%s10 + $0x4] sm:$0xf] %v1041
  %v1046 = vpack.c.bf16 %v1031, %v1028
  %v1048 = vunpack.c.l.b16 %v1046
  %v1049 = vunpack.c.h.b16 %v1046
  %v1050 = vpack.c.b16 %v1048, %v1048
  %v1051 = vpack.c.b16 %v1049, %v1049
  %1054 = vst [vmem:[%s11] sm:$0xf] %v1050
  %1055 = vst [vmem:[%s11 + $0x4] sm:$0xf] %v1051
  // Predicated region
  $region38: #{fwd.9} parent=0 // pred_check
    _
  $region39: #{fwd.9} parent=0 // pred_check_branch
    %1057 = sbr.rel (0) target = $region41
  $region40: #{fwd.9} parent=0 // pred_region
    _
  $region41: #{fwd.9} parent=0 // pred_fallthru
    _
  // Predicated region
  $region42: #{fwd.9} parent=0 // pred_check
    _
  $region43: #{fwd.9} parent=0 // pred_check_branch
    %1059 = sbr.rel (0) target = $region45
  $region44: #{fwd.9} parent=0 // pred_region
    _
  $region45: #{fwd.9} parent=0 // pred_fallthru
    _
  // Predicated region
  $region46: #{fwd.9} parent=0 // pred_check
    _
  $region47: #{fwd.9} parent=0 // pred_check_branch
    %1061 = sbr.rel (0) target = $region49
  $region48: #{fwd.9} parent=0 // pred_region
    _
  $region49: #{fwd.9} parent=0 // pred_fallthru
    _
  // Predicated region
  $region50: #{fwd.9} parent=0 // pred_check
    _
  $region51: #{fwd.9} parent=0 // pred_check_branch
    %1063 = sbr.rel (0) target = $region53
  $region52: #{fwd.9} parent=0 // pred_region
    _
  $region53: #{fwd.9} parent=0 // pred_fallthru
    _
  // Predicated region
  $region54: #{fwd.9} parent=0 // pred_check
    _
  $region55: #{fwd.9} parent=0 // pred_check_branch
    %1065 = sbr.rel (0) target = $region57
  $region56: #{fwd.9} parent=0 // pred_region
    _
  $region57: #{fwd.9} parent=0 // pred_fallthru
    _
  // Predicated region
  $region58: #{fwd.9} parent=0 // pred_check
    _
  $region59: #{fwd.9} parent=0 // pred_check_branch
    %1067 = sbr.rel (0) target = $region61
  $region60: #{fwd.9} parent=0 // pred_region
    _
  $region61: #{fwd.9} parent=0 // pred_fallthru
    _

// kernel: fwd.15
$region0: #{fwd.15}
  #allocation0 [shape = 'u32[]', space=smem, size = 0x4, offset = 0x4, fixed_abs, tag = 'smem constant byte address 0x4 - core index']
  #allocation1 [shape = 'u32[144,128]{1,0:T(1,128)}', space=vmem, size = 0x12000, scoped, tag = 'internal scratch']
  %s0 = inlined_call_operand.vmem [shape: f32[16,128], index: 0, kind: input, shape index: {}]
  %s1 = inlined_call_operand.vmem [shape: f32[128,256], index: 1, kind: input, shape index: {}]
  %s2 = inlined_call_operand.vmem [shape: f32[1,256], index: 2, kind: input, shape index: {}]
  %s3 = inlined_call_operand.vmem [shape: f32[256,128], index: 3, kind: input, shape index: {}]
  %s4 = inlined_call_operand.vmem [shape: f32[1,128], index: 4, kind: input, shape index: {}]
  %s5 = inlined_call_operand.hbm [shape: f32[16,128], index: 5, kind: output, shape index: {}]
  %s6 = sld [smem:[#allocation0]]
  $region30: #{fwd.15} parent=0
    _
  %s8 = ssub.s32 1, %s6
  %s9 = scalar_select 0, %s8, %s6
  $region1: #{fwd.15} parent=0
    #allocation2 [shape = 'u8[8192]{0}', space=vmem, size = 0x2000, scoped, tag = 'output window, operand 0, single buffered']
    #allocation3 [shape = 's32[1]{0}', space=sflag, size = 0x4, scoped, tag = 'scoped memory for fwd.15']
    %10 = vsyncpa [#allocation3], 0
    // Predicated region
    $region2: #{fwd.15} parent=1 // pred_check
      _
    $region3: #{fwd.15} parent=1 // pred_check_branch
      %12 = sbr.rel (0) target = $region5
    $region4: #{fwd.15} parent=1 // pred_region
      _
    $region5: #{fwd.15} parent=1 // pred_fallthru
      _
    // Predicated region
    $region6: #{fwd.15} parent=1 // pred_check
      _
    $region7: #{fwd.15} parent=1 // pred_check_branch
      %14 = sbr.rel (0) target = $region9
    $region8: #{fwd.15} parent=1 // pred_region
      _
    $region9: #{fwd.15} parent=1 // pred_fallthru
      _
    // Predicated region
    $region10: #{fwd.15} parent=1 // pred_check
      _
    $region11: #{fwd.15} parent=1 // pred_check_branch
      %16 = sbr.rel (0) target = $region13
    $region12: #{fwd.15} parent=1 // pred_region
      _
    $region13: #{fwd.15} parent=1 // pred_fallthru
      _
    // Predicated region
    $region14: #{fwd.15} parent=1 // pred_check
      _
    $region15: #{fwd.15} parent=1 // pred_check_branch
      %18 = sbr.rel (0) target = $region17
    $region16: #{fwd.15} parent=1 // pred_region
      _
    $region17: #{fwd.15} parent=1 // pred_fallthru
      _
    // Predicated region
    $region18: #{fwd.15} parent=1 // pred_check
      _
    $region19: #{fwd.15} parent=1 // pred_check_branch
      %20 = sbr.rel (0) target = $region21
    $region20: #{fwd.15} parent=1 // pred_region
      _
    $region21: #{fwd.15} parent=1 // pred_fallthru
      _
    %v21 = vld [vmem:[%s0] sm:$0xff]
    %v22 = vld [vmem:[%s0 + $0x8] sm:$0xff]
    %v23 = vld [vmem:[%s1] sm:$0xff]
    %v24 = vld [vmem:[%s1 + $0x8] sm:$0xff]
    %v25 = vld [vmem:[%s1 + $0x10] sm:$0xff]
    %v26 = vld [vmem:[%s1 + $0x18] sm:$0xff]
    %v27 = vld [vmem:[%s1 + $0x20] sm:$0xff]
    %v28 = vld [vmem:[%s1 + $0x28] sm:$0xff]
    %v29 = vld [vmem:[%s1 + $0x30] sm:$0xff]
    %v30 = vld [vmem:[%s1 + $0x38] sm:$0xff]
    %v31 = vld [vmem:[%s1 + $0x40] sm:$0xff]
    %v32 = vld [vmem:[%s1 + $0x48] sm:$0xff]
    %v33 = vld [vmem:[%s1 + $0x50] sm:$0xff]
    %v34 = vld [vmem:[%s1 + $0x58] sm:$0xff]
    %v35 = vld [vmem:[%s1 + $0x60] sm:$0xff]
    %v36 = vld [vmem:[%s1 + $0x68] sm:$0xff]
    %v37 = vld [vmem:[%s1 + $0x70] sm:$0xff]
    %v38 = vld [vmem:[%s1 + $0x78] sm:$0xff]
    %v39 = vld [vmem:[%s1 + $0x80] sm:$0xff]
    %v40 = vld [vmem:[%s1 + $0x88] sm:$0xff]
    %v41 = vld [vmem:[%s1 + $0x90] sm:$0xff]
    %v42 = vld [vmem:[%s1 + $0x98] sm:$0xff]
    %v43 = vld [vmem:[%s1 + $0xa0] sm:$0xff]
    %v44 = vld [vmem:[%s1 + $0xa8] sm:$0xff]
    %v45 = vld [vmem:[%s1 + $0xb0] sm:$0xff]
    %v46 = vld [vmem:[%s1 + $0xb8] sm:$0xff]
    %v47 = vld [vmem:[%s1 + $0xc0] sm:$0xff]
    %v48 = vld [vmem:[%s1 + $0xc8] sm:$0xff]
    %v49 = vld [vmem:[%s1 + $0xd0] sm:$0xff]
    %v50 = vld [vmem:[%s1 + $0xd8] sm:$0xff]
    %v51 = vld [vmem:[%s1 + $0xe0] sm:$0xff]
    %v52 = vld [vmem:[%s1 + $0xe8] sm:$0xff]
    %v53 = vld [vmem:[%s1 + $0xf0] sm:$0xff]
    %v54 = vld [vmem:[%s1 + $0xf8] sm:$0xff]
    %v55 = vld [vmem:[%s2] sm:$0x3]
    %v57 = vlaneseq
    %v58 = vshrl.u32 %v57, 7
    %v59 = vsub.s32 0, %v58
    %v60 = vrot.slane %v55, %v59
    %v61 = vlaneseq
    %v62 = vshrl.u32 %v61, 7
    %v63 = vsub.s32 1, %v62
    %v64 = vrot.slane %v55, %v63
    %67 = vmatprep.subr.mxu0 %v54
    %68 = vmatpush1.msra.mxu0 %v53
    %69 = vmatprep.subr.mxu0 %v52
    %70 = vmatpush1.msra.mxu0 %v51
    %71 = vmatprep.subr.mxu0 %v50
    %72 = vmatpush1.msra.mxu0 %v49
    %73 = vmatprep.subr.mxu0 %v48
    %74 = vmatpush1.msra.mxu0 %v47
    %75 = vmatprep.subr.mxu0 %v46
    %76 = vmatpush1.msra.mxu0 %v45
    %77 = vmatprep.subr.mxu0 %v44
    %78 = vmatpush1.msra.mxu0 %v43
    %79 = vmatprep.subr.mxu0 %v42
    %80 = vmatpush1.msra.mxu0 %v41
    %81 = vmatprep.subr.mxu0 %v40
    %82 = vmatpush1.msra.mxu0 %v39
    %83 = vmatprep.subr.mxu0 %v38
    %84 = vmatpush1.msra.mxu0 %v37
    %85 = vmatprep.subr.mxu0 %v36
    %86 = vmatpush1.msra.mxu0 %v35
    %87 = vmatprep.subr.mxu0 %v34
    %88 = vmatpush1.msra.mxu0 %v33
    %89 = vmatprep.subr.mxu0 %v32
    %90 = vmatpush1.msra.mxu0 %v31
    %91 = vmatprep.subr.mxu0 %v30
    %92 = vmatpush1.msra.mxu0 %v29
    %93 = vmatprep.subr.mxu0 %v28
    %94 = vmatpush1.msra.mxu0 %v27
    %95 = vmatprep.subr.mxu0 %v26
    %96 = vmatpush1.msra.mxu0 %v25
    %97 = vmatprep.subr.mxu0 %v24
    %98 = vmatpush1.msra.mxu0 %v23
    %99 = vmatprep.subr.mxu0 0.0
    %100 = vmatpush2.msra.mxu0 0.0
    %101 = vmatprep.subr.mxu0 0.0
    %102 = vmatpush2.msra.mxu0 0.0
    %103 = vmatprep.subr.mxu0 0.0
    %104 = vmatpush2.msra.mxu0 0.0
    %105 = vmatprep.subr.mxu0 0.0
    %106 = vmatpush2.msra.mxu0 0.0
    %107 = vmatprep.subr.mxu0 0.0
    %108 = vmatpush2.msra.mxu0 0.0
    %109 = vmatprep.subr.mxu0 0.0
    %110 = vmatpush2.msra.mxu0 0.0
    %111 = vmatprep.subr.mxu0 0.0
    %112 = vmatpush2.msra.mxu0 0.0
    %113 = vmatprep.subr.mxu0 0.0
    %114 = vmatpush2.msra.mxu0 0.0
    %115 = vmatprep.subr.mxu0 0.0
    %116 = vmatpush2.msra.mxu0 0.0
    %117 = vmatprep.subr.mxu0 0.0
    %118 = vmatpush2.msra.mxu0 0.0
    %119 = vmatprep.subr.mxu0 0.0
    %120 = vmatpush2.msra.mxu0 0.0
    %121 = vmatprep.subr.mxu0 0.0
    %122 = vmatpush2.msra.mxu0 0.0
    %123 = vmatprep.subr.mxu0 0.0
    %124 = vmatpush2.msra.mxu0 0.0
    %125 = vmatprep.subr.mxu0 0.0
    %126 = vmatpush2.msra.mxu0 0.0
    %127 = vmatprep.subr.mxu0 0.0
    %128 = vmatpush2.msra.mxu0 0.0
    %129 = vmatprep.subr.mxu0 0.0
    %130 = vmatpush2.msra.mxu0 0.0
    %131 = vmatprep.mubr.f32.mxu0 0.0
    %132 = vmatmul.mubr.f32.gmra.mxu0 %v21
    %v133 = vpop.f32.mrf.mxu0
    %v134 = vadd.f32 %v60, %v133
    %v135 = vpop.f32.mrf.mxu0
    %v136 = vadd.f32 %v64, %v135
    %137 = vmatprep.mubr.f32.mxu0 0.0
    %138 = vmatmul.mubr.f32.gmra.mxu0 %v22
    %v139 = vpop.f32.mrf.mxu0
    %v140 = vadd.f32 %v60, %v139
    %v141 = vpop.f32.mrf.mxu0
    %v142 = vadd.f32 %v64, %v141
    %143 = vdwg.mxu0
    %v144 = vmax.f32 %v134, 0.0
    %v145 = vmax.f32 %v136, 0.0
    %v146 = vmax.f32 %v140, 0.0
    %v147 = vmax.f32 %v142, 0.0
    %v148 = vld [vmem:[%s3] sm:$0xff]
    %v149 = vld [vmem:[%s3 + $0x8] sm:$0xff]
    %v150 = vld [vmem:[%s3 + $0x10] sm:$0xff]
    %v151 = vld [vmem:[%s3 + $0x18] sm:$0xff]
    %v152 = vld [vmem:[%s3 + $0x20] sm:$0xff]
    %v153 = vld [vmem:[%s3 + $0x28] sm:$0xff]
    %v154 = vld [vmem:[%s3 + $0x30] sm:$0xff]
    %v155 = vld [vmem:[%s3 + $0x38] sm:$0xff]
    %v156 = vld [vmem:[%s3 + $0x40] sm:$0xff]
    %v157 = vld [vmem:[%s3 + $0x48] sm:$0xff]
    %v158 = vld [vmem:[%s3 + $0x50] sm:$0xff]
    %v159 = vld [vmem:[%s3 + $0x58] sm:$0xff]
    %v160 = vld [vmem:[%s3 + $0x60] sm:$0xff]
    %v161 = vld [vmem:[%s3 + $0x68] sm:$0xff]
    %v162 = vld [vmem:[%s3 + $0x70] sm:$0xff]
    %v163 = vld [vmem:[%s3 + $0x78] sm:$0xff]
    %v164 = vld [vmem:[%s3 + $0x80] sm:$0xff]
    %v165 = vld [vmem:[%s3 + $0x88] sm:$0xff]
    %v166 = vld [vmem:[%s3 + $0x90] sm:$0xff]
    %v167 = vld [vmem:[%s3 + $0x98] sm:$0xff]
    %v168 = vld [vmem:[%s3 + $0xa0] sm:$0xff]
    %v169 = vld [vmem:[%s3 + $0xa8] sm:$0xff]
    %v170 = vld [vmem:[%s3 + $0xb0] sm:$0xff]
    %v171 = vld [vmem:[%s3 + $0xb8] sm:$0xff]
    %v172 = vld [vmem:[%s3 + $0xc0] sm:$0xff]
    %v173 = vld [vmem:[%s3 + $0xc8] sm:$0xff]
    %v174 = vld [vmem:[%s3 + $0xd0] sm:$0xff]
    %v175 = vld [vmem:[%s3 + $0xd8] sm:$0xff]
    %v176 = vld [vmem:[%s3 + $0xe0] sm:$0xff]
    %v177 = vld [vmem:[%s3 + $0xe8] sm:$0xff]
    %v178 = vld [vmem:[%s3 + $0xf0] sm:$0xff]
    %v179 = vld [vmem:[%s3 + $0xf8] sm:$0xff]
    %v180 = vld [vmem:[%s4] sm:$0x1]
    %v182 = vlaneseq
    %v183 = vshrl.u32 %v182, 7
    %v184 = vsub.s32 0, %v183
    %v185 = vrot.slane %v180, %v184
    %187 = vmatprep.subr.mxu0 0.0
    %188 = vmatpush1.msra.mxu0 %v163
    %189 = vmatprep.subr.mxu0 0.0
    %190 = vmatpush1.msra.mxu0 %v162
    %191 = vmatprep.subr.mxu0 0.0
    %192 = vmatpush1.msra.mxu0 %v161
    %193 = vmatprep.subr.mxu0 0.0
    %194 = vmatpush1.msra.mxu0 %v160
    %195 = vmatprep.subr.mxu0 0.0
    %196 = vmatpush1.msra.mxu0 %v159
    %197 = vmatprep.subr.mxu0 0.0
    %198 = vmatpush1.msra.mxu0 %v158
    %199 = vmatprep.subr.mxu0 0.0
    %200 = vmatpush1.msra.mxu0 %v157
    %201 = vmatprep.subr.mxu0 0.0
    %202 = vmatpush1.msra.mxu0 %v156
    %203 = vmatprep.subr.mxu0 0.0
    %204 = vmatpush1.msra.mxu0 %v155
    %205 = vmatprep.subr.mxu0 0.0
    %206 = vmatpush1.msra.mxu0 %v154
    %207 = vmatprep.subr.mxu0 0.0
    %208 = vmatpush1.msra.mxu0 %v153
    %209 = vmatprep.subr.mxu0 0.0
    %210 = vmatpush1.msra.mxu0 %v152
    %211 = vmatprep.subr.mxu0 0.0
    %212 = vmatpush1.msra.mxu0 %v151
    %213 = vmatprep.subr.mxu0 0.0
    %214 = vmatpush1.msra.mxu0 %v150
    %215 = vmatprep.subr.mxu0 0.0
    %216 = vmatpush1.msra.mxu0 %v149
    %217 = vmatprep.subr.mxu0 0.0
    %218 = vmatpush1.msra.mxu0 %v148
    %219 = vmatprep.subr.mxu0 0.0
    %220 = vmatpush2.msra.mxu0 %v179
    %221 = vmatprep.subr.mxu0 0.0
    %222 = vmatpush2.msra.mxu0 %v178
    %223 = vmatprep.subr.mxu0 0.0
    %224 = vmatpush2.msra.mxu0 %v177
    %225 = vmatprep.subr.mxu0 0.0
    %226 = vmatpush2.msra.mxu0 %v176
    %227 = vmatprep.subr.mxu0 0.0
    %228 = vmatpush2.msra.mxu0 %v175
    %229 = vmatprep.subr.mxu0 0.0
    %230 = vmatpush2.msra.mxu0 %v174
    %231 = vmatprep.subr.mxu0 0.0
    %232 = vmatpush2.msra.mxu0 %v173
    %233 = vmatprep.subr.mxu0 0.0
    %234 = vmatpush2.msra.mxu0 %v172
    %235 = vmatprep.subr.mxu0 0.0
    %236 = vmatpush2.msra.mxu0 %v171
    %237 = vmatprep.subr.mxu0 0.0
    %238 = vmatpush2.msra.mxu0 %v170
    %239 = vmatprep.subr.mxu0 0.0
    %240 = vmatpush2.msra.mxu0 %v169
    %241 = vmatprep.subr.mxu0 0.0
    %242 = vmatpush2.msra.mxu0 %v168
    %243 = vmatprep.subr.mxu0 0.0
    %244 = vmatpush2.msra.mxu0 %v167
    %245 = vmatprep.subr.mxu0 0.0
    %246 = vmatpush2.msra.mxu0 %v166
    %247 = vmatprep.subr.mxu0 0.0
    %248 = vmatpush2.msra.mxu0 %v165
    %249 = vmatprep.subr.mxu0 0.0
    %250 = vmatpush2.msra.mxu0 %v164
    %251 = vmatprep.mubr.f32.mxu0 %v145
    %252 = vmatmul.mubr.f32.gmra.mxu0 %v144
    %v253 = vpop.f32.mrf.mxu0
    %v254 = vadd.f32 %v185, %v253
    %v255 = vpop.f32.mrf.mxu0
    %256 = vmatprep.mubr.f32.mxu0 %v147
    %257 = vmatmul.mubr.f32.gmra.mxu0 %v146
    %v258 = vpop.f32.mrf.mxu0
    %v259 = vadd.f32 %v185, %v258
    %v260 = vpop.f32.mrf.mxu0
    %261 = vdwg.mxu0
    %262 = vst [vmem:[#allocation2] sm:$0xff] %v254
    %263 = vst [vmem:[#allocation2 + $0x8] sm:$0xff] %v259
    // Predicated region
    $region22: #{fwd.15} parent=1 // pred_check
      _
    $region23: #{fwd.15} parent=1 // pred_check_branch
      %265 = sbr.rel (0) target = $region25
    $region24: #{fwd.15} parent=1 // pred_region
      %s267 = ssub.s32 256, 256
      %268 = vsyncadd [#allocation3], %s267
      %s269 = sshll.u32 [#allocation2], 4
      %s270 = int_to_ptr.vmem [resolvable:$true] %s269
      %275 = dma.vmem_to_hbm [thread:$0]  %s270, 256, %s5, [#allocation3], 128, 128, 8
    $region25: #{fwd.15} parent=1 // pred_fallthru
      _
    // Predicated region
    $region26: #{fwd.15} parent=1 // pred_check
      _
    $region27: #{fwd.15} parent=1 // pred_check_branch
      %277 = sbr.rel (0) target = $region29
    $region28: #{fwd.15} parent=1 // pred_region
      %278 = dma.done [#allocation3], 256
    $region29: #{fwd.15} parent=1 // pred_fallthru
      _
    %279 = vsyncpa [#allocation3], 1

// kernel: fwd.10
$region0: #{fwd.10}
  #allocation0 [shape = 'u32[]', space=smem, size = 0x4, offset = 0x4, fixed_abs, tag = 'smem constant byte address 0x4 - core index']
  #allocation1 [shape = 'u32[144,128]{1,0:T(1,128)}', space=vmem, size = 0x12000, scoped, tag = 'internal scratch']
  %s0 = inlined_call_operand.vmem [shape: f32[2,8,128], index: 0, kind: input, shape index: {}]
  %s1 = inlined_call_operand.vmem [shape: bf16[2,8,4,128], index: 1, kind: input, shape index: {}]
  %s2 = inlined_call_operand.vmem [shape: bf16[2,8,4,128], index: 2, kind: input, shape index: {}]
  %s3 = inlined_call_operand.vmem [shape: f32[2,8,4,2], index: 3, kind: input, shape index: {}]
  %s4 = inlined_call_operand.vmem [shape: f32[2,128], index: 4, kind: input, shape index: {}]
  %s5 = inlined_call_operand.vmem [shape: f32[1,128], index: 5, kind: input, shape index: {}]
  %s6 = inlined_call_operand.vmem [shape: bf16[128,128], index: 6, kind: input, shape index: {}]
  %s7 = inlined_call_operand.vmem [shape: f32[1,128], index: 7, kind: input, shape index: {}]
  %s8 = inlined_call_operand.vmem [shape: bf16[128,256], index: 8, kind: input, shape index: {}]
  %s9 = inlined_call_operand.vmem [shape: f32[1,256], index: 9, kind: input, shape index: {}]
  %s10 = inlined_call_operand.vmem [shape: bf16[256,128], index: 10, kind: input, shape index: {}]
  %s11 = inlined_call_operand.vmem [shape: f32[1,128], index: 11, kind: input, shape index: {}]
  %s12 = inlined_call_operand.vmem [shape: f32[1,128], index: 12, kind: input, shape index: {}]
  %s13 = inlined_call_operand.vmem [shape: f32[1,128], index: 13, kind: input, shape index: {}]
  %s14 = inlined_call_operand.vmem [shape: f32[2,8,128], index: 14, kind: output, shape index: {}]
  %s15 = sld [smem:[#allocation0]]
  $region89: #{fwd.10} parent=0
    _
  %s17 = ssub.s32 1, %s15
  %s18 = scalar_select 0, %s17, %s15
  loop: start=0, step=1, limit=4
  $region2: #{fwd.10} parent=0 // loop_pre_header
    _
  $region3: #{fwd.10} parent=0 // loop_header
    %s20 = sphi 0, %s24
    %p21 = scmp.ge.s32.totalorder %s20, 4
    %s27 = sphi 0, %s39
    %s28 = sphi 0, %s35
    %s29 = sphi 0, %s27
    %s30 = sphi 0, %s28
    %s31 = sphi 0, %s29
    %s32 = sphi 0, %s30
    %s44 = sphi 0, %s46
    %s47 = sphi 0, %s44
    %s48 = sphi 0, %s47
    %s64 = sphi 0, %s48
    %s72 = sphi 0, %s74
    %s75 = sphi 0, %s72
    %s76 = sphi 0, %s75
    %s92 = sphi 0, %s76
    %s100 = sphi 0, %s102
    %s103 = sphi 0, %s100
    %s104 = sphi 0, %s103
    %s120 = sphi 0, %s104
    %s128 = sphi 0, %s130
    %s131 = sphi 0, %s128
    %s132 = sphi 0, %s131
    %s148 = sphi 0, %s132
    %s152 = sphi 0, %s152
    %s154 = sphi 0, %s152
    %s155 = sphi 0, %s154
    %s169 = sphi 0, %s155
    %s173 = sphi 0, %s173
    %s175 = sphi 0, %s173
    %s176 = sphi 0, %s175
    %s190 = sphi 0, %s176
    %s194 = sphi 0, %s194
    %s196 = sphi 0, %s194
    %s197 = sphi 0, %s196
    %s211 = sphi 0, %s197
    %s215 = sphi 0, %s215
    %s217 = sphi 0, %s215
    %s218 = sphi 0, %s217
    %s232 = sphi 0, %s218
    %s236 = sphi 0, %s236
    %s238 = sphi 0, %s236
    %s239 = sphi 0, %s238
    %s253 = sphi 0, %s239
    %s257 = sphi 0, %s257
    %s259 = sphi 0, %s257
    %s260 = sphi 0, %s259
    %s274 = sphi 0, %s260
    %s278 = sphi 0, %s278
    %s280 = sphi 0, %s278
    %s281 = sphi 0, %s280
    %s295 = sphi 0, %s281
    %s299 = sphi 0, %s299
    %s301 = sphi 0, %s299
    %s302 = sphi 0, %s301
    %s316 = sphi 0, %s302
    %s320 = sphi 0, %s320
    %s322 = sphi 0, %s320
    %s323 = sphi 0, %s322
    %s337 = sphi 0, %s323
    %s341 = sphi 0, %s341
    %s343 = sphi 0, %s341
    %s344 = sphi 0, %s343
    %s358 = sphi 0, %s344
    %s366 = sphi 0, %s368
    %s369 = sphi 0, %s366
    %s370 = sphi 0, %s369
    %s386 = sphi 0, %s370
  $region4: #{fwd.10} parent=0 // loop_header_branch
    %23 = sbr.rel (%p21) target = $region8
  $region5: #{fwd.10} parent=0 // loop_body
    %s25 = ssub.s32 %s20, 1
    %s26 = ssub.s32 %s20, 2
    %s33 = sadd.s32 1, %s28
    %p34 = scmp.ge.s32.totalorder %s33, 1
    %s35 = scalar_select %p34, 0, %s33
    %s36 = sadd.s32 1, %s27
    %s37 = scalar_select %p34, %s36, %s27
    %p38 = scmp.ge.s32.totalorder %s37, 2
    %s39 = scalar_select %p38, 0, %s37
    %s40 = ssub.s32 %s27, %s39
    %s41 = ssub.s32 %s28, %s35
    %s42 = sor.u32 %s40, %s41
    %p43 = scmp.eq.s32.totalorder %s42, 0
    %s45 = sadd.s32 %s44, 1
    %s46 = scalar_select %p43, %s44, %s45
    %p49 = pneg %p43
    %p50 = scmp.eq.s32.totalorder %s20, 1
    %p51 = por %p49, %p50
    %p52 = scmp.ne.s32.totalorder %s44, %s47
    %p53 = scmp.eq.s32.totalorder %s20, 0
    %p54 = por %p52, %p53
    %p55 = scmp.ne.s32.totalorder %s44, %s47
    %p56 = scmp.eq.s32.totalorder %s25, 1
    %p57 = por %p55, %p56
    %p58 = scmp.ne.s32.totalorder %s47, %s48
    %p59 = scmp.eq.s32.totalorder %s25, 0
    %p60 = por %p58, %p59
    %p61 = scmp.ne.s32.totalorder %s47, %s48
    %p62 = scmp.eq.s32.totalorder %s26, 1
    %p63 = por %p61, %p62
    %p65 = scmp.ne.s32.totalorder %s48, %s64
    %p66 = scmp.eq.s32.totalorder %s26, 0
    %p67 = por %p65, %p66
    %s68 = ssub.s32 %s27, %s39
    %s69 = ssub.s32 %s28, %s35
    %s70 = sor.u32 %s68, %s69
    %p71 = scmp.eq.s32.totalorder %s70, 0
    %s73 = sadd.s32 %s72, 1
    %s74 = scalar_select %p71, %s72, %s73
    %p77 = pneg %p71
    %p78 = scmp.eq.s32.totalorder %s20, 1
    %p79 = por %p77, %p78
    %p80 = scmp.ne.s32.totalorder %s72, %s75
    %p81 = scmp.eq.s32.totalorder %s20, 0
    %p82 = por %p80, %p81
    %p83 = scmp.ne.s32.totalorder %s72, %s75
    %p84 = scmp.eq.s32.totalorder %s25, 1
    %p85 = por %p83, %p84
    %p86 = scmp.ne.s32.totalorder %s75, %s76
    %p87 = scmp.eq.s32.totalorder %s25, 0
    %p88 = por %p86, %p87
    %p89 = scmp.ne.s32.totalorder %s75, %s76
    %p90 = scmp.eq.s32.totalorder %s26, 1
    %p91 = por %p89, %p90
    %p93 = scmp.ne.s32.totalorder %s76, %s92
    %p94 = scmp.eq.s32.totalorder %s26, 0
    %p95 = por %p93, %p94
    %s96 = ssub.s32 %s27, %s39
    %s97 = ssub.s32 %s28, %s35
    %s98 = sor.u32 %s96, %s97
    %p99 = scmp.eq.s32.totalorder %s98, 0
    %s101 = sadd.s32 %s100, 1
    %s102 = scalar_select %p99, %s100, %s101
    %p105 = pneg %p99
    %p106 = scmp.eq.s32.totalorder %s20, 1
    %p107 = por %p105, %p106
    %p108 = scmp.ne.s32.totalorder %s100, %s103
    %p109 = scmp.eq.s32.totalorder %s20, 0
    %p110 = por %p108, %p109
    %p111 = scmp.ne.s32.totalorder %s100, %s103
    %p112 = scmp.eq.s32.totalorder %s25, 1
    %p113 = por %p111, %p112
    %p114 = scmp.ne.s32.totalorder %s103, %s104
    %p115 = scmp.eq.s32.totalorder %s25, 0
    %p116 = por %p114, %p115
    %p117 = scmp.ne.s32.totalorder %s103, %s104
    %p118 = scmp.eq.s32.totalorder %s26, 1
    %p119 = por %p117, %p118
    %p121 = scmp.ne.s32.totalorder %s104, %s120
    %p122 = scmp.eq.s32.totalorder %s26, 0
    %p123 = por %p121, %p122
    %s124 = ssub.s32 %s27, %s39
    %s125 = ssub.s32 %s28, %s35
    %s126 = sor.u32 %s124, %s125
    %p127 = scmp.eq.s32.totalorder %s126, 0
    %s129 = sadd.s32 %s128, 1
    %s130 = scalar_select %p127, %s128, %s129
    %p133 = pneg %p127
    %p134 = scmp.eq.s32.totalorder %s20, 1
    %p135 = por %p133, %p134
    %p136 = scmp.ne.s32.totalorder %s128, %s131
    %p137 = scmp.eq.s32.totalorder %s20, 0
    %p138 = por %p136, %p137
    %p139 = scmp.ne.s32.totalorder %s128, %s131
    %p140 = scmp.eq.s32.totalorder %s25, 1
    %p141 = por %p139, %p140
    %p142 = scmp.ne.s32.totalorder %s131, %s132
    %p143 = scmp.eq.s32.totalorder %s25, 0
    %p144 = por %p142, %p143
    %p145 = scmp.ne.s32.totalorder %s131, %s132
    %p146 = scmp.eq.s32.totalorder %s26, 1
    %p147 = por %p145, %p146
    %p149 = scmp.ne.s32.totalorder %s132, %s148
    %p150 = scmp.eq.s32.totalorder %s26, 0
    %p151 = por %p149, %p150
    %s153 = sadd.s32 %s152, 1
    %p156 = scmp.eq.s32.totalorder %s20, 1
    %p157 = scmp.ne.s32.totalorder %s152, %s154
    %p158 = scmp.eq.s32.totalorder %s20, 0
    %p159 = por %p157, %p158
    %p160 = scmp.ne.s32.totalorder %s152, %s154
    %p161 = scmp.eq.s32.totalorder %s25, 1
    %p162 = por %p160, %p161
    %p163 = scmp.ne.s32.totalorder %s154, %s155
    %p164 = scmp.eq.s32.totalorder %s25, 0
    %p165 = por %p163, %p164
    %p166 = scmp.ne.s32.totalorder %s154, %s155
    %p167 = scmp.eq.s32.totalorder %s26, 1
    %p168 = por %p166, %p167
    %p170 = scmp.ne.s32.totalorder %s155, %s169
    %p171 = scmp.eq.s32.totalorder %s26, 0
    %p172 = por %p170, %p171
    %s174 = sadd.s32 %s173, 1
    %p177 = scmp.eq.s32.totalorder %s20, 1
    %p178 = scmp.ne.s32.totalorder %s173, %s175
    %p179 = scmp.eq.s32.totalorder %s20, 0
    %p180 = por %p178, %p179
    %p181 = scmp.ne.s32.totalorder %s173, %s175
    %p182 = scmp.eq.s32.totalorder %s25, 1
    %p183 = por %p181, %p182
    %p184 = scmp.ne.s32.totalorder %s175, %s176
    %p185 = scmp.eq.s32.totalorder %s25, 0
    %p186 = por %p184, %p185
    %p187 = scmp.ne.s32.totalorder %s175, %s176
    %p188 = scmp.eq.s32.totalorder %s26, 1
    %p189 = por %p187, %p188
    %p191 = scmp.ne.s32.totalorder %s176, %s190
    %p192 = scmp.eq.s32.totalorder %s26, 0
    %p193 = por %p191, %p192
    %s195 = sadd.s32 %s194, 1
    %p198 = scmp.eq.s32.totalorder %s20, 1
    %p199 = scmp.ne.s32.totalorder %s194, %s196
    %p200 = scmp.eq.s32.totalorder %s20, 0
    %p201 = por %p199, %p200
    %p202 = scmp.ne.s32.totalorder %s194, %s196
    %p203 = scmp.eq.s32.totalorder %s25, 1
    %p204 = por %p202, %p203
    %p205 = scmp.ne.s32.totalorder %s196, %s197
    %p206 = scmp.eq.s32.totalorder %s25, 0
    %p207 = por %p205, %p206
    %p208 = scmp.ne.s32.totalorder %s196, %s197
    %p209 = scmp.eq.s32.totalorder %s26, 1
    %p210 = por %p208, %p209
    %p212 = scmp.ne.s32.totalorder %s197, %s211
    %p213 = scmp.eq.s32.totalorder %s26, 0
    %p214 = por %p212, %p213
    %s216 = sadd.s32 %s215, 1
    %p219 = scmp.eq.s32.totalorder %s20, 1
    %p220 = scmp.ne.s32.totalorder %s215, %s217
    %p221 = scmp.eq.s32.totalorder %s20, 0
    %p222 = por %p220, %p221
    %p223 = scmp.ne.s32.totalorder %s215, %s217
    %p224 = scmp.eq.s32.totalorder %s25, 1
    %p225 = por %p223, %p224
    %p226 = scmp.ne.s32.totalorder %s217, %s218
    %p227 = scmp.eq.s32.totalorder %s25, 0
    %p228 = por %p226, %p227
    %p229 = scmp.ne.s32.totalorder %s217, %s218
    %p230 = scmp.eq.s32.totalorder %s26, 1
    %p231 = por %p229, %p230
    %p233 = scmp.ne.s32.totalorder %s218, %s232
    %p234 = scmp.eq.s32.totalorder %s26, 0
    %p235 = por %p233, %p234
    %s237 = sadd.s32 %s236, 1
    %p240 = scmp.eq.s32.totalorder %s20, 1
    %p241 = scmp.ne.s32.totalorder %s236, %s238
    %p242 = scmp.eq.s32.totalorder %s20, 0
    %p243 = por %p241, %p242
    %p244 = scmp.ne.s32.totalorder %s236, %s238
    %p245 = scmp.eq.s32.totalorder %s25, 1
    %p246 = por %p244, %p245
    %p247 = scmp.ne.s32.totalorder %s238, %s239
    %p248 = scmp.eq.s32.totalorder %s25, 0
    %p249 = por %p247, %p248
    %p250 = scmp.ne.s32.totalorder %s238, %s239
    %p251 = scmp.eq.s32.totalorder %s26, 1
    %p252 = por %p250, %p251
    %p254 = scmp.ne.s32.totalorder %s239, %s253
    %p255 = scmp.eq.s32.totalorder %s26, 0
    %p256 = por %p254, %p255
    %s258 = sadd.s32 %s257, 1
    %p261 = scmp.eq.s32.totalorder %s20, 1
    %p262 = scmp.ne.s32.totalorder %s257, %s259
    %p263 = scmp.eq.s32.totalorder %s20, 0
    %p264 = por %p262, %p263
    %p265 = scmp.ne.s32.totalorder %s257, %s259
    %p266 = scmp.eq.s32.totalorder %s25, 1
    %p267 = por %p265, %p266
    %p268 = scmp.ne.s32.totalorder %s259, %s260
    %p269 = scmp.eq.s32.totalorder %s25, 0
    %p270 = por %p268, %p269
    %p271 = scmp.ne.s32.totalorder %s259, %s260
    %p272 = scmp.eq.s32.totalorder %s26, 1
    %p273 = por %p271, %p272
    %p275 = scmp.ne.s32.totalorder %s260, %s274
    %p276 = scmp.eq.s32.totalorder %s26, 0
    %p277 = por %p275, %p276
    %s279 = sadd.s32 %s278, 1
    %p282 = scmp.eq.s32.totalorder %s20, 1
    %p283 = scmp.ne.s32.totalorder %s278, %s280
    %p284 = scmp.eq.s32.totalorder %s20, 0
    %p285 = por %p283, %p284
    %p286 = scmp.ne.s32.totalorder %s278, %s280
    %p287 = scmp.eq.s32.totalorder %s25, 1
    %p288 = por %p286, %p287
    %p289 = scmp.ne.s32.totalorder %s280, %s281
    %p290 = scmp.eq.s32.totalorder %s25, 0
    %p291 = por %p289, %p290
    %p292 = scmp.ne.s32.totalorder %s280, %s281
    %p293 = scmp.eq.s32.totalorder %s26, 1
    %p294 = por %p292, %p293
    %p296 = scmp.ne.s32.totalorder %s281, %s295
    %p297 = scmp.eq.s32.totalorder %s26, 0
    %p298 = por %p296, %p297
    %s300 = sadd.s32 %s299, 1
    %p303 = scmp.eq.s32.totalorder %s20, 1
    %p304 = scmp.ne.s32.totalorder %s299, %s301
    %p305 = scmp.eq.s32.totalorder %s20, 0
    %p306 = por %p304, %p305
    %p307 = scmp.ne.s32.totalorder %s299, %s301
    %p308 = scmp.eq.s32.totalorder %s25, 1
    %p309 = por %p307, %p308
    %p310 = scmp.ne.s32.totalorder %s301, %s302
    %p311 = scmp.eq.s32.totalorder %s25, 0
    %p312 = por %p310, %p311
    %p313 = scmp.ne.s32.totalorder %s301, %s302
    %p314 = scmp.eq.s32.totalorder %s26, 1
    %p315 = por %p313, %p314
    %p317 = scmp.ne.s32.totalorder %s302, %s316
    %p318 = scmp.eq.s32.totalorder %s26, 0
    %p319 = por %p317, %p318
    %s321 = sadd.s32 %s320, 1
    %p324 = scmp.eq.s32.totalorder %s20, 1
    %p325 = scmp.ne.s32.totalorder %s320, %s322
    %p326 = scmp.eq.s32.totalorder %s20, 0
    %p327 = por %p325, %p326
    %p328 = scmp.ne.s32.totalorder %s320, %s322
    %p329 = scmp.eq.s32.totalorder %s25, 1
    %p330 = por %p328, %p329
    %p331 = scmp.ne.s32.totalorder %s322, %s323
    %p332 = scmp.eq.s32.totalorder %s25, 0
    %p333 = por %p331, %p332
    %p334 = scmp.ne.s32.totalorder %s322, %s323
    %p335 = scmp.eq.s32.totalorder %s26, 1
    %p336 = por %p334, %p335
    %p338 = scmp.ne.s32.totalorder %s323, %s337
    %p339 = scmp.eq.s32.totalorder %s26, 0
    %p340 = por %p338, %p339
    %s342 = sadd.s32 %s341, 1
    %p345 = scmp.eq.s32.totalorder %s20, 1
    %p346 = scmp.ne.s32.totalorder %s341, %s343
    %p347 = scmp.eq.s32.totalorder %s20, 0
    %p348 = por %p346, %p347
    %p349 = scmp.ne.s32.totalorder %s341, %s343
    %p350 = scmp.eq.s32.totalorder %s25, 1
    %p351 = por %p349, %p350
    %p352 = scmp.ne.s32.totalorder %s343, %s344
    %p353 = scmp.eq.s32.totalorder %s25, 0
    %p354 = por %p352, %p353
    %p355 = scmp.ne.s32.totalorder %s343, %s344
    %p356 = scmp.eq.s32.totalorder %s26, 1
    %p357 = por %p355, %p356
    %p359 = scmp.ne.s32.totalorder %s344, %s358
    %p360 = scmp.eq.s32.totalorder %s26, 0
    %p361 = por %p359, %p360
    %s362 = ssub.s32 %s27, %s39
    %s363 = ssub.s32 %s28, %s35
    %s364 = sor.u32 %s362, %s363
    %p365 = scmp.eq.s32.totalorder %s364, 0
    %s367 = sadd.s32 %s366, 1
    %s368 = scalar_select %p365, %s366, %s367
    %p371 = pneg %p365
    %p372 = scmp.eq.s32.totalorder %s20, 1
    %p373 = por %p371, %p372
    %p374 = scmp.ne.s32.totalorder %s366, %s369
    %p375 = scmp.eq.s32.totalorder %s20, 0
    %p376 = por %p374, %p375
    %p377 = scmp.ne.s32.totalorder %s366, %s369
    %p378 = scmp.eq.s32.totalorder %s25, 1
    %p379 = por %p377, %p378
    %p380 = scmp.ne.s32.totalorder %s369, %s370
    %p381 = scmp.eq.s32.totalorder %s25, 0
    %p382 = por %p380, %p381
    %p383 = scmp.ne.s32.totalorder %s369, %s370
    %p384 = scmp.eq.s32.totalorder %s26, 1
    %p385 = por %p383, %p384
    %p387 = scmp.ne.s32.totalorder %s370, %s386
    %p388 = scmp.eq.s32.totalorder %s26, 0
    %p389 = por %p387, %p388
    %p390 = scmp.le.s32.totalorder 1, %s20
    %p391 = scmp.lt.s32.totalorder %s20, 3
    %p392 = pnand %p390, %p391
    %p393 = pneg %p392
    // Predicated region
    $region9: #{fwd.10} parent=5 // pred_check
      _
    $region10: #{fwd.10} parent=5 // pred_check_branch
      %395 = sbr.rel (%p392) target = $region12
    $region11: #{fwd.10} parent=5 // pred_region
      %s396 = ssub.s32 %s20, 1
      // Predicated region
      $region13: #{fwd.10} parent=11 // pred_check
        %p397 = pneg %p165
      $region14: #{fwd.10} parent=11 // pred_check_branch
        %399 = sbr.rel (%p397) target = $region16
      $region15: #{fwd.10} parent=11 // pred_region
        _
      $region16: #{fwd.10} parent=11 // pred_fallthru
        _
      // Predicated region
      $region17: #{fwd.10} parent=11 // pred_check
        %p400 = pneg %p186
      $region18: #{fwd.10} parent=11 // pred_check_branch
        %402 = sbr.rel (%p400) target = $region20
      $region19: #{fwd.10} parent=11 // pred_region
        _
      $region20: #{fwd.10} parent=11 // pred_fallthru
        _
      // Predicated region
      $region21: #{fwd.10} parent=11 // pred_check
        %p403 = pneg %p207
      $region22: #{fwd.10} parent=11 // pred_check_branch
        %405 = sbr.rel (%p403) target = $region24
      $region23: #{fwd.10} parent=11 // pred_region
        _
      $region24: #{fwd.10} parent=11 // pred_fallthru
        _
      // Predicated region
      $region25: #{fwd.10} parent=11 // pred_check
        %p406 = pneg %p228
      $region26: #{fwd.10} parent=11 // pred_check_branch
        %408 = sbr.rel (%p406) target = $region28
      $region27: #{fwd.10} parent=11 // pred_region
        _
      $region28: #{fwd.10} parent=11 // pred_fallthru
        _
      // Predicated region
      $region29: #{fwd.10} parent=11 // pred_check
        %p409 = pneg %p249
      $region30: #{fwd.10} parent=11 // pred_check_branch
        %411 = sbr.rel (%p409) target = $region32
      $region31: #{fwd.10} parent=11 // pred_region
        _
      $region32: #{fwd.10} parent=11 // pred_fallthru
        _
      // Predicated region
      $region33: #{fwd.10} parent=11 // pred_check
        %p412 = pneg %p270
      $region34: #{fwd.10} parent=11 // pred_check_branch
        %414 = sbr.rel (%p412) target = $region36
      $region35: #{fwd.10} parent=11 // pred_region
        _
      $region36: #{fwd.10} parent=11 // pred_fallthru
        _
      // Predicated region
      $region37: #{fwd.10} parent=11 // pred_check
        %p415 = pneg %p291
      $region38: #{fwd.10} parent=11 // pred_check_branch
        %417 = sbr.rel (%p415) target = $region40
      $region39: #{fwd.10} parent=11 // pred_region
        _
      $region40: #{fwd.10} parent=11 // pred_fallthru
        _
      // Predicated region
      $region41: #{fwd.10} parent=11 // pred_check
        %p418 = pneg %p312
      $region42: #{fwd.10} parent=11 // pred_check_branch
        %420 = sbr.rel (%p418) target = $region44
      $region43: #{fwd.10} parent=11 // pred_region
        _
      $region44: #{fwd.10} parent=11 // pred_fallthru
        _
      // Predicated region
      $region45: #{fwd.10} parent=11 // pred_check
        %p421 = pneg %p333
      $region46: #{fwd.10} parent=11 // pred_check_branch
        %423 = sbr.rel (%p421) target = $region48
      $region47: #{fwd.10} parent=11 // pred_region
        _
      $region48: #{fwd.10} parent=11 // pred_fallthru
        _
      // Predicated region
      $region49: #{fwd.10} parent=11 // pred_check
        %p424 = pneg %p354
      $region50: #{fwd.10} parent=11 // pred_check_branch
        %426 = sbr.rel (%p424) target = $region52
      $region51: #{fwd.10} parent=11 // pred_region
        _
      $region52: #{fwd.10} parent=11 // pred_fallthru
        _
    $region12: #{fwd.10} parent=5 // pred_fallthru
      _
    %p427 = scmp.lt.s32.totalorder %s20, 2
    // Predicated region
    $region53: #{fwd.10} parent=5 // pred_check
      %p428 = pneg %p427
    $region54: #{fwd.10} parent=5 // pred_check_branch
      %430 = sbr.rel (%p428) target = $region56
    $region55: #{fwd.10} parent=5 // pred_region
      // Predicated region
      $region57: #{fwd.10} parent=55 // pred_check
        %p431 = pneg %p54
      $region58: #{fwd.10} parent=55 // pred_check_branch
        %433 = sbr.rel (%p431) target = $region60
      $region59: #{fwd.10} parent=55 // pred_region
        %p434 = scmp.lt.s32.totalorder %s27, 1
        %s435 = scalar_select %p434, %s27, 1
        %p436 = scmp.lt.s32.totalorder %s28, 0
        %s437 = scalar_select %p436, %s28, 0
        %s438 = sadd.s32 %s437, %s435
        %s439 = smul.addr %s438, 8
        %s440 = scalar_lea.vmem %s0, %s439
      $region60: #{fwd.10} parent=55 // pred_fallthru
        _
      // Predicated region
      $region61: #{fwd.10} parent=55 // pred_check
        %p441 = pneg %p82
      $region62: #{fwd.10} parent=55 // pred_check_branch
        %443 = sbr.rel (%p441) target = $region64
      $region63: #{fwd.10} parent=55 // pred_region
        %s444 = smul.u32 8, %s28
        %p445 = scmp.lt.s32.totalorder %s27, 1
        %s446 = scalar_select %p445, %s27, 1
        %p447 = scmp.lt.s32.totalorder %s444, 7
        %s448 = scalar_select %p447, %s444, 7
        %s449 = smul.addr %s446, 8
        %s450 = sadd.s32 %s448, %s449
        %s451 = smul.addr %s450, 2
        %s452 = scalar_lea.vmem %s1, %s451
        %s453 = smul.u32 8, %s28
      $region64: #{fwd.10} parent=55 // pred_fallthru
        _
      // Predicated region
      $region65: #{fwd.10} parent=55 // pred_check
        %p454 = pneg %p110
      $region66: #{fwd.10} parent=55 // pred_check_branch
        %456 = sbr.rel (%p454) target = $region68
      $region67: #{fwd.10} parent=55 // pred_region
        %s457 = smul.u32 8, %s28
        %p458 = scmp.lt.s32.totalorder %s27, 1
        %s459 = scalar_select %p458, %s27, 1
        %p460 = scmp.lt.s32.totalorder %s457, 7
        %s461 = scalar_select %p460, %s457, 7
        %s462 = smul.addr %s459, 8
        %s463 = sadd.s32 %s461, %s462
        %s464 = smul.addr %s463, 2
        %s465 = scalar_lea.vmem %s2, %s464
        %s466 = smul.u32 8, %s28
      $region68: #{fwd.10} parent=55 // pred_fallthru
        _
      // Predicated region
      $region69: #{fwd.10} parent=55 // pred_check
        %p467 = pneg %p138
      $region70: #{fwd.10} parent=55 // pred_check_branch
        %469 = sbr.rel (%p467) target = $region72
      $region71: #{fwd.10} parent=55 // pred_region
        %s470 = smul.u32 8, %s28
        %p471 = scmp.lt.s32.totalorder %s27, 1
        %s472 = scalar_select %p471, %s27, 1
        %p473 = scmp.lt.s32.totalorder %s470, 7
        %s474 = scalar_select %p473, %s470, 7
        %s475 = smul.addr %s472, 8
        %s476 = sadd.s32 %s474, %s475
        %s477 = smul.addr %s476, 4
        %s478 = scalar_lea.vmem %s3, %s477
        %s479 = smul.u32 8, %s28
      $region72: #{fwd.10} parent=55 // pred_fallthru
        _
    $region56: #{fwd.10} parent=5 // pred_fallthru
      _
    %p480 = scmp.le.s32.totalorder 1, %s20
    %p481 = scmp.lt.s32.totalorder %s20, 3
    %p482 = pnand %p480, %p481
    %p483 = pneg %p482
    // Predicated region
    $region73: #{fwd.10} parent=5 // pred_check
      _
    $region74: #{fwd.10} parent=5 // pred_check_branch
      %485 = sbr.rel (%p482) target = $region76
    $region75: #{fwd.10} parent=5 // pred_region
      %s486 = ssub.s32 %s20, 1
      %p487 = scmp.lt.s32.totalorder %s29, 1
      %s488 = scalar_select %p487, %s29, 1
      %p489 = scmp.lt.s32.totalorder %s30, 0
      %s490 = scalar_select %p489, %s30, 0
      %s491 = sadd.s32 %s490, %s488
      %s492 = smul.addr %s491, 8
      %s493 = scalar_lea.vmem %s0, %s492
      %p494 = pneg %p60
      %p495 = pneg %p57
      %s496 = smul.u32 8, %s30
      %p497 = scmp.lt.s32.totalorder %s29, 1
      %s498 = scalar_select %p497, %s29, 1
      %p499 = scmp.lt.s32.totalorder %s496, 7
      %s500 = scalar_select %p499, %s496, 7
      %s501 = smul.addr %s498, 8
      %s502 = sadd.s32 %s500, %s501
      %s503 = smul.addr %s502, 2
      %s504 = scalar_lea.vmem %s1, %s503
      %p505 = pneg %p88
      %p506 = pneg %p85
      %s507 = smul.u32 8, %s30
      %p508 = scmp.lt.s32.totalorder %s29, 1
      %s509 = scalar_select %p508, %s29, 1
      %p510 = scmp.lt.s32.totalorder %s507, 7
      %s511 = scalar_select %p510, %s507, 7
      %s512 = smul.addr %s509, 8
      %s513 = sadd.s32 %s511, %s512
      %s514 = smul.addr %s513, 2
      %s515 = scalar_lea.vmem %s2, %s514
      %p516 = pneg %p116
      %p517 = pneg %p113
      %s518 = smul.u32 8, %s30
      %p519 = scmp.lt.s32.totalorder %s29, 1
      %s520 = scalar_select %p519, %s29, 1
      %p521 = scmp.lt.s32.totalorder %s518, 7
      %s522 = scalar_select %p521, %s518, 7
      %s523 = smul.addr %s520, 8
      %s524 = sadd.s32 %s522, %s523
      %s525 = smul.addr %s524, 4
      %s526 = scalar_lea.vmem %s3, %s525
      %p527 = pneg %p144
      %p528 = pneg %p141
      %p529 = pneg %p165
      %p530 = pneg %p162
      %p531 = pneg %p186
      %p532 = pneg %p183
      %p533 = pneg %p207
      %p534 = pneg %p204
      %p535 = pneg %p228
      %p536 = pneg %p225
      %p537 = pneg %p249
      %p538 = pneg %p246
      %p539 = pneg %p270
      %p540 = pneg %p267
      %p541 = pneg %p291
      %p542 = pneg %p288
      %p543 = pneg %p312
      %p544 = pneg %p309
      %p545 = pneg %p333
      %p546 = pneg %p330
      %p547 = pneg %p354
      %p548 = pneg %p351
      %p549 = pneg %p382
      %p550 = pneg %p379
      %p551 = scmp.lt.s32.totalorder %s29, 1
      %s552 = scalar_select %p551, %s29, 1
      %p553 = scmp.lt.s32.totalorder %s30, 0
      %s554 = scalar_select %p553, %s30, 0
      %s555 = sadd.s32 %s554, %s552
      %s556 = smul.addr %s555, 8
      %s557 = scalar_lea.vmem %s14, %s556
      %p558 = scmp.lt.s32.totalorder %s29, 1
      %s559 = scalar_select %p558, %s29, 1
      %p560 = scmp.lt.s32.totalorder %s30, 0
      %s561 = scalar_select %p560, %s30, 0
      %s562 = sadd.s32 %s561, %s559
      %s563 = smul.addr %s562, 8
      %s564 = scalar_lea.vmem %s0, %s563
      %s565 = smul.u32 8, %s30
      %p566 = scmp.lt.s32.totalorder %s29, 1
      %s567 = scalar_select %p566, %s29, 1
      %p568 = scmp.lt.s32.totalorder %s565, 7
      %s569 = scalar_select %p568, %s565, 7
      %s570 = smul.addr %s567, 8
      %s571 = sadd.s32 %s569, %s570
      %s572 = smul.addr %s571, 2
      %s573 = scalar_lea.vmem %s1, %s572
      %s574 = smul.u32 8, %s30
      %s575 = smul.u32 8, %s30
      %p576 = scmp.lt.s32.totalorder %s29, 1
      %s577 = scalar_select %p576, %s29, 1
      %p578 = scmp.lt.s32.totalorder %s575, 7
      %s579 = scalar_select %p578, %s575, 7
      %s580 = smul.addr %s577, 8
      %s581 = sadd.s32 %s579, %s580
      %s582 = smul.addr %s581, 2
      %s583 = scalar_lea.vmem %s2, %s582
      %s584 = smul.u32 8, %s30
      %s585 = smul.u32 8, %s30
      %p586 = scmp.lt.s32.totalorder %s29, 1
      %s587 = scalar_select %p586, %s29, 1
      %p588 = scmp.lt.s32.totalorder %s585, 7
      %s589 = scalar_select %p588, %s585, 7
      %s590 = smul.addr %s587, 8
      %s591 = sadd.s32 %s589, %s590
      %s592 = smul.addr %s591, 4
      %s593 = scalar_lea.vmem %s3, %s592
      %s594 = smul.u32 8, %s30
      %p595 = scmp.lt.s32.totalorder %s29, 1
      %s596 = scalar_select %p595, %s29, 1
      %p597 = scmp.lt.s32.totalorder %s30, 0
      %s598 = scalar_select %p597, %s30, 0
      %s599 = sadd.s32 %s598, %s596
      %s600 = smul.addr %s599, 8
      %s601 = scalar_lea.vmem %s14, %s600
      %v603 = vld [vmem:[%s564] sm:$0xff]
      %v604 = vld [vmem:[%s4] sm:$0x3]
      %v605 = vld [vmem:[%s5] sm:$0x1]
      %v606 = vld [vmem:[%s6] sm:$0xf]
      %v607 = vld [vmem:[%s6 + $0x4] sm:$0xf]
      %v608 = vld [vmem:[%s6 + $0x8] sm:$0xf]
      %v609 = vld [vmem:[%s6 + $0xc] sm:$0xf]
      %v610 = vld [vmem:[%s6 + $0x10] sm:$0xf]
      %v611 = vld [vmem:[%s6 + $0x14] sm:$0xf]
      %v612 = vld [vmem:[%s6 + $0x18] sm:$0xf]
      %v613 = vld [vmem:[%s6 + $0x1c] sm:$0xf]
      %v614 = vld [vmem:[%s6 + $0x20] sm:$0xf]
      %v615 = vld [vmem:[%s6 + $0x24] sm:$0xf]
      %v616 = vld [vmem:[%s6 + $0x28] sm:$0xf]
      %v617 = vld [vmem:[%s6 + $0x2c] sm:$0xf]
      %v618 = vld [vmem:[%s6 + $0x30] sm:$0xf]
      %v619 = vld [vmem:[%s6 + $0x34] sm:$0xf]
      %v620 = vld [vmem:[%s6 + $0x38] sm:$0xf]
      %v621 = vld [vmem:[%s6 + $0x3c] sm:$0xf]
      %v622 = vld [vmem:[%s7] sm:$0x1]
      %v623 = vld [vmem:[%s573] sm:$0x3]
      %v624 = vld [vmem:[%s573 + $0x2] sm:$0x3]
      %v625 = vld [vmem:[%s573 + $0x4] sm:$0x3]
      %v626 = vld [vmem:[%s573 + $0x6] sm:$0x3]
      %v627 = vld [vmem:[%s573 + $0x8] sm:$0x3]
      %v628 = vld [vmem:[%s573 + $0xa] sm:$0x3]
      %v629 = vld [vmem:[%s573 + $0xc] sm:$0x3]
      %v630 = vld [vmem:[%s573 + $0xe] sm:$0x3]
      %v631 = vunpack.c.l.bf16 %v623
      %v632 = vunpack.c.l.bf16 %v624
      %v633 = vunpack.c.l.bf16 %v625
      %v634 = vunpack.c.l.bf16 %v626
      %v635 = vunpack.c.l.bf16 %v627
      %v636 = vunpack.c.l.bf16 %v628
      %v637 = vunpack.c.l.bf16 %v629
      %v638 = vunpack.c.l.bf16 %v630
      %v639 = vld [vmem:[%s583] sm:$0x3]
      %v640 = vld [vmem:[%s583 + $0x2] sm:$0x3]
      %v641 = vld [vmem:[%s583 + $0x4] sm:$0x3]
      %v642 = vld [vmem:[%s583 + $0x6] sm:$0x3]
      %v643 = vld [vmem:[%s583 + $0x8] sm:$0x3]
      %v644 = vld [vmem:[%s583 + $0xa] sm:$0x3]
      %v645 = vld [vmem:[%s583 + $0xc] sm:$0x3]
      %v646 = vld [vmem:[%s583 + $0xe] sm:$0x3]
      %v647 = vunpack.c.l.bf16 %v639
      %v648 = vunpack.c.l.bf16 %v640
      %v649 = vunpack.c.l.bf16 %v641
      %v650 = vunpack.c.l.bf16 %v642
      %v651 = vunpack.c.l.bf16 %v643
      %v652 = vunpack.c.l.bf16 %v644
      %v653 = vunpack.c.l.bf16 %v645
      %v654 = vunpack.c.l.bf16 %v646
      %v655 = vld [vmem:[%s593] sm:$0xf]
      %v656 = vld [vmem:[%s593 + $0x4] sm:$0xf]
      %v657 = vld [vmem:[%s593 + $0x8] sm:$0xf]
      %v658 = vld [vmem:[%s593 + $0xc] sm:$0xf]
      %v659 = vld [vmem:[%s593 + $0x10] sm:$0xf]
      %v660 = vld [vmem:[%s593 + $0x14] sm:$0xf]
      %v661 = vld [vmem:[%s593 + $0x18] sm:$0xf]
      %v662 = vld [vmem:[%s593 + $0x1c] sm:$0xf]
      %664 = vset.pattern.permute.xlu0 0
      %665 = vperm.xlu0 %664, %v655
      %v666 = vpop.permute.xlu0 %665
      %669 = vset.pattern.permute.xlu0 0
      %670 = vperm.xlu0 %669, %v656
      %v671 = vpop.permute.xlu0 %670
      %674 = vset.pattern.permute.xlu0 0
      %675 = vperm.xlu0 %674, %v657
      %v676 = vpop.permute.xlu0 %675
      %679 = vset.pattern.permute.xlu0 0
      %680 = vperm.xlu0 %679, %v658
      %v681 = vpop.permute.xlu0 %680
      %684 = vset.pattern.permute.xlu0 0
      %685 = vperm.xlu0 %684, %v659
      %v686 = vpop.permute.xlu0 %685
      %689 = vset.pattern.permute.xlu0 0
      %690 = vperm.xlu0 %689, %v660
      %v691 = vpop.permute.xlu0 %690
      %694 = vset.pattern.permute.xlu0 0
      %695 = vperm.xlu0 %694, %v661
      %v696 = vpop.permute.xlu0 %695
      %699 = vset.pattern.permute.xlu0 0
      %700 = vperm.xlu0 %699, %v662
      %v701 = vpop.permute.xlu0 %700
      %v703 = vlaneseq
      %v704 = vshrl.u32 %v703, 7
      %v705 = vsub.s32 0, %v704
      %v706 = vrot.slane %v604, %v705
      %v707 = vmul.f32 %v666, %v706
      %v708 = vmul.f32 %v671, %v706
      %v709 = vmul.f32 %v676, %v706
      %v710 = vmul.f32 %v681, %v706
      %v711 = vmul.f32 %v686, %v706
      %v712 = vmul.f32 %v691, %v706
      %v713 = vmul.f32 %v696, %v706
      %v714 = vmul.f32 %v701, %v706
      %715 = vset.pattern.permute.xlu0 1
      %716 = vperm.xlu0 %715, %v655
      %v717 = vpop.permute.xlu0 %716
      %719 = vset.pattern.permute.xlu0 1
      %720 = vperm.xlu0 %719, %v656
      %v721 = vpop.permute.xlu0 %720
      %723 = vset.pattern.permute.xlu0 1
      %724 = vperm.xlu0 %723, %v657
      %v725 = vpop.permute.xlu0 %724
      %727 = vset.pattern.permute.xlu0 1
      %728 = vperm.xlu0 %727, %v658
      %v729 = vpop.permute.xlu0 %728
      %731 = vset.pattern.permute.xlu0 1
      %732 = vperm.xlu0 %731, %v659
      %v733 = vpop.permute.xlu0 %732
      %735 = vset.pattern.permute.xlu0 1
      %736 = vperm.xlu0 %735, %v660
      %v737 = vpop.permute.xlu0 %736
      %739 = vset.pattern.permute.xlu0 1
      %740 = vperm.xlu0 %739, %v661
      %v741 = vpop.permute.xlu0 %740
      %743 = vset.pattern.permute.xlu0 1
      %744 = vperm.xlu0 %743, %v662
      %v745 = vpop.permute.xlu0 %744
      %v747 = vlaneseq
      %v748 = vshrl.u32 %v747, 7
      %v749 = vsub.s32 1, %v748
      %v750 = vrot.slane %v604, %v749
      %v751 = vmul.f32 %v717, %v750
      %v752 = vmul.f32 %v721, %v750
      %v753 = vmul.f32 %v725, %v750
      %v754 = vmul.f32 %v729, %v750
      %v755 = vmul.f32 %v733, %v750
      %v756 = vmul.f32 %v737, %v750
      %v757 = vmul.f32 %v741, %v750
      %v758 = vmul.f32 %v745, %v750
      %v759 = vadd.f32 %v707, %v751
      %v760 = vadd.f32 %v708, %v752
      %v761 = vadd.f32 %v709, %v753
      %v762 = vadd.f32 %v710, %v754
      %v763 = vadd.f32 %v711, %v755
      %v764 = vadd.f32 %v712, %v756
      %v765 = vadd.f32 %v713, %v757
      %v766 = vadd.f32 %v714, %v758
      %v768 = vlaneseq
      %v769 = vshrl.u32 %v768, 7
      %v770 = vsub.s32 0, %v769
      %v771 = vrot.slane %v605, %v770
      %v773 = vadd.f32 %v759, %v771
      %v774 = vadd.f32 %v760, %v771
      %v775 = vadd.f32 %v761, %v771
      %v776 = vadd.f32 %v762, %v771
      %v777 = vadd.f32 %v763, %v771
      %v778 = vadd.f32 %v764, %v771
      %v779 = vadd.f32 %v765, %v771
      %v780 = vadd.f32 %v766, %v771
      %v781 = vmax.f32 %v773, 0.0
      %v782 = vmax.f32 %v774, 0.0
      %v783 = vmax.f32 %v775, 0.0
      %v784 = vmax.f32 %v776, 0.0
      %v785 = vmax.f32 %v777, 0.0
      %v786 = vmax.f32 %v778, 0.0
      %v787 = vmax.f32 %v779, 0.0
      %v788 = vmax.f32 %v780, 0.0
      %v797 = vcombine.low %v781, %v782
      %v798 = vcombine.low %v783, %v784
      %v799 = vcombine.low %v785, %v786
      %v800 = vcombine.low %v787, %v788
      %v805 = vpack.c.bf16 %v798, %v797
      %v806 = vpack.c.bf16 %v800, %v799
      %v808 = vlaneseq
      %v809 = vshrl.u32 %v808, 7
      %v810 = vsub.s32 0, %v809
      %v811 = vrot.slane %v622, %v810
      %v829 = vunpack.c.l.b16 %v606
      %v830 = vunpack.c.l.b16 %v607
      %v831 = vunpack.c.l.b16 %v608
      %v832 = vunpack.c.l.b16 %v609
      %v833 = vunpack.c.l.b16 %v610
      %v834 = vunpack.c.l.b16 %v611
      %v835 = vunpack.c.l.b16 %v612
      %v836 = vunpack.c.l.b16 %v613
      %v837 = vunpack.c.l.b16 %v614
      %v838 = vunpack.c.l.b16 %v615
      %v839 = vunpack.c.l.b16 %v616
      %v840 = vunpack.c.l.b16 %v617
      %v841 = vunpack.c.l.b16 %v618
      %v842 = vunpack.c.l.b16 %v619
      %v843 = vunpack.c.l.b16 %v620
      %v844 = vunpack.c.l.b16 %v621
      %v845 = vpack.c.b16 %v830, %v829
      %v846 = vpack.c.b16 %v832, %v831
      %v847 = vpack.c.b16 %v834, %v833
      %v848 = vpack.c.b16 %v836, %v835
      %v849 = vpack.c.b16 %v838, %v837
      %v850 = vpack.c.b16 %v840, %v839
      %v851 = vpack.c.b16 %v842, %v841
      %v852 = vpack.c.b16 %v844, %v843
      %861 = vmatprep.subr.bf16.mxu0 0
      %862 = vmatpush1.bf16.msra.mxu0 %v852
      %863 = vmatprep.subr.bf16.mxu0 0
      %864 = vmatpush1.bf16.msra.mxu0 %v851
      %865 = vmatprep.subr.bf16.mxu0 0
      %866 = vmatpush1.bf16.msra.mxu0 %v850
      %867 = vmatprep.subr.bf16.mxu0 0
      %868 = vmatpush1.bf16.msra.mxu0 %v849
      %869 = vmatprep.subr.bf16.mxu0 0
      %870 = vmatpush1.bf16.msra.mxu0 %v848
      %871 = vmatprep.subr.bf16.mxu0 0
      %872 = vmatpush1.bf16.msra.mxu0 %v847
      %873 = vmatprep.subr.bf16.mxu0 0
      %874 = vmatpush1.bf16.msra.mxu0 %v846
      %875 = vmatprep.subr.bf16.mxu0 0
      %876 = vmatpush1.bf16.msra.mxu0 %v845
      %877 = vmatprep.subr.bf16.mxu0 0
      %878 = vmatpush2.bf16.msra.mxu0 0
      %879 = vmatprep.subr.bf16.mxu0 0
      %880 = vmatpush2.bf16.msra.mxu0 0
      %881 = vmatprep.subr.bf16.mxu0 0
      %882 = vmatpush2.bf16.msra.mxu0 0
      %883 = vmatprep.subr.bf16.mxu0 0
      %884 = vmatpush2.bf16.msra.mxu0 0
      %885 = vmatprep.subr.bf16.mxu0 0
      %886 = vmatpush2.bf16.msra.mxu0 0
      %887 = vmatprep.subr.bf16.mxu0 0
      %888 = vmatpush2.bf16.msra.mxu0 0
      %889 = vmatprep.subr.bf16.mxu0 0
      %890 = vmatpush2.bf16.msra.mxu0 0
      %891 = vmatprep.subr.bf16.mxu0 0
      %892 = vmatpush2.bf16.msra.mxu0 0
      %893 = vmatprep.mubr.bf16.mxu0 0
      %894 = vmatmul.mubr.bf16.gmra.mxu0 %v805
      %v895 = vpop.f32.mrf.mxu0
      %v896 = vadd.f32 %v811, %v895
      %v897 = vpop.f32.mrf.mxu0
      %v898 = vpop.f32.mrf.mxu0
      %v899 = vadd.f32 %v811, %v898
      %v900 = vpop.f32.mrf.mxu0
      %901 = vmatprep.mubr.bf16.mxu0 0
      %902 = vmatmul.mubr.bf16.gmra.mxu0 %v806
      %v903 = vpop.f32.mrf.mxu0
      %v904 = vadd.f32 %v811, %v903
      %v905 = vpop.f32.mrf.mxu0
      %v906 = vpop.f32.mrf.mxu0
      %v907 = vadd.f32 %v811, %v906
      %v908 = vpop.f32.mrf.mxu0
      %909 = vdwg.mxu0
      %v914 = vcombine.high %v896, %v896
      %v915 = vcombine.high %v899, %v899
      %v916 = vcombine.high %v904, %v904
      %v917 = vcombine.high %v907, %v907
      %v922 = vadd.f32 %v631, %v896
      %v923 = vadd.f32 %v632, %v914
      %v924 = vadd.f32 %v633, %v899
      %v925 = vadd.f32 %v634, %v915
      %v926 = vadd.f32 %v635, %v904
      %v927 = vadd.f32 %v636, %v916
      %v928 = vadd.f32 %v637, %v907
      %v929 = vadd.f32 %v638, %v917
      %v930 = vadd.f32 %v647, %v896
      %v931 = vadd.f32 %v648, %v914
      %v932 = vadd.f32 %v649, %v899
      %v933 = vadd.f32 %v650, %v915
      %v934 = vadd.f32 %v651, %v904
      %v935 = vadd.f32 %v652, %v916
      %v936 = vadd.f32 %v653, %v907
      %v937 = vadd.f32 %v654, %v917
      %v939 = vcombine.high %v603, %v603
      %v941 = vunpack.c.l.s4 1966171168
      %v942 = vunpack.c.0.s8 %v941
      %v943 = vlaneseq
      %v944 = vshrl.u32 %v943, 7
      %v945 = vsub.s32 %v942, %v944
      %v946 = vrot.slane %v603, %v945
      %v948 = vunpack.c.l.s4 1966171168
      %v949 = vunpack.c.0.s8 %v948
      %v950 = vlaneseq
      %v951 = vshrl.u32 %v950, 7
      %v952 = vsub.s32 %v949, %v951
      %v953 = vrot.slane %v939, %v952
      %v954 = vcombine.high %v946, %v946
      %v955 = vcombine.high %v953, %v953
      %v957 = vunpack.c.l.s4 1966171168
      %v958 = vunpack.c.0.s8 %v957
      %v959 = vlaneseq
      %v960 = vshrl.u32 %v959, 7
      %v961 = vsub.s32 %v958, %v960
      %v962 = vrot.slane %v946, %v961
      %v964 = vunpack.c.l.s4 1966171168
      %v965 = vunpack.c.0.s8 %v964
      %v966 = vlaneseq
      %v967 = vshrl.u32 %v966, 7
      %v968 = vsub.s32 %v965, %v967
      %v969 = vrot.slane %v953, %v968
      %v971 = vunpack.c.l.s4 1966171168
      %v972 = vunpack.c.0.s8 %v971
      %v973 = vlaneseq
      %v974 = vshrl.u32 %v973, 7
      %v975 = vsub.s32 %v972, %v974
      %v976 = vrot.slane %v954, %v975
      %v978 = vunpack.c.l.s4 1966171168
      %v979 = vunpack.c.0.s8 %v978
      %v980 = vlaneseq
      %v981 = vshrl.u32 %v980, 7
      %v982 = vsub.s32 %v979, %v981
      %v983 = vrot.slane %v955, %v982
      %v984 = vcombine.high %v962, %v962
      %v985 = vcombine.high %v969, %v969
      %v986 = vcombine.high %v976, %v976
      %v987 = vcombine.high %v983, %v983
      %v988 = vlaneseq
      %v989 = vshrl.u32 %v988, 7
      %v990 = vsub.s32 0, %v989
      %v991 = vrot.slane %v962, %v990
      %v992 = vlaneseq
      %v993 = vshrl.u32 %v992, 7
      %v994 = vsub.s32 0, %v993
      %v995 = vrot.slane %v976, %v994
      %v996 = vlaneseq
      %v997 = vshrl.u32 %v996, 7
      %v998 = vsub.s32 0, %v997
      %v999 = vrot.slane %v984, %v998
      %v1000 = vlaneseq
      %v1001 = vshrl.u32 %v1000, 7
      %v1002 = vsub.s32 0, %v1001
      %v1003 = vrot.slane %v986, %v1002
      %v1004 = vlaneseq
      %v1005 = vshrl.u32 %v1004, 7
      %v1006 = vsub.s32 0, %v1005
      %v1007 = vrot.slane %v969, %v1006
      %v1008 = vlaneseq
      %v1009 = vshrl.u32 %v1008, 7
      %v1010 = vsub.s32 0, %v1009
      %v1011 = vrot.slane %v983, %v1010
      %v1012 = vlaneseq
      %v1013 = vshrl.u32 %v1012, 7
      %v1014 = vsub.s32 0, %v1013
      %v1015 = vrot.slane %v985, %v1014
      %v1016 = vlaneseq
      %v1017 = vshrl.u32 %v1016, 7
      %v1018 = vsub.s32 0, %v1017
      %v1019 = vrot.slane %v987, %v1018
      %v1028 = vmul.f32 %v991, %v922
      %v1029 = vmul.f32 %v995, %v923
      %v1030 = vmul.f32 %v999, %v924
      %v1031 = vmul.f32 %v1003, %v925
      %v1032 = vmul.f32 %v1007, %v926
      %v1033 = vmul.f32 %v1011, %v927
      %v1034 = vmul.f32 %v1015, %v928
      %v1035 = vmul.f32 %v1019, %v929
      %vm1036 = vcmask 1043456
      %v1037 = vsel %vm1036, %v1028, 0.0
      %1038 = vadd.xlane.f32.xlu0 %v1037
      %v1039 = vpop.xlane.xlu0 %1038
      %v1040 = vsel %vm1036, %v1029, 0.0
      %1041 = vadd.xlane.f32.xlu0 %v1040
      %v1042 = vpop.xlane.xlu0 %1041
      %v1043 = vsel %vm1036, %v1030, 0.0
      %1044 = vadd.xlane.f32.xlu0 %v1043
      %v1045 = vpop.xlane.xlu0 %1044
      %v1046 = vsel %vm1036, %v1031, 0.0
      %1047 = vadd.xlane.f32.xlu0 %v1046
      %v1048 = vpop.xlane.xlu0 %1047
      %v1049 = vsel %vm1036, %v1032, 0.0
      %1050 = vadd.xlane.f32.xlu0 %v1049
      %v1051 = vpop.xlane.xlu0 %1050
      %v1052 = vsel %vm1036, %v1033, 0.0
      %1053 = vadd.xlane.f32.xlu0 %v1052
      %v1054 = vpop.xlane.xlu0 %1053
      %v1055 = vsel %vm1036, %v1034, 0.0
      %1056 = vadd.xlane.f32.xlu0 %v1055
      %v1057 = vpop.xlane.xlu0 %1056
      %v1058 = vsel %vm1036, %v1035, 0.0
      %1059 = vadd.xlane.f32.xlu0 %v1058
      %v1060 = vpop.xlane.xlu0 %1059
      %v1061 = vmul.f32 %v1039, 0.088388346
      %v1062 = vmul.f32 %v1042, 0.088388346
      %v1063 = vmul.f32 %v1045, 0.088388346
      %v1064 = vmul.f32 %v1048, 0.088388346
      %v1065 = vmul.f32 %v1051, 0.088388346
      %v1066 = vmul.f32 %v1054, 0.088388346
      %v1067 = vmul.f32 %v1057, 0.088388346
      %v1068 = vmul.f32 %v1060, 0.088388346
      %v1077 = vlaneseq
      %v1078 = vand.u32 %v1077, 127
      %v1079 = vlaneseq
      %v1080 = vshrl.u32 %v1079, 7
      %v1081 = vsub.s32 %v1078, %v1080
      %v1082 = vrot.slane %v1061, %v1081
      %v1083 = vlaneseq
      %v1084 = vshrl.u32 %v1083, 7
      %v1085 = vsub.s32 %v1078, %v1084
      %v1086 = vrot.slane %v1062, %v1085
      %v1087 = vlaneseq
      %v1088 = vshrl.u32 %v1087, 7
      %v1089 = vsub.s32 %v1078, %v1088
      %v1090 = vrot.slane %v1063, %v1089
      %v1091 = vlaneseq
      %v1092 = vshrl.u32 %v1091, 7
      %v1093 = vsub.s32 %v1078, %v1092
      %v1094 = vrot.slane %v1064, %v1093
      %v1095 = vlaneseq
      %v1096 = vshrl.u32 %v1095, 7
      %v1097 = vsub.s32 %v1078, %v1096
      %v1098 = vrot.slane %v1065, %v1097
      %v1099 = vlaneseq
      %v1100 = vshrl.u32 %v1099, 7
      %v1101 = vsub.s32 %v1078, %v1100
      %v1102 = vrot.slane %v1066, %v1101
      %v1103 = vlaneseq
      %v1104 = vshrl.u32 %v1103, 7
      %v1105 = vsub.s32 %v1078, %v1104
      %v1106 = vrot.slane %v1067, %v1105
      %v1107 = vlaneseq
      %v1108 = vshrl.u32 %v1107, 7
      %v1109 = vsub.s32 %v1078, %v1108
      %v1110 = vrot.slane %v1068, %v1109
      %vm1111 = vcmask 1041409
      %v1112 = vsel %vm1111, %v1086, %v1082
      %vm1113 = vcmask 1042434
      %v1114 = vsel %vm1113, %v1090, %v1112
      %vm1115 = vcmask 1043459
      %v1116 = vsel %vm1115, %v1094, %v1114
      %vm1117 = vcmask 1044484
      %v1118 = vsel %vm1117, %v1098, %v1116
      %vm1119 = vcmask 1045509
      %v1120 = vsel %vm1119, %v1102, %v1118
      %vm1121 = vcmask 1046534
      %v1122 = vsel %vm1121, %v1106, %v1120
      %vm1123 = vcmask 1047559
      %v1124 = vsel %vm1123, %v1110, %v1122
      %vm1126 = vcmask 31744
      %v1127 = vsel %vm1126, %v1124, -inf
      %1128 = vmax.xlane.f32.xlu0 %v1127
      %v1129 = vpop.xlane.xlu0 %1128
      %v1131 = vlaneseq
      %v1132 = vshrl.u32 %v1131, 7
      %v1133 = vsub.s32 0, %v1132
      %v1134 = vrot.slane %v1129, %v1133
      %v1135 = vlaneseq
      %v1136 = vshrl.u32 %v1135, 7
      %v1137 = vsub.s32 1, %v1136
      %v1138 = vrot.slane %v1129, %v1137
      %v1139 = vlaneseq
      %v1140 = vshrl.u32 %v1139, 7
      %v1141 = vsub.s32 2, %v1140
      %v1142 = vrot.slane %v1129, %v1141
      %v1143 = vlaneseq
      %v1144 = vshrl.u32 %v1143, 7
      %v1145 = vsub.s32 3, %v1144
      %v1146 = vrot.slane %v1129, %v1145
      %v1147 = vlaneseq
      %v1148 = vshrl.u32 %v1147, 7
      %v1149 = vsub.s32 4, %v1148
      %v1150 = vrot.slane %v1129, %v1149
      %v1151 = vlaneseq
      %v1152 = vshrl.u32 %v1151, 7
      %v1153 = vsub.s32 5, %v1152
      %v1154 = vrot.slane %v1129, %v1153
      %v1155 = vlaneseq
      %v1156 = vshrl.u32 %v1155, 7
      %v1157 = vsub.s32 6, %v1156
      %v1158 = vrot.slane %v1129, %v1157
      %v1159 = vlaneseq
      %v1160 = vshrl.u32 %v1159, 7
      %v1161 = vsub.s32 7, %v1160
      %v1162 = vrot.slane %v1129, %v1161
      %v1171 = vsub.f32 %v1061, %v1134
      %v1172 = vsub.f32 %v1062, %v1138
      %v1173 = vsub.f32 %v1063, %v1142
      %v1174 = vsub.f32 %v1064, %v1146
      %v1175 = vsub.f32 %v1065, %v1150
      %v1176 = vsub.f32 %v1066, %v1154
      %v1177 = vsub.f32 %v1067, %v1158
      %v1178 = vsub.f32 %v1068, %v1162
      %v1179 = vmul.f32 %v1171, 1.442695
      %v1180 = vpow.pop %v1179
      %v1181 = vmul.f32 %v1172, 1.442695
      %v1182 = vpow.pop %v1181
      %v1183 = vmul.f32 %v1173, 1.442695
      %v1184 = vpow.pop %v1183
      %v1185 = vmul.f32 %v1174, 1.442695
      %v1186 = vpow.pop %v1185
      %v1187 = vmul.f32 %v1175, 1.442695
      %v1188 = vpow.pop %v1187
      %v1189 = vmul.f32 %v1176, 1.442695
      %v1190 = vpow.pop %v1189
      %v1191 = vmul.f32 %v1177, 1.442695
      %v1192 = vpow.pop %v1191
      %v1193 = vmul.f32 %v1178, 1.442695
      %v1194 = vpow.pop %v1193
      %1203 = vset.pattern.permute.xlu0 0
      %1204 = vperm.xlu0 %1203, %v1180
      %v1205 = vpop.permute.xlu0 %1204
      %1206 = vset.pattern.permute.xlu0 0
      %1207 = vperm.xlu0 %1206, %v1182
      %v1208 = vpop.permute.xlu0 %1207
      %1209 = vset.pattern.permute.xlu0 0
      %1210 = vperm.xlu0 %1209, %v1184
      %v1211 = vpop.permute.xlu0 %1210
      %1212 = vset.pattern.permute.xlu0 0
      %1213 = vperm.xlu0 %1212, %v1186
      %v1214 = vpop.permute.xlu0 %1213
      %1215 = vset.pattern.permute.xlu0 0
      %1216 = vperm.xlu0 %1215, %v1188
      %v1217 = vpop.permute.xlu0 %1216
      %1218 = vset.pattern.permute.xlu0 0
      %1219 = vperm.xlu0 %1218, %v1190
      %v1220 = vpop.permute.xlu0 %1219
      %1221 = vset.pattern.permute.xlu0 0
      %1222 = vperm.xlu0 %1221, %v1192
      %v1223 = vpop.permute.xlu0 %1222
      %1224 = vset.pattern.permute.xlu0 0
      %1225 = vperm.xlu0 %1224, %v1194
      %v1226 = vpop.permute.xlu0 %1225
      %v1227 = vlaneseq
      %v1228 = vshrl.u32 %v1227, 7
      %v1229 = vsub.s32 %v1078, %v1228
      %v1230 = vrot.slane %v1205, %v1229
      %v1231 = vlaneseq
      %v1232 = vshrl.u32 %v1231, 7
      %v1233 = vsub.s32 %v1078, %v1232
      %v1234 = vrot.slane %v1208, %v1233
      %v1235 = vlaneseq
      %v1236 = vshrl.u32 %v1235, 7
      %v1237 = vsub.s32 %v1078, %v1236
      %v1238 = vrot.slane %v1211, %v1237
      %v1239 = vlaneseq
      %v1240 = vshrl.u32 %v1239, 7
      %v1241 = vsub.s32 %v1078, %v1240
      %v1242 = vrot.slane %v1214, %v1241
      %v1243 = vlaneseq
      %v1244 = vshrl.u32 %v1243, 7
      %v1245 = vsub.s32 %v1078, %v1244
      %v1246 = vrot.slane %v1217, %v1245
      %v1247 = vlaneseq
      %v1248 = vshrl.u32 %v1247, 7
      %v1249 = vsub.s32 %v1078, %v1248
      %v1250 = vrot.slane %v1220, %v1249
      %v1251 = vlaneseq
      %v1252 = vshrl.u32 %v1251, 7
      %v1253 = vsub.s32 %v1078, %v1252
      %v1254 = vrot.slane %v1223, %v1253
      %v1255 = vlaneseq
      %v1256 = vshrl.u32 %v1255, 7
      %v1257 = vsub.s32 %v1078, %v1256
      %v1258 = vrot.slane %v1226, %v1257
      %v1259 = vsel %vm1111, %v1234, %v1230
      %v1260 = vsel %vm1113, %v1238, %v1259
      %v1261 = vsel %vm1115, %v1242, %v1260
      %v1262 = vsel %vm1117, %v1246, %v1261
      %v1263 = vsel %vm1119, %v1250, %v1262
      %v1264 = vsel %vm1121, %v1254, %v1263
      %v1265 = vsel %vm1123, %v1258, %v1264
      %v1267 = vsel %vm1126, %v1265, 0.0
      %1268 = vadd.xlane.f32.xlu0 %v1267
      %v1269 = vpop.xlane.xlu0 %1268
      %v1270 = vlaneseq
      %v1271 = vshrl.u32 %v1270, 7
      %v1272 = vsub.s32 0, %v1271
      %v1273 = vrot.slane %v1180, %v1272
      %v1274 = vlaneseq
      %v1275 = vshrl.u32 %v1274, 7
      %v1276 = vsub.s32 0, %v1275
      %v1277 = vrot.slane %v1182, %v1276
      %v1278 = vlaneseq
      %v1279 = vshrl.u32 %v1278, 7
      %v1280 = vsub.s32 0, %v1279
      %v1281 = vrot.slane %v1184, %v1280
      %v1282 = vlaneseq
      %v1283 = vshrl.u32 %v1282, 7
      %v1284 = vsub.s32 0, %v1283
      %v1285 = vrot.slane %v1186, %v1284
      %v1286 = vlaneseq
      %v1287 = vshrl.u32 %v1286, 7
      %v1288 = vsub.s32 0, %v1287
      %v1289 = vrot.slane %v1188, %v1288
      %v1290 = vlaneseq
      %v1291 = vshrl.u32 %v1290, 7
      %v1292 = vsub.s32 0, %v1291
      %v1293 = vrot.slane %v1190, %v1292
      %v1294 = vlaneseq
      %v1295 = vshrl.u32 %v1294, 7
      %v1296 = vsub.s32 0, %v1295
      %v1297 = vrot.slane %v1192, %v1296
      %v1298 = vlaneseq
      %v1299 = vshrl.u32 %v1298, 7
      %v1300 = vsub.s32 0, %v1299
      %v1301 = vrot.slane %v1194, %v1300
      %v1310 = vlaneseq
      %v1311 = vshrl.u32 %v1310, 7
      %v1312 = vsub.s32 0, %v1311
      %v1313 = vrot.slane %v930, %v1312
      %v1314 = vlaneseq
      %v1315 = vshrl.u32 %v1314, 7
      %v1316 = vsub.s32 0, %v1315
      %v1317 = vrot.slane %v931, %v1316
      %v1318 = vlaneseq
      %v1319 = vshrl.u32 %v1318, 7
      %v1320 = vsub.s32 0, %v1319
      %v1321 = vrot.slane %v932, %v1320
      %v1322 = vlaneseq
      %v1323 = vshrl.u32 %v1322, 7
      %v1324 = vsub.s32 0, %v1323
      %v1325 = vrot.slane %v933, %v1324
      %v1326 = vlaneseq
      %v1327 = vshrl.u32 %v1326, 7
      %v1328 = vsub.s32 0, %v1327
      %v1329 = vrot.slane %v934, %v1328
      %v1330 = vlaneseq
      %v1331 = vshrl.u32 %v1330, 7
      %v1332 = vsub.s32 0, %v1331
      %v1333 = vrot.slane %v935, %v1332
      %v1334 = vlaneseq
      %v1335 = vshrl.u32 %v1334, 7
      %v1336 = vsub.s32 0, %v1335
      %v1337 = vrot.slane %v936, %v1336
      %v1338 = vlaneseq
      %v1339 = vshrl.u32 %v1338, 7
      %v1340 = vsub.s32 0, %v1339
      %v1341 = vrot.slane %v937, %v1340
      %1343 = vbcast.lane.b32.xlu0 %v1313, 256
      %v1344 = vpop.permute.xlu0 %1343
      %s1346 = sor.u32 256, 8
      %1347 = vbcast.lane.b32.xlu0 %v1313, %s1346
      %v1348 = vpop.permute.xlu0 %1347
      %s1350 = sor.u32 256, 16
      %1351 = vbcast.lane.b32.xlu0 %v1313, %s1350
      %v1352 = vpop.permute.xlu0 %1351
      %s1354 = sor.u32 256, 24
      %1355 = vbcast.lane.b32.xlu0 %v1313, %s1354
      %v1356 = vpop.permute.xlu0 %1355
      %s1358 = sor.u32 256, 32
      %1359 = vbcast.lane.b32.xlu0 %v1313, %s1358
      %v1360 = vpop.permute.xlu0 %1359
      %s1362 = sor.u32 256, 40
      %1363 = vbcast.lane.b32.xlu0 %v1313, %s1362
      %v1364 = vpop.permute.xlu0 %1363
      %s1366 = sor.u32 256, 48
      %1367 = vbcast.lane.b32.xlu0 %v1313, %s1366
      %v1368 = vpop.permute.xlu0 %1367
      %s1370 = sor.u32 256, 56
      %1371 = vbcast.lane.b32.xlu0 %v1313, %s1370
      %v1372 = vpop.permute.xlu0 %1371
      %s1374 = sor.u32 256, 64
      %1375 = vbcast.lane.b32.xlu0 %v1313, %s1374
      %v1376 = vpop.permute.xlu0 %1375
      %s1378 = sor.u32 256, 72
      %1379 = vbcast.lane.b32.xlu0 %v1313, %s1378
      %v1380 = vpop.permute.xlu0 %1379
      %s1382 = sor.u32 256, 80
      %1383 = vbcast.lane.b32.xlu0 %v1313, %s1382
      %v1384 = vpop.permute.xlu0 %1383
      %s1386 = sor.u32 256, 88
      %1387 = vbcast.lane.b32.xlu0 %v1313, %s1386
      %v1388 = vpop.permute.xlu0 %1387
      %s1390 = sor.u32 256, 96
      %1391 = vbcast.lane.b32.xlu0 %v1313, %s1390
      %v1392 = vpop.permute.xlu0 %1391
      %s1394 = sor.u32 256, 104
      %1395 = vbcast.lane.b32.xlu0 %v1313, %s1394
      %v1396 = vpop.permute.xlu0 %1395
      %s1398 = sor.u32 256, 112
      %1399 = vbcast.lane.b32.xlu0 %v1313, %s1398
      %v1400 = vpop.permute.xlu0 %1399
      %s1402 = sor.u32 256, 120
      %1403 = vbcast.lane.b32.xlu0 %v1313, %s1402
      %v1404 = vpop.permute.xlu0 %1403
      %1406 = vbcast.lane.b32.xlu0 %v1317, 256
      %v1407 = vpop.permute.xlu0 %1406
      %s1409 = sor.u32 256, 8
      %1410 = vbcast.lane.b32.xlu0 %v1317, %s1409
      %v1411 = vpop.permute.xlu0 %1410
      %s1413 = sor.u32 256, 16
      %1414 = vbcast.lane.b32.xlu0 %v1317, %s1413
      %v1415 = vpop.permute.xlu0 %1414
      %s1417 = sor.u32 256, 24
      %1418 = vbcast.lane.b32.xlu0 %v1317, %s1417
      %v1419 = vpop.permute.xlu0 %1418
      %s1421 = sor.u32 256, 32
      %1422 = vbcast.lane.b32.xlu0 %v1317, %s1421
      %v1423 = vpop.permute.xlu0 %1422
      %s1425 = sor.u32 256, 40
      %1426 = vbcast.lane.b32.xlu0 %v1317, %s1425
      %v1427 = vpop.permute.xlu0 %1426
      %s1429 = sor.u32 256, 48
      %1430 = vbcast.lane.b32.xlu0 %v1317, %s1429
      %v1431 = vpop.permute.xlu0 %1430
      %s1433 = sor.u32 256, 56
      %1434 = vbcast.lane.b32.xlu0 %v1317, %s1433
      %v1435 = vpop.permute.xlu0 %1434
      %s1437 = sor.u32 256, 64
      %1438 = vbcast.lane.b32.xlu0 %v1317, %s1437
      %v1439 = vpop.permute.xlu0 %1438
      %s1441 = sor.u32 256, 72
      %1442 = vbcast.lane.b32.xlu0 %v1317, %s1441
      %v1443 = vpop.permute.xlu0 %1442
      %s1445 = sor.u32 256, 80
      %1446 = vbcast.lane.b32.xlu0 %v1317, %s1445
      %v1447 = vpop.permute.xlu0 %1446
      %s1449 = sor.u32 256, 88
      %1450 = vbcast.lane.b32.xlu0 %v1317, %s1449
      %v1451 = vpop.permute.xlu0 %1450
      %s1453 = sor.u32 256, 96
      %1454 = vbcast.lane.b32.xlu0 %v1317, %s1453
      %v1455 = vpop.permute.xlu0 %1454
      %s1457 = sor.u32 256, 104
      %1458 = vbcast.lane.b32.xlu0 %v1317, %s1457
      %v1459 = vpop.permute.xlu0 %1458
      %s1461 = sor.u32 256, 112
      %1462 = vbcast.lane.b32.xlu0 %v1317, %s1461
      %v1463 = vpop.permute.xlu0 %1462
      %s1465 = sor.u32 256, 120
      %1466 = vbcast.lane.b32.xlu0 %v1317, %s1465
      %v1467 = vpop.permute.xlu0 %1466
      %1469 = vbcast.lane.b32.xlu0 %v1321, 256
      %v1470 = vpop.permute.xlu0 %1469
      %s1472 = sor.u32 256, 8
      %1473 = vbcast.lane.b32.xlu0 %v1321, %s1472
      %v1474 = vpop.permute.xlu0 %1473
      %s1476 = sor.u32 256, 16
      %1477 = vbcast.lane.b32.xlu0 %v1321, %s1476
      %v1478 = vpop.permute.xlu0 %1477
      %s1480 = sor.u32 256, 24
      %1481 = vbcast.lane.b32.xlu0 %v1321, %s1480
      %v1482 = vpop.permute.xlu0 %1481
      %s1484 = sor.u32 256, 32
      %1485 = vbcast.lane.b32.xlu0 %v1321, %s1484
      %v1486 = vpop.permute.xlu0 %1485
      %s1488 = sor.u32 256, 40
      %1489 = vbcast.lane.b32.xlu0 %v1321, %s1488
      %v1490 = vpop.permute.xlu0 %1489
      %s1492 = sor.u32 256, 48
      %1493 = vbcast.lane.b32.xlu0 %v1321, %s1492
      %v1494 = vpop.permute.xlu0 %1493
      %s1496 = sor.u32 256, 56
      %1497 = vbcast.lane.b32.xlu0 %v1321, %s1496
      %v1498 = vpop.permute.xlu0 %1497
      %s1500 = sor.u32 256, 64
      %1501 = vbcast.lane.b32.xlu0 %v1321, %s1500
      %v1502 = vpop.permute.xlu0 %1501
      %s1504 = sor.u32 256, 72
      %1505 = vbcast.lane.b32.xlu0 %v1321, %s1504
      %v1506 = vpop.permute.xlu0 %1505
      %s1508 = sor.u32 256, 80
      %1509 = vbcast.lane.b32.xlu0 %v1321, %s1508
      %v1510 = vpop.permute.xlu0 %1509
      %s1512 = sor.u32 256, 88
      %1513 = vbcast.lane.b32.xlu0 %v1321, %s1512
      %v1514 = vpop.permute.xlu0 %1513
      %s1516 = sor.u32 256, 96
      %1517 = vbcast.lane.b32.xlu0 %v1321, %s1516
      %v1518 = vpop.permute.xlu0 %1517
      %s1520 = sor.u32 256, 104
      %1521 = vbcast.lane.b32.xlu0 %v1321, %s1520
      %v1522 = vpop.permute.xlu0 %1521
      %s1524 = sor.u32 256, 112
      %1525 = vbcast.lane.b32.xlu0 %v1321, %s1524
      %v1526 = vpop.permute.xlu0 %1525
      %s1528 = sor.u32 256, 120
      %1529 = vbcast.lane.b32.xlu0 %v1321, %s1528
      %v1530 = vpop.permute.xlu0 %1529
      %1532 = vbcast.lane.b32.xlu0 %v1325, 256
      %v1533 = vpop.permute.xlu0 %1532
      %s1535 = sor.u32 256, 8
      %1536 = vbcast.lane.b32.xlu0 %v1325, %s1535
      %v1537 = vpop.permute.xlu0 %1536
      %s1539 = sor.u32 256, 16
      %1540 = vbcast.lane.b32.xlu0 %v1325, %s1539
      %v1541 = vpop.permute.xlu0 %1540
      %s1543 = sor.u32 256, 24
      %1544 = vbcast.lane.b32.xlu0 %v1325, %s1543
      %v1545 = vpop.permute.xlu0 %1544
      %s1547 = sor.u32 256, 32
      %1548 = vbcast.lane.b32.xlu0 %v1325, %s1547
      %v1549 = vpop.permute.xlu0 %1548
      %s1551 = sor.u32 256, 40
      %1552 = vbcast.lane.b32.xlu0 %v1325, %s1551
      %v1553 = vpop.permute.xlu0 %1552
      %s1555 = sor.u32 256, 48
      %1556 = vbcast.lane.b32.xlu0 %v1325, %s1555
      %v1557 = vpop.permute.xlu0 %1556
      %s1559 = sor.u32 256, 56
      %1560 = vbcast.lane.b32.xlu0 %v1325, %s1559
      %v1561 = vpop.permute.xlu0 %1560
      %s1563 = sor.u32 256, 64
      %1564 = vbcast.lane.b32.xlu0 %v1325, %s1563
      %v1565 = vpop.permute.xlu0 %1564
      %s1567 = sor.u32 256, 72
      %1568 = vbcast.lane.b32.xlu0 %v1325, %s1567
      %v1569 = vpop.permute.xlu0 %1568
      %s1571 = sor.u32 256, 80
      %1572 = vbcast.lane.b32.xlu0 %v1325, %s1571
      %v1573 = vpop.permute.xlu0 %1572
      %s1575 = sor.u32 256, 88
      %1576 = vbcast.lane.b32.xlu0 %v1325, %s1575
      %v1577 = vpop.permute.xlu0 %1576
      %s1579 = sor.u32 256, 96
      %1580 = vbcast.lane.b32.xlu0 %v1325, %s1579
      %v1581 = vpop.permute.xlu0 %1580
      %s1583 = sor.u32 256, 104
      %1584 = vbcast.lane.b32.xlu0 %v1325, %s1583
      %v1585 = vpop.permute.xlu0 %1584
      %s1587 = sor.u32 256, 112
      %1588 = vbcast.lane.b32.xlu0 %v1325, %s1587
      %v1589 = vpop.permute.xlu0 %1588
      %s1591 = sor.u32 256, 120
      %1592 = vbcast.lane.b32.xlu0 %v1325, %s1591
      %v1593 = vpop.permute.xlu0 %1592
      %1595 = vbcast.lane.b32.xlu0 %v1329, 256
      %v1596 = vpop.permute.xlu0 %1595
      %s1598 = sor.u32 256, 8
      %1599 = vbcast.lane.b32.xlu0 %v1329, %s1598
      %v1600 = vpop.permute.xlu0 %1599
      %s1602 = sor.u32 256, 16
      %1603 = vbcast.lane.b32.xlu0 %v1329, %s1602
      %v1604 = vpop.permute.xlu0 %1603
      %s1606 = sor.u32 256, 24
      %1607 = vbcast.lane.b32.xlu0 %v1329, %s1606
      %v1608 = vpop.permute.xlu0 %1607
      %s1610 = sor.u32 256, 32
      %1611 = vbcast.lane.b32.xlu0 %v1329, %s1610
      %v1612 = vpop.permute.xlu0 %1611
      %s1614 = sor.u32 256, 40
      %1615 = vbcast.lane.b32.xlu0 %v1329, %s1614
      %v1616 = vpop.permute.xlu0 %1615
      %s1618 = sor.u32 256, 48
      %1619 = vbcast.lane.b32.xlu0 %v1329, %s1618
      %v1620 = vpop.permute.xlu0 %1619
      %s1622 = sor.u32 256, 56
      %1623 = vbcast.lane.b32.xlu0 %v1329, %s1622
      %v1624 = vpop.permute.xlu0 %1623
      %s1626 = sor.u32 256, 64
      %1627 = vbcast.lane.b32.xlu0 %v1329, %s1626
      %v1628 = vpop.permute.xlu0 %1627
      %s1630 = sor.u32 256, 72
      %1631 = vbcast.lane.b32.xlu0 %v1329, %s1630
      %v1632 = vpop.permute.xlu0 %1631
      %s1634 = sor.u32 256, 80
      %1635 = vbcast.lane.b32.xlu0 %v1329, %s1634
      %v1636 = vpop.permute.xlu0 %1635
      %s1638 = sor.u32 256, 88
      %1639 = vbcast.lane.b32.xlu0 %v1329, %s1638
      %v1640 = vpop.permute.xlu0 %1639
      %s1642 = sor.u32 256, 96
      %1643 = vbcast.lane.b32.xlu0 %v1329, %s1642
      %v1644 = vpop.permute.xlu0 %1643
      %s1646 = sor.u32 256, 104
      %1647 = vbcast.lane.b32.xlu0 %v1329, %s1646
      %v1648 = vpop.permute.xlu0 %1647
      %s1650 = sor.u32 256, 112
      %1651 = vbcast.lane.b32.xlu0 %v1329, %s1650
      %v1652 = vpop.permute.xlu0 %1651
      %s1654 = sor.u32 256, 120
      %1655 = vbcast.lane.b32.xlu0 %v1329, %s1654
      %v1656 = vpop.permute.xlu0 %1655
      %1658 = vbcast.lane.b32.xlu0 %v1333, 256
      %v1659 = vpop.permute.xlu0 %1658
      %s1661 = sor.u32 256, 8
      %1662 = vbcast.lane.b32.xlu0 %v1333, %s1661
      %v1663 = vpop.permute.xlu0 %1662
      %s1665 = sor.u32 256, 16
      %1666 = vbcast.lane.b32.xlu0 %v1333, %s1665
      %v1667 = vpop.permute.xlu0 %1666
      %s1669 = sor.u32 256, 24
      %1670 = vbcast.lane.b32.xlu0 %v1333, %s1669
      %v1671 = vpop.permute.xlu0 %1670
      %s1673 = sor.u32 256, 32
      %1674 = vbcast.lane.b32.xlu0 %v1333, %s1673
      %v1675 = vpop.permute.xlu0 %1674
      %s1677 = sor.u32 256, 40
      %1678 = vbcast.lane.b32.xlu0 %v1333, %s1677
      %v1679 = vpop.permute.xlu0 %1678
      %s1681 = sor.u32 256, 48
      %1682 = vbcast.lane.b32.xlu0 %v1333, %s1681
      %v1683 = vpop.permute.xlu0 %1682
      %s1685 = sor.u32 256, 56
      %1686 = vbcast.lane.b32.xlu0 %v1333, %s1685
      %v1687 = vpop.permute.xlu0 %1686
      %s1689 = sor.u32 256, 64
      %1690 = vbcast.lane.b32.xlu0 %v1333, %s1689
      %v1691 = vpop.permute.xlu0 %1690
      %s1693 = sor.u32 256, 72
      %1694 = vbcast.lane.b32.xlu0 %v1333, %s1693
      %v1695 = vpop.permute.xlu0 %1694
      %s1697 = sor.u32 256, 80
      %1698 = vbcast.lane.b32.xlu0 %v1333, %s1697
      %v1699 = vpop.permute.xlu0 %1698
      %s1701 = sor.u32 256, 88
      %1702 = vbcast.lane.b32.xlu0 %v1333, %s1701
      %v1703 = vpop.permute.xlu0 %1702
      %s1705 = sor.u32 256, 96
      %1706 = vbcast.lane.b32.xlu0 %v1333, %s1705
      %v1707 = vpop.permute.xlu0 %1706
      %s1709 = sor.u32 256, 104
      %1710 = vbcast.lane.b32.xlu0 %v1333, %s1709
      %v1711 = vpop.permute.xlu0 %1710
      %s1713 = sor.u32 256, 112
      %1714 = vbcast.lane.b32.xlu0 %v1333, %s1713
      %v1715 = vpop.permute.xlu0 %1714
      %s1717 = sor.u32 256, 120
      %1718 = vbcast.lane.b32.xlu0 %v1333, %s1717
      %v1719 = vpop.permute.xlu0 %1718
      %1721 = vbcast.lane.b32.xlu0 %v1337, 256
      %v1722 = vpop.permute.xlu0 %1721
      %s1724 = sor.u32 256, 8
      %1725 = vbcast.lane.b32.xlu0 %v1337, %s1724
      %v1726 = vpop.permute.xlu0 %1725
      %s1728 = sor.u32 256, 16
      %1729 = vbcast.lane.b32.xlu0 %v1337, %s1728
      %v1730 = vpop.permute.xlu0 %1729
      %s1732 = sor.u32 256, 24
      %1733 = vbcast.lane.b32.xlu0 %v1337, %s1732
      %v1734 = vpop.permute.xlu0 %1733
      %s1736 = sor.u32 256, 32
      %1737 = vbcast.lane.b32.xlu0 %v1337, %s1736
      %v1738 = vpop.permute.xlu0 %1737
      %s1740 = sor.u32 256, 40
      %1741 = vbcast.lane.b32.xlu0 %v1337, %s1740
      %v1742 = vpop.permute.xlu0 %1741
      %s1744 = sor.u32 256, 48
      %1745 = vbcast.lane.b32.xlu0 %v1337, %s1744
      %v1746 = vpop.permute.xlu0 %1745
      %s1748 = sor.u32 256, 56
      %1749 = vbcast.lane.b32.xlu0 %v1337, %s1748
      %v1750 = vpop.permute.xlu0 %1749
      %s1752 = sor.u32 256, 64
      %1753 = vbcast.lane.b32.xlu0 %v1337, %s1752
      %v1754 = vpop.permute.xlu0 %1753
      %s1756 = sor.u32 256, 72
      %1757 = vbcast.lane.b32.xlu0 %v1337, %s1756
      %v1758 = vpop.permute.xlu0 %1757
      %s1760 = sor.u32 256, 80
      %1761 = vbcast.lane.b32.xlu0 %v1337, %s1760
      %v1762 = vpop.permute.xlu0 %1761
      %s1764 = sor.u32 256, 88
      %1765 = vbcast.lane.b32.xlu0 %v1337, %s1764
      %v1766 = vpop.permute.xlu0 %1765
      %s1768 = sor.u32 256, 96
      %1769 = vbcast.lane.b32.xlu0 %v1337, %s1768
      %v1770 = vpop.permute.xlu0 %1769
      %s1772 = sor.u32 256, 104
      %1773 = vbcast.lane.b32.xlu0 %v1337, %s1772
      %v1774 = vpop.permute.xlu0 %1773
      %s1776 = sor.u32 256, 112
      %1777 = vbcast.lane.b32.xlu0 %v1337, %s1776
      %v1778 = vpop.permute.xlu0 %1777
      %s1780 = sor.u32 256, 120
      %1781 = vbcast.lane.b32.xlu0 %v1337, %s1780
      %v1782 = vpop.permute.xlu0 %1781
      %1784 = vbcast.lane.b32.xlu0 %v1341, 256
      %v1785 = vpop.permute.xlu0 %1784
      %s1787 = sor.u32 256, 8
      %1788 = vbcast.lane.b32.xlu0 %v1341, %s1787
      %v1789 = vpop.permute.xlu0 %1788
      %s1791 = sor.u32 256, 16
      %1792 = vbcast.lane.b32.xlu0 %v1341, %s1791
      %v1793 = vpop.permute.xlu0 %1792
      %s1795 = sor.u32 256, 24
      %1796 = vbcast.lane.b32.xlu0 %v1341, %s1795
      %v1797 = vpop.permute.xlu0 %1796
      %s1799 = sor.u32 256, 32
      %1800 = vbcast.lane.b32.xlu0 %v1341, %s1799
      %v1801 = vpop.permute.xlu0 %1800
      %s1803 = sor.u32 256, 40
      %1804 = vbcast.lane.b32.xlu0 %v1341, %s1803
      %v1805 = vpop.permute.xlu0 %1804
      %s1807 = sor.u32 256, 48
      %1808 = vbcast.lane.b32.xlu0 %v1341, %s1807
      %v1809 = vpop.permute.xlu0 %1808
      %s1811 = sor.u32 256, 56
      %1812 = vbcast.lane.b32.xlu0 %v1341, %s1811
      %v1813 = vpop.permute.xlu0 %1812
      %s1815 = sor.u32 256, 64
      %1816 = vbcast.lane.b32.xlu0 %v1341, %s1815
      %v1817 = vpop.permute.xlu0 %1816
      %s1819 = sor.u32 256, 72
      %1820 = vbcast.lane.b32.xlu0 %v1341, %s1819
      %v1821 = vpop.permute.xlu0 %1820
      %s1823 = sor.u32 256, 80
      %1824 = vbcast.lane.b32.xlu0 %v1341, %s1823
      %v1825 = vpop.permute.xlu0 %1824
      %s1827 = sor.u32 256, 88
      %1828 = vbcast.lane.b32.xlu0 %v1341, %s1827
      %v1829 = vpop.permute.xlu0 %1828
      %s1831 = sor.u32 256, 96
      %1832 = vbcast.lane.b32.xlu0 %v1341, %s1831
      %v1833 = vpop.permute.xlu0 %1832
      %s1835 = sor.u32 256, 104
      %1836 = vbcast.lane.b32.xlu0 %v1341, %s1835
      %v1837 = vpop.permute.xlu0 %1836
      %s1839 = sor.u32 256, 112
      %1840 = vbcast.lane.b32.xlu0 %v1341, %s1839
      %v1841 = vpop.permute.xlu0 %1840
      %s1843 = sor.u32 256, 120
      %1844 = vbcast.lane.b32.xlu0 %v1341, %s1843
      %v1845 = vpop.permute.xlu0 %1844
      %v1974 = vmul.f32 %v1273, %v1344
      %v1975 = vmul.f32 %v1273, %v1348
      %v1976 = vmul.f32 %v1273, %v1352
      %v1977 = vmul.f32 %v1273, %v1356
      %v1978 = vmul.f32 %v1273, %v1360
      %v1979 = vmul.f32 %v1273, %v1364
      %v1980 = vmul.f32 %v1273, %v1368
      %v1981 = vmul.f32 %v1273, %v1372
      %v1982 = vmul.f32 %v1273, %v1376
      %v1983 = vmul.f32 %v1273, %v1380
      %v1984 = vmul.f32 %v1273, %v1384
      %v1985 = vmul.f32 %v1273, %v1388
      %v1986 = vmul.f32 %v1273, %v1392
      %v1987 = vmul.f32 %v1273, %v1396
      %v1988 = vmul.f32 %v1273, %v1400
      %v1989 = vmul.f32 %v1273, %v1404
      %v1990 = vmul.f32 %v1277, %v1407
      %v1991 = vmul.f32 %v1277, %v1411
      %v1992 = vmul.f32 %v1277, %v1415
      %v1993 = vmul.f32 %v1277, %v1419
      %v1994 = vmul.f32 %v1277, %v1423
      %v1995 = vmul.f32 %v1277, %v1427
      %v1996 = vmul.f32 %v1277, %v1431
      %v1997 = vmul.f32 %v1277, %v1435
      %v1998 = vmul.f32 %v1277, %v1439
      %v1999 = vmul.f32 %v1277, %v1443
      %v2000 = vmul.f32 %v1277, %v1447
      %v2001 = vmul.f32 %v1277, %v1451
      %v2002 = vmul.f32 %v1277, %v1455
      %v2003 = vmul.f32 %v1277, %v1459
      %v2004 = vmul.f32 %v1277, %v1463
      %v2005 = vmul.f32 %v1277, %v1467
      %v2006 = vmul.f32 %v1281, %v1470
      %v2007 = vmul.f32 %v1281, %v1474
      %v2008 = vmul.f32 %v1281, %v1478
      %v2009 = vmul.f32 %v1281, %v1482
      %v2010 = vmul.f32 %v1281, %v1486
      %v2011 = vmul.f32 %v1281, %v1490
      %v2012 = vmul.f32 %v1281, %v1494
      %v2013 = vmul.f32 %v1281, %v1498
      %v2014 = vmul.f32 %v1281, %v1502
      %v2015 = vmul.f32 %v1281, %v1506
      %v2016 = vmul.f32 %v1281, %v1510
      %v2017 = vmul.f32 %v1281, %v1514
      %v2018 = vmul.f32 %v1281, %v1518
      %v2019 = vmul.f32 %v1281, %v1522
      %v2020 = vmul.f32 %v1281, %v1526
      %v2021 = vmul.f32 %v1281, %v1530
      %v2022 = vmul.f32 %v1285, %v1533
      %v2023 = vmul.f32 %v1285, %v1537
      %v2024 = vmul.f32 %v1285, %v1541
      %v2025 = vmul.f32 %v1285, %v1545
      %v2026 = vmul.f32 %v1285, %v1549
      %v2027 = vmul.f32 %v1285, %v1553
      %v2028 = vmul.f32 %v1285, %v1557
      %v2029 = vmul.f32 %v1285, %v1561
      %v2030 = vmul.f32 %v1285, %v1565
      %v2031 = vmul.f32 %v1285, %v1569
      %v2032 = vmul.f32 %v1285, %v1573
      %v2033 = vmul.f32 %v1285, %v1577
      %v2034 = vmul.f32 %v1285, %v1581
      %v2035 = vmul.f32 %v1285, %v1585
      %v2036 = vmul.f32 %v1285, %v1589
      %v2037 = vmul.f32 %v1285, %v1593
      %v2038 = vmul.f32 %v1289, %v1596
      %v2039 = vmul.f32 %v1289, %v1600
      %v2040 = vmul.f32 %v1289, %v1604
      %v2041 = vmul.f32 %v1289, %v1608
      %v2042 = vmul.f32 %v1289, %v1612
      %v2043 = vmul.f32 %v1289, %v1616
      %v2044 = vmul.f32 %v1289, %v1620
      %v2045 = vmul.f32 %v1289, %v1624
      %v2046 = vmul.f32 %v1289, %v1628
      %v2047 = vmul.f32 %v1289, %v1632
      %v2048 = vmul.f32 %v1289, %v1636
      %v2049 = vmul.f32 %v1289, %v1640
      %v2050 = vmul.f32 %v1289, %v1644
      %v2051 = vmul.f32 %v1289, %v1648
      %v2052 = vmul.f32 %v1289, %v1652
      %v2053 = vmul.f32 %v1289, %v1656
      %v2054 = vmul.f32 %v1293, %v1659
      %v2055 = vmul.f32 %v1293, %v1663
      %v2056 = vmul.f32 %v1293, %v1667
      %v2057 = vmul.f32 %v1293, %v1671
      %v2058 = vmul.f32 %v1293, %v1675
      %v2059 = vmul.f32 %v1293, %v1679
      %v2060 = vmul.f32 %v1293, %v1683
      %v2061 = vmul.f32 %v1293, %v1687
      %v2062 = vmul.f32 %v1293, %v1691
      %v2063 = vmul.f32 %v1293, %v1695
      %v2064 = vmul.f32 %v1293, %v1699
      %v2065 = vmul.f32 %v1293, %v1703
      %v2066 = vmul.f32 %v1293, %v1707
      %v2067 = vmul.f32 %v1293, %v1711
      %v2068 = vmul.f32 %v1293, %v1715
      %v2069 = vmul.f32 %v1293, %v1719
      %v2070 = vmul.f32 %v1297, %v1722
      %v2071 = vmul.f32 %v1297, %v1726
      %v2072 = vmul.f32 %v1297, %v1730
      %v2073 = vmul.f32 %v1297, %v1734
      %v2074 = vmul.f32 %v1297, %v1738
      %v2075 = vmul.f32 %v1297, %v1742
      %v2076 = vmul.f32 %v1297, %v1746
      %v2077 = vmul.f32 %v1297, %v1750
      %v2078 = vmul.f32 %v1297, %v1754
      %v2079 = vmul.f32 %v1297, %v1758
      %v2080 = vmul.f32 %v1297, %v1762
      %v2081 = vmul.f32 %v1297, %v1766
      %v2082 = vmul.f32 %v1297, %v1770
      %v2083 = vmul.f32 %v1297, %v1774
      %v2084 = vmul.f32 %v1297, %v1778
      %v2085 = vmul.f32 %v1297, %v1782
      %v2086 = vmul.f32 %v1301, %v1785
      %v2087 = vmul.f32 %v1301, %v1789
      %v2088 = vmul.f32 %v1301, %v1793
      %v2089 = vmul.f32 %v1301, %v1797
      %v2090 = vmul.f32 %v1301, %v1801
      %v2091 = vmul.f32 %v1301, %v1805
      %v2092 = vmul.f32 %v1301, %v1809
      %v2093 = vmul.f32 %v1301, %v1813
      %v2094 = vmul.f32 %v1301, %v1817
      %v2095 = vmul.f32 %v1301, %v1821
      %v2096 = vmul.f32 %v1301, %v1825
      %v2097 = vmul.f32 %v1301, %v1829
      %v2098 = vmul.f32 %v1301, %v1833
      %v2099 = vmul.f32 %v1301, %v1837
      %v2100 = vmul.f32 %v1301, %v1841
      %v2101 = vmul.f32 %v1301, %v1845
      %v2102 = vlaneseq
      %v2103 = vshrl.u32 %v2102, 7
      %v2104 = vsub.s32 1, %v2103
      %v2105 = vrot.slane %v1180, %v2104
      %v2106 = vlaneseq
      %v2107 = vshrl.u32 %v2106, 7
      %v2108 = vsub.s32 1, %v2107
      %v2109 = vrot.slane %v1182, %v2108
      %v2110 = vlaneseq
      %v2111 = vshrl.u32 %v2110, 7
      %v2112 = vsub.s32 1, %v2111
      %v2113 = vrot.slane %v1184, %v2112
      %v2114 = vlaneseq
      %v2115 = vshrl.u32 %v2114, 7
      %v2116 = vsub.s32 1, %v2115
      %v2117 = vrot.slane %v1186, %v2116
      %v2118 = vlaneseq
      %v2119 = vshrl.u32 %v2118, 7
      %v2120 = vsub.s32 1, %v2119
      %v2121 = vrot.slane %v1188, %v2120
      %v2122 = vlaneseq
      %v2123 = vshrl.u32 %v2122, 7
      %v2124 = vsub.s32 1, %v2123
      %v2125 = vrot.slane %v1190, %v2124
      %v2126 = vlaneseq
      %v2127 = vshrl.u32 %v2126, 7
      %v2128 = vsub.s32 1, %v2127
      %v2129 = vrot.slane %v1192, %v2128
      %v2130 = vlaneseq
      %v2131 = vshrl.u32 %v2130, 7
      %v2132 = vsub.s32 1, %v2131
      %v2133 = vrot.slane %v1194, %v2132
      %v2134 = vlaneseq
      %v2135 = vshrl.u32 %v2134, 7
      %v2136 = vsub.s32 1, %v2135
      %v2137 = vrot.slane %v930, %v2136
      %v2138 = vlaneseq
      %v2139 = vshrl.u32 %v2138, 7
      %v2140 = vsub.s32 1, %v2139
      %v2141 = vrot.slane %v931, %v2140
      %v2142 = vlaneseq
      %v2143 = vshrl.u32 %v2142, 7
      %v2144 = vsub.s32 1, %v2143
      %v2145 = vrot.slane %v932, %v2144
      %v2146 = vlaneseq
      %v2147 = vshrl.u32 %v2146, 7
      %v2148 = vsub.s32 1, %v2147
      %v2149 = vrot.slane %v933, %v2148
      %v2150 = vlaneseq
      %v2151 = vshrl.u32 %v2150, 7
      %v2152 = vsub.s32 1, %v2151
      %v2153 = vrot.slane %v934, %v2152
      %v2154 = vlaneseq
      %v2155 = vshrl.u32 %v2154, 7
      %v2156 = vsub.s32 1, %v2155
      %v2157 = vrot.slane %v935, %v2156
      %v2158 = vlaneseq
      %v2159 = vshrl.u32 %v2158, 7
      %v2160 = vsub.s32 1, %v2159
      %v2161 = vrot.slane %v936, %v2160
      %v2162 = vlaneseq
      %v2163 = vshrl.u32 %v2162, 7
      %v2164 = vsub.s32 1, %v2163
      %v2165 = vrot.slane %v937, %v2164
      %2167 = vbcast.lane.b32.xlu0 %v2137, 256
      %v2168 = vpop.permute.xlu0 %2167
      %s2170 = sor.u32 256, 8
      %2171 = vbcast.lane.b32.xlu0 %v2137, %s2170
      %v2172 = vpop.permute.xlu0 %2171
      %s2174 = sor.u32 256, 16
      %2175 = vbcast.lane.b32.xlu0 %v2137, %s2174
      %v2176 = vpop.permute.xlu0 %2175
      %s2178 = sor.u32 256, 24
      %2179 = vbcast.lane.b32.xlu0 %v2137, %s2178
      %v2180 = vpop.permute.xlu0 %2179
      %s2182 = sor.u32 256, 32
      %2183 = vbcast.lane.b32.xlu0 %v2137, %s2182
      %v2184 = vpop.permute.xlu0 %2183
      %s2186 = sor.u32 256, 40
      %2187 = vbcast.lane.b32.xlu0 %v2137, %s2186
      %v2188 = vpop.permute.xlu0 %2187
      %s2190 = sor.u32 256, 48
      %2191 = vbcast.lane.b32.xlu0 %v2137, %s2190
      %v2192 = vpop.permute.xlu0 %2191
      %s2194 = sor.u32 256, 56
      %2195 = vbcast.lane.b32.xlu0 %v2137, %s2194
      %v2196 = vpop.permute.xlu0 %2195
      %s2198 = sor.u32 256, 64
      %2199 = vbcast.lane.b32.xlu0 %v2137, %s2198
      %v2200 = vpop.permute.xlu0 %2199
      %s2202 = sor.u32 256, 72
      %2203 = vbcast.lane.b32.xlu0 %v2137, %s2202
      %v2204 = vpop.permute.xlu0 %2203
      %s2206 = sor.u32 256, 80
      %2207 = vbcast.lane.b32.xlu0 %v2137, %s2206
      %v2208 = vpop.permute.xlu0 %2207
      %s2210 = sor.u32 256, 88
      %2211 = vbcast.lane.b32.xlu0 %v2137, %s2210
      %v2212 = vpop.permute.xlu0 %2211
      %s2214 = sor.u32 256, 96
      %2215 = vbcast.lane.b32.xlu0 %v2137, %s2214
      %v2216 = vpop.permute.xlu0 %2215
      %s2218 = sor.u32 256, 104
      %2219 = vbcast.lane.b32.xlu0 %v2137, %s2218
      %v2220 = vpop.permute.xlu0 %2219
      %s2222 = sor.u32 256, 112
      %2223 = vbcast.lane.b32.xlu0 %v2137, %s2222
      %v2224 = vpop.permute.xlu0 %2223
      %s2226 = sor.u32 256, 120
      %2227 = vbcast.lane.b32.xlu0 %v2137, %s2226
      %v2228 = vpop.permute.xlu0 %2227
      %2230 = vbcast.lane.b32.xlu0 %v2141, 256
      %v2231 = vpop.permute.xlu0 %2230
      %s2233 = sor.u32 256, 8
      %2234 = vbcast.lane.b32.xlu0 %v2141, %s2233
      %v2235 = vpop.permute.xlu0 %2234
      %s2237 = sor.u32 256, 16
      %2238 = vbcast.lane.b32.xlu0 %v2141, %s2237
      %v2239 = vpop.permute.xlu0 %2238
      %s2241 = sor.u32 256, 24
      %2242 = vbcast.lane.b32.xlu0 %v2141, %s2241
      %v2243 = vpop.permute.xlu0 %2242
      %s2245 = sor.u32 256, 32
      %2246 = vbcast.lane.b32.xlu0 %v2141, %s2245
      %v2247 = vpop.permute.xlu0 %2246
      %s2249 = sor.u32 256, 40
      %2250 = vbcast.lane.b32.xlu0 %v2141, %s2249
      %v2251 = vpop.permute.xlu0 %2250
      %s2253 = sor.u32 256, 48
      %2254 = vbcast.lane.b32.xlu0 %v2141, %s2253
      %v2255 = vpop.permute.xlu0 %2254
      %s2257 = sor.u32 256, 56
      %2258 = vbcast.lane.b32.xlu0 %v2141, %s2257
      %v2259 = vpop.permute.xlu0 %2258
      %s2261 = sor.u32 256, 64
      %2262 = vbcast.lane.b32.xlu0 %v2141, %s2261
      %v2263 = vpop.permute.xlu0 %2262
      %s2265 = sor.u32 256, 72
      %2266 = vbcast.lane.b32.xlu0 %v2141, %s2265
      %v2267 = vpop.permute.xlu0 %2266
      %s2269 = sor.u32 256, 80
      %2270 = vbcast.lane.b32.xlu0 %v2141, %s2269
      %v2271 = vpop.permute.xlu0 %2270
      %s2273 = sor.u32 256, 88
      %2274 = vbcast.lane.b32.xlu0 %v2141, %s2273
      %v2275 = vpop.permute.xlu0 %2274
      %s2277 = sor.u32 256, 96
      %2278 = vbcast.lane.b32.xlu0 %v2141, %s2277
      %v2279 = vpop.permute.xlu0 %2278
      %s2281 = sor.u32 256, 104
      %2282 = vbcast.lane.b32.xlu0 %v2141, %s2281
      %v2283 = vpop.permute.xlu0 %2282
      %s2285 = sor.u32 256, 112
      %2286 = vbcast.lane.b32.xlu0 %v2141, %s2285
      %v2287 = vpop.permute.xlu0 %2286
      %s2289 = sor.u32 256, 120
      %2290 = vbcast.lane.b32.xlu0 %v2141, %s2289
      %v2291 = vpop.permute.xlu0 %2290
      %2293 = vbcast.lane.b32.xlu0 %v2145, 256
      %v2294 = vpop.permute.xlu0 %2293
      %s2296 = sor.u32 256, 8
      %2297 = vbcast.lane.b32.xlu0 %v2145, %s2296
      %v2298 = vpop.permute.xlu0 %2297
      %s2300 = sor.u32 256, 16
      %2301 = vbcast.lane.b32.xlu0 %v2145, %s2300
      %v2302 = vpop.permute.xlu0 %2301
      %s2304 = sor.u32 256, 24
      %2305 = vbcast.lane.b32.xlu0 %v2145, %s2304
      %v2306 = vpop.permute.xlu0 %2305
      %s2308 = sor.u32 256, 32
      %2309 = vbcast.lane.b32.xlu0 %v2145, %s2308
      %v2310 = vpop.permute.xlu0 %2309
      %s2312 = sor.u32 256, 40
      %2313 = vbcast.lane.b32.xlu0 %v2145, %s2312
      %v2314 = vpop.permute.xlu0 %2313
      %s2316 = sor.u32 256, 48
      %2317 = vbcast.lane.b32.xlu0 %v2145, %s2316
      %v2318 = vpop.permute.xlu0 %2317
      %s2320 = sor.u32 256, 56
      %2321 = vbcast.lane.b32.xlu0 %v2145, %s2320
      %v2322 = vpop.permute.xlu0 %2321
      %s2324 = sor.u32 256, 64
      %2325 = vbcast.lane.b32.xlu0 %v2145, %s2324
      %v2326 = vpop.permute.xlu0 %2325
      %s2328 = sor.u32 256, 72
      %2329 = vbcast.lane.b32.xlu0 %v2145, %s2328
      %v2330 = vpop.permute.xlu0 %2329
      %s2332 = sor.u32 256, 80
      %2333 = vbcast.lane.b32.xlu0 %v2145, %s2332
      %v2334 = vpop.permute.xlu0 %2333
      %s2336 = sor.u32 256, 88
      %2337 = vbcast.lane.b32.xlu0 %v2145, %s2336
      %v2338 = vpop.permute.xlu0 %2337
      %s2340 = sor.u32 256, 96
      %2341 = vbcast.lane.b32.xlu0 %v2145, %s2340
      %v2342 = vpop.permute.xlu0 %2341
      %s2344 = sor.u32 256, 104
      %2345 = vbcast.lane.b32.xlu0 %v2145, %s2344
      %v2346 = vpop.permute.xlu0 %2345
      %s2348 = sor.u32 256, 112
      %2349 = vbcast.lane.b32.xlu0 %v2145, %s2348
      %v2350 = vpop.permute.xlu0 %2349
      %s2352 = sor.u32 256, 120
      %2353 = vbcast.lane.b32.xlu0 %v2145, %s2352
      %v2354 = vpop.permute.xlu0 %2353
      %2356 = vbcast.lane.b32.xlu0 %v2149, 256
      %v2357 = vpop.permute.xlu0 %2356
      %s2359 = sor.u32 256, 8
      %2360 = vbcast.lane.b32.xlu0 %v2149, %s2359
      %v2361 = vpop.permute.xlu0 %2360
      %s2363 = sor.u32 256, 16
      %2364 = vbcast.lane.b32.xlu0 %v2149, %s2363
      %v2365 = vpop.permute.xlu0 %2364
      %s2367 = sor.u32 256, 24
      %2368 = vbcast.lane.b32.xlu0 %v2149, %s2367
      %v2369 = vpop.permute.xlu0 %2368
      %s2371 = sor.u32 256, 32
      %2372 = vbcast.lane.b32.xlu0 %v2149, %s2371
      %v2373 = vpop.permute.xlu0 %2372
      %s2375 = sor.u32 256, 40
      %2376 = vbcast.lane.b32.xlu0 %v2149, %s2375
      %v2377 = vpop.permute.xlu0 %2376
      %s2379 = sor.u32 256, 48
      %2380 = vbcast.lane.b32.xlu0 %v2149, %s2379
      %v2381 = vpop.permute.xlu0 %2380
      %s2383 = sor.u32 256, 56
      %2384 = vbcast.lane.b32.xlu0 %v2149, %s2383
      %v2385 = vpop.permute.xlu0 %2384
      %s2387 = sor.u32 256, 64
      %2388 = vbcast.lane.b32.xlu0 %v2149, %s2387
      %v2389 = vpop.permute.xlu0 %2388
      %s2391 = sor.u32 256, 72
      %2392 = vbcast.lane.b32.xlu0 %v2149, %s2391
      %v2393 = vpop.permute.xlu0 %2392
      %s2395 = sor.u32 256, 80
      %2396 = vbcast.lane.b32.xlu0 %v2149, %s2395
      %v2397 = vpop.permute.xlu0 %2396
      %s2399 = sor.u32 256, 88
      %2400 = vbcast.lane.b32.xlu0 %v2149, %s2399
      %v2401 = vpop.permute.xlu0 %2400
      %s2403 = sor.u32 256, 96
      %2404 = vbcast.lane.b32.xlu0 %v2149, %s2403
      %v2405 = vpop.permute.xlu0 %2404
      %s2407 = sor.u32 256, 104
      %2408 = vbcast.lane.b32.xlu0 %v2149, %s2407
      %v2409 = vpop.permute.xlu0 %2408
      %s2411 = sor.u32 256, 112
      %2412 = vbcast.lane.b32.xlu0 %v2149, %s2411
      %v2413 = vpop.permute.xlu0 %2412
      %s2415 = sor.u32 256, 120
      %2416 = vbcast.lane.b32.xlu0 %v2149, %s2415
      %v2417 = vpop.permute.xlu0 %2416
      %2419 = vbcast.lane.b32.xlu0 %v2153, 256
      %v2420 = vpop.permute.xlu0 %2419
      %s2422 = sor.u32 256, 8
      %2423 = vbcast.lane.b32.xlu0 %v2153, %s2422
      %v2424 = vpop.permute.xlu0 %2423
      %s2426 = sor.u32 256, 16
      %2427 = vbcast.lane.b32.xlu0 %v2153, %s2426
      %v2428 = vpop.permute.xlu0 %2427
      %s2430 = sor.u32 256, 24
      %2431 = vbcast.lane.b32.xlu0 %v2153, %s2430
      %v2432 = vpop.permute.xlu0 %2431
      %s2434 = sor.u32 256, 32
      %2435 = vbcast.lane.b32.xlu0 %v2153, %s2434
      %v2436 = vpop.permute.xlu0 %2435
      %s2438 = sor.u32 256, 40
      %2439 = vbcast.lane.b32.xlu0 %v2153, %s2438
      %v2440 = vpop.permute.xlu0 %2439
      %s2442 = sor.u32 256, 48
      %2443 = vbcast.lane.b32.xlu0 %v2153, %s2442
      %v2444 = vpop.permute.xlu0 %2443
      %s2446 = sor.u32 256, 56
      %2447 = vbcast.lane.b32.xlu0 %v2153, %s2446
      %v2448 = vpop.permute.xlu0 %2447
      %s2450 = sor.u32 256, 64
      %2451 = vbcast.lane.b32.xlu0 %v2153, %s2450
      %v2452 = vpop.permute.xlu0 %2451
      %s2454 = sor.u32 256, 72
      %2455 = vbcast.lane.b32.xlu0 %v2153, %s2454
      %v2456 = vpop.permute.xlu0 %2455
      %s2458 = sor.u32 256, 80
      %2459 = vbcast.lane.b32.xlu0 %v2153, %s2458
      %v2460 = vpop.permute.xlu0 %2459
      %s2462 = sor.u32 256, 88
      %2463 = vbcast.lane.b32.xlu0 %v2153, %s2462
      %v2464 = vpop.permute.xlu0 %2463
      %s2466 = sor.u32 256, 96
      %2467 = vbcast.lane.b32.xlu0 %v2153, %s2466
      %v2468 = vpop.permute.xlu0 %2467
      %s2470 = sor.u32 256, 104
      %2471 = vbcast.lane.b32.xlu0 %v2153, %s2470
      %v2472 = vpop.permute.xlu0 %2471
      %s2474 = sor.u32 256, 112
      %2475 = vbcast.lane.b32.xlu0 %v2153, %s2474
      %v2476 = vpop.permute.xlu0 %2475
      %s2478 = sor.u32 256, 120
      %2479 = vbcast.lane.b32.xlu0 %v2153, %s2478
      %v2480 = vpop.permute.xlu0 %2479
      %2482 = vbcast.lane.b32.xlu0 %v2157, 256
      %v2483 = vpop.permute.xlu0 %2482
      %s2485 = sor.u32 256, 8
      %2486 = vbcast.lane.b32.xlu0 %v2157, %s2485
      %v2487 = vpop.permute.xlu0 %2486
      %s2489 = sor.u32 256, 16
      %2490 = vbcast.lane.b32.xlu0 %v2157, %s2489
      %v2491 = vpop.permute.xlu0 %2490
      %s2493 = sor.u32 256, 24
      %2494 = vbcast.lane.b32.xlu0 %v2157, %s2493
      %v2495 = vpop.permute.xlu0 %2494
      %s2497 = sor.u32 256, 32
      %2498 = vbcast.lane.b32.xlu0 %v2157, %s2497
      %v2499 = vpop.permute.xlu0 %2498
      %s2501 = sor.u32 256, 40
      %2502 = vbcast.lane.b32.xlu0 %v2157, %s2501
      %v2503 = vpop.permute.xlu0 %2502
      %s2505 = sor.u32 256, 48
      %2506 = vbcast.lane.b32.xlu0 %v2157, %s2505
      %v2507 = vpop.permute.xlu0 %2506
      %s2509 = sor.u32 256, 56
      %2510 = vbcast.lane.b32.xlu0 %v2157, %s2509
      %v2511 = vpop.permute.xlu0 %2510
      %s2513 = sor.u32 256, 64
      %2514 = vbcast.lane.b32.xlu0 %v2157, %s2513
      %v2515 = vpop.permute.xlu0 %2514
      %s2517 = sor.u32 256, 72
      %2518 = vbcast.lane.b32.xlu0 %v2157, %s2517
      %v2519 = vpop.permute.xlu0 %2518
      %s2521 = sor.u32 256, 80
      %2522 = vbcast.lane.b32.xlu0 %v2157, %s2521
      %v2523 = vpop.permute.xlu0 %2522
      %s2525 = sor.u32 256, 88
      %2526 = vbcast.lane.b32.xlu0 %v2157, %s2525
      %v2527 = vpop.permute.xlu0 %2526
      %s2529 = sor.u32 256, 96
      %2530 = vbcast.lane.b32.xlu0 %v2157, %s2529
      %v2531 = vpop.permute.xlu0 %2530
      %s2533 = sor.u32 256, 104
      %2534 = vbcast.lane.b32.xlu0 %v2157, %s2533
      %v2535 = vpop.permute.xlu0 %2534
      %s2537 = sor.u32 256, 112
      %2538 = vbcast.lane.b32.xlu0 %v2157, %s2537
      %v2539 = vpop.permute.xlu0 %2538
      %s2541 = sor.u32 256, 120
      %2542 = vbcast.lane.b32.xlu0 %v2157, %s2541
      %v2543 = vpop.permute.xlu0 %2542
      %2545 = vbcast.lane.b32.xlu0 %v2161, 256
      %v2546 = vpop.permute.xlu0 %2545
      %s2548 = sor.u32 256, 8
      %2549 = vbcast.lane.b32.xlu0 %v2161, %s2548
      %v2550 = vpop.permute.xlu0 %2549
      %s2552 = sor.u32 256, 16
      %2553 = vbcast.lane.b32.xlu0 %v2161, %s2552
      %v2554 = vpop.permute.xlu0 %2553
      %s2556 = sor.u32 256, 24
      %2557 = vbcast.lane.b32.xlu0 %v2161, %s2556
      %v2558 = vpop.permute.xlu0 %2557
      %s2560 = sor.u32 256, 32
      %2561 = vbcast.lane.b32.xlu0 %v2161, %s2560
      %v2562 = vpop.permute.xlu0 %2561
      %s2564 = sor.u32 256, 40
      %2565 = vbcast.lane.b32.xlu0 %v2161, %s2564
      %v2566 = vpop.permute.xlu0 %2565
      %s2568 = sor.u32 256, 48
      %2569 = vbcast.lane.b32.xlu0 %v2161, %s2568
      %v2570 = vpop.permute.xlu0 %2569
      %s2572 = sor.u32 256, 56
      %2573 = vbcast.lane.b32.xlu0 %v2161, %s2572
      %v2574 = vpop.permute.xlu0 %2573
      %s2576 = sor.u32 256, 64
      %2577 = vbcast.lane.b32.xlu0 %v2161, %s2576
      %v2578 = vpop.permute.xlu0 %2577
      %s2580 = sor.u32 256, 72
      %2581 = vbcast.lane.b32.xlu0 %v2161, %s2580
      %v2582 = vpop.permute.xlu0 %2581
      %s2584 = sor.u32 256, 80
      %2585 = vbcast.lane.b32.xlu0 %v2161, %s2584
      %v2586 = vpop.permute.xlu0 %2585
      %s2588 = sor.u32 256, 88
      %2589 = vbcast.lane.b32.xlu0 %v2161, %s2588
      %v2590 = vpop.permute.xlu0 %2589
      %s2592 = sor.u32 256, 96
      %2593 = vbcast.lane.b32.xlu0 %v2161, %s2592
      %v2594 = vpop.permute.xlu0 %2593
      %s2596 = sor.u32 256, 104
      %2597 = vbcast.lane.b32.xlu0 %v2161, %s2596
      %v2598 = vpop.permute.xlu0 %2597
      %s2600 = sor.u32 256, 112
      %2601 = vbcast.lane.b32.xlu0 %v2161, %s2600
      %v2602 = vpop.permute.xlu0 %2601
      %s2604 = sor.u32 256, 120
      %2605 = vbcast.lane.b32.xlu0 %v2161, %s2604
      %v2606 = vpop.permute.xlu0 %2605
      %2608 = vbcast.lane.b32.xlu0 %v2165, 256
      %v2609 = vpop.permute.xlu0 %2608
      %s2611 = sor.u32 256, 8
      %2612 = vbcast.lane.b32.xlu0 %v2165, %s2611
      %v2613 = vpop.permute.xlu0 %2612
      %s2615 = sor.u32 256, 16
      %2616 = vbcast.lane.b32.xlu0 %v2165, %s2615
      %v2617 = vpop.permute.xlu0 %2616
      %s2619 = sor.u32 256, 24
      %2620 = vbcast.lane.b32.xlu0 %v2165, %s2619
      %v2621 = vpop.permute.xlu0 %2620
      %s2623 = sor.u32 256, 32
      %2624 = vbcast.lane.b32.xlu0 %v2165, %s2623
      %v2625 = vpop.permute.xlu0 %2624
      %s2627 = sor.u32 256, 40
      %2628 = vbcast.lane.b32.xlu0 %v2165, %s2627
      %v2629 = vpop.permute.xlu0 %2628
      %s2631 = sor.u32 256, 48
      %2632 = vbcast.lane.b32.xlu0 %v2165, %s2631
      %v2633 = vpop.permute.xlu0 %2632
      %s2635 = sor.u32 256, 56
      %2636 = vbcast.lane.b32.xlu0 %v2165, %s2635
      %v2637 = vpop.permute.xlu0 %2636
      %s2639 = sor.u32 256, 64
      %2640 = vbcast.lane.b32.xlu0 %v2165, %s2639
      %v2641 = vpop.permute.xlu0 %2640
      %s2643 = sor.u32 256, 72
      %2644 = vbcast.lane.b32.xlu0 %v2165, %s2643
      %v2645 = vpop.permute.xlu0 %2644
      %s2647 = sor.u32 256, 80
      %2648 = vbcast.lane.b32.xlu0 %v2165, %s2647
      %v2649 = vpop.permute.xlu0 %2648
      %s2651 = sor.u32 256, 88
      %2652 = vbcast.lane.b32.xlu0 %v2165, %s2651
      %v2653 = vpop.permute.xlu0 %2652
      %s2655 = sor.u32 256, 96
      %2656 = vbcast.lane.b32.xlu0 %v2165, %s2655
      %v2657 = vpop.permute.xlu0 %2656
      %s2659 = sor.u32 256, 104
      %2660 = vbcast.lane.b32.xlu0 %v2165, %s2659
      %v2661 = vpop.permute.xlu0 %2660
      %s2663 = sor.u32 256, 112
      %2664 = vbcast.lane.b32.xlu0 %v2165, %s2663
      %v2665 = vpop.permute.xlu0 %2664
      %s2667 = sor.u32 256, 120
      %2668 = vbcast.lane.b32.xlu0 %v2165, %s2667
      %v2669 = vpop.permute.xlu0 %2668
      %v2798 = vmul.f32 %v2105, %v2168
      %v2799 = vmul.f32 %v2105, %v2172
      %v2800 = vmul.f32 %v2105, %v2176
      %v2801 = vmul.f32 %v2105, %v2180
      %v2802 = vmul.f32 %v2105, %v2184
      %v2803 = vmul.f32 %v2105, %v2188
      %v2804 = vmul.f32 %v2105, %v2192
      %v2805 = vmul.f32 %v2105, %v2196
      %v2806 = vmul.f32 %v2105, %v2200
      %v2807 = vmul.f32 %v2105, %v2204
      %v2808 = vmul.f32 %v2105, %v2208
      %v2809 = vmul.f32 %v2105, %v2212
      %v2810 = vmul.f32 %v2105, %v2216
      %v2811 = vmul.f32 %v2105, %v2220
      %v2812 = vmul.f32 %v2105, %v2224
      %v2813 = vmul.f32 %v2105, %v2228
      %v2814 = vmul.f32 %v2109, %v2231
      %v2815 = vmul.f32 %v2109, %v2235
      %v2816 = vmul.f32 %v2109, %v2239
      %v2817 = vmul.f32 %v2109, %v2243
      %v2818 = vmul.f32 %v2109, %v2247
      %v2819 = vmul.f32 %v2109, %v2251
      %v2820 = vmul.f32 %v2109, %v2255
      %v2821 = vmul.f32 %v2109, %v2259
      %v2822 = vmul.f32 %v2109, %v2263
      %v2823 = vmul.f32 %v2109, %v2267
      %v2824 = vmul.f32 %v2109, %v2271
      %v2825 = vmul.f32 %v2109, %v2275
      %v2826 = vmul.f32 %v2109, %v2279
      %v2827 = vmul.f32 %v2109, %v2283
      %v2828 = vmul.f32 %v2109, %v2287
      %v2829 = vmul.f32 %v2109, %v2291
      %v2830 = vmul.f32 %v2113, %v2294
      %v2831 = vmul.f32 %v2113, %v2298
      %v2832 = vmul.f32 %v2113, %v2302
      %v2833 = vmul.f32 %v2113, %v2306
      %v2834 = vmul.f32 %v2113, %v2310
      %v2835 = vmul.f32 %v2113, %v2314
      %v2836 = vmul.f32 %v2113, %v2318
      %v2837 = vmul.f32 %v2113, %v2322
      %v2838 = vmul.f32 %v2113, %v2326
      %v2839 = vmul.f32 %v2113, %v2330
      %v2840 = vmul.f32 %v2113, %v2334
      %v2841 = vmul.f32 %v2113, %v2338
      %v2842 = vmul.f32 %v2113, %v2342
      %v2843 = vmul.f32 %v2113, %v2346
      %v2844 = vmul.f32 %v2113, %v2350
      %v2845 = vmul.f32 %v2113, %v2354
      %v2846 = vmul.f32 %v2117, %v2357
      %v2847 = vmul.f32 %v2117, %v2361
      %v2848 = vmul.f32 %v2117, %v2365
      %v2849 = vmul.f32 %v2117, %v2369
      %v2850 = vmul.f32 %v2117, %v2373
      %v2851 = vmul.f32 %v2117, %v2377
      %v2852 = vmul.f32 %v2117, %v2381
      %v2853 = vmul.f32 %v2117, %v2385
      %v2854 = vmul.f32 %v2117, %v2389
      %v2855 = vmul.f32 %v2117, %v2393
      %v2856 = vmul.f32 %v2117, %v2397
      %v2857 = vmul.f32 %v2117, %v2401
      %v2858 = vmul.f32 %v2117, %v2405
      %v2859 = vmul.f32 %v2117, %v2409
      %v2860 = vmul.f32 %v2117, %v2413
      %v2861 = vmul.f32 %v2117, %v2417
      %v2862 = vmul.f32 %v2121, %v2420
      %v2863 = vmul.f32 %v2121, %v2424
      %v2864 = vmul.f32 %v2121, %v2428
      %v2865 = vmul.f32 %v2121, %v2432
      %v2866 = vmul.f32 %v2121, %v2436
      %v2867 = vmul.f32 %v2121, %v2440
      %v2868 = vmul.f32 %v2121, %v2444
      %v2869 = vmul.f32 %v2121, %v2448
      %v2870 = vmul.f32 %v2121, %v2452
      %v2871 = vmul.f32 %v2121, %v2456
      %v2872 = vmul.f32 %v2121, %v2460
      %v2873 = vmul.f32 %v2121, %v2464
      %v2874 = vmul.f32 %v2121, %v2468
      %v2875 = vmul.f32 %v2121, %v2472
      %v2876 = vmul.f32 %v2121, %v2476
      %v2877 = vmul.f32 %v2121, %v2480
      %v2878 = vmul.f32 %v2125, %v2483
      %v2879 = vmul.f32 %v2125, %v2487
      %v2880 = vmul.f32 %v2125, %v2491
      %v2881 = vmul.f32 %v2125, %v2495
      %v2882 = vmul.f32 %v2125, %v2499
      %v2883 = vmul.f32 %v2125, %v2503
      %v2884 = vmul.f32 %v2125, %v2507
      %v2885 = vmul.f32 %v2125, %v2511
      %v2886 = vmul.f32 %v2125, %v2515
      %v2887 = vmul.f32 %v2125, %v2519
      %v2888 = vmul.f32 %v2125, %v2523
      %v2889 = vmul.f32 %v2125, %v2527
      %v2890 = vmul.f32 %v2125, %v2531
      %v2891 = vmul.f32 %v2125, %v2535
      %v2892 = vmul.f32 %v2125, %v2539
      %v2893 = vmul.f32 %v2125, %v2543
      %v2894 = vmul.f32 %v2129, %v2546
      %v2895 = vmul.f32 %v2129, %v2550
      %v2896 = vmul.f32 %v2129, %v2554
      %v2897 = vmul.f32 %v2129, %v2558
      %v2898 = vmul.f32 %v2129, %v2562
      %v2899 = vmul.f32 %v2129, %v2566
      %v2900 = vmul.f32 %v2129, %v2570
      %v2901 = vmul.f32 %v2129, %v2574
      %v2902 = vmul.f32 %v2129, %v2578
      %v2903 = vmul.f32 %v2129, %v2582
      %v2904 = vmul.f32 %v2129, %v2586
      %v2905 = vmul.f32 %v2129, %v2590
      %v2906 = vmul.f32 %v2129, %v2594
      %v2907 = vmul.f32 %v2129, %v2598
      %v2908 = vmul.f32 %v2129, %v2602
      %v2909 = vmul.f32 %v2129, %v2606
      %v2910 = vmul.f32 %v2133, %v2609
      %v2911 = vmul.f32 %v2133, %v2613
      %v2912 = vmul.f32 %v2133, %v2617
      %v2913 = vmul.f32 %v2133, %v2621
      %v2914 = vmul.f32 %v2133, %v2625
      %v2915 = vmul.f32 %v2133, %v2629
      %v2916 = vmul.f32 %v2133, %v2633
      %v2917 = vmul.f32 %v2133, %v2637
      %v2918 = vmul.f32 %v2133, %v2641
      %v2919 = vmul.f32 %v2133, %v2645
      %v2920 = vmul.f32 %v2133, %v2649
      %v2921 = vmul.f32 %v2133, %v2653
      %v2922 = vmul.f32 %v2133, %v2657
      %v2923 = vmul.f32 %v2133, %v2661
      %v2924 = vmul.f32 %v2133, %v2665
      %v2925 = vmul.f32 %v2133, %v2669
      %v2926 = vadd.f32 %v1974, %v2798
      %v2927 = vadd.f32 %v1975, %v2799
      %v2928 = vadd.f32 %v1976, %v2800
      %v2929 = vadd.f32 %v1977, %v2801
      %v2930 = vadd.f32 %v1978, %v2802
      %v2931 = vadd.f32 %v1979, %v2803
      %v2932 = vadd.f32 %v1980, %v2804
      %v2933 = vadd.f32 %v1981, %v2805
      %v2934 = vadd.f32 %v1982, %v2806
      %v2935 = vadd.f32 %v1983, %v2807
      %v2936 = vadd.f32 %v1984, %v2808
      %v2937 = vadd.f32 %v1985, %v2809
      %v2938 = vadd.f32 %v1986, %v2810
      %v2939 = vadd.f32 %v1987, %v2811
      %v2940 = vadd.f32 %v1988, %v2812
      %v2941 = vadd.f32 %v1989, %v2813
      %v2942 = vadd.f32 %v1990, %v2814
      %v2943 = vadd.f32 %v1991, %v2815
      %v2944 = vadd.f32 %v1992, %v2816
      %v2945 = vadd.f32 %v1993, %v2817
      %v2946 = vadd.f32 %v1994, %v2818
      %v2947 = vadd.f32 %v1995, %v2819
      %v2948 = vadd.f32 %v1996, %v2820
      %v2949 = vadd.f32 %v1997, %v2821
      %v2950 = vadd.f32 %v1998, %v2822
      %v2951 = vadd.f32 %v1999, %v2823
      %v2952 = vadd.f32 %v2000, %v2824
      %v2953 = vadd.f32 %v2001, %v2825
      %v2954 = vadd.f32 %v2002, %v2826
      %v2955 = vadd.f32 %v2003, %v2827
      %v2956 = vadd.f32 %v2004, %v2828
      %v2957 = vadd.f32 %v2005, %v2829
      %v2958 = vadd.f32 %v2006, %v2830
      %v2959 = vadd.f32 %v2007, %v2831
      %v2960 = vadd.f32 %v2008, %v2832
      %v2961 = vadd.f32 %v2009, %v2833
      %v2962 = vadd.f32 %v2010, %v2834
      %v2963 = vadd.f32 %v2011, %v2835
      %v2964 = vadd.f32 %v2012, %v2836
      %v2965 = vadd.f32 %v2013, %v2837
      %v2966 = vadd.f32 %v2014, %v2838
      %v2967 = vadd.f32 %v2015, %v2839
      %v2968 = vadd.f32 %v2016, %v2840
      %v2969 = vadd.f32 %v2017, %v2841
      %v2970 = vadd.f32 %v2018, %v2842
      %v2971 = vadd.f32 %v2019, %v2843
      %v2972 = vadd.f32 %v2020, %v2844
      %v2973 = vadd.f32 %v2021, %v2845
      %v2974 = vadd.f32 %v2022, %v2846
      %v2975 = vadd.f32 %v2023, %v2847
      %v2976 = vadd.f32 %v2024, %v2848
      %v2977 = vadd.f32 %v2025, %v2849
      %v2978 = vadd.f32 %v2026, %v2850
      %v2979 = vadd.f32 %v2027, %v2851
      %v2980 = vadd.f32 %v2028, %v2852
      %v2981 = vadd.f32 %v2029, %v2853
      %v2982 = vadd.f32 %v2030, %v2854
      %v2983 = vadd.f32 %v2031, %v2855
      %v2984 = vadd.f32 %v2032, %v2856
      %v2985 = vadd.f32 %v2033, %v2857
      %v2986 = vadd.f32 %v2034, %v2858
      %v2987 = vadd.f32 %v2035, %v2859
      %v2988 = vadd.f32 %v2036, %v2860
      %v2989 = vadd.f32 %v2037, %v2861
      %v2990 = vadd.f32 %v2038, %v2862
      %v2991 = vadd.f32 %v2039, %v2863
      %v2992 = vadd.f32 %v2040, %v2864
      %v2993 = vadd.f32 %v2041, %v2865
      %v2994 = vadd.f32 %v2042, %v2866
      %v2995 = vadd.f32 %v2043, %v2867
      %v2996 = vadd.f32 %v2044, %v2868
      %v2997 = vadd.f32 %v2045, %v2869
      %v2998 = vadd.f32 %v2046, %v2870
      %v2999 = vadd.f32 %v2047, %v2871
      %v3000 = vadd.f32 %v2048, %v2872
      %v3001 = vadd.f32 %v2049, %v2873
      %v3002 = vadd.f32 %v2050, %v2874
      %v3003 = vadd.f32 %v2051, %v2875
      %v3004 = vadd.f32 %v2052, %v2876
      %v3005 = vadd.f32 %v2053, %v2877
      %v3006 = vadd.f32 %v2054, %v2878
      %v3007 = vadd.f32 %v2055, %v2879
      %v3008 = vadd.f32 %v2056, %v2880
      %v3009 = vadd.f32 %v2057, %v2881
      %v3010 = vadd.f32 %v2058, %v2882
      %v3011 = vadd.f32 %v2059, %v2883
      %v3012 = vadd.f32 %v2060, %v2884
      %v3013 = vadd.f32 %v2061, %v2885
      %v3014 = vadd.f32 %v2062, %v2886
      %v3015 = vadd.f32 %v2063, %v2887
      %v3016 = vadd.f32 %v2064, %v2888
      %v3017 = vadd.f32 %v2065, %v2889
      %v3018 = vadd.f32 %v2066, %v2890
      %v3019 = vadd.f32 %v2067, %v2891
      %v3020 = vadd.f32 %v2068, %v2892
      %v3021 = vadd.f32 %v2069, %v2893
      %v3022 = vadd.f32 %v2070, %v2894
      %v3023 = vadd.f32 %v2071, %v2895
      %v3024 = vadd.f32 %v2072, %v2896
      %v3025 = vadd.f32 %v2073, %v2897
      %v3026 = vadd.f32 %v2074, %v2898
      %v3027 = vadd.f32 %v2075, %v2899
      %v3028 = vadd.f32 %v2076, %v2900
      %v3029 = vadd.f32 %v2077, %v2901
      %v3030 = vadd.f32 %v2078, %v2902
      %v3031 = vadd.f32 %v2079, %v2903
      %v3032 = vadd.f32 %v2080, %v2904
      %v3033 = vadd.f32 %v2081, %v2905
      %v3034 = vadd.f32 %v2082, %v2906
      %v3035 = vadd.f32 %v2083, %v2907
      %v3036 = vadd.f32 %v2084, %v2908
      %v3037 = vadd.f32 %v2085, %v2909
      %v3038 = vadd.f32 %v2086, %v2910
      %v3039 = vadd.f32 %v2087, %v2911
      %v3040 = vadd.f32 %v2088, %v2912
      %v3041 = vadd.f32 %v2089, %v2913
      %v3042 = vadd.f32 %v2090, %v2914
      %v3043 = vadd.f32 %v2091, %v2915
      %v3044 = vadd.f32 %v2092, %v2916
      %v3045 = vadd.f32 %v2093, %v2917
      %v3046 = vadd.f32 %v2094, %v2918
      %v3047 = vadd.f32 %v2095, %v2919
      %v3048 = vadd.f32 %v2096, %v2920
      %v3049 = vadd.f32 %v2097, %v2921
      %v3050 = vadd.f32 %v2098, %v2922
      %v3051 = vadd.f32 %v2099, %v2923
      %v3052 = vadd.f32 %v2100, %v2924
      %v3053 = vadd.f32 %v2101, %v2925
      %v3054 = vlaneseq
      %v3055 = vshrl.u32 %v3054, 7
      %v3056 = vsub.s32 2, %v3055
      %v3057 = vrot.slane %v1180, %v3056
      %v3058 = vlaneseq
      %v3059 = vshrl.u32 %v3058, 7
      %v3060 = vsub.s32 2, %v3059
      %v3061 = vrot.slane %v1182, %v3060
      %v3062 = vlaneseq
      %v3063 = vshrl.u32 %v3062, 7
      %v3064 = vsub.s32 2, %v3063
      %v3065 = vrot.slane %v1184, %v3064
      %v3066 = vlaneseq
      %v3067 = vshrl.u32 %v3066, 7
      %v3068 = vsub.s32 2, %v3067
      %v3069 = vrot.slane %v1186, %v3068
      %v3070 = vlaneseq
      %v3071 = vshrl.u32 %v3070, 7
      %v3072 = vsub.s32 2, %v3071
      %v3073 = vrot.slane %v1188, %v3072
      %v3074 = vlaneseq
      %v3075 = vshrl.u32 %v3074, 7
      %v3076 = vsub.s32 2, %v3075
      %v3077 = vrot.slane %v1190, %v3076
      %v3078 = vlaneseq
      %v3079 = vshrl.u32 %v3078, 7
      %v3080 = vsub.s32 2, %v3079
      %v3081 = vrot.slane %v1192, %v3080
      %v3082 = vlaneseq
      %v3083 = vshrl.u32 %v3082, 7
      %v3084 = vsub.s32 2, %v3083
      %v3085 = vrot.slane %v1194, %v3084
      %v3086 = vlaneseq
      %v3087 = vshrl.u32 %v3086, 7
      %v3088 = vsub.s32 2, %v3087
      %v3089 = vrot.slane %v930, %v3088
      %v3090 = vlaneseq
      %v3091 = vshrl.u32 %v3090, 7
      %v3092 = vsub.s32 2, %v3091
      %v3093 = vrot.slane %v931, %v3092
      %v3094 = vlaneseq
      %v3095 = vshrl.u32 %v3094, 7
      %v3096 = vsub.s32 2, %v3095
      %v3097 = vrot.slane %v932, %v3096
      %v3098 = vlaneseq
      %v3099 = vshrl.u32 %v3098, 7
      %v3100 = vsub.s32 2, %v3099
      %v3101 = vrot.slane %v933, %v3100
      %v3102 = vlaneseq
      %v3103 = vshrl.u32 %v3102, 7
      %v3104 = vsub.s32 2, %v3103
      %v3105 = vrot.slane %v934, %v3104
      %v3106 = vlaneseq
      %v3107 = vshrl.u32 %v3106, 7
      %v3108 = vsub.s32 2, %v3107
      %v3109 = vrot.slane %v935, %v3108
      %v3110 = vlaneseq
      %v3111 = vshrl.u32 %v3110, 7
      %v3112 = vsub.s32 2, %v3111
      %v3113 = vrot.slane %v936, %v3112
      %v3114 = vlaneseq
      %v3115 = vshrl.u32 %v3114, 7
      %v3116 = vsub.s32 2, %v3115
      %v3117 = vrot.slane %v937, %v3116
      %3119 = vbcast.lane.b32.xlu0 %v3089, 256
      %v3120 = vpop.permute.xlu0 %3119
      %s3122 = sor.u32 256, 8
      %3123 = vbcast.lane.b32.xlu0 %v3089, %s3122
      %v3124 = vpop.permute.xlu0 %3123
      %s3126 = sor.u32 256, 16
      %3127 = vbcast.lane.b32.xlu0 %v3089, %s3126
      %v3128 = vpop.permute.xlu0 %3127
      %s3130 = sor.u32 256, 24
      %3131 = vbcast.lane.b32.xlu0 %v3089, %s3130
      %v3132 = vpop.permute.xlu0 %3131
      %s3134 = sor.u32 256, 32
      %3135 = vbcast.lane.b32.xlu0 %v3089, %s3134
      %v3136 = vpop.permute.xlu0 %3135
      %s3138 = sor.u32 256, 40
      %3139 = vbcast.lane.b32.xlu0 %v3089, %s3138
      %v3140 = vpop.permute.xlu0 %3139
      %s3142 = sor.u32 256, 48
      %3143 = vbcast.lane.b32.xlu0 %v3089, %s3142
      %v3144 = vpop.permute.xlu0 %3143
      %s3146 = sor.u32 256, 56
      %3147 = vbcast.lane.b32.xlu0 %v3089, %s3146
      %v3148 = vpop.permute.xlu0 %3147
      %s3150 = sor.u32 256, 64
      %3151 = vbcast.lane.b32.xlu0 %v3089, %s3150
      %v3152 = vpop.permute.xlu0 %3151
      %s3154 = sor.u32 256, 72
      %3155 = vbcast.lane.b32.xlu0 %v3089, %s3154
      %v3156 = vpop.permute.xlu0 %3155
      %s3158 = sor.u32 256, 80
      %3159 = vbcast.lane.b32.xlu0 %v3089, %s3158
      %v3160 = vpop.permute.xlu0 %3159
      %s3162 = sor.u32 256, 88
      %3163 = vbcast.lane.b32.xlu0 %v3089, %s3162
      %v3164 = vpop.permute.xlu0 %3163
      %s3166 = sor.u32 256, 96
      %3167 = vbcast.lane.b32.xlu0 %v3089, %s3166
      %v3168 = vpop.permute.xlu0 %3167
      %s3170 = sor.u32 256, 104
      %3171 = vbcast.lane.b32.xlu0 %v3089, %s3170
      %v3172 = vpop.permute.xlu0 %3171
      %s3174 = sor.u32 256, 112
      %3175 = vbcast.lane.b32.xlu0 %v3089, %s3174
      %v3176 = vpop.permute.xlu0 %3175
      %s3178 = sor.u32 256, 120
      %3179 = vbcast.lane.b32.xlu0 %v3089, %s3178
      %v3180 = vpop.permute.xlu0 %3179
      %3182 = vbcast.lane.b32.xlu0 %v3093, 256
      %v3183 = vpop.permute.xlu0 %3182
      %s3185 = sor.u32 256, 8
      %3186 = vbcast.lane.b32.xlu0 %v3093, %s3185
      %v3187 = vpop.permute.xlu0 %3186
      %s3189 = sor.u32 256, 16
      %3190 = vbcast.lane.b32.xlu0 %v3093, %s3189
      %v3191 = vpop.permute.xlu0 %3190
      %s3193 = sor.u32 256, 24
      %3194 = vbcast.lane.b32.xlu0 %v3093, %s3193
      %v3195 = vpop.permute.xlu0 %3194
      %s3197 = sor.u32 256, 32
      %3198 = vbcast.lane.b32.xlu0 %v3093, %s3197
      %v3199 = vpop.permute.xlu0 %3198
      %s3201 = sor.u32 256, 40
      %3202 = vbcast.lane.b32.xlu0 %v3093, %s3201
      %v3203 = vpop.permute.xlu0 %3202
      %s3205 = sor.u32 256, 48
      %3206 = vbcast.lane.b32.xlu0 %v3093, %s3205
      %v3207 = vpop.permute.xlu0 %3206
      %s3209 = sor.u32 256, 56
      %3210 = vbcast.lane.b32.xlu0 %v3093, %s3209
      %v3211 = vpop.permute.xlu0 %3210
      %s3213 = sor.u32 256, 64
      %3214 = vbcast.lane.b32.xlu0 %v3093, %s3213
      %v3215 = vpop.permute.xlu0 %3214
      %s3217 = sor.u32 256, 72
      %3218 = vbcast.lane.b32.xlu0 %v3093, %s3217
      %v3219 = vpop.permute.xlu0 %3218
      %s3221 = sor.u32 256, 80
      %3222 = vbcast.lane.b32.xlu0 %v3093, %s3221
      %v3223 = vpop.permute.xlu0 %3222
      %s3225 = sor.u32 256, 88
      %3226 = vbcast.lane.b32.xlu0 %v3093, %s3225
      %v3227 = vpop.permute.xlu0 %3226
      %s3229 = sor.u32 256, 96
      %3230 = vbcast.lane.b32.xlu0 %v3093, %s3229
      %v3231 = vpop.permute.xlu0 %3230
      %s3233 = sor.u32 256, 104
      %3234 = vbcast.lane.b32.xlu0 %v3093, %s3233
      %v3235 = vpop.permute.xlu0 %3234
      %s3237 = sor.u32 256, 112
      %3238 = vbcast.lane.b32.xlu0 %v3093, %s3237
      %v3239 = vpop.permute.xlu0 %3238
      %s3241 = sor.u32 256, 120
      %3242 = vbcast.lane.b32.xlu0 %v3093, %s3241
      %v3243 = vpop.permute.xlu0 %3242
      %3245 = vbcast.lane.b32.xlu0 %v3097, 256
      %v3246 = vpop.permute.xlu0 %3245
      %s3248 = sor.u32 256, 8
      %3249 = vbcast.lane.b32.xlu0 %v3097, %s3248
      %v3250 = vpop.permute.xlu0 %3249
      %s3252 = sor.u32 256, 16
      %3253 = vbcast.lane.b32.xlu0 %v3097, %s3252
      %v3254 = vpop.permute.xlu0 %3253
      %s3256 = sor.u32 256, 24
      %3257 = vbcast.lane.b32.xlu0 %v3097, %s3256
      %v3258 = vpop.permute.xlu0 %3257
      %s3260 = sor.u32 256, 32
      %3261 = vbcast.lane.b32.xlu0 %v3097, %s3260
      %v3262 = vpop.permute.xlu0 %3261
      %s3264 = sor.u32 256, 40
      %3265 = vbcast.lane.b32.xlu0 %v3097, %s3264
      %v3266 = vpop.permute.xlu0 %3265
      %s3268 = sor.u32 256, 48
      %3269 = vbcast.lane.b32.xlu0 %v3097, %s3268
      %v3270 = vpop.permute.xlu0 %3269
      %s3272 = sor.u32 256, 56
      %3273 = vbcast.lane.b32.xlu0 %v3097, %s3272
      %v3274 = vpop.permute.xlu0 %3273
      %s3276 = sor.u32 256, 64
      %3277 = vbcast.lane.b32.xlu0 %v3097, %s3276
      %v3278 = vpop.permute.xlu0 %3277
      %s3280 = sor.u32 256, 72
      %3281 = vbcast.lane.b32.xlu0 %v3097, %s3280
      %v3282 = vpop.permute.xlu0 %3281
      %s3284 = sor.u32 256, 80
      %3285 = vbcast.lane.b32.xlu0 %v3097, %s3284
      %v3286 = vpop.permute.xlu0 %3285
      %s3288 = sor.u32 256, 88
      %3289 = vbcast.lane.b32.xlu0 %v3097, %s3288
      %v3290 = vpop.permute.xlu0 %3289
      %s3292 = sor.u32 256, 96
      %3293 = vbcast.lane.b32.xlu0 %v3097, %s3292
      %v3294 = vpop.permute.xlu0 %3293
      %s3296 = sor.u32 256, 104
      %3297 = vbcast.lane.b32.xlu0 %v3097, %s3296
      %v3298 = vpop.permute.xlu0 %3297
      %s3300 = sor.u32 256, 112
      %3301 = vbcast.lane.b32.xlu0 %v3097, %s3300
      %v3302 = vpop.permute.xlu0 %3301
      %s3304 = sor.u32 256, 120
      %3305 = vbcast.lane.b32.xlu0 %v3097, %s3304
      %v3306 = vpop.permute.xlu0 %3305
      %3308 = vbcast.lane.b32.xlu0 %v3101, 256
      %v3309 = vpop.permute.xlu0 %3308
      %s3311 = sor.u32 256, 8
      %3312 = vbcast.lane.b32.xlu0 %v3101, %s3311
      %v3313 = vpop.permute.xlu0 %3312
      %s3315 = sor.u32 256, 16
      %3316 = vbcast.lane.b32.xlu0 %v3101, %s3315
      %v3317 = vpop.permute.xlu0 %3316
      %s3319 = sor.u32 256, 24
      %3320 = vbcast.lane.b32.xlu0 %v3101, %s3319
      %v3321 = vpop.permute.xlu0 %3320
      %s3323 = sor.u32 256, 32
      %3324 = vbcast.lane.b32.xlu0 %v3101, %s3323
      %v3325 = vpop.permute.xlu0 %3324
      %s3327 = sor.u32 256, 40
      %3328 = vbcast.lane.b32.xlu0 %v3101, %s3327
      %v3329 = vpop.permute.xlu0 %3328
      %s3331 = sor.u32 256, 48
      %3332 = vbcast.lane.b32.xlu0 %v3101, %s3331
      %v3333 = vpop.permute.xlu0 %3332
      %s3335 = sor.u32 256, 56
      %3336 = vbcast.lane.b32.xlu0 %v3101, %s3335
      %v3337 = vpop.permute.xlu0 %3336
      %s3339 = sor.u32 256, 64
      %3340 = vbcast.lane.b32.xlu0 %v3101, %s3339
      %v3341 = vpop.permute.xlu0 %3340
      %s3343 = sor.u32 256, 72
      %3344 = vbcast.lane.b32.xlu0 %v3101, %s3343
      %v3345 = vpop.permute.xlu0 %3344
      %s3347 = sor.u32 256, 80
      %3348 = vbcast.lane.b32.xlu0 %v3101, %s3347
      %v3349 = vpop.permute.xlu0 %3348
      %s3351 = sor.u32 256, 88
      %3352 = vbcast.lane.b32.xlu0 %v3101, %s3351
      %v3353 = vpop.permute.xlu0 %3352
      %s3355 = sor.u32 256, 96
      %3356 = vbcast.lane.b32.xlu0 %v3101, %s3355
      %v3357 = vpop.permute.xlu0 %3356
      %s3359 = sor.u32 256, 104
      %3360 = vbcast.lane.b32.xlu0 %v3101, %s3359
      %v3361 = vpop.permute.xlu0 %3360
      %s3363 = sor.u32 256, 112
      %3364 = vbcast.lane.b32.xlu0 %v3101, %s3363
      %v3365 = vpop.permute.xlu0 %3364
      %s3367 = sor.u32 256, 120
      %3368 = vbcast.lane.b32.xlu0 %v3101, %s3367
      %v3369 = vpop.permute.xlu0 %3368
      %3371 = vbcast.lane.b32.xlu0 %v3105, 256
      %v3372 = vpop.permute.xlu0 %3371
      %s3374 = sor.u32 256, 8
      %3375 = vbcast.lane.b32.xlu0 %v3105, %s3374
      %v3376 = vpop.permute.xlu0 %3375
      %s3378 = sor.u32 256, 16
      %3379 = vbcast.lane.b32.xlu0 %v3105, %s3378
      %v3380 = vpop.permute.xlu0 %3379
      %s3382 = sor.u32 256, 24
      %3383 = vbcast.lane.b32.xlu0 %v3105, %s3382
      %v3384 = vpop.permute.xlu0 %3383
      %s3386 = sor.u32 256, 32
      %3387 = vbcast.lane.b32.xlu0 %v3105, %s3386
      %v3388 = vpop.permute.xlu0 %3387
      %s3390 = sor.u32 256, 40
      %3391 = vbcast.lane.b32.xlu0 %v3105, %s3390
      %v3392 = vpop.permute.xlu0 %3391
      %s3394 = sor.u32 256, 48
      %3395 = vbcast.lane.b32.xlu0 %v3105, %s3394
      %v3396 = vpop.permute.xlu0 %3395
      %s3398 = sor.u32 256, 56
      %3399 = vbcast.lane.b32.xlu0 %v3105, %s3398
      %v3400 = vpop.permute.xlu0 %3399
      %s3402 = sor.u32 256, 64
      %3403 = vbcast.lane.b32.xlu0 %v3105, %s3402
      %v3404 = vpop.permute.xlu0 %3403
      %s3406 = sor.u32 256, 72
      %3407 = vbcast.lane.b32.xlu0 %v3105, %s3406
      %v3408 = vpop.permute.xlu0 %3407
      %s3410 = sor.u32 256, 80
      %3411 = vbcast.lane.b32.xlu0 %v3105, %s3410
      %v3412 = vpop.permute.xlu0 %3411
      %s3414 = sor.u32 256, 88
      %3415 = vbcast.lane.b32.xlu0 %v3105, %s3414
      %v3416 = vpop.permute.xlu0 %3415
      %s3418 = sor.u32 256, 96
      %3419 = vbcast.lane.b32.xlu0 %v3105, %s3418
      %v3420 = vpop.permute.xlu0 %3419
      %s3422 = sor.u32 256, 104
      %3423 = vbcast.lane.b32.xlu0 %v3105, %s3422
      %v3424 = vpop.permute.xlu0 %3423
      %s3426 = sor.u32 256, 112
      %3427 = vbcast.lane.b32.xlu0 %v3105, %s3426
      %v3428 = vpop.permute.xlu0 %3427
      %s3430 = sor.u32 256, 120
      %3431 = vbcast.lane.b32.xlu0 %v3105, %s3430
      %v3432 = vpop.permute.xlu0 %3431
      %3434 = vbcast.lane.b32.xlu0 %v3109, 256
      %v3435 = vpop.permute.xlu0 %3434
      %s3437 = sor.u32 256, 8
      %3438 = vbcast.lane.b32.xlu0 %v3109, %s3437
      %v3439 = vpop.permute.xlu0 %3438
      %s3441 = sor.u32 256, 16
      %3442 = vbcast.lane.b32.xlu0 %v3109, %s3441
      %v3443 = vpop.permute.xlu0 %3442
      %s3445 = sor.u32 256, 24
      %3446 = vbcast.lane.b32.xlu0 %v3109, %s3445
      %v3447 = vpop.permute.xlu0 %3446
      %s3449 = sor.u32 256, 32
      %3450 = vbcast.lane.b32.xlu0 %v3109, %s3449
      %v3451 = vpop.permute.xlu0 %3450
      %s3453 = sor.u32 256, 40
      %3454 = vbcast.lane.b32.xlu0 %v3109, %s3453
      %v3455 = vpop.permute.xlu0 %3454
      %s3457 = sor.u32 256, 48
      %3458 = vbcast.lane.b32.xlu0 %v3109, %s3457
      %v3459 = vpop.permute.xlu0 %3458
      %s3461 = sor.u32 256, 56
      %3462 = vbcast.lane.b32.xlu0 %v3109, %s3461
      %v3463 = vpop.permute.xlu0 %3462
      %s3465 = sor.u32 256, 64
      %3466 = vbcast.lane.b32.xlu0 %v3109, %s3465
      %v3467 = vpop.permute.xlu0 %3466
      %s3469 = sor.u32 256, 72
      %3470 = vbcast.lane.b32.xlu0 %v3109, %s3469
      %v3471 = vpop.permute.xlu0 %3470
      %s3473 = sor.u32 256, 80
      %3474 = vbcast.lane.b32.xlu0 %v3109, %s3473
      %v3475 = vpop.permute.xlu0 %3474
      %s3477 = sor.u32 256, 88
      %3478 = vbcast.lane.b32.xlu0 %v3109, %s3477
      %v3479 = vpop.permute.xlu0 %3478
      %s3481 = sor.u32 256, 96
      %3482 = vbcast.lane.b32.xlu0 %v3109, %s3481
      %v3483 = vpop.permute.xlu0 %3482
      %s3485 = sor.u32 256, 104
      %3486 = vbcast.lane.b32.xlu0 %v3109, %s3485
      %v3487 = vpop.permute.xlu0 %3486
      %s3489 = sor.u32 256, 112
      %3490 = vbcast.lane.b32.xlu0 %v3109, %s3489
      %v3491 = vpop.permute.xlu0 %3490
      %s3493 = sor.u32 256, 120
      %3494 = vbcast.lane.b32.xlu0 %v3109, %s3493
      %v3495 = vpop.permute.xlu0 %3494
      %3497 = vbcast.lane.b32.xlu0 %v3113, 256
      %v3498 = vpop.permute.xlu0 %3497
      %s3500 = sor.u32 256, 8
      %3501 = vbcast.lane.b32.xlu0 %v3113, %s3500
      %v3502 = vpop.permute.xlu0 %3501
      %s3504 = sor.u32 256, 16
      %3505 = vbcast.lane.b32.xlu0 %v3113, %s3504
      %v3506 = vpop.permute.xlu0 %3505
      %s3508 = sor.u32 256, 24
      %3509 = vbcast.lane.b32.xlu0 %v3113, %s3508
      %v3510 = vpop.permute.xlu0 %3509
      %s3512 = sor.u32 256, 32
      %3513 = vbcast.lane.b32.xlu0 %v3113, %s3512
      %v3514 = vpop.permute.xlu0 %3513
      %s3516 = sor.u32 256, 40
      %3517 = vbcast.lane.b32.xlu0 %v3113, %s3516
      %v3518 = vpop.permute.xlu0 %3517
      %s3520 = sor.u32 256, 48
      %3521 = vbcast.lane.b32.xlu0 %v3113, %s3520
      %v3522 = vpop.permute.xlu0 %3521
      %s3524 = sor.u32 256, 56
      %3525 = vbcast.lane.b32.xlu0 %v3113, %s3524
      %v3526 = vpop.permute.xlu0 %3525
      %s3528 = sor.u32 256, 64
      %3529 = vbcast.lane.b32.xlu0 %v3113, %s3528
      %v3530 = vpop.permute.xlu0 %3529
      %s3532 = sor.u32 256, 72
      %3533 = vbcast.lane.b32.xlu0 %v3113, %s3532
      %v3534 = vpop.permute.xlu0 %3533
      %s3536 = sor.u32 256, 80
      %3537 = vbcast.lane.b32.xlu0 %v3113, %s3536
      %v3538 = vpop.permute.xlu0 %3537
      %s3540 = sor.u32 256, 88
      %3541 = vbcast.lane.b32.xlu0 %v3113, %s3540
      %v3542 = vpop.permute.xlu0 %3541
      %s3544 = sor.u32 256, 96
      %3545 = vbcast.lane.b32.xlu0 %v3113, %s3544
      %v3546 = vpop.permute.xlu0 %3545
      %s3548 = sor.u32 256, 104
      %3549 = vbcast.lane.b32.xlu0 %v3113, %s3548
      %v3550 = vpop.permute.xlu0 %3549
      %s3552 = sor.u32 256, 112
      %3553 = vbcast.lane.b32.xlu0 %v3113, %s3552
      %v3554 = vpop.permute.xlu0 %3553
      %s3556 = sor.u32 256, 120
      %3557 = vbcast.lane.b32.xlu0 %v3113, %s3556
      %v3558 = vpop.permute.xlu0 %3557
      %3560 = vbcast.lane.b32.xlu0 %v3117, 256
      %v3561 = vpop.permute.xlu0 %3560
      %s3563 = sor.u32 256, 8
      %3564 = vbcast.lane.b32.xlu0 %v3117, %s3563
      %v3565 = vpop.permute.xlu0 %3564
      %s3567 = sor.u32 256, 16
      %3568 = vbcast.lane.b32.xlu0 %v3117, %s3567
      %v3569 = vpop.permute.xlu0 %3568
      %s3571 = sor.u32 256, 24
      %3572 = vbcast.lane.b32.xlu0 %v3117, %s3571
      %v3573 = vpop.permute.xlu0 %3572
      %s3575 = sor.u32 256, 32
      %3576 = vbcast.lane.b32.xlu0 %v3117, %s3575
      %v3577 = vpop.permute.xlu0 %3576
      %s3579 = sor.u32 256, 40
      %3580 = vbcast.lane.b32.xlu0 %v3117, %s3579
      %v3581 = vpop.permute.xlu0 %3580
      %s3583 = sor.u32 256, 48
      %3584 = vbcast.lane.b32.xlu0 %v3117, %s3583
      %v3585 = vpop.permute.xlu0 %3584
      %s3587 = sor.u32 256, 56
      %3588 = vbcast.lane.b32.xlu0 %v3117, %s3587
      %v3589 = vpop.permute.xlu0 %3588
      %s3591 = sor.u32 256, 64
      %3592 = vbcast.lane.b32.xlu0 %v3117, %s3591
      %v3593 = vpop.permute.xlu0 %3592
      %s3595 = sor.u32 256, 72
      %3596 = vbcast.lane.b32.xlu0 %v3117, %s3595
      %v3597 = vpop.permute.xlu0 %3596
      %s3599 = sor.u32 256, 80
      %3600 = vbcast.lane.b32.xlu0 %v3117, %s3599
      %v3601 = vpop.permute.xlu0 %3600
      %s3603 = sor.u32 256, 88
      %3604 = vbcast.lane.b32.xlu0 %v3117, %s3603
      %v3605 = vpop.permute.xlu0 %3604
      %s3607 = sor.u32 256, 96
      %3608 = vbcast.lane.b32.xlu0 %v3117, %s3607
      %v3609 = vpop.permute.xlu0 %3608
      %s3611 = sor.u32 256, 104
      %3612 = vbcast.lane.b32.xlu0 %v3117, %s3611
      %v3613 = vpop.permute.xlu0 %3612
      %s3615 = sor.u32 256, 112
      %3616 = vbcast.lane.b32.xlu0 %v3117, %s3615
      %v3617 = vpop.permute.xlu0 %3616
      %s3619 = sor.u32 256, 120
      %3620 = vbcast.lane.b32.xlu0 %v3117, %s3619
      %v3621 = vpop.permute.xlu0 %3620
      %v3750 = vmul.f32 %v3057, %v3120
      %v3751 = vmul.f32 %v3057, %v3124
      %v3752 = vmul.f32 %v3057, %v3128
      %v3753 = vmul.f32 %v3057, %v3132
      %v3754 = vmul.f32 %v3057, %v3136
      %v3755 = vmul.f32 %v3057, %v3140
      %v3756 = vmul.f32 %v3057, %v3144
      %v3757 = vmul.f32 %v3057, %v3148
      %v3758 = vmul.f32 %v3057, %v3152
      %v3759 = vmul.f32 %v3057, %v3156
      %v3760 = vmul.f32 %v3057, %v3160
      %v3761 = vmul.f32 %v3057, %v3164
      %v3762 = vmul.f32 %v3057, %v3168
      %v3763 = vmul.f32 %v3057, %v3172
      %v3764 = vmul.f32 %v3057, %v3176
      %v3765 = vmul.f32 %v3057, %v3180
      %v3766 = vmul.f32 %v3061, %v3183
      %v3767 = vmul.f32 %v3061, %v3187
      %v3768 = vmul.f32 %v3061, %v3191
      %v3769 = vmul.f32 %v3061, %v3195
      %v3770 = vmul.f32 %v3061, %v3199
      %v3771 = vmul.f32 %v3061, %v3203
      %v3772 = vmul.f32 %v3061, %v3207
      %v3773 = vmul.f32 %v3061, %v3211
      %v3774 = vmul.f32 %v3061, %v3215
      %v3775 = vmul.f32 %v3061, %v3219
      %v3776 = vmul.f32 %v3061, %v3223
      %v3777 = vmul.f32 %v3061, %v3227
      %v3778 = vmul.f32 %v3061, %v3231
      %v3779 = vmul.f32 %v3061, %v3235
      %v3780 = vmul.f32 %v3061, %v3239
      %v3781 = vmul.f32 %v3061, %v3243
      %v3782 = vmul.f32 %v3065, %v3246
      %v3783 = vmul.f32 %v3065, %v3250
      %v3784 = vmul.f32 %v3065, %v3254
      %v3785 = vmul.f32 %v3065, %v3258
      %v3786 = vmul.f32 %v3065, %v3262
      %v3787 = vmul.f32 %v3065, %v3266
      %v3788 = vmul.f32 %v3065, %v3270
      %v3789 = vmul.f32 %v3065, %v3274
      %v3790 = vmul.f32 %v3065, %v3278
      %v3791 = vmul.f32 %v3065, %v3282
      %v3792 = vmul.f32 %v3065, %v3286
      %v3793 = vmul.f32 %v3065, %v3290
      %v3794 = vmul.f32 %v3065, %v3294
      %v3795 = vmul.f32 %v3065, %v3298
      %v3796 = vmul.f32 %v3065, %v3302
      %v3797 = vmul.f32 %v3065, %v3306
      %v3798 = vmul.f32 %v3069, %v3309
      %v3799 = vmul.f32 %v3069, %v3313
      %v3800 = vmul.f32 %v3069, %v3317
      %v3801 = vmul.f32 %v3069, %v3321
      %v3802 = vmul.f32 %v3069, %v3325
      %v3803 = vmul.f32 %v3069, %v3329
      %v3804 = vmul.f32 %v3069, %v3333
      %v3805 = vmul.f32 %v3069, %v3337
      %v3806 = vmul.f32 %v3069, %v3341
      %v3807 = vmul.f32 %v3069, %v3345
      %v3808 = vmul.f32 %v3069, %v3349
      %v3809 = vmul.f32 %v3069, %v3353
      %v3810 = vmul.f32 %v3069, %v3357
      %v3811 = vmul.f32 %v3069, %v3361
      %v3812 = vmul.f32 %v3069, %v3365
      %v3813 = vmul.f32 %v3069, %v3369
      %v3814 = vmul.f32 %v3073, %v3372
      %v3815 = vmul.f32 %v3073, %v3376
      %v3816 = vmul.f32 %v3073, %v3380
      %v3817 = vmul.f32 %v3073, %v3384
      %v3818 = vmul.f32 %v3073, %v3388
      %v3819 = vmul.f32 %v3073, %v3392
      %v3820 = vmul.f32 %v3073, %v3396
      %v3821 = vmul.f32 %v3073, %v3400
      %v3822 = vmul.f32 %v3073, %v3404
      %v3823 = vmul.f32 %v3073, %v3408
      %v3824 = vmul.f32 %v3073, %v3412
      %v3825 = vmul.f32 %v3073, %v3416
      %v3826 = vmul.f32 %v3073, %v3420
      %v3827 = vmul.f32 %v3073, %v3424
      %v3828 = vmul.f32 %v3073, %v3428
      %v3829 = vmul.f32 %v3073, %v3432
      %v3830 = vmul.f32 %v3077, %v3435
      %v3831 = vmul.f32 %v3077, %v3439
      %v3832 = vmul.f32 %v3077, %v3443
      %v3833 = vmul.f32 %v3077, %v3447
      %v3834 = vmul.f32 %v3077, %v3451
      %v3835 = vmul.f32 %v3077, %v3455
      %v3836 = vmul.f32 %v3077, %v3459
      %v3837 = vmul.f32 %v3077, %v3463
      %v3838 = vmul.f32 %v3077, %v3467
      %v3839 = vmul.f32 %v3077, %v3471
      %v3840 = vmul.f32 %v3077, %v3475
      %v3841 = vmul.f32 %v3077, %v3479
      %v3842 = vmul.f32 %v3077, %v3483
      %v3843 = vmul.f32 %v3077, %v3487
      %v3844 = vmul.f32 %v3077, %v3491
      %v3845 = vmul.f32 %v3077, %v3495
      %v3846 = vmul.f32 %v3081, %v3498
      %v3847 = vmul.f32 %v3081, %v3502
      %v3848 = vmul.f32 %v3081, %v3506
      %v3849 = vmul.f32 %v3081, %v3510
      %v3850 = vmul.f32 %v3081, %v3514
      %v3851 = vmul.f32 %v3081, %v3518
      %v3852 = vmul.f32 %v3081, %v3522
      %v3853 = vmul.f32 %v3081, %v3526
      %v3854 = vmul.f32 %v3081, %v3530
      %v3855 = vmul.f32 %v3081, %v3534
      %v3856 = vmul.f32 %v3081, %v3538
      %v3857 = vmul.f32 %v3081, %v3542
      %v3858 = vmul.f32 %v3081, %v3546
      %v3859 = vmul.f32 %v3081, %v3550
      %v3860 = vmul.f32 %v3081, %v3554
      %v3861 = vmul.f32 %v3081, %v3558
      %v3862 = vmul.f32 %v3085, %v3561
      %v3863 = vmul.f32 %v3085, %v3565
      %v3864 = vmul.f32 %v3085, %v3569
      %v3865 = vmul.f32 %v3085, %v3573
      %v3866 = vmul.f32 %v3085, %v3577
      %v3867 = vmul.f32 %v3085, %v3581
      %v3868 = vmul.f32 %v3085, %v3585
      %v3869 = vmul.f32 %v3085, %v3589
      %v3870 = vmul.f32 %v3085, %v3593
      %v3871 = vmul.f32 %v3085, %v3597
      %v3872 = vmul.f32 %v3085, %v3601
      %v3873 = vmul.f32 %v3085, %v3605
      %v3874 = vmul.f32 %v3085, %v3609
      %v3875 = vmul.f32 %v3085, %v3613
      %v3876 = vmul.f32 %v3085, %v3617
      %v3877 = vmul.f32 %v3085, %v3621
      %v3878 = vadd.f32 %v2926, %v3750
      %v3879 = vadd.f32 %v2927, %v3751
      %v3880 = vadd.f32 %v2928, %v3752
      %v3881 = vadd.f32 %v2929, %v3753
      %v3882 = vadd.f32 %v2930, %v3754
      %v3883 = vadd.f32 %v2931, %v3755
      %v3884 = vadd.f32 %v2932, %v3756
      %v3885 = vadd.f32 %v2933, %v3757
      %v3886 = vadd.f32 %v2934, %v3758
      %v3887 = vadd.f32 %v2935, %v3759
      %v3888 = vadd.f32 %v2936, %v3760
      %v3889 = vadd.f32 %v2937, %v3761
      %v3890 = vadd.f32 %v2938, %v3762
      %v3891 = vadd.f32 %v2939, %v3763
      %v3892 = vadd.f32 %v2940, %v3764
      %v3893 = vadd.f32 %v2941, %v3765
      %v3894 = vadd.f32 %v2942, %v3766
      %v3895 = vadd.f32 %v2943, %v3767
      %v3896 = vadd.f32 %v2944, %v3768
      %v3897 = vadd.f32 %v2945, %v3769
      %v3898 = vadd.f32 %v2946, %v3770
      %v3899 = vadd.f32 %v2947, %v3771
      %v3900 = vadd.f32 %v2948, %v3772
      %v3901 = vadd.f32 %v2949, %v3773
      %v3902 = vadd.f32 %v2950, %v3774
      %v3903 = vadd.f32 %v2951, %v3775
      %v3904 = vadd.f32 %v2952, %v3776
      %v3905 = vadd.f32 %v2953, %v3777
      %v3906 = vadd.f32 %v2954, %v3778
      %v3907 = vadd.f32 %v2955, %v3779
      %v3908 = vadd.f32 %v2956, %v3780
      %v3909 = vadd.f32 %v2957, %v3781
      %v3910 = vadd.f32 %v2958, %v3782
      %v3911 = vadd.f32 %v2959, %v3783
      %v3912 = vadd.f32 %v2960, %v3784
      %v3913 = vadd.f32 %v2961, %v3785
      %v3914 = vadd.f32 %v2962, %v3786
      %v3915 = vadd.f32 %v2963, %v3787
      %v3916 = vadd.f32 %v2964, %v3788
      %v3917 = vadd.f32 %v2965, %v3789
      %v3918 = vadd.f32 %v2966, %v3790
      %v3919 = vadd.f32 %v2967, %v3791
      %v3920 = vadd.f32 %v2968, %v3792
      %v3921 = vadd.f32 %v2969, %v3793
      %v3922 = vadd.f32 %v2970, %v3794
      %v3923 = vadd.f32 %v2971, %v3795
      %v3924 = vadd.f32 %v2972, %v3796
      %v3925 = vadd.f32 %v2973, %v3797
      %v3926 = vadd.f32 %v2974, %v3798
      %v3927 = vadd.f32 %v2975, %v3799
      %v3928 = vadd.f32 %v2976, %v3800
      %v3929 = vadd.f32 %v2977, %v3801
      %v3930 = vadd.f32 %v2978, %v3802
      %v3931 = vadd.f32 %v2979, %v3803
      %v3932 = vadd.f32 %v2980, %v3804
      %v3933 = vadd.f32 %v2981, %v3805
      %v3934 = vadd.f32 %v2982, %v3806
      %v3935 = vadd.f32 %v2983, %v3807
      %v3936 = vadd.f32 %v2984, %v3808
      %v3937 = vadd.f32 %v2985, %v3809
      %v3938 = vadd.f32 %v2986, %v3810
      %v3939 = vadd.f32 %v2987, %v3811
      %v3940 = vadd.f32 %v2988, %v3812
      %v3941 = vadd.f32 %v2989, %v3813
      %v3942 = vadd.f32 %v2990, %v3814
      %v3943 = vadd.f32 %v2991, %v3815
      %v3944 = vadd.f32 %v2992, %v3816
      %v3945 = vadd.f32 %v2993, %v3817
      %v3946 = vadd.f32 %v2994, %v3818
      %v3947 = vadd.f32 %v2995, %v3819
      %v3948 = vadd.f32 %v2996, %v3820
      %v3949 = vadd.f32 %v2997, %v3821
      %v3950 = vadd.f32 %v2998, %v3822
      %v3951 = vadd.f32 %v2999, %v3823
      %v3952 = vadd.f32 %v3000, %v3824
      %v3953 = vadd.f32 %v3001, %v3825
      %v3954 = vadd.f32 %v3002, %v3826
      %v3955 = vadd.f32 %v3003, %v3827
      %v3956 = vadd.f32 %v3004, %v3828
      %v3957 = vadd.f32 %v3005, %v3829
      %v3958 = vadd.f32 %v3006, %v3830
      %v3959 = vadd.f32 %v3007, %v3831
      %v3960 = vadd.f32 %v3008, %v3832
      %v3961 = vadd.f32 %v3009, %v3833
      %v3962 = vadd.f32 %v3010, %v3834
      %v3963 = vadd.f32 %v3011, %v3835
      %v3964 = vadd.f32 %v3012, %v3836
      %v3965 = vadd.f32 %v3013, %v3837
      %v3966 = vadd.f32 %v3014, %v3838
      %v3967 = vadd.f32 %v3015, %v3839
      %v3968 = vadd.f32 %v3016, %v3840
      %v3969 = vadd.f32 %v3017, %v3841
      %v3970 = vadd.f32 %v3018, %v3842
      %v3971 = vadd.f32 %v3019, %v3843
      %v3972 = vadd.f32 %v3020, %v3844
      %v3973 = vadd.f32 %v3021, %v3845
      %v3974 = vadd.f32 %v3022, %v3846
      %v3975 = vadd.f32 %v3023, %v3847
      %v3976 = vadd.f32 %v3024, %v3848
      %v3977 = vadd.f32 %v3025, %v3849
      %v3978 = vadd.f32 %v3026, %v3850
      %v3979 = vadd.f32 %v3027, %v3851
      %v3980 = vadd.f32 %v3028, %v3852
      %v3981 = vadd.f32 %v3029, %v3853
      %v3982 = vadd.f32 %v3030, %v3854
      %v3983 = vadd.f32 %v3031, %v3855
      %v3984 = vadd.f32 %v3032, %v3856
      %v3985 = vadd.f32 %v3033, %v3857
      %v3986 = vadd.f32 %v3034, %v3858
      %v3987 = vadd.f32 %v3035, %v3859
      %v3988 = vadd.f32 %v3036, %v3860
      %v3989 = vadd.f32 %v3037, %v3861
      %v3990 = vadd.f32 %v3038, %v3862
      %v3991 = vadd.f32 %v3039, %v3863
      %v3992 = vadd.f32 %v3040, %v3864
      %v3993 = vadd.f32 %v3041, %v3865
      %v3994 = vadd.f32 %v3042, %v3866
      %v3995 = vadd.f32 %v3043, %v3867
      %v3996 = vadd.f32 %v3044, %v3868
      %v3997 = vadd.f32 %v3045, %v3869
      %v3998 = vadd.f32 %v3046, %v3870
      %v3999 = vadd.f32 %v3047, %v3871
      %v4000 = vadd.f32 %v3048, %v3872
      %v4001 = vadd.f32 %v3049, %v3873
      %v4002 = vadd.f32 %v3050, %v3874
      %v4003 = vadd.f32 %v3051, %v3875
      %v4004 = vadd.f32 %v3052, %v3876
      %v4005 = vadd.f32 %v3053, %v3877
      %v4006 = vlaneseq
      %v4007 = vshrl.u32 %v4006, 7
      %v4008 = vsub.s32 3, %v4007
      %v4009 = vrot.slane %v1180, %v4008
      %v4010 = vlaneseq
      %v4011 = vshrl.u32 %v4010, 7
      %v4012 = vsub.s32 3, %v4011
      %v4013 = vrot.slane %v1182, %v4012
      %v4014 = vlaneseq
      %v4015 = vshrl.u32 %v4014, 7
      %v4016 = vsub.s32 3, %v4015
      %v4017 = vrot.slane %v1184, %v4016
      %v4018 = vlaneseq
      %v4019 = vshrl.u32 %v4018, 7
      %v4020 = vsub.s32 3, %v4019
      %v4021 = vrot.slane %v1186, %v4020
      %v4022 = vlaneseq
      %v4023 = vshrl.u32 %v4022, 7
      %v4024 = vsub.s32 3, %v4023
      %v4025 = vrot.slane %v1188, %v4024
      %v4026 = vlaneseq
      %v4027 = vshrl.u32 %v4026, 7
      %v4028 = vsub.s32 3, %v4027
      %v4029 = vrot.slane %v1190, %v4028
      %v4030 = vlaneseq
      %v4031 = vshrl.u32 %v4030, 7
      %v4032 = vsub.s32 3, %v4031
      %v4033 = vrot.slane %v1192, %v4032
      %v4034 = vlaneseq
      %v4035 = vshrl.u32 %v4034, 7
      %v4036 = vsub.s32 3, %v4035
      %v4037 = vrot.slane %v1194, %v4036
      %v4038 = vlaneseq
      %v4039 = vshrl.u32 %v4038, 7
      %v4040 = vsub.s32 3, %v4039
      %v4041 = vrot.slane %v930, %v4040
      %v4042 = vlaneseq
      %v4043 = vshrl.u32 %v4042, 7
      %v4044 = vsub.s32 3, %v4043
      %v4045 = vrot.slane %v931, %v4044
      %v4046 = vlaneseq
      %v4047 = vshrl.u32 %v4046, 7
      %v4048 = vsub.s32 3, %v4047
      %v4049 = vrot.slane %v932, %v4048
      %v4050 = vlaneseq
      %v4051 = vshrl.u32 %v4050, 7
      %v4052 = vsub.s32 3, %v4051
      %v4053 = vrot.slane %v933, %v4052
      %v4054 = vlaneseq
      %v4055 = vshrl.u32 %v4054, 7
      %v4056 = vsub.s32 3, %v4055
      %v4057 = vrot.slane %v934, %v4056
      %v4058 = vlaneseq
      %v4059 = vshrl.u32 %v4058, 7
      %v4060 = vsub.s32 3, %v4059
      %v4061 = vrot.slane %v935, %v4060
      %v4062 = vlaneseq
      %v4063 = vshrl.u32 %v4062, 7
      %v4064 = vsub.s32 3, %v4063
      %v4065 = vrot.slane %v936, %v4064
      %v4066 = vlaneseq
      %v4067 = vshrl.u32 %v4066, 7
      %v4068 = vsub.s32 3, %v4067
      %v4069 = vrot.slane %v937, %v4068
      %4071 = vbcast.lane.b32.xlu0 %v4041, 256
      %v4072 = vpop.permute.xlu0 %4071
      %s4074 = sor.u32 256, 8
      %4075 = vbcast.lane.b32.xlu0 %v4041, %s4074
      %v4076 = vpop.permute.xlu0 %4075
      %s4078 = sor.u32 256, 16
      %4079 = vbcast.lane.b32.xlu0 %v4041, %s4078
      %v4080 = vpop.permute.xlu0 %4079
      %s4082 = sor.u32 256, 24
      %4083 = vbcast.lane.b32.xlu0 %v4041, %s4082
      %v4084 = vpop.permute.xlu0 %4083
      %s4086 = sor.u32 256, 32
      %4087 = vbcast.lane.b32.xlu0 %v4041, %s4086
      %v4088 = vpop.permute.xlu0 %4087
      %s4090 = sor.u32 256, 40
      %4091 = vbcast.lane.b32.xlu0 %v4041, %s4090
      %v4092 = vpop.permute.xlu0 %4091
      %s4094 = sor.u32 256, 48
      %4095 = vbcast.lane.b32.xlu0 %v4041, %s4094
      %v4096 = vpop.permute.xlu0 %4095
      %s4098 = sor.u32 256, 56
      %4099 = vbcast.lane.b32.xlu0 %v4041, %s4098
      %v4100 = vpop.permute.xlu0 %4099
      %s4102 = sor.u32 256, 64
      %4103 = vbcast.lane.b32.xlu0 %v4041, %s4102
      %v4104 = vpop.permute.xlu0 %4103
      %s4106 = sor.u32 256, 72
      %4107 = vbcast.lane.b32.xlu0 %v4041, %s4106
      %v4108 = vpop.permute.xlu0 %4107
      %s4110 = sor.u32 256, 80
      %4111 = vbcast.lane.b32.xlu0 %v4041, %s4110
      %v4112 = vpop.permute.xlu0 %4111
      %s4114 = sor.u32 256, 88
      %4115 = vbcast.lane.b32.xlu0 %v4041, %s4114
      %v4116 = vpop.permute.xlu0 %4115
      %s4118 = sor.u32 256, 96
      %4119 = vbcast.lane.b32.xlu0 %v4041, %s4118
      %v4120 = vpop.permute.xlu0 %4119
      %s4122 = sor.u32 256, 104
      %4123 = vbcast.lane.b32.xlu0 %v4041, %s4122
      %v4124 = vpop.permute.xlu0 %4123
      %s4126 = sor.u32 256, 112
      %4127 = vbcast.lane.b32.xlu0 %v4041, %s4126
      %v4128 = vpop.permute.xlu0 %4127
      %s4130 = sor.u32 256, 120
      %4131 = vbcast.lane.b32.xlu0 %v4041, %s4130
      %v4132 = vpop.permute.xlu0 %4131
      %4134 = vbcast.lane.b32.xlu0 %v4045, 256
      %v4135 = vpop.permute.xlu0 %4134
      %s4137 = sor.u32 256, 8
      %4138 = vbcast.lane.b32.xlu0 %v4045, %s4137
      %v4139 = vpop.permute.xlu0 %4138
      %s4141 = sor.u32 256, 16
      %4142 = vbcast.lane.b32.xlu0 %v4045, %s4141
      %v4143 = vpop.permute.xlu0 %4142
      %s4145 = sor.u32 256, 24
      %4146 = vbcast.lane.b32.xlu0 %v4045, %s4145
      %v4147 = vpop.permute.xlu0 %4146
      %s4149 = sor.u32 256, 32
      %4150 = vbcast.lane.b32.xlu0 %v4045, %s4149
      %v4151 = vpop.permute.xlu0 %4150
      %s4153 = sor.u32 256, 40
      %4154 = vbcast.lane.b32.xlu0 %v4045, %s4153
      %v4155 = vpop.permute.xlu0 %4154
      %s4157 = sor.u32 256, 48
      %4158 = vbcast.lane.b32.xlu0 %v4045, %s4157
      %v4159 = vpop.permute.xlu0 %4158
      %s4161 = sor.u32 256, 56
      %4162 = vbcast.lane.b32.xlu0 %v4045, %s4161
      %v4163 = vpop.permute.xlu0 %4162
      %s4165 = sor.u32 256, 64
      %4166 = vbcast.lane.b32.xlu0 %v4045, %s4165
      %v4167 = vpop.permute.xlu0 %4166
      %s4169 = sor.u32 256, 72
      %4170 = vbcast.lane.b32.xlu0 %v4045, %s4169
      %v4171 = vpop.permute.xlu0 %4170
      %s4173 = sor.u32 256, 80
      %4174 = vbcast.lane.b32.xlu0 %v4045, %s4173
      %v4175 = vpop.permute.xlu0 %4174
      %s4177 = sor.u32 256, 88
      %4178 = vbcast.lane.b32.xlu0 %v4045, %s4177
      %v4179 = vpop.permute.xlu0 %4178
      %s4181 = sor.u32 256, 96
      %4182 = vbcast.lane.b32.xlu0 %v4045, %s4181
      %v4183 = vpop.permute.xlu0 %4182
      %s4185 = sor.u32 256, 104
      %4186 = vbcast.lane.b32.xlu0 %v4045, %s4185
      %v4187 = vpop.permute.xlu0 %4186
      %s4189 = sor.u32 256, 112
      %4190 = vbcast.lane.b32.xlu0 %v4045, %s4189
      %v4191 = vpop.permute.xlu0 %4190
      %s4193 = sor.u32 256, 120
      %4194 = vbcast.lane.b32.xlu0 %v4045, %s4193
      %v4195 = vpop.permute.xlu0 %4194
      %4197 = vbcast.lane.b32.xlu0 %v4049, 256
      %v4198 = vpop.permute.xlu0 %4197
      %s4200 = sor.u32 256, 8
      %4201 = vbcast.lane.b32.xlu0 %v4049, %s4200
      %v4202 = vpop.permute.xlu0 %4201
      %s4204 = sor.u32 256, 16
      %4205 = vbcast.lane.b32.xlu0 %v4049, %s4204
      %v4206 = vpop.permute.xlu0 %4205
      %s4208 = sor.u32 256, 24
      %4209 = vbcast.lane.b32.xlu0 %v4049, %s4208
      %v4210 = vpop.permute.xlu0 %4209
      %s4212 = sor.u32 256, 32
      %4213 = vbcast.lane.b32.xlu0 %v4049, %s4212
      %v4214 = vpop.permute.xlu0 %4213
      %s4216 = sor.u32 256, 40
      %4217 = vbcast.lane.b32.xlu0 %v4049, %s4216
      %v4218 = vpop.permute.xlu0 %4217
      %s4220 = sor.u32 256, 48
      %4221 = vbcast.lane.b32.xlu0 %v4049, %s4220
      %v4222 = vpop.permute.xlu0 %4221
      %s4224 = sor.u32 256, 56
      %4225 = vbcast.lane.b32.xlu0 %v4049, %s4224
      %v4226 = vpop.permute.xlu0 %4225
      %s4228 = sor.u32 256, 64
      %4229 = vbcast.lane.b32.xlu0 %v4049, %s4228
      %v4230 = vpop.permute.xlu0 %4229
      %s4232 = sor.u32 256, 72
      %4233 = vbcast.lane.b32.xlu0 %v4049, %s4232
      %v4234 = vpop.permute.xlu0 %4233
      %s4236 = sor.u32 256, 80
      %4237 = vbcast.lane.b32.xlu0 %v4049, %s4236
      %v4238 = vpop.permute.xlu0 %4237
      %s4240 = sor.u32 256, 88
      %4241 = vbcast.lane.b32.xlu0 %v4049, %s4240
      %v4242 = vpop.permute.xlu0 %4241
      %s4244 = sor.u32 256, 96
      %4245 = vbcast.lane.b32.xlu0 %v4049, %s4244
      %v4246 = vpop.permute.xlu0 %4245
      %s4248 = sor.u32 256, 104
      %4249 = vbcast.lane.b32.xlu0 %v4049, %s4248
      %v4250 = vpop.permute.xlu0 %4249
      %s4252 = sor.u32 256, 112
      %4253 = vbcast.lane.b32.xlu0 %v4049, %s4252
      %v4254 = vpop.permute.xlu0 %4253
      %s4256 = sor.u32 256, 120
      %4257 = vbcast.lane.b32.xlu0 %v4049, %s4256
      %v4258 = vpop.permute.xlu0 %4257
      %4260 = vbcast.lane.b32.xlu0 %v4053, 256
      %v4261 = vpop.permute.xlu0 %4260
      %s4263 = sor.u32 256, 8
      %4264 = vbcast.lane.b32.xlu0 %v4053, %s4263
      %v4265 = vpop.permute.xlu0 %4264
      %s4267 = sor.u32 256, 16
      %4268 = vbcast.lane.b32.xlu0 %v4053, %s4267
      %v4269 = vpop.permute.xlu0 %4268
      %s4271 = sor.u32 256, 24
      %4272 = vbcast.lane.b32.xlu0 %v4053, %s4271
      %v4273 = vpop.permute.xlu0 %4272
      %s4275 = sor.u32 256, 32
      %4276 = vbcast.lane.b32.xlu0 %v4053, %s4275
      %v4277 = vpop.permute.xlu0 %4276
      %s4279 = sor.u32 256, 40
      %4280 = vbcast.lane.b32.xlu0 %v4053, %s4279
      %v4281 = vpop.permute.xlu0 %4280
      %s4283 = sor.u32 256, 48
      %4284 = vbcast.lane.b32.xlu0 %v4053, %s4283
      %v4285 = vpop.permute.xlu0 %4284
      %s4287 = sor.u32 256, 56
      %4288 = vbcast.lane.b32.xlu0 %v4053, %s4287
      %v4289 = vpop.permute.xlu0 %4288
      %s4291 = sor.u32 256, 64
      %4292 = vbcast.lane.b32.xlu0 %v4053, %s4291
      %v4293 = vpop.permute.xlu0 %4292
      %s4295 = sor.u32 256, 72
      %4296 = vbcast.lane.b32.xlu0 %v4053, %s4295
      %v4297 = vpop.permute.xlu0 %4296
      %s4299 = sor.u32 256, 80
      %4300 = vbcast.lane.b32.xlu0 %v4053, %s4299
      %v4301 = vpop.permute.xlu0 %4300
      %s4303 = sor.u32 256, 88
      %4304 = vbcast.lane.b32.xlu0 %v4053, %s4303
      %v4305 = vpop.permute.xlu0 %4304
      %s4307 = sor.u32 256, 96
      %4308 = vbcast.lane.b32.xlu0 %v4053, %s4307
      %v4309 = vpop.permute.xlu0 %4308
      %s4311 = sor.u32 256, 104
      %4312 = vbcast.lane.b32.xlu0 %v4053, %s4311
      %v4313 = vpop.permute.xlu0 %4312
      %s4315 = sor.u32 256, 112
      %4316 = vbcast.lane.b32.xlu0 %v4053, %s4315
      %v4317 = vpop.permute.xlu0 %4316
      %s4319 = sor.u32 256, 120
      %4320 = vbcast.lane.b32.xlu0 %v4053, %s4319
      %v4321 = vpop.permute.xlu0 %4320
      %4323 = vbcast.lane.b32.xlu0 %v4057, 256
      %v4324 = vpop.permute.xlu0 %4323
      %s4326 = sor.u32 256, 8
      %4327 = vbcast.lane.b32.xlu0 %v4057, %s4326
      %v4328 = vpop.permute.xlu0 %4327
      %s4330 = sor.u32 256, 16
      %4331 = vbcast.lane.b32.xlu0 %v4057, %s4330
      %v4332 = vpop.permute.xlu0 %4331
      %s4334 = sor.u32 256, 24
      %4335 = vbcast.lane.b32.xlu0 %v4057, %s4334
      %v4336 = vpop.permute.xlu0 %4335
      %s4338 = sor.u32 256, 32
      %4339 = vbcast.lane.b32.xlu0 %v4057, %s4338
      %v4340 = vpop.permute.xlu0 %4339
      %s4342 = sor.u32 256, 40
      %4343 = vbcast.lane.b32.xlu0 %v4057, %s4342
      %v4344 = vpop.permute.xlu0 %4343
      %s4346 = sor.u32 256, 48
      %4347 = vbcast.lane.b32.xlu0 %v4057, %s4346
      %v4348 = vpop.permute.xlu0 %4347
      %s4350 = sor.u32 256, 56
      %4351 = vbcast.lane.b32.xlu0 %v4057, %s4350
      %v4352 = vpop.permute.xlu0 %4351
      %s4354 = sor.u32 256, 64
      %4355 = vbcast.lane.b32.xlu0 %v4057, %s4354
      %v4356 = vpop.permute.xlu0 %4355
      %s4358 = sor.u32 256, 72
      %4359 = vbcast.lane.b32.xlu0 %v4057, %s4358
      %v4360 = vpop.permute.xlu0 %4359
      %s4362 = sor.u32 256, 80
      %4363 = vbcast.lane.b32.xlu0 %v4057, %s4362
      %v4364 = vpop.permute.xlu0 %4363
      %s4366 = sor.u32 256, 88
      %4367 = vbcast.lane.b32.xlu0 %v4057, %s4366
      %v4368 = vpop.permute.xlu0 %4367
      %s4370 = sor.u32 256, 96
      %4371 = vbcast.lane.b32.xlu0 %v4057, %s4370
      %v4372 = vpop.permute.xlu0 %4371
      %s4374 = sor.u32 256, 104
      %4375 = vbcast.lane.b32.xlu0 %v4057, %s4374
      %v4376 = vpop.permute.xlu0 %4375
      %s4378 = sor.u32 256, 112
      %4379 = vbcast.lane.b32.xlu0 %v4057, %s4378
      %v4380 = vpop.permute.xlu0 %4379
      %s4382 = sor.u32 256, 120
      %4383 = vbcast.lane.b32.xlu0 %v4057, %s4382
      %v4384 = vpop.permute.xlu0 %4383
      %4386 = vbcast.lane.b32.xlu0 %v4061, 256
      %v4387 = vpop.permute.xlu0 %4386
      %s4389 = sor.u32 256, 8
      %4390 = vbcast.lane.b32.xlu0 %v4061, %s4389
      %v4391 = vpop.permute.xlu0 %4390
      %s4393 = sor.u32 256, 16
      %4394 = vbcast.lane.b32.xlu0 %v4061, %s4393
      %v4395 = vpop.permute.xlu0 %4394
      %s4397 = sor.u32 256, 24
      %4398 = vbcast.lane.b32.xlu0 %v4061, %s4397
      %v4399 = vpop.permute.xlu0 %4398
      %s4401 = sor.u32 256, 32
      %4402 = vbcast.lane.b32.xlu0 %v4061, %s4401
      %v4403 = vpop.permute.xlu0 %4402
      %s4405 = sor.u32 256, 40
      %4406 = vbcast.lane.b32.xlu0 %v4061, %s4405
      %v4407 = vpop.permute.xlu0 %4406
      %s4409 = sor.u32 256, 48
      %4410 = vbcast.lane.b32.xlu0 %v4061, %s4409
      %v4411 = vpop.permute.xlu0 %4410
      %s4413 = sor.u32 256, 56
      %4414 = vbcast.lane.b32.xlu0 %v4061, %s4413
      %v4415 = vpop.permute.xlu0 %4414
      %s4417 = sor.u32 256, 64
      %4418 = vbcast.lane.b32.xlu0 %v4061, %s4417
      %v4419 = vpop.permute.xlu0 %4418
      %s4421 = sor.u32 256, 72
      %4422 = vbcast.lane.b32.xlu0 %v4061, %s4421
      %v4423 = vpop.permute.xlu0 %4422
      %s4425 = sor.u32 256, 80
      %4426 = vbcast.lane.b32.xlu0 %v4061, %s4425
      %v4427 = vpop.permute.xlu0 %4426
      %s4429 = sor.u32 256, 88
      %4430 = vbcast.lane.b32.xlu0 %v4061, %s4429
      %v4431 = vpop.permute.xlu0 %4430
      %s4433 = sor.u32 256, 96
      %4434 = vbcast.lane.b32.xlu0 %v4061, %s4433
      %v4435 = vpop.permute.xlu0 %4434
      %s4437 = sor.u32 256, 104
      %4438 = vbcast.lane.b32.xlu0 %v4061, %s4437
      %v4439 = vpop.permute.xlu0 %4438
      %s4441 = sor.u32 256, 112
      %4442 = vbcast.lane.b32.xlu0 %v4061, %s4441
      %v4443 = vpop.permute.xlu0 %4442
      %s4445 = sor.u32 256, 120
      %4446 = vbcast.lane.b32.xlu0 %v4061, %s4445
      %v4447 = vpop.permute.xlu0 %4446
      %4449 = vbcast.lane.b32.xlu0 %v4065, 256
      %v4450 = vpop.permute.xlu0 %4449
      %s4452 = sor.u32 256, 8
      %4453 = vbcast.lane.b32.xlu0 %v4065, %s4452
      %v4454 = vpop.permute.xlu0 %4453
      %s4456 = sor.u32 256, 16
      %4457 = vbcast.lane.b32.xlu0 %v4065, %s4456
      %v4458 = vpop.permute.xlu0 %4457
      %s4460 = sor.u32 256, 24
      %4461 = vbcast.lane.b32.xlu0 %v4065, %s4460
      %v4462 = vpop.permute.xlu0 %4461
      %s4464 = sor.u32 256, 32
      %4465 = vbcast.lane.b32.xlu0 %v4065, %s4464
      %v4466 = vpop.permute.xlu0 %4465
      %s4468 = sor.u32 256, 40
      %4469 = vbcast.lane.b32.xlu0 %v4065, %s4468
      %v4470 = vpop.permute.xlu0 %4469
      %s4472 = sor.u32 256, 48
      %4473 = vbcast.lane.b32.xlu0 %v4065, %s4472
      %v4474 = vpop.permute.xlu0 %4473
      %s4476 = sor.u32 256, 56
      %4477 = vbcast.lane.b32.xlu0 %v4065, %s4476
      %v4478 = vpop.permute.xlu0 %4477
      %s4480 = sor.u32 256, 64
      %4481 = vbcast.lane.b32.xlu0 %v4065, %s4480
      %v4482 = vpop.permute.xlu0 %4481
      %s4484 = sor.u32 256, 72
      %4485 = vbcast.lane.b32.xlu0 %v4065, %s4484
      %v4486 = vpop.permute.xlu0 %4485
      %s4488 = sor.u32 256, 80
      %4489 = vbcast.lane.b32.xlu0 %v4065, %s4488
      %v4490 = vpop.permute.xlu0 %4489
      %s4492 = sor.u32 256, 88
      %4493 = vbcast.lane.b32.xlu0 %v4065, %s4492
      %v4494 = vpop.permute.xlu0 %4493
      %s4496 = sor.u32 256, 96
      %4497 = vbcast.lane.b32.xlu0 %v4065, %s4496
      %v4498 = vpop.permute.xlu0 %4497
      %s4500 = sor.u32 256, 104
      %4501 = vbcast.lane.b32.xlu0 %v4065, %s4500
      %v4502 = vpop.permute.xlu0 %4501
      %s4504 = sor.u32 256, 112
      %4505 = vbcast.lane.b32.xlu0 %v4065, %s4504
      %v4506 = vpop.permute.xlu0 %4505
      %s4508 = sor.u32 256, 120
      %4509 = vbcast.lane.b32.xlu0 %v4065, %s4508
      %v4510 = vpop.permute.xlu0 %4509
      %4512 = vbcast.lane.b32.xlu0 %v4069, 256
      %v4513 = vpop.permute.xlu0 %4512
      %s4515 = sor.u32 256, 8
      %4516 = vbcast.lane.b32.xlu0 %v4069, %s4515
      %v4517 = vpop.permute.xlu0 %4516
      %s4519 = sor.u32 256, 16
      %4520 = vbcast.lane.b32.xlu0 %v4069, %s4519
      %v4521 = vpop.permute.xlu0 %4520
      %s4523 = sor.u32 256, 24
      %4524 = vbcast.lane.b32.xlu0 %v4069, %s4523
      %v4525 = vpop.permute.xlu0 %4524
      %s4527 = sor.u32 256, 32
      %4528 = vbcast.lane.b32.xlu0 %v4069, %s4527
      %v4529 = vpop.permute.xlu0 %4528
      %s4531 = sor.u32 256, 40
      %4532 = vbcast.lane.b32.xlu0 %v4069, %s4531
      %v4533 = vpop.permute.xlu0 %4532
      %s4535 = sor.u32 256, 48
      %4536 = vbcast.lane.b32.xlu0 %v4069, %s4535
      %v4537 = vpop.permute.xlu0 %4536
      %s4539 = sor.u32 256, 56
      %4540 = vbcast.lane.b32.xlu0 %v4069, %s4539
      %v4541 = vpop.permute.xlu0 %4540
      %s4543 = sor.u32 256, 64
      %4544 = vbcast.lane.b32.xlu0 %v4069, %s4543
      %v4545 = vpop.permute.xlu0 %4544
      %s4547 = sor.u32 256, 72
      %4548 = vbcast.lane.b32.xlu0 %v4069, %s4547
      %v4549 = vpop.permute.xlu0 %4548
      %s4551 = sor.u32 256, 80
      %4552 = vbcast.lane.b32.xlu0 %v4069, %s4551
      %v4553 = vpop.permute.xlu0 %4552
      %s4555 = sor.u32 256, 88
      %4556 = vbcast.lane.b32.xlu0 %v4069, %s4555
      %v4557 = vpop.permute.xlu0 %4556
      %s4559 = sor.u32 256, 96
      %4560 = vbcast.lane.b32.xlu0 %v4069, %s4559
      %v4561 = vpop.permute.xlu0 %4560
      %s4563 = sor.u32 256, 104
      %4564 = vbcast.lane.b32.xlu0 %v4069, %s4563
      %v4565 = vpop.permute.xlu0 %4564
      %s4567 = sor.u32 256, 112
      %4568 = vbcast.lane.b32.xlu0 %v4069, %s4567
      %v4569 = vpop.permute.xlu0 %4568
      %s4571 = sor.u32 256, 120
      %4572 = vbcast.lane.b32.xlu0 %v4069, %s4571
      %v4573 = vpop.permute.xlu0 %4572
      %v4702 = vmul.f32 %v4009, %v4072
      %v4703 = vmul.f32 %v4009, %v4076
      %v4704 = vmul.f32 %v4009, %v4080
      %v4705 = vmul.f32 %v4009, %v4084
      %v4706 = vmul.f32 %v4009, %v4088
      %v4707 = vmul.f32 %v4009, %v4092
      %v4708 = vmul.f32 %v4009, %v4096
      %v4709 = vmul.f32 %v4009, %v4100
      %v4710 = vmul.f32 %v4009, %v4104
      %v4711 = vmul.f32 %v4009, %v4108
      %v4712 = vmul.f32 %v4009, %v4112
      %v4713 = vmul.f32 %v4009, %v4116
      %v4714 = vmul.f32 %v4009, %v4120
      %v4715 = vmul.f32 %v4009, %v4124
      %v4716 = vmul.f32 %v4009, %v4128
      %v4717 = vmul.f32 %v4009, %v4132
      %v4718 = vmul.f32 %v4013, %v4135
      %v4719 = vmul.f32 %v4013, %v4139
      %v4720 = vmul.f32 %v4013, %v4143
      %v4721 = vmul.f32 %v4013, %v4147
      %v4722 = vmul.f32 %v4013, %v4151
      %v4723 = vmul.f32 %v4013, %v4155
      %v4724 = vmul.f32 %v4013, %v4159
      %v4725 = vmul.f32 %v4013, %v4163
      %v4726 = vmul.f32 %v4013, %v4167
      %v4727 = vmul.f32 %v4013, %v4171
      %v4728 = vmul.f32 %v4013, %v4175
      %v4729 = vmul.f32 %v4013, %v4179
      %v4730 = vmul.f32 %v4013, %v4183
      %v4731 = vmul.f32 %v4013, %v4187
      %v4732 = vmul.f32 %v4013, %v4191
      %v4733 = vmul.f32 %v4013, %v4195
      %v4734 = vmul.f32 %v4017, %v4198
      %v4735 = vmul.f32 %v4017, %v4202
      %v4736 = vmul.f32 %v4017, %v4206
      %v4737 = vmul.f32 %v4017, %v4210
      %v4738 = vmul.f32 %v4017, %v4214
      %v4739 = vmul.f32 %v4017, %v4218
      %v4740 = vmul.f32 %v4017, %v4222
      %v4741 = vmul.f32 %v4017, %v4226
      %v4742 = vmul.f32 %v4017, %v4230
      %v4743 = vmul.f32 %v4017, %v4234
      %v4744 = vmul.f32 %v4017, %v4238
      %v4745 = vmul.f32 %v4017, %v4242
      %v4746 = vmul.f32 %v4017, %v4246
      %v4747 = vmul.f32 %v4017, %v4250
      %v4748 = vmul.f32 %v4017, %v4254
      %v4749 = vmul.f32 %v4017, %v4258
      %v4750 = vmul.f32 %v4021, %v4261
      %v4751 = vmul.f32 %v4021, %v4265
      %v4752 = vmul.f32 %v4021, %v4269
      %v4753 = vmul.f32 %v4021, %v4273
      %v4754 = vmul.f32 %v4021, %v4277
      %v4755 = vmul.f32 %v4021, %v4281
      %v4756 = vmul.f32 %v4021, %v4285
      %v4757 = vmul.f32 %v4021, %v4289
      %v4758 = vmul.f32 %v4021, %v4293
      %v4759 = vmul.f32 %v4021, %v4297
      %v4760 = vmul.f32 %v4021, %v4301
      %v4761 = vmul.f32 %v4021, %v4305
      %v4762 = vmul.f32 %v4021, %v4309
      %v4763 = vmul.f32 %v4021, %v4313
      %v4764 = vmul.f32 %v4021, %v4317
      %v4765 = vmul.f32 %v4021, %v4321
      %v4766 = vmul.f32 %v4025, %v4324
      %v4767 = vmul.f32 %v4025, %v4328
      %v4768 = vmul.f32 %v4025, %v4332
      %v4769 = vmul.f32 %v4025, %v4336
      %v4770 = vmul.f32 %v4025, %v4340
      %v4771 = vmul.f32 %v4025, %v4344
      %v4772 = vmul.f32 %v4025, %v4348
      %v4773 = vmul.f32 %v4025, %v4352
      %v4774 = vmul.f32 %v4025, %v4356
      %v4775 = vmul.f32 %v4025, %v4360
      %v4776 = vmul.f32 %v4025, %v4364
      %v4777 = vmul.f32 %v4025, %v4368
      %v4778 = vmul.f32 %v4025, %v4372
      %v4779 = vmul.f32 %v4025, %v4376
      %v4780 = vmul.f32 %v4025, %v4380
      %v4781 = vmul.f32 %v4025, %v4384
      %v4782 = vmul.f32 %v4029, %v4387
      %v4783 = vmul.f32 %v4029, %v4391
      %v4784 = vmul.f32 %v4029, %v4395
      %v4785 = vmul.f32 %v4029, %v4399
      %v4786 = vmul.f32 %v4029, %v4403
      %v4787 = vmul.f32 %v4029, %v4407
      %v4788 = vmul.f32 %v4029, %v4411
      %v4789 = vmul.f32 %v4029, %v4415
      %v4790 = vmul.f32 %v4029, %v4419
      %v4791 = vmul.f32 %v4029, %v4423
      %v4792 = vmul.f32 %v4029, %v4427
      %v4793 = vmul.f32 %v4029, %v4431
      %v4794 = vmul.f32 %v4029, %v4435
      %v4795 = vmul.f32 %v4029, %v4439
      %v4796 = vmul.f32 %v4029, %v4443
      %v4797 = vmul.f32 %v4029, %v4447
      %v4798 = vmul.f32 %v4033, %v4450
      %v4799 = vmul.f32 %v4033, %v4454
      %v4800 = vmul.f32 %v4033, %v4458
      %v4801 = vmul.f32 %v4033, %v4462
      %v4802 = vmul.f32 %v4033, %v4466
      %v4803 = vmul.f32 %v4033, %v4470
      %v4804 = vmul.f32 %v4033, %v4474
      %v4805 = vmul.f32 %v4033, %v4478
      %v4806 = vmul.f32 %v4033, %v4482
      %v4807 = vmul.f32 %v4033, %v4486
      %v4808 = vmul.f32 %v4033, %v4490
      %v4809 = vmul.f32 %v4033, %v4494
      %v4810 = vmul.f32 %v4033, %v4498
      %v4811 = vmul.f32 %v4033, %v4502
      %v4812 = vmul.f32 %v4033, %v4506
      %v4813 = vmul.f32 %v4033, %v4510
      %v4814 = vmul.f32 %v4037, %v4513
      %v4815 = vmul.f32 %v4037, %v4517
      %v4816 = vmul.f32 %v4037, %v4521
      %v4817 = vmul.f32 %v4037, %v4525
      %v4818 = vmul.f32 %v4037, %v4529
      %v4819 = vmul.f32 %v4037, %v4533
      %v4820 = vmul.f32 %v4037, %v4537
      %v4821 = vmul.f32 %v4037, %v4541
      %v4822 = vmul.f32 %v4037, %v4545
      %v4823 = vmul.f32 %v4037, %v4549
      %v4824 = vmul.f32 %v4037, %v4553
      %v4825 = vmul.f32 %v4037, %v4557
      %v4826 = vmul.f32 %v4037, %v4561
      %v4827 = vmul.f32 %v4037, %v4565
      %v4828 = vmul.f32 %v4037, %v4569
      %v4829 = vmul.f32 %v4037, %v4573
      %v4830 = vadd.f32 %v3878, %v4702
      %v4831 = vadd.f32 %v3879, %v4703
      %v4832 = vadd.f32 %v3880, %v4704
      %v4833 = vadd.f32 %v3881, %v4705
      %v4834 = vadd.f32 %v3882, %v4706
      %v4835 = vadd.f32 %v3883, %v4707
      %v4836 = vadd.f32 %v3884, %v4708
      %v4837 = vadd.f32 %v3885, %v4709
      %v4838 = vadd.f32 %v3886, %v4710
      %v4839 = vadd.f32 %v3887, %v4711
      %v4840 = vadd.f32 %v3888, %v4712
      %v4841 = vadd.f32 %v3889, %v4713
      %v4842 = vadd.f32 %v3890, %v4714
      %v4843 = vadd.f32 %v3891, %v4715
      %v4844 = vadd.f32 %v3892, %v4716
      %v4845 = vadd.f32 %v3893, %v4717
      %v4846 = vadd.f32 %v3894, %v4718
      %v4847 = vadd.f32 %v3895, %v4719
      %v4848 = vadd.f32 %v3896, %v4720
      %v4849 = vadd.f32 %v3897, %v4721
      %v4850 = vadd.f32 %v3898, %v4722
      %v4851 = vadd.f32 %v3899, %v4723
      %v4852 = vadd.f32 %v3900, %v4724
      %v4853 = vadd.f32 %v3901, %v4725
      %v4854 = vadd.f32 %v3902, %v4726
      %v4855 = vadd.f32 %v3903, %v4727
      %v4856 = vadd.f32 %v3904, %v4728
      %v4857 = vadd.f32 %v3905, %v4729
      %v4858 = vadd.f32 %v3906, %v4730
      %v4859 = vadd.f32 %v3907, %v4731
      %v4860 = vadd.f32 %v3908, %v4732
      %v4861 = vadd.f32 %v3909, %v4733
      %v4862 = vadd.f32 %v3910, %v4734
      %v4863 = vadd.f32 %v3911, %v4735
      %v4864 = vadd.f32 %v3912, %v4736
      %v4865 = vadd.f32 %v3913, %v4737
      %v4866 = vadd.f32 %v3914, %v4738
      %v4867 = vadd.f32 %v3915, %v4739
      %v4868 = vadd.f32 %v3916, %v4740
      %v4869 = vadd.f32 %v3917, %v4741
      %v4870 = vadd.f32 %v3918, %v4742
      %v4871 = vadd.f32 %v3919, %v4743
      %v4872 = vadd.f32 %v3920, %v4744
      %v4873 = vadd.f32 %v3921, %v4745
      %v4874 = vadd.f32 %v3922, %v4746
      %v4875 = vadd.f32 %v3923, %v4747
      %v4876 = vadd.f32 %v3924, %v4748
      %v4877 = vadd.f32 %v3925, %v4749
      %v4878 = vadd.f32 %v3926, %v4750
      %v4879 = vadd.f32 %v3927, %v4751
      %v4880 = vadd.f32 %v3928, %v4752
      %v4881 = vadd.f32 %v3929, %v4753
      %v4882 = vadd.f32 %v3930, %v4754
      %v4883 = vadd.f32 %v3931, %v4755
      %v4884 = vadd.f32 %v3932, %v4756
      %v4885 = vadd.f32 %v3933, %v4757
      %v4886 = vadd.f32 %v3934, %v4758
      %v4887 = vadd.f32 %v3935, %v4759
      %v4888 = vadd.f32 %v3936, %v4760
      %v4889 = vadd.f32 %v3937, %v4761
      %v4890 = vadd.f32 %v3938, %v4762
      %v4891 = vadd.f32 %v3939, %v4763
      %v4892 = vadd.f32 %v3940, %v4764
      %v4893 = vadd.f32 %v3941, %v4765
      %v4894 = vadd.f32 %v3942, %v4766
      %v4895 = vadd.f32 %v3943, %v4767
      %v4896 = vadd.f32 %v3944, %v4768
      %v4897 = vadd.f32 %v3945, %v4769
      %v4898 = vadd.f32 %v3946, %v4770
      %v4899 = vadd.f32 %v3947, %v4771
      %v4900 = vadd.f32 %v3948, %v4772
      %v4901 = vadd.f32 %v3949, %v4773
      %v4902 = vadd.f32 %v3950, %v4774
      %v4903 = vadd.f32 %v3951, %v4775
      %v4904 = vadd.f32 %v3952, %v4776
      %v4905 = vadd.f32 %v3953, %v4777
      %v4906 = vadd.f32 %v3954, %v4778
      %v4907 = vadd.f32 %v3955, %v4779
      %v4908 = vadd.f32 %v3956, %v4780
      %v4909 = vadd.f32 %v3957, %v4781
      %v4910 = vadd.f32 %v3958, %v4782
      %v4911 = vadd.f32 %v3959, %v4783
      %v4912 = vadd.f32 %v3960, %v4784
      %v4913 = vadd.f32 %v3961, %v4785
      %v4914 = vadd.f32 %v3962, %v4786
      %v4915 = vadd.f32 %v3963, %v4787
      %v4916 = vadd.f32 %v3964, %v4788
      %v4917 = vadd.f32 %v3965, %v4789
      %v4918 = vadd.f32 %v3966, %v4790
      %v4919 = vadd.f32 %v3967, %v4791
      %v4920 = vadd.f32 %v3968, %v4792
      %v4921 = vadd.f32 %v3969, %v4793
      %v4922 = vadd.f32 %v3970, %v4794
      %v4923 = vadd.f32 %v3971, %v4795
      %v4924 = vadd.f32 %v3972, %v4796
      %v4925 = vadd.f32 %v3973, %v4797
      %v4926 = vadd.f32 %v3974, %v4798
      %v4927 = vadd.f32 %v3975, %v4799
      %v4928 = vadd.f32 %v3976, %v4800
      %v4929 = vadd.f32 %v3977, %v4801
      %v4930 = vadd.f32 %v3978, %v4802
      %v4931 = vadd.f32 %v3979, %v4803
      %v4932 = vadd.f32 %v3980, %v4804
      %v4933 = vadd.f32 %v3981, %v4805
      %v4934 = vadd.f32 %v3982, %v4806
      %v4935 = vadd.f32 %v3983, %v4807
      %v4936 = vadd.f32 %v3984, %v4808
      %v4937 = vadd.f32 %v3985, %v4809
      %v4938 = vadd.f32 %v3986, %v4810
      %v4939 = vadd.f32 %v3987, %v4811
      %v4940 = vadd.f32 %v3988, %v4812
      %v4941 = vadd.f32 %v3989, %v4813
      %v4942 = vadd.f32 %v3990, %v4814
      %v4943 = vadd.f32 %v3991, %v4815
      %v4944 = vadd.f32 %v3992, %v4816
      %v4945 = vadd.f32 %v3993, %v4817
      %v4946 = vadd.f32 %v3994, %v4818
      %v4947 = vadd.f32 %v3995, %v4819
      %v4948 = vadd.f32 %v3996, %v4820
      %v4949 = vadd.f32 %v3997, %v4821
      %v4950 = vadd.f32 %v3998, %v4822
      %v4951 = vadd.f32 %v3999, %v4823
      %v4952 = vadd.f32 %v4000, %v4824
      %v4953 = vadd.f32 %v4001, %v4825
      %v4954 = vadd.f32 %v4002, %v4826
      %v4955 = vadd.f32 %v4003, %v4827
      %v4956 = vadd.f32 %v4004, %v4828
      %v4957 = vadd.f32 %v4005, %v4829
      %v4958 = vrcp.pop %v1269
      %v4960 = vlaneseq
      %v4961 = vshrl.u32 %v4960, 7
      %v4962 = vsub.s32 0, %v4961
      %v4963 = vrot.slane %v4958, %v4962
      %v4964 = vlaneseq
      %v4965 = vshrl.u32 %v4964, 7
      %v4966 = vsub.s32 1, %v4965
      %v4967 = vrot.slane %v4958, %v4966
      %v4968 = vlaneseq
      %v4969 = vshrl.u32 %v4968, 7
      %v4970 = vsub.s32 2, %v4969
      %v4971 = vrot.slane %v4958, %v4970
      %v4972 = vlaneseq
      %v4973 = vshrl.u32 %v4972, 7
      %v4974 = vsub.s32 3, %v4973
      %v4975 = vrot.slane %v4958, %v4974
      %v4976 = vlaneseq
      %v4977 = vshrl.u32 %v4976, 7
      %v4978 = vsub.s32 4, %v4977
      %v4979 = vrot.slane %v4958, %v4978
      %v4980 = vlaneseq
      %v4981 = vshrl.u32 %v4980, 7
      %v4982 = vsub.s32 5, %v4981
      %v4983 = vrot.slane %v4958, %v4982
      %v4984 = vlaneseq
      %v4985 = vshrl.u32 %v4984, 7
      %v4986 = vsub.s32 6, %v4985
      %v4987 = vrot.slane %v4958, %v4986
      %v4988 = vlaneseq
      %v4989 = vshrl.u32 %v4988, 7
      %v4990 = vsub.s32 7, %v4989
      %v4991 = vrot.slane %v4958, %v4990
      %v5000 = vmul.f32 %v4830, %v4963
      %v5001 = vmul.f32 %v4831, %v4963
      %v5002 = vmul.f32 %v4832, %v4963
      %v5003 = vmul.f32 %v4833, %v4963
      %v5004 = vmul.f32 %v4834, %v4963
      %v5005 = vmul.f32 %v4835, %v4963
      %v5006 = vmul.f32 %v4836, %v4963
      %v5007 = vmul.f32 %v4837, %v4963
      %v5008 = vmul.f32 %v4838, %v4963
      %v5009 = vmul.f32 %v4839, %v4963
      %v5010 = vmul.f32 %v4840, %v4963
      %v5011 = vmul.f32 %v4841, %v4963
      %v5012 = vmul.f32 %v4842, %v4963
      %v5013 = vmul.f32 %v4843, %v4963
      %v5014 = vmul.f32 %v4844, %v4963
      %v5015 = vmul.f32 %v4845, %v4963
      %v5016 = vmul.f32 %v4846, %v4967
      %v5017 = vmul.f32 %v4847, %v4967
      %v5018 = vmul.f32 %v4848, %v4967
      %v5019 = vmul.f32 %v4849, %v4967
      %v5020 = vmul.f32 %v4850, %v4967
      %v5021 = vmul.f32 %v4851, %v4967
      %v5022 = vmul.f32 %v4852, %v4967
      %v5023 = vmul.f32 %v4853, %v4967
      %v5024 = vmul.f32 %v4854, %v4967
      %v5025 = vmul.f32 %v4855, %v4967
      %v5026 = vmul.f32 %v4856, %v4967
      %v5027 = vmul.f32 %v4857, %v4967
      %v5028 = vmul.f32 %v4858, %v4967
      %v5029 = vmul.f32 %v4859, %v4967
      %v5030 = vmul.f32 %v4860, %v4967
      %v5031 = vmul.f32 %v4861, %v4967
      %v5032 = vmul.f32 %v4862, %v4971
      %v5033 = vmul.f32 %v4863, %v4971
      %v5034 = vmul.f32 %v4864, %v4971
      %v5035 = vmul.f32 %v4865, %v4971
      %v5036 = vmul.f32 %v4866, %v4971
      %v5037 = vmul.f32 %v4867, %v4971
      %v5038 = vmul.f32 %v4868, %v4971
      %v5039 = vmul.f32 %v4869, %v4971
      %v5040 = vmul.f32 %v4870, %v4971
      %v5041 = vmul.f32 %v4871, %v4971
      %v5042 = vmul.f32 %v4872, %v4971
      %v5043 = vmul.f32 %v4873, %v4971
      %v5044 = vmul.f32 %v4874, %v4971
      %v5045 = vmul.f32 %v4875, %v4971
      %v5046 = vmul.f32 %v4876, %v4971
      %v5047 = vmul.f32 %v4877, %v4971
      %v5048 = vmul.f32 %v4878, %v4975
      %v5049 = vmul.f32 %v4879, %v4975
      %v5050 = vmul.f32 %v4880, %v4975
      %v5051 = vmul.f32 %v4881, %v4975
      %v5052 = vmul.f32 %v4882, %v4975
      %v5053 = vmul.f32 %v4883, %v4975
      %v5054 = vmul.f32 %v4884, %v4975
      %v5055 = vmul.f32 %v4885, %v4975
      %v5056 = vmul.f32 %v4886, %v4975
      %v5057 = vmul.f32 %v4887, %v4975
      %v5058 = vmul.f32 %v4888, %v4975
      %v5059 = vmul.f32 %v4889, %v4975
      %v5060 = vmul.f32 %v4890, %v4975
      %v5061 = vmul.f32 %v4891, %v4975
      %v5062 = vmul.f32 %v4892, %v4975
      %v5063 = vmul.f32 %v4893, %v4975
      %v5064 = vmul.f32 %v4894, %v4979
      %v5065 = vmul.f32 %v4895, %v4979
      %v5066 = vmul.f32 %v4896, %v4979
      %v5067 = vmul.f32 %v4897, %v4979
      %v5068 = vmul.f32 %v4898, %v4979
      %v5069 = vmul.f32 %v4899, %v4979
      %v5070 = vmul.f32 %v4900, %v4979
      %v5071 = vmul.f32 %v4901, %v4979
      %v5072 = vmul.f32 %v4902, %v4979
      %v5073 = vmul.f32 %v4903, %v4979
      %v5074 = vmul.f32 %v4904, %v4979
      %v5075 = vmul.f32 %v4905, %v4979
      %v5076 = vmul.f32 %v4906, %v4979
      %v5077 = vmul.f32 %v4907, %v4979
      %v5078 = vmul.f32 %v4908, %v4979
      %v5079 = vmul.f32 %v4909, %v4979
      %v5080 = vmul.f32 %v4910, %v4983
      %v5081 = vmul.f32 %v4911, %v4983
      %v5082 = vmul.f32 %v4912, %v4983
      %v5083 = vmul.f32 %v4913, %v4983
      %v5084 = vmul.f32 %v4914, %v4983
      %v5085 = vmul.f32 %v4915, %v4983
      %v5086 = vmul.f32 %v4916, %v4983
      %v5087 = vmul.f32 %v4917, %v4983
      %v5088 = vmul.f32 %v4918, %v4983
      %v5089 = vmul.f32 %v4919, %v4983
      %v5090 = vmul.f32 %v4920, %v4983
      %v5091 = vmul.f32 %v4921, %v4983
      %v5092 = vmul.f32 %v4922, %v4983
      %v5093 = vmul.f32 %v4923, %v4983
      %v5094 = vmul.f32 %v4924, %v4983
      %v5095 = vmul.f32 %v4925, %v4983
      %v5096 = vmul.f32 %v4926, %v4987
      %v5097 = vmul.f32 %v4927, %v4987
      %v5098 = vmul.f32 %v4928, %v4987
      %v5099 = vmul.f32 %v4929, %v4987
      %v5100 = vmul.f32 %v4930, %v4987
      %v5101 = vmul.f32 %v4931, %v4987
      %v5102 = vmul.f32 %v4932, %v4987
      %v5103 = vmul.f32 %v4933, %v4987
      %v5104 = vmul.f32 %v4934, %v4987
      %v5105 = vmul.f32 %v4935, %v4987
      %v5106 = vmul.f32 %v4936, %v4987
      %v5107 = vmul.f32 %v4937, %v4987
      %v5108 = vmul.f32 %v4938, %v4987
      %v5109 = vmul.f32 %v4939, %v4987
      %v5110 = vmul.f32 %v4940, %v4987
      %v5111 = vmul.f32 %v4941, %v4987
      %v5112 = vmul.f32 %v4942, %v4991
      %v5113 = vmul.f32 %v4943, %v4991
      %v5114 = vmul.f32 %v4944, %v4991
      %v5115 = vmul.f32 %v4945, %v4991
      %v5116 = vmul.f32 %v4946, %v4991
      %v5117 = vmul.f32 %v4947, %v4991
      %v5118 = vmul.f32 %v4948, %v4991
      %v5119 = vmul.f32 %v4949, %v4991
      %v5120 = vmul.f32 %v4950, %v4991
      %v5121 = vmul.f32 %v4951, %v4991
      %v5122 = vmul.f32 %v4952, %v4991
      %v5123 = vmul.f32 %v4953, %v4991
      %v5124 = vmul.f32 %v4954, %v4991
      %v5125 = vmul.f32 %v4955, %v4991
      %v5126 = vmul.f32 %v4956, %v4991
      %v5127 = vmul.f32 %v4957, %v4991
      %v5128 = vpack.c.bf16 %v5001, %v5000
      %v5129 = vpack.c.bf16 %v5003, %v5002
      %v5130 = vpack.c.bf16 %v5005, %v5004
      %v5131 = vpack.c.bf16 %v5007, %v5006
      %v5132 = vpack.c.bf16 %v5009, %v5008
      %v5133 = vpack.c.bf16 %v5011, %v5010
      %v5134 = vpack.c.bf16 %v5013, %v5012
      %v5135 = vpack.c.bf16 %v5015, %v5014
      %v5136 = vpack.c.bf16 %v5017, %v5016
      %v5137 = vpack.c.bf16 %v5019, %v5018
      %v5138 = vpack.c.bf16 %v5021, %v5020
      %v5139 = vpack.c.bf16 %v5023, %v5022
      %v5140 = vpack.c.bf16 %v5025, %v5024
      %v5141 = vpack.c.bf16 %v5027, %v5026
      %v5142 = vpack.c.bf16 %v5029, %v5028
      %v5143 = vpack.c.bf16 %v5031, %v5030
      %v5144 = vpack.c.bf16 %v5033, %v5032
      %v5145 = vpack.c.bf16 %v5035, %v5034
      %v5146 = vpack.c.bf16 %v5037, %v5036
      %v5147 = vpack.c.bf16 %v5039, %v5038
      %v5148 = vpack.c.bf16 %v5041, %v5040
      %v5149 = vpack.c.bf16 %v5043, %v5042
      %v5150 = vpack.c.bf16 %v5045, %v5044
      %v5151 = vpack.c.bf16 %v5047, %v5046
      %v5152 = vpack.c.bf16 %v5049, %v5048
      %v5153 = vpack.c.bf16 %v5051, %v5050
      %v5154 = vpack.c.bf16 %v5053, %v5052
      %v5155 = vpack.c.bf16 %v5055, %v5054
      %v5156 = vpack.c.bf16 %v5057, %v5056
      %v5157 = vpack.c.bf16 %v5059, %v5058
      %v5158 = vpack.c.bf16 %v5061, %v5060
      %v5159 = vpack.c.bf16 %v5063, %v5062
      %v5160 = vpack.c.bf16 %v5065, %v5064
      %v5161 = vpack.c.bf16 %v5067, %v5066
      %v5162 = vpack.c.bf16 %v5069, %v5068
      %v5163 = vpack.c.bf16 %v5071, %v5070
      %v5164 = vpack.c.bf16 %v5073, %v5072
      %v5165 = vpack.c.bf16 %v5075, %v5074
      %v5166 = vpack.c.bf16 %v5077, %v5076
      %v5167 = vpack.c.bf16 %v5079, %v5078
      %v5168 = vpack.c.bf16 %v5081, %v5080
      %v5169 = vpack.c.bf16 %v5083, %v5082
      %v5170 = vpack.c.bf16 %v5085, %v5084
      %v5171 = vpack.c.bf16 %v5087, %v5086
      %v5172 = vpack.c.bf16 %v5089, %v5088
      %v5173 = vpack.c.bf16 %v5091, %v5090
      %v5174 = vpack.c.bf16 %v5093, %v5092
      %v5175 = vpack.c.bf16 %v5095, %v5094
      %v5176 = vpack.c.bf16 %v5097, %v5096
      %v5177 = vpack.c.bf16 %v5099, %v5098
      %v5178 = vpack.c.bf16 %v5101, %v5100
      %v5179 = vpack.c.bf16 %v5103, %v5102
      %v5180 = vpack.c.bf16 %v5105, %v5104
      %v5181 = vpack.c.bf16 %v5107, %v5106
      %v5182 = vpack.c.bf16 %v5109, %v5108
      %v5183 = vpack.c.bf16 %v5111, %v5110
      %v5184 = vpack.c.bf16 %v5113, %v5112
      %v5185 = vpack.c.bf16 %v5115, %v5114
      %v5186 = vpack.c.bf16 %v5117, %v5116
      %v5187 = vpack.c.bf16 %v5119, %v5118
      %v5188 = vpack.c.bf16 %v5121, %v5120
      %v5189 = vpack.c.bf16 %v5123, %v5122
      %v5190 = vpack.c.bf16 %v5125, %v5124
      %v5191 = vpack.c.bf16 %v5127, %v5126
      %v5192 = vld [vmem:[%s8] sm:$0xff]
      %v5193 = vld [vmem:[%s8 + $0x8] sm:$0xff]
      %v5194 = vld [vmem:[%s8 + $0x10] sm:$0xff]
      %v5195 = vld [vmem:[%s8 + $0x18] sm:$0xff]
      %v5196 = vld [vmem:[%s8 + $0x20] sm:$0xff]
      %v5197 = vld [vmem:[%s8 + $0x28] sm:$0xff]
      %v5198 = vld [vmem:[%s8 + $0x30] sm:$0xff]
      %v5199 = vld [vmem:[%s8 + $0x38] sm:$0xff]
      %v5200 = vld [vmem:[%s8 + $0x40] sm:$0xff]
      %v5201 = vld [vmem:[%s8 + $0x48] sm:$0xff]
      %v5202 = vld [vmem:[%s8 + $0x50] sm:$0xff]
      %v5203 = vld [vmem:[%s8 + $0x58] sm:$0xff]
      %v5204 = vld [vmem:[%s8 + $0x60] sm:$0xff]
      %v5205 = vld [vmem:[%s8 + $0x68] sm:$0xff]
      %v5206 = vld [vmem:[%s8 + $0x70] sm:$0xff]
      %v5207 = vld [vmem:[%s8 + $0x78] sm:$0xff]
      %v5208 = vld [vmem:[%s9] sm:$0x3]
      %v5210 = vlaneseq
      %v5211 = vshrl.u32 %v5210, 7
      %v5212 = vsub.s32 0, %v5211
      %v5213 = vrot.slane %v5208, %v5212
      %v5214 = vlaneseq
      %v5215 = vshrl.u32 %v5214, 7
      %v5216 = vsub.s32 1, %v5215
      %v5217 = vrot.slane %v5208, %v5216
      %v5284 = vunpack.c.l.b16 %v5128
      %v5285 = vunpack.c.h.b16 %v5128
      %v5286 = vunpack.c.l.b16 %v5129
      %v5287 = vunpack.c.h.b16 %v5129
      %v5288 = vunpack.c.l.b16 %v5130
      %v5289 = vunpack.c.h.b16 %v5130
      %v5290 = vunpack.c.l.b16 %v5131
      %v5291 = vunpack.c.h.b16 %v5131
      %v5292 = vunpack.c.l.b16 %v5132
      %v5293 = vunpack.c.h.b16 %v5132
      %v5294 = vunpack.c.l.b16 %v5133
      %v5295 = vunpack.c.h.b16 %v5133
      %v5296 = vunpack.c.l.b16 %v5134
      %v5297 = vunpack.c.h.b16 %v5134
      %v5298 = vunpack.c.l.b16 %v5135
      %v5299 = vunpack.c.h.b16 %v5135
      %v5300 = vunpack.c.l.b16 %v5136
      %v5301 = vunpack.c.h.b16 %v5136
      %v5302 = vunpack.c.l.b16 %v5137
      %v5303 = vunpack.c.h.b16 %v5137
      %v5304 = vunpack.c.l.b16 %v5138
      %v5305 = vunpack.c.h.b16 %v5138
      %v5306 = vunpack.c.l.b16 %v5139
      %v5307 = vunpack.c.h.b16 %v5139
      %v5308 = vunpack.c.l.b16 %v5140
      %v5309 = vunpack.c.h.b16 %v5140
      %v5310 = vunpack.c.l.b16 %v5141
      %v5311 = vunpack.c.h.b16 %v5141
      %v5312 = vunpack.c.l.b16 %v5142
      %v5313 = vunpack.c.h.b16 %v5142
      %v5314 = vunpack.c.l.b16 %v5143
      %v5315 = vunpack.c.h.b16 %v5143
      %v5316 = vunpack.c.l.b16 %v5144
      %v5317 = vunpack.c.h.b16 %v5144
      %v5318 = vunpack.c.l.b16 %v5145
      %v5319 = vunpack.c.h.b16 %v5145
      %v5320 = vunpack.c.l.b16 %v5146
      %v5321 = vunpack.c.h.b16 %v5146
      %v5322 = vunpack.c.l.b16 %v5147
      %v5323 = vunpack.c.h.b16 %v5147
      %v5324 = vunpack.c.l.b16 %v5148
      %v5325 = vunpack.c.h.b16 %v5148
      %v5326 = vunpack.c.l.b16 %v5149
      %v5327 = vunpack.c.h.b16 %v5149
      %v5328 = vunpack.c.l.b16 %v5150
      %v5329 = vunpack.c.h.b16 %v5150
      %v5330 = vunpack.c.l.b16 %v5151
      %v5331 = vunpack.c.h.b16 %v5151
      %v5332 = vunpack.c.l.b16 %v5152
      %v5333 = vunpack.c.h.b16 %v5152
      %v5334 = vunpack.c.l.b16 %v5153
      %v5335 = vunpack.c.h.b16 %v5153
      %v5336 = vunpack.c.l.b16 %v5154
      %v5337 = vunpack.c.h.b16 %v5154
      %v5338 = vunpack.c.l.b16 %v5155
      %v5339 = vunpack.c.h.b16 %v5155
      %v5340 = vunpack.c.l.b16 %v5156
      %v5341 = vunpack.c.h.b16 %v5156
      %v5342 = vunpack.c.l.b16 %v5157
      %v5343 = vunpack.c.h.b16 %v5157
      %v5344 = vunpack.c.l.b16 %v5158
      %v5345 = vunpack.c.h.b16 %v5158
      %v5346 = vunpack.c.l.b16 %v5159
      %v5347 = vunpack.c.h.b16 %v5159
      %v5348 = vunpack.c.l.b16 %v5160
      %v5349 = vunpack.c.h.b16 %v5160
      %v5350 = vunpack.c.l.b16 %v5161
      %v5351 = vunpack.c.h.b16 %v5161
      %v5352 = vunpack.c.l.b16 %v5162
      %v5353 = vunpack.c.h.b16 %v5162
      %v5354 = vunpack.c.l.b16 %v5163
      %v5355 = vunpack.c.h.b16 %v5163
      %v5356 = vunpack.c.l.b16 %v5164
      %v5357 = vunpack.c.h.b16 %v5164
      %v5358 = vunpack.c.l.b16 %v5165
      %v5359 = vunpack.c.h.b16 %v5165
      %v5360 = vunpack.c.l.b16 %v5166
      %v5361 = vunpack.c.h.b16 %v5166
      %v5362 = vunpack.c.l.b16 %v5167
      %v5363 = vunpack.c.h.b16 %v5167
      %v5364 = vunpack.c.l.b16 %v5168
      %v5365 = vunpack.c.h.b16 %v5168
      %v5366 = vunpack.c.l.b16 %v5169
      %v5367 = vunpack.c.h.b16 %v5169
      %v5368 = vunpack.c.l.b16 %v5170
      %v5369 = vunpack.c.h.b16 %v5170
      %v5370 = vunpack.c.l.b16 %v5171
      %v5371 = vunpack.c.h.b16 %v5171
      %v5372 = vunpack.c.l.b16 %v5172
      %v5373 = vunpack.c.h.b16 %v5172
      %v5374 = vunpack.c.l.b16 %v5173
      %v5375 = vunpack.c.h.b16 %v5173
      %v5376 = vunpack.c.l.b16 %v5174
      %v5377 = vunpack.c.h.b16 %v5174
      %v5378 = vunpack.c.l.b16 %v5175
      %v5379 = vunpack.c.h.b16 %v5175
      %v5380 = vunpack.c.l.b16 %v5176
      %v5381 = vunpack.c.h.b16 %v5176
      %v5382 = vunpack.c.l.b16 %v5177
      %v5383 = vunpack.c.h.b16 %v5177
      %v5384 = vunpack.c.l.b16 %v5178
      %v5385 = vunpack.c.h.b16 %v5178
      %v5386 = vunpack.c.l.b16 %v5179
      %v5387 = vunpack.c.h.b16 %v5179
      %v5388 = vunpack.c.l.b16 %v5180
      %v5389 = vunpack.c.h.b16 %v5180
      %v5390 = vunpack.c.l.b16 %v5181
      %v5391 = vunpack.c.h.b16 %v5181
      %v5392 = vunpack.c.l.b16 %v5182
      %v5393 = vunpack.c.h.b16 %v5182
      %v5394 = vunpack.c.l.b16 %v5183
      %v5395 = vunpack.c.h.b16 %v5183
      %v5396 = vunpack.c.l.b16 %v5184
      %v5397 = vunpack.c.h.b16 %v5184
      %v5398 = vunpack.c.l.b16 %v5185
      %v5399 = vunpack.c.h.b16 %v5185
      %v5400 = vunpack.c.l.b16 %v5186
      %v5401 = vunpack.c.h.b16 %v5186
      %v5402 = vunpack.c.l.b16 %v5187
      %v5403 = vunpack.c.h.b16 %v5187
      %v5404 = vunpack.c.l.b16 %v5188
      %v5405 = vunpack.c.h.b16 %v5188
      %v5406 = vunpack.c.l.b16 %v5189
      %v5407 = vunpack.c.h.b16 %v5189
      %v5408 = vunpack.c.l.b16 %v5190
      %v5409 = vunpack.c.h.b16 %v5190
      %v5410 = vunpack.c.l.b16 %v5191
      %v5411 = vunpack.c.h.b16 %v5191
      %5412 = vset.pattern.permute.xlu0 0
      %5413 = vperm.xlu0 %5412, %v5284
      %v5414 = vpop.permute.xlu0 %5413
      %5415 = vset.pattern.permute.xlu0 0
      %5416 = vperm.xlu0 %5415, %v5285
      %v5417 = vpop.permute.xlu0 %5416
      %5418 = vset.pattern.permute.xlu0 0
      %5419 = vperm.xlu0 %5418, %v5286
      %v5420 = vpop.permute.xlu0 %5419
      %5421 = vset.pattern.permute.xlu0 0
      %5422 = vperm.xlu0 %5421, %v5287
      %v5423 = vpop.permute.xlu0 %5422
      %5424 = vset.pattern.permute.xlu0 0
      %5425 = vperm.xlu0 %5424, %v5288
      %v5426 = vpop.permute.xlu0 %5425
      %5427 = vset.pattern.permute.xlu0 0
      %5428 = vperm.xlu0 %5427, %v5289
      %v5429 = vpop.permute.xlu0 %5428
      %5430 = vset.pattern.permute.xlu0 0
      %5431 = vperm.xlu0 %5430, %v5290
      %v5432 = vpop.permute.xlu0 %5431
      %5433 = vset.pattern.permute.xlu0 0
      %5434 = vperm.xlu0 %5433, %v5291
      %v5435 = vpop.permute.xlu0 %5434
      %5436 = vset.pattern.permute.xlu0 0
      %5437 = vperm.xlu0 %5436, %v5292
      %v5438 = vpop.permute.xlu0 %5437
      %5439 = vset.pattern.permute.xlu0 0
      %5440 = vperm.xlu0 %5439, %v5293
      %v5441 = vpop.permute.xlu0 %5440
      %5442 = vset.pattern.permute.xlu0 0
      %5443 = vperm.xlu0 %5442, %v5294
      %v5444 = vpop.permute.xlu0 %5443
      %5445 = vset.pattern.permute.xlu0 0
      %5446 = vperm.xlu0 %5445, %v5295
      %v5447 = vpop.permute.xlu0 %5446
      %5448 = vset.pattern.permute.xlu0 0
      %5449 = vperm.xlu0 %5448, %v5296
      %v5450 = vpop.permute.xlu0 %5449
      %5451 = vset.pattern.permute.xlu0 0
      %5452 = vperm.xlu0 %5451, %v5297
      %v5453 = vpop.permute.xlu0 %5452
      %5454 = vset.pattern.permute.xlu0 0
      %5455 = vperm.xlu0 %5454, %v5298
      %v5456 = vpop.permute.xlu0 %5455
      %5457 = vset.pattern.permute.xlu0 0
      %5458 = vperm.xlu0 %5457, %v5299
      %v5459 = vpop.permute.xlu0 %5458
      %5460 = vset.pattern.permute.xlu0 0
      %5461 = vperm.xlu0 %5460, %v5300
      %v5462 = vpop.permute.xlu0 %5461
      %5463 = vset.pattern.permute.xlu0 0
      %5464 = vperm.xlu0 %5463, %v5301
      %v5465 = vpop.permute.xlu0 %5464
      %5466 = vset.pattern.permute.xlu0 0
      %5467 = vperm.xlu0 %5466, %v5302
      %v5468 = vpop.permute.xlu0 %5467
      %5469 = vset.pattern.permute.xlu0 0
      %5470 = vperm.xlu0 %5469, %v5303
      %v5471 = vpop.permute.xlu0 %5470
      %5472 = vset.pattern.permute.xlu0 0
      %5473 = vperm.xlu0 %5472, %v5304
      %v5474 = vpop.permute.xlu0 %5473
      %5475 = vset.pattern.permute.xlu0 0
      %5476 = vperm.xlu0 %5475, %v5305
      %v5477 = vpop.permute.xlu0 %5476
      %5478 = vset.pattern.permute.xlu0 0
      %5479 = vperm.xlu0 %5478, %v5306
      %v5480 = vpop.permute.xlu0 %5479
      %5481 = vset.pattern.permute.xlu0 0
      %5482 = vperm.xlu0 %5481, %v5307
      %v5483 = vpop.permute.xlu0 %5482
      %5484 = vset.pattern.permute.xlu0 0
      %5485 = vperm.xlu0 %5484, %v5308
      %v5486 = vpop.permute.xlu0 %5485
      %5487 = vset.pattern.permute.xlu0 0
      %5488 = vperm.xlu0 %5487, %v5309
      %v5489 = vpop.permute.xlu0 %5488
      %5490 = vset.pattern.permute.xlu0 0
      %5491 = vperm.xlu0 %5490, %v5310
      %v5492 = vpop.permute.xlu0 %5491
      %5493 = vset.pattern.permute.xlu0 0
      %5494 = vperm.xlu0 %5493, %v5311
      %v5495 = vpop.permute.xlu0 %5494
      %5496 = vset.pattern.permute.xlu0 0
      %5497 = vperm.xlu0 %5496, %v5312
      %v5498 = vpop.permute.xlu0 %5497
      %5499 = vset.pattern.permute.xlu0 0
      %5500 = vperm.xlu0 %5499, %v5313
      %v5501 = vpop.permute.xlu0 %5500
      %5502 = vset.pattern.permute.xlu0 0
      %5503 = vperm.xlu0 %5502, %v5314
      %v5504 = vpop.permute.xlu0 %5503
      %5505 = vset.pattern.permute.xlu0 0
      %5506 = vperm.xlu0 %5505, %v5315
      %v5507 = vpop.permute.xlu0 %5506
      %5508 = vset.pattern.permute.xlu0 0
      %5509 = vperm.xlu0 %5508, %v5316
      %v5510 = vpop.permute.xlu0 %5509
      %5511 = vset.pattern.permute.xlu0 0
      %5512 = vperm.xlu0 %5511, %v5317
      %v5513 = vpop.permute.xlu0 %5512
      %5514 = vset.pattern.permute.xlu0 0
      %5515 = vperm.xlu0 %5514, %v5318
      %v5516 = vpop.permute.xlu0 %5515
      %5517 = vset.pattern.permute.xlu0 0
      %5518 = vperm.xlu0 %5517, %v5319
      %v5519 = vpop.permute.xlu0 %5518
      %5520 = vset.pattern.permute.xlu0 0
      %5521 = vperm.xlu0 %5520, %v5320
      %v5522 = vpop.permute.xlu0 %5521
      %5523 = vset.pattern.permute.xlu0 0
      %5524 = vperm.xlu0 %5523, %v5321
      %v5525 = vpop.permute.xlu0 %5524
      %5526 = vset.pattern.permute.xlu0 0
      %5527 = vperm.xlu0 %5526, %v5322
      %v5528 = vpop.permute.xlu0 %5527
      %5529 = vset.pattern.permute.xlu0 0
      %5530 = vperm.xlu0 %5529, %v5323
      %v5531 = vpop.permute.xlu0 %5530
      %5532 = vset.pattern.permute.xlu0 0
      %5533 = vperm.xlu0 %5532, %v5324
      %v5534 = vpop.permute.xlu0 %5533
      %5535 = vset.pattern.permute.xlu0 0
      %5536 = vperm.xlu0 %5535, %v5325
      %v5537 = vpop.permute.xlu0 %5536
      %5538 = vset.pattern.permute.xlu0 0
      %5539 = vperm.xlu0 %5538, %v5326
      %v5540 = vpop.permute.xlu0 %5539
      %5541 = vset.pattern.permute.xlu0 0
      %5542 = vperm.xlu0 %5541, %v5327
      %v5543 = vpop.permute.xlu0 %5542
      %5544 = vset.pattern.permute.xlu0 0
      %5545 = vperm.xlu0 %5544, %v5328
      %v5546 = vpop.permute.xlu0 %5545
      %5547 = vset.pattern.permute.xlu0 0
      %5548 = vperm.xlu0 %5547, %v5329
      %v5549 = vpop.permute.xlu0 %5548
      %5550 = vset.pattern.permute.xlu0 0
      %5551 = vperm.xlu0 %5550, %v5330
      %v5552 = vpop.permute.xlu0 %5551
      %5553 = vset.pattern.permute.xlu0 0
      %5554 = vperm.xlu0 %5553, %v5331
      %v5555 = vpop.permute.xlu0 %5554
      %5556 = vset.pattern.permute.xlu0 0
      %5557 = vperm.xlu0 %5556, %v5332
      %v5558 = vpop.permute.xlu0 %5557
      %5559 = vset.pattern.permute.xlu0 0
      %5560 = vperm.xlu0 %5559, %v5333
      %v5561 = vpop.permute.xlu0 %5560
      %5562 = vset.pattern.permute.xlu0 0
      %5563 = vperm.xlu0 %5562, %v5334
      %v5564 = vpop.permute.xlu0 %5563
      %5565 = vset.pattern.permute.xlu0 0
      %5566 = vperm.xlu0 %5565, %v5335
      %v5567 = vpop.permute.xlu0 %5566
      %5568 = vset.pattern.permute.xlu0 0
      %5569 = vperm.xlu0 %5568, %v5336
      %v5570 = vpop.permute.xlu0 %5569
      %5571 = vset.pattern.permute.xlu0 0
      %5572 = vperm.xlu0 %5571, %v5337
      %v5573 = vpop.permute.xlu0 %5572
      %5574 = vset.pattern.permute.xlu0 0
      %5575 = vperm.xlu0 %5574, %v5338
      %v5576 = vpop.permute.xlu0 %5575
      %5577 = vset.pattern.permute.xlu0 0
      %5578 = vperm.xlu0 %5577, %v5339
      %v5579 = vpop.permute.xlu0 %5578
      %5580 = vset.pattern.permute.xlu0 0
      %5581 = vperm.xlu0 %5580, %v5340
      %v5582 = vpop.permute.xlu0 %5581
      %5583 = vset.pattern.permute.xlu0 0
      %5584 = vperm.xlu0 %5583, %v5341
      %v5585 = vpop.permute.xlu0 %5584
      %5586 = vset.pattern.permute.xlu0 0
      %5587 = vperm.xlu0 %5586, %v5342
      %v5588 = vpop.permute.xlu0 %5587
      %5589 = vset.pattern.permute.xlu0 0
      %5590 = vperm.xlu0 %5589, %v5343
      %v5591 = vpop.permute.xlu0 %5590
      %5592 = vset.pattern.permute.xlu0 0
      %5593 = vperm.xlu0 %5592, %v5344
      %v5594 = vpop.permute.xlu0 %5593
      %5595 = vset.pattern.permute.xlu0 0
      %5596 = vperm.xlu0 %5595, %v5345
      %v5597 = vpop.permute.xlu0 %5596
      %5598 = vset.pattern.permute.xlu0 0
      %5599 = vperm.xlu0 %5598, %v5346
      %v5600 = vpop.permute.xlu0 %5599
      %5601 = vset.pattern.permute.xlu0 0
      %5602 = vperm.xlu0 %5601, %v5347
      %v5603 = vpop.permute.xlu0 %5602
      %5604 = vset.pattern.permute.xlu0 0
      %5605 = vperm.xlu0 %5604, %v5348
      %v5606 = vpop.permute.xlu0 %5605
      %5607 = vset.pattern.permute.xlu0 0
      %5608 = vperm.xlu0 %5607, %v5349
      %v5609 = vpop.permute.xlu0 %5608
      %5610 = vset.pattern.permute.xlu0 0
      %5611 = vperm.xlu0 %5610, %v5350
      %v5612 = vpop.permute.xlu0 %5611
      %5613 = vset.pattern.permute.xlu0 0
      %5614 = vperm.xlu0 %5613, %v5351
      %v5615 = vpop.permute.xlu0 %5614
      %5616 = vset.pattern.permute.xlu0 0
      %5617 = vperm.xlu0 %5616, %v5352
      %v5618 = vpop.permute.xlu0 %5617
      %5619 = vset.pattern.permute.xlu0 0
      %5620 = vperm.xlu0 %5619, %v5353
      %v5621 = vpop.permute.xlu0 %5620
      %5622 = vset.pattern.permute.xlu0 0
      %5623 = vperm.xlu0 %5622, %v5354
      %v5624 = vpop.permute.xlu0 %5623
      %5625 = vset.pattern.permute.xlu0 0
      %5626 = vperm.xlu0 %5625, %v5355
      %v5627 = vpop.permute.xlu0 %5626
      %5628 = vset.pattern.permute.xlu0 0
      %5629 = vperm.xlu0 %5628, %v5356
      %v5630 = vpop.permute.xlu0 %5629
      %5631 = vset.pattern.permute.xlu0 0
      %5632 = vperm.xlu0 %5631, %v5357
      %v5633 = vpop.permute.xlu0 %5632
      %5634 = vset.pattern.permute.xlu0 0
      %5635 = vperm.xlu0 %5634, %v5358
      %v5636 = vpop.permute.xlu0 %5635
      %5637 = vset.pattern.permute.xlu0 0
      %5638 = vperm.xlu0 %5637, %v5359
      %v5639 = vpop.permute.xlu0 %5638
      %5640 = vset.pattern.permute.xlu0 0
      %5641 = vperm.xlu0 %5640, %v5360
      %v5642 = vpop.permute.xlu0 %5641
      %5643 = vset.pattern.permute.xlu0 0
      %5644 = vperm.xlu0 %5643, %v5361
      %v5645 = vpop.permute.xlu0 %5644
      %5646 = vset.pattern.permute.xlu0 0
      %5647 = vperm.xlu0 %5646, %v5362
      %v5648 = vpop.permute.xlu0 %5647
      %5649 = vset.pattern.permute.xlu0 0
      %5650 = vperm.xlu0 %5649, %v5363
      %v5651 = vpop.permute.xlu0 %5650
      %5652 = vset.pattern.permute.xlu0 0
      %5653 = vperm.xlu0 %5652, %v5364
      %v5654 = vpop.permute.xlu0 %5653
      %5655 = vset.pattern.permute.xlu0 0
      %5656 = vperm.xlu0 %5655, %v5365
      %v5657 = vpop.permute.xlu0 %5656
      %5658 = vset.pattern.permute.xlu0 0
      %5659 = vperm.xlu0 %5658, %v5366
      %v5660 = vpop.permute.xlu0 %5659
      %5661 = vset.pattern.permute.xlu0 0
      %5662 = vperm.xlu0 %5661, %v5367
      %v5663 = vpop.permute.xlu0 %5662
      %5664 = vset.pattern.permute.xlu0 0
      %5665 = vperm.xlu0 %5664, %v5368
      %v5666 = vpop.permute.xlu0 %5665
      %5667 = vset.pattern.permute.xlu0 0
      %5668 = vperm.xlu0 %5667, %v5369
      %v5669 = vpop.permute.xlu0 %5668
      %5670 = vset.pattern.permute.xlu0 0
      %5671 = vperm.xlu0 %5670, %v5370
      %v5672 = vpop.permute.xlu0 %5671
      %5673 = vset.pattern.permute.xlu0 0
      %5674 = vperm.xlu0 %5673, %v5371
      %v5675 = vpop.permute.xlu0 %5674
      %5676 = vset.pattern.permute.xlu0 0
      %5677 = vperm.xlu0 %5676, %v5372
      %v5678 = vpop.permute.xlu0 %5677
      %5679 = vset.pattern.permute.xlu0 0
      %5680 = vperm.xlu0 %5679, %v5373
      %v5681 = vpop.permute.xlu0 %5680
      %5682 = vset.pattern.permute.xlu0 0
      %5683 = vperm.xlu0 %5682, %v5374
      %v5684 = vpop.permute.xlu0 %5683
      %5685 = vset.pattern.permute.xlu0 0
      %5686 = vperm.xlu0 %5685, %v5375
      %v5687 = vpop.permute.xlu0 %5686
      %5688 = vset.pattern.permute.xlu0 0
      %5689 = vperm.xlu0 %5688, %v5376
      %v5690 = vpop.permute.xlu0 %5689
      %5691 = vset.pattern.permute.xlu0 0
      %5692 = vperm.xlu0 %5691, %v5377
      %v5693 = vpop.permute.xlu0 %5692
      %5694 = vset.pattern.permute.xlu0 0
      %5695 = vperm.xlu0 %5694, %v5378
      %v5696 = vpop.permute.xlu0 %5695
      %5697 = vset.pattern.permute.xlu0 0
      %5698 = vperm.xlu0 %5697, %v5379
      %v5699 = vpop.permute.xlu0 %5698
      %5700 = vset.pattern.permute.xlu0 0
      %5701 = vperm.xlu0 %5700, %v5380
      %v5702 = vpop.permute.xlu0 %5701
      %5703 = vset.pattern.permute.xlu0 0
      %5704 = vperm.xlu0 %5703, %v5381
      %v5705 = vpop.permute.xlu0 %5704
      %5706 = vset.pattern.permute.xlu0 0
      %5707 = vperm.xlu0 %5706, %v5382
      %v5708 = vpop.permute.xlu0 %5707
      %5709 = vset.pattern.permute.xlu0 0
      %5710 = vperm.xlu0 %5709, %v5383
      %v5711 = vpop.permute.xlu0 %5710
      %5712 = vset.pattern.permute.xlu0 0
      %5713 = vperm.xlu0 %5712, %v5384
      %v5714 = vpop.permute.xlu0 %5713
      %5715 = vset.pattern.permute.xlu0 0
      %5716 = vperm.xlu0 %5715, %v5385
      %v5717 = vpop.permute.xlu0 %5716
      %5718 = vset.pattern.permute.xlu0 0
      %5719 = vperm.xlu0 %5718, %v5386
      %v5720 = vpop.permute.xlu0 %5719
      %5721 = vset.pattern.permute.xlu0 0
      %5722 = vperm.xlu0 %5721, %v5387
      %v5723 = vpop.permute.xlu0 %5722
      %5724 = vset.pattern.permute.xlu0 0
      %5725 = vperm.xlu0 %5724, %v5388
      %v5726 = vpop.permute.xlu0 %5725
      %5727 = vset.pattern.permute.xlu0 0
      %5728 = vperm.xlu0 %5727, %v5389
      %v5729 = vpop.permute.xlu0 %5728
      %5730 = vset.pattern.permute.xlu0 0
      %5731 = vperm.xlu0 %5730, %v5390
      %v5732 = vpop.permute.xlu0 %5731
      %5733 = vset.pattern.permute.xlu0 0
      %5734 = vperm.xlu0 %5733, %v5391
      %v5735 = vpop.permute.xlu0 %5734
      %5736 = vset.pattern.permute.xlu0 0
      %5737 = vperm.xlu0 %5736, %v5392
      %v5738 = vpop.permute.xlu0 %5737
      %5739 = vset.pattern.permute.xlu0 0
      %5740 = vperm.xlu0 %5739, %v5393
      %v5741 = vpop.permute.xlu0 %5740
      %5742 = vset.pattern.permute.xlu0 0
      %5743 = vperm.xlu0 %5742, %v5394
      %v5744 = vpop.permute.xlu0 %5743
      %5745 = vset.pattern.permute.xlu0 0
      %5746 = vperm.xlu0 %5745, %v5395
      %v5747 = vpop.permute.xlu0 %5746
      %5748 = vset.pattern.permute.xlu0 0
      %5749 = vperm.xlu0 %5748, %v5396
      %v5750 = vpop.permute.xlu0 %5749
      %5751 = vset.pattern.permute.xlu0 0
      %5752 = vperm.xlu0 %5751, %v5397
      %v5753 = vpop.permute.xlu0 %5752
      %5754 = vset.pattern.permute.xlu0 0
      %5755 = vperm.xlu0 %5754, %v5398
      %v5756 = vpop.permute.xlu0 %5755
      %5757 = vset.pattern.permute.xlu0 0
      %5758 = vperm.xlu0 %5757, %v5399
      %v5759 = vpop.permute.xlu0 %5758
      %5760 = vset.pattern.permute.xlu0 0
      %5761 = vperm.xlu0 %5760, %v5400
      %v5762 = vpop.permute.xlu0 %5761
      %5763 = vset.pattern.permute.xlu0 0
      %5764 = vperm.xlu0 %5763, %v5401
      %v5765 = vpop.permute.xlu0 %5764
      %5766 = vset.pattern.permute.xlu0 0
      %5767 = vperm.xlu0 %5766, %v5402
      %v5768 = vpop.permute.xlu0 %5767
      %5769 = vset.pattern.permute.xlu0 0
      %5770 = vperm.xlu0 %5769, %v5403
      %v5771 = vpop.permute.xlu0 %5770
      %5772 = vset.pattern.permute.xlu0 0
      %5773 = vperm.xlu0 %5772, %v5404
      %v5774 = vpop.permute.xlu0 %5773
      %5775 = vset.pattern.permute.xlu0 0
      %5776 = vperm.xlu0 %5775, %v5405
      %v5777 = vpop.permute.xlu0 %5776
      %5778 = vset.pattern.permute.xlu0 0
      %5779 = vperm.xlu0 %5778, %v5406
      %v5780 = vpop.permute.xlu0 %5779
      %5781 = vset.pattern.permute.xlu0 0
      %5782 = vperm.xlu0 %5781, %v5407
      %v5783 = vpop.permute.xlu0 %5782
      %5784 = vset.pattern.permute.xlu0 0
      %5785 = vperm.xlu0 %5784, %v5408
      %v5786 = vpop.permute.xlu0 %5785
      %5787 = vset.pattern.permute.xlu0 0
      %5788 = vperm.xlu0 %5787, %v5409
      %v5789 = vpop.permute.xlu0 %5788
      %5790 = vset.pattern.permute.xlu0 0
      %5791 = vperm.xlu0 %5790, %v5410
      %v5792 = vpop.permute.xlu0 %5791
      %5793 = vset.pattern.permute.xlu0 0
      %5794 = vperm.xlu0 %5793, %v5411
      %v5795 = vpop.permute.xlu0 %5794
      %v5796 = vlaneseq
      %v5797 = vshrl.u32 %v5796, 7
      %v5798 = vsub.s32 %v1078, %v5797
      %v5799 = vrot.slane %v5414, %v5798
      %v5800 = vadd.s32 %v1078, 4294967288
      %v5801 = vlaneseq
      %v5802 = vshrl.u32 %v5801, 7
      %v5803 = vsub.s32 %v5800, %v5802
      %v5804 = vrot.slane %v5417, %v5803
      %vm5805 = vcmask 130112
      %v5806 = vsel %vm5805, %v5804, %v5799
      %v5807 = vadd.s32 %v1078, 4294967280
      %v5808 = vlaneseq
      %v5809 = vshrl.u32 %v5808, 7
      %v5810 = vsub.s32 %v5807, %v5809
      %v5811 = vrot.slane %v5420, %v5810
      %vm5812 = vcmask 195712
      %v5813 = vsel %vm5812, %v5811, %v5806
      %v5814 = vadd.s32 %v1078, 4294967272
      %v5815 = vlaneseq
      %v5816 = vshrl.u32 %v5815, 7
      %v5817 = vsub.s32 %v5814, %v5816
      %v5818 = vrot.slane %v5423, %v5817
      %vm5819 = vcmask 261312
      %v5820 = vsel %vm5819, %v5818, %v5813
      %v5821 = vadd.s32 %v1078, 4294967264
      %v5822 = vlaneseq
      %v5823 = vshrl.u32 %v5822, 7
      %v5824 = vsub.s32 %v5821, %v5823
      %v5825 = vrot.slane %v5426, %v5824
      %vm5826 = vcmask 326912
      %v5827 = vsel %vm5826, %v5825, %v5820
      %v5828 = vadd.s32 %v1078, 4294967256
      %v5829 = vlaneseq
      %v5830 = vshrl.u32 %v5829, 7
      %v5831 = vsub.s32 %v5828, %v5830
      %v5832 = vrot.slane %v5429, %v5831
      %vm5833 = vcmask 392512
      %v5834 = vsel %vm5833, %v5832, %v5827
      %v5835 = vadd.s32 %v1078, 4294967248
      %v5836 = vlaneseq
      %v5837 = vshrl.u32 %v5836, 7
      %v5838 = vsub.s32 %v5835, %v5837
      %v5839 = vrot.slane %v5432, %v5838
      %vm5840 = vcmask 458112
      %v5841 = vsel %vm5840, %v5839, %v5834
      %v5842 = vadd.s32 %v1078, 4294967240
      %v5843 = vlaneseq
      %v5844 = vshrl.u32 %v5843, 7
      %v5845 = vsub.s32 %v5842, %v5844
      %v5846 = vrot.slane %v5435, %v5845
      %vm5847 = vcmask 523712
      %v5848 = vsel %vm5847, %v5846, %v5841
      %v5849 = vadd.s32 %v1078, 4294967232
      %v5850 = vlaneseq
      %v5851 = vshrl.u32 %v5850, 7
      %v5852 = vsub.s32 %v5849, %v5851
      %v5853 = vrot.slane %v5438, %v5852
      %vm5854 = vcmask 589312
      %v5855 = vsel %vm5854, %v5853, %v5848
      %v5856 = vadd.s32 %v1078, 4294967224
      %v5857 = vlaneseq
      %v5858 = vshrl.u32 %v5857, 7
      %v5859 = vsub.s32 %v5856, %v5858
      %v5860 = vrot.slane %v5441, %v5859
      %vm5861 = vcmask 654912
      %v5862 = vsel %vm5861, %v5860, %v5855
      %v5863 = vadd.s32 %v1078, 4294967216
      %v5864 = vlaneseq
      %v5865 = vshrl.u32 %v5864, 7
      %v5866 = vsub.s32 %v5863, %v5865
      %v5867 = vrot.slane %v5444, %v5866
      %vm5868 = vcmask 720512
      %v5869 = vsel %vm5868, %v5867, %v5862
      %v5870 = vadd.s32 %v1078, 4294967208
      %v5871 = vlaneseq
      %v5872 = vshrl.u32 %v5871, 7
      %v5873 = vsub.s32 %v5870, %v5872
      %v5874 = vrot.slane %v5447, %v5873
      %vm5875 = vcmask 786112
      %v5876 = vsel %vm5875, %v5874, %v5869
      %v5877 = vadd.s32 %v1078, 4294967200
      %v5878 = vlaneseq
      %v5879 = vshrl.u32 %v5878, 7
      %v5880 = vsub.s32 %v5877, %v5879
      %v5881 = vrot.slane %v5450, %v5880
      %vm5882 = vcmask 851712
      %v5883 = vsel %vm5882, %v5881, %v5876
      %v5884 = vadd.s32 %v1078, 4294967192
      %v5885 = vlaneseq
      %v5886 = vshrl.u32 %v5885, 7
      %v5887 = vsub.s32 %v5884, %v5886
      %v5888 = vrot.slane %v5453, %v5887
      %vm5889 = vcmask 917312
      %v5890 = vsel %vm5889, %v5888, %v5883
      %v5891 = vadd.s32 %v1078, 4294967184
      %v5892 = vlaneseq
      %v5893 = vshrl.u32 %v5892, 7
      %v5894 = vsub.s32 %v5891, %v5893
      %v5895 = vrot.slane %v5456, %v5894
      %vm5896 = vcmask 982912
      %v5897 = vsel %vm5896, %v5895, %v5890
      %v5898 = vadd.s32 %v1078, 4294967176
      %v5899 = vlaneseq
      %v5900 = vshrl.u32 %v5899, 7
      %v5901 = vsub.s32 %v5898, %v5900
      %v5902 = vrot.slane %v5459, %v5901
      %vm5903 = vcmask 1048512
      %v5904 = vsel %vm5903, %v5902, %v5897
      %v5905 = vlaneseq
      %v5906 = vshrl.u32 %v5905, 7
      %v5907 = vsub.s32 %v1078, %v5906
      %v5908 = vrot.slane %v5462, %v5907
      %v5909 = vlaneseq
      %v5910 = vshrl.u32 %v5909, 7
      %v5911 = vsub.s32 %v5800, %v5910
      %v5912 = vrot.slane %v5465, %v5911
      %v5913 = vsel %vm5805, %v5912, %v5908
      %v5914 = vlaneseq
      %v5915 = vshrl.u32 %v5914, 7
      %v5916 = vsub.s32 %v5807, %v5915
      %v5917 = vrot.slane %v5468, %v5916
      %v5918 = vsel %vm5812, %v5917, %v5913
      %v5919 = vlaneseq
      %v5920 = vshrl.u32 %v5919, 7
      %v5921 = vsub.s32 %v5814, %v5920
      %v5922 = vrot.slane %v5471, %v5921
      %v5923 = vsel %vm5819, %v5922, %v5918
      %v5924 = vlaneseq
      %v5925 = vshrl.u32 %v5924, 7
      %v5926 = vsub.s32 %v5821, %v5925
      %v5927 = vrot.slane %v5474, %v5926
      %v5928 = vsel %vm5826, %v5927, %v5923
      %v5929 = vlaneseq
      %v5930 = vshrl.u32 %v5929, 7
      %v5931 = vsub.s32 %v5828, %v5930
      %v5932 = vrot.slane %v5477, %v5931
      %v5933 = vsel %vm5833, %v5932, %v5928
      %v5934 = vlaneseq
      %v5935 = vshrl.u32 %v5934, 7
      %v5936 = vsub.s32 %v5835, %v5935
      %v5937 = vrot.slane %v5480, %v5936
      %v5938 = vsel %vm5840, %v5937, %v5933
      %v5939 = vlaneseq
      %v5940 = vshrl.u32 %v5939, 7
      %v5941 = vsub.s32 %v5842, %v5940
      %v5942 = vrot.slane %v5483, %v5941
      %v5943 = vsel %vm5847, %v5942, %v5938
      %v5944 = vlaneseq
      %v5945 = vshrl.u32 %v5944, 7
      %v5946 = vsub.s32 %v5849, %v5945
      %v5947 = vrot.slane %v5486, %v5946
      %v5948 = vsel %vm5854, %v5947, %v5943
      %v5949 = vlaneseq
      %v5950 = vshrl.u32 %v5949, 7
      %v5951 = vsub.s32 %v5856, %v5950
      %v5952 = vrot.slane %v5489, %v5951
      %v5953 = vsel %vm5861, %v5952, %v5948
      %v5954 = vlaneseq
      %v5955 = vshrl.u32 %v5954, 7
      %v5956 = vsub.s32 %v5863, %v5955
      %v5957 = vrot.slane %v5492, %v5956
      %v5958 = vsel %vm5868, %v5957, %v5953
      %v5959 = vlaneseq
      %v5960 = vshrl.u32 %v5959, 7
      %v5961 = vsub.s32 %v5870, %v5960
      %v5962 = vrot.slane %v5495, %v5961
      %v5963 = vsel %vm5875, %v5962, %v5958
      %v5964 = vlaneseq
      %v5965 = vshrl.u32 %v5964, 7
      %v5966 = vsub.s32 %v5877, %v5965
      %v5967 = vrot.slane %v5498, %v5966
      %v5968 = vsel %vm5882, %v5967, %v5963
      %v5969 = vlaneseq
      %v5970 = vshrl.u32 %v5969, 7
      %v5971 = vsub.s32 %v5884, %v5970
      %v5972 = vrot.slane %v5501, %v5971
      %v5973 = vsel %vm5889, %v5972, %v5968
      %v5974 = vlaneseq
      %v5975 = vshrl.u32 %v5974, 7
      %v5976 = vsub.s32 %v5891, %v5975
      %v5977 = vrot.slane %v5504, %v5976
      %v5978 = vsel %vm5896, %v5977, %v5973
      %v5979 = vlaneseq
      %v5980 = vshrl.u32 %v5979, 7
      %v5981 = vsub.s32 %v5898, %v5980
      %v5982 = vrot.slane %v5507, %v5981
      %v5983 = vsel %vm5903, %v5982, %v5978
      %v5984 = vlaneseq
      %v5985 = vshrl.u32 %v5984, 7
      %v5986 = vsub.s32 %v1078, %v5985
      %v5987 = vrot.slane %v5510, %v5986
      %v5988 = vlaneseq
      %v5989 = vshrl.u32 %v5988, 7
      %v5990 = vsub.s32 %v5800, %v5989
      %v5991 = vrot.slane %v5513, %v5990
      %v5992 = vsel %vm5805, %v5991, %v5987
      %v5993 = vlaneseq
      %v5994 = vshrl.u32 %v5993, 7
      %v5995 = vsub.s32 %v5807, %v5994
      %v5996 = vrot.slane %v5516, %v5995
      %v5997 = vsel %vm5812, %v5996, %v5992
      %v5998 = vlaneseq
      %v5999 = vshrl.u32 %v5998, 7
      %v6000 = vsub.s32 %v5814, %v5999
      %v6001 = vrot.slane %v5519, %v6000
      %v6002 = vsel %vm5819, %v6001, %v5997
      %v6003 = vlaneseq
      %v6004 = vshrl.u32 %v6003, 7
      %v6005 = vsub.s32 %v5821, %v6004
      %v6006 = vrot.slane %v5522, %v6005
      %v6007 = vsel %vm5826, %v6006, %v6002
      %v6008 = vlaneseq
      %v6009 = vshrl.u32 %v6008, 7
      %v6010 = vsub.s32 %v5828, %v6009
      %v6011 = vrot.slane %v5525, %v6010
      %v6012 = vsel %vm5833, %v6011, %v6007
      %v6013 = vlaneseq
      %v6014 = vshrl.u32 %v6013, 7
      %v6015 = vsub.s32 %v5835, %v6014
      %v6016 = vrot.slane %v5528, %v6015
      %v6017 = vsel %vm5840, %v6016, %v6012
      %v6018 = vlaneseq
      %v6019 = vshrl.u32 %v6018, 7
      %v6020 = vsub.s32 %v5842, %v6019
      %v6021 = vrot.slane %v5531, %v6020
      %v6022 = vsel %vm5847, %v6021, %v6017
      %v6023 = vlaneseq
      %v6024 = vshrl.u32 %v6023, 7
      %v6025 = vsub.s32 %v5849, %v6024
      %v6026 = vrot.slane %v5534, %v6025
      %v6027 = vsel %vm5854, %v6026, %v6022
      %v6028 = vlaneseq
      %v6029 = vshrl.u32 %v6028, 7
      %v6030 = vsub.s32 %v5856, %v6029
      %v6031 = vrot.slane %v5537, %v6030
      %v6032 = vsel %vm5861, %v6031, %v6027
      %v6033 = vlaneseq
      %v6034 = vshrl.u32 %v6033, 7
      %v6035 = vsub.s32 %v5863, %v6034
      %v6036 = vrot.slane %v5540, %v6035
      %v6037 = vsel %vm5868, %v6036, %v6032
      %v6038 = vlaneseq
      %v6039 = vshrl.u32 %v6038, 7
      %v6040 = vsub.s32 %v5870, %v6039
      %v6041 = vrot.slane %v5543, %v6040
      %v6042 = vsel %vm5875, %v6041, %v6037
      %v6043 = vlaneseq
      %v6044 = vshrl.u32 %v6043, 7
      %v6045 = vsub.s32 %v5877, %v6044
      %v6046 = vrot.slane %v5546, %v6045
      %v6047 = vsel %vm5882, %v6046, %v6042
      %v6048 = vlaneseq
      %v6049 = vshrl.u32 %v6048, 7
      %v6050 = vsub.s32 %v5884, %v6049
      %v6051 = vrot.slane %v5549, %v6050
      %v6052 = vsel %vm5889, %v6051, %v6047
      %v6053 = vlaneseq
      %v6054 = vshrl.u32 %v6053, 7
      %v6055 = vsub.s32 %v5891, %v6054
      %v6056 = vrot.slane %v5552, %v6055
      %v6057 = vsel %vm5896, %v6056, %v6052
      %v6058 = vlaneseq
      %v6059 = vshrl.u32 %v6058, 7
      %v6060 = vsub.s32 %v5898, %v6059
      %v6061 = vrot.slane %v5555, %v6060
      %v6062 = vsel %vm5903, %v6061, %v6057
      %v6063 = vlaneseq
      %v6064 = vshrl.u32 %v6063, 7
      %v6065 = vsub.s32 %v1078, %v6064
      %v6066 = vrot.slane %v5558, %v6065
      %v6067 = vlaneseq
      %v6068 = vshrl.u32 %v6067, 7
      %v6069 = vsub.s32 %v5800, %v6068
      %v6070 = vrot.slane %v5561, %v6069
      %v6071 = vsel %vm5805, %v6070, %v6066
      %v6072 = vlaneseq
      %v6073 = vshrl.u32 %v6072, 7
      %v6074 = vsub.s32 %v5807, %v6073
      %v6075 = vrot.slane %v5564, %v6074
      %v6076 = vsel %vm5812, %v6075, %v6071
      %v6077 = vlaneseq
      %v6078 = vshrl.u32 %v6077, 7
      %v6079 = vsub.s32 %v5814, %v6078
      %v6080 = vrot.slane %v5567, %v6079
      %v6081 = vsel %vm5819, %v6080, %v6076
      %v6082 = vlaneseq
      %v6083 = vshrl.u32 %v6082, 7
      %v6084 = vsub.s32 %v5821, %v6083
      %v6085 = vrot.slane %v5570, %v6084
      %v6086 = vsel %vm5826, %v6085, %v6081
      %v6087 = vlaneseq
      %v6088 = vshrl.u32 %v6087, 7
      %v6089 = vsub.s32 %v5828, %v6088
      %v6090 = vrot.slane %v5573, %v6089
      %v6091 = vsel %vm5833, %v6090, %v6086
      %v6092 = vlaneseq
      %v6093 = vshrl.u32 %v6092, 7
      %v6094 = vsub.s32 %v5835, %v6093
      %v6095 = vrot.slane %v5576, %v6094
      %v6096 = vsel %vm5840, %v6095, %v6091
      %v6097 = vlaneseq
      %v6098 = vshrl.u32 %v6097, 7
      %v6099 = vsub.s32 %v5842, %v6098
      %v6100 = vrot.slane %v5579, %v6099
      %v6101 = vsel %vm5847, %v6100, %v6096
      %v6102 = vlaneseq
      %v6103 = vshrl.u32 %v6102, 7
      %v6104 = vsub.s32 %v5849, %v6103
      %v6105 = vrot.slane %v5582, %v6104
      %v6106 = vsel %vm5854, %v6105, %v6101
      %v6107 = vlaneseq
      %v6108 = vshrl.u32 %v6107, 7
      %v6109 = vsub.s32 %v5856, %v6108
      %v6110 = vrot.slane %v5585, %v6109
      %v6111 = vsel %vm5861, %v6110, %v6106
      %v6112 = vlaneseq
      %v6113 = vshrl.u32 %v6112, 7
      %v6114 = vsub.s32 %v5863, %v6113
      %v6115 = vrot.slane %v5588, %v6114
      %v6116 = vsel %vm5868, %v6115, %v6111
      %v6117 = vlaneseq
      %v6118 = vshrl.u32 %v6117, 7
      %v6119 = vsub.s32 %v5870, %v6118
      %v6120 = vrot.slane %v5591, %v6119
      %v6121 = vsel %vm5875, %v6120, %v6116
      %v6122 = vlaneseq
      %v6123 = vshrl.u32 %v6122, 7
      %v6124 = vsub.s32 %v5877, %v6123
      %v6125 = vrot.slane %v5594, %v6124
      %v6126 = vsel %vm5882, %v6125, %v6121
      %v6127 = vlaneseq
      %v6128 = vshrl.u32 %v6127, 7
      %v6129 = vsub.s32 %v5884, %v6128
      %v6130 = vrot.slane %v5597, %v6129
      %v6131 = vsel %vm5889, %v6130, %v6126
      %v6132 = vlaneseq
      %v6133 = vshrl.u32 %v6132, 7
      %v6134 = vsub.s32 %v5891, %v6133
      %v6135 = vrot.slane %v5600, %v6134
      %v6136 = vsel %vm5896, %v6135, %v6131
      %v6137 = vlaneseq
      %v6138 = vshrl.u32 %v6137, 7
      %v6139 = vsub.s32 %v5898, %v6138
      %v6140 = vrot.slane %v5603, %v6139
      %v6141 = vsel %vm5903, %v6140, %v6136
      %v6142 = vlaneseq
      %v6143 = vshrl.u32 %v6142, 7
      %v6144 = vsub.s32 %v1078, %v6143
      %v6145 = vrot.slane %v5606, %v6144
      %v6146 = vlaneseq
      %v6147 = vshrl.u32 %v6146, 7
      %v6148 = vsub.s32 %v5800, %v6147
      %v6149 = vrot.slane %v5609, %v6148
      %v6150 = vsel %vm5805, %v6149, %v6145
      %v6151 = vlaneseq
      %v6152 = vshrl.u32 %v6151, 7
      %v6153 = vsub.s32 %v5807, %v6152
      %v6154 = vrot.slane %v5612, %v6153
      %v6155 = vsel %vm5812, %v6154, %v6150
      %v6156 = vlaneseq
      %v6157 = vshrl.u32 %v6156, 7
      %v6158 = vsub.s32 %v5814, %v6157
      %v6159 = vrot.slane %v5615, %v6158
      %v6160 = vsel %vm5819, %v6159, %v6155
      %v6161 = vlaneseq
      %v6162 = vshrl.u32 %v6161, 7
      %v6163 = vsub.s32 %v5821, %v6162
      %v6164 = vrot.slane %v5618, %v6163
      %v6165 = vsel %vm5826, %v6164, %v6160
      %v6166 = vlaneseq
      %v6167 = vshrl.u32 %v6166, 7
      %v6168 = vsub.s32 %v5828, %v6167
      %v6169 = vrot.slane %v5621, %v6168
      %v6170 = vsel %vm5833, %v6169, %v6165
      %v6171 = vlaneseq
      %v6172 = vshrl.u32 %v6171, 7
      %v6173 = vsub.s32 %v5835, %v6172
      %v6174 = vrot.slane %v5624, %v6173
      %v6175 = vsel %vm5840, %v6174, %v6170
      %v6176 = vlaneseq
      %v6177 = vshrl.u32 %v6176, 7
      %v6178 = vsub.s32 %v5842, %v6177
      %v6179 = vrot.slane %v5627, %v6178
      %v6180 = vsel %vm5847, %v6179, %v6175
      %v6181 = vlaneseq
      %v6182 = vshrl.u32 %v6181, 7
      %v6183 = vsub.s32 %v5849, %v6182
      %v6184 = vrot.slane %v5630, %v6183
      %v6185 = vsel %vm5854, %v6184, %v6180
      %v6186 = vlaneseq
      %v6187 = vshrl.u32 %v6186, 7
      %v6188 = vsub.s32 %v5856, %v6187
      %v6189 = vrot.slane %v5633, %v6188
      %v6190 = vsel %vm5861, %v6189, %v6185
      %v6191 = vlaneseq
      %v6192 = vshrl.u32 %v6191, 7
      %v6193 = vsub.s32 %v5863, %v6192
      %v6194 = vrot.slane %v5636, %v6193
      %v6195 = vsel %vm5868, %v6194, %v6190
      %v6196 = vlaneseq
      %v6197 = vshrl.u32 %v6196, 7
      %v6198 = vsub.s32 %v5870, %v6197
      %v6199 = vrot.slane %v5639, %v6198
      %v6200 = vsel %vm5875, %v6199, %v6195
      %v6201 = vlaneseq
      %v6202 = vshrl.u32 %v6201, 7
      %v6203 = vsub.s32 %v5877, %v6202
      %v6204 = vrot.slane %v5642, %v6203
      %v6205 = vsel %vm5882, %v6204, %v6200
      %v6206 = vlaneseq
      %v6207 = vshrl.u32 %v6206, 7
      %v6208 = vsub.s32 %v5884, %v6207
      %v6209 = vrot.slane %v5645, %v6208
      %v6210 = vsel %vm5889, %v6209, %v6205
      %v6211 = vlaneseq
      %v6212 = vshrl.u32 %v6211, 7
      %v6213 = vsub.s32 %v5891, %v6212
      %v6214 = vrot.slane %v5648, %v6213
      %v6215 = vsel %vm5896, %v6214, %v6210
      %v6216 = vlaneseq
      %v6217 = vshrl.u32 %v6216, 7
      %v6218 = vsub.s32 %v5898, %v6217
      %v6219 = vrot.slane %v5651, %v6218
      %v6220 = vsel %vm5903, %v6219, %v6215
      %v6221 = vlaneseq
      %v6222 = vshrl.u32 %v6221, 7
      %v6223 = vsub.s32 %v1078, %v6222
      %v6224 = vrot.slane %v5654, %v6223
      %v6225 = vlaneseq
      %v6226 = vshrl.u32 %v6225, 7
      %v6227 = vsub.s32 %v5800, %v6226
      %v6228 = vrot.slane %v5657, %v6227
      %v6229 = vsel %vm5805, %v6228, %v6224
      %v6230 = vlaneseq
      %v6231 = vshrl.u32 %v6230, 7
      %v6232 = vsub.s32 %v5807, %v6231
      %v6233 = vrot.slane %v5660, %v6232
      %v6234 = vsel %vm5812, %v6233, %v6229
      %v6235 = vlaneseq
      %v6236 = vshrl.u32 %v6235, 7
      %v6237 = vsub.s32 %v5814, %v6236
      %v6238 = vrot.slane %v5663, %v6237
      %v6239 = vsel %vm5819, %v6238, %v6234
      %v6240 = vlaneseq
      %v6241 = vshrl.u32 %v6240, 7
      %v6242 = vsub.s32 %v5821, %v6241
      %v6243 = vrot.slane %v5666, %v6242
      %v6244 = vsel %vm5826, %v6243, %v6239
      %v6245 = vlaneseq
      %v6246 = vshrl.u32 %v6245, 7
      %v6247 = vsub.s32 %v5828, %v6246
      %v6248 = vrot.slane %v5669, %v6247
      %v6249 = vsel %vm5833, %v6248, %v6244
      %v6250 = vlaneseq
      %v6251 = vshrl.u32 %v6250, 7
      %v6252 = vsub.s32 %v5835, %v6251
      %v6253 = vrot.slane %v5672, %v6252
      %v6254 = vsel %vm5840, %v6253, %v6249
      %v6255 = vlaneseq
      %v6256 = vshrl.u32 %v6255, 7
      %v6257 = vsub.s32 %v5842, %v6256
      %v6258 = vrot.slane %v5675, %v6257
      %v6259 = vsel %vm5847, %v6258, %v6254
      %v6260 = vlaneseq
      %v6261 = vshrl.u32 %v6260, 7
      %v6262 = vsub.s32 %v5849, %v6261
      %v6263 = vrot.slane %v5678, %v6262
      %v6264 = vsel %vm5854, %v6263, %v6259
      %v6265 = vlaneseq
      %v6266 = vshrl.u32 %v6265, 7
      %v6267 = vsub.s32 %v5856, %v6266
      %v6268 = vrot.slane %v5681, %v6267
      %v6269 = vsel %vm5861, %v6268, %v6264
      %v6270 = vlaneseq
      %v6271 = vshrl.u32 %v6270, 7
      %v6272 = vsub.s32 %v5863, %v6271
      %v6273 = vrot.slane %v5684, %v6272
      %v6274 = vsel %vm5868, %v6273, %v6269
      %v6275 = vlaneseq
      %v6276 = vshrl.u32 %v6275, 7
      %v6277 = vsub.s32 %v5870, %v6276
      %v6278 = vrot.slane %v5687, %v6277
      %v6279 = vsel %vm5875, %v6278, %v6274
      %v6280 = vlaneseq
      %v6281 = vshrl.u32 %v6280, 7
      %v6282 = vsub.s32 %v5877, %v6281
      %v6283 = vrot.slane %v5690, %v6282
      %v6284 = vsel %vm5882, %v6283, %v6279
      %v6285 = vlaneseq
      %v6286 = vshrl.u32 %v6285, 7
      %v6287 = vsub.s32 %v5884, %v6286
      %v6288 = vrot.slane %v5693, %v6287
      %v6289 = vsel %vm5889, %v6288, %v6284
      %v6290 = vlaneseq
      %v6291 = vshrl.u32 %v6290, 7
      %v6292 = vsub.s32 %v5891, %v6291
      %v6293 = vrot.slane %v5696, %v6292
      %v6294 = vsel %vm5896, %v6293, %v6289
      %v6295 = vlaneseq
      %v6296 = vshrl.u32 %v6295, 7
      %v6297 = vsub.s32 %v5898, %v6296
      %v6298 = vrot.slane %v5699, %v6297
      %v6299 = vsel %vm5903, %v6298, %v6294
      %v6300 = vlaneseq
      %v6301 = vshrl.u32 %v6300, 7
      %v6302 = vsub.s32 %v1078, %v6301
      %v6303 = vrot.slane %v5702, %v6302
      %v6304 = vlaneseq
      %v6305 = vshrl.u32 %v6304, 7
      %v6306 = vsub.s32 %v5800, %v6305
      %v6307 = vrot.slane %v5705, %v6306
      %v6308 = vsel %vm5805, %v6307, %v6303
      %v6309 = vlaneseq
      %v6310 = vshrl.u32 %v6309, 7
      %v6311 = vsub.s32 %v5807, %v6310
      %v6312 = vrot.slane %v5708, %v6311
      %v6313 = vsel %vm5812, %v6312, %v6308
      %v6314 = vlaneseq
      %v6315 = vshrl.u32 %v6314, 7
      %v6316 = vsub.s32 %v5814, %v6315
      %v6317 = vrot.slane %v5711, %v6316
      %v6318 = vsel %vm5819, %v6317, %v6313
      %v6319 = vlaneseq
      %v6320 = vshrl.u32 %v6319, 7
      %v6321 = vsub.s32 %v5821, %v6320
      %v6322 = vrot.slane %v5714, %v6321
      %v6323 = vsel %vm5826, %v6322, %v6318
      %v6324 = vlaneseq
      %v6325 = vshrl.u32 %v6324, 7
      %v6326 = vsub.s32 %v5828, %v6325
      %v6327 = vrot.slane %v5717, %v6326
      %v6328 = vsel %vm5833, %v6327, %v6323
      %v6329 = vlaneseq
      %v6330 = vshrl.u32 %v6329, 7
      %v6331 = vsub.s32 %v5835, %v6330
      %v6332 = vrot.slane %v5720, %v6331
      %v6333 = vsel %vm5840, %v6332, %v6328
      %v6334 = vlaneseq
      %v6335 = vshrl.u32 %v6334, 7
      %v6336 = vsub.s32 %v5842, %v6335
      %v6337 = vrot.slane %v5723, %v6336
      %v6338 = vsel %vm5847, %v6337, %v6333
      %v6339 = vlaneseq
      %v6340 = vshrl.u32 %v6339, 7
      %v6341 = vsub.s32 %v5849, %v6340
      %v6342 = vrot.slane %v5726, %v6341
      %v6343 = vsel %vm5854, %v6342, %v6338
      %v6344 = vlaneseq
      %v6345 = vshrl.u32 %v6344, 7
      %v6346 = vsub.s32 %v5856, %v6345
      %v6347 = vrot.slane %v5729, %v6346
      %v6348 = vsel %vm5861, %v6347, %v6343
      %v6349 = vlaneseq
      %v6350 = vshrl.u32 %v6349, 7
      %v6351 = vsub.s32 %v5863, %v6350
      %v6352 = vrot.slane %v5732, %v6351
      %v6353 = vsel %vm5868, %v6352, %v6348
      %v6354 = vlaneseq
      %v6355 = vshrl.u32 %v6354, 7
      %v6356 = vsub.s32 %v5870, %v6355
      %v6357 = vrot.slane %v5735, %v6356
      %v6358 = vsel %vm5875, %v6357, %v6353
      %v6359 = vlaneseq
      %v6360 = vshrl.u32 %v6359, 7
      %v6361 = vsub.s32 %v5877, %v6360
      %v6362 = vrot.slane %v5738, %v6361
      %v6363 = vsel %vm5882, %v6362, %v6358
      %v6364 = vlaneseq
      %v6365 = vshrl.u32 %v6364, 7
      %v6366 = vsub.s32 %v5884, %v6365
      %v6367 = vrot.slane %v5741, %v6366
      %v6368 = vsel %vm5889, %v6367, %v6363
      %v6369 = vlaneseq
      %v6370 = vshrl.u32 %v6369, 7
      %v6371 = vsub.s32 %v5891, %v6370
      %v6372 = vrot.slane %v5744, %v6371
      %v6373 = vsel %vm5896, %v6372, %v6368
      %v6374 = vlaneseq
      %v6375 = vshrl.u32 %v6374, 7
      %v6376 = vsub.s32 %v5898, %v6375
      %v6377 = vrot.slane %v5747, %v6376
      %v6378 = vsel %vm5903, %v6377, %v6373
      %v6379 = vlaneseq
      %v6380 = vshrl.u32 %v6379, 7
      %v6381 = vsub.s32 %v1078, %v6380
      %v6382 = vrot.slane %v5750, %v6381
      %v6383 = vlaneseq
      %v6384 = vshrl.u32 %v6383, 7
      %v6385 = vsub.s32 %v5800, %v6384
      %v6386 = vrot.slane %v5753, %v6385
      %v6387 = vsel %vm5805, %v6386, %v6382
      %v6388 = vlaneseq
      %v6389 = vshrl.u32 %v6388, 7
      %v6390 = vsub.s32 %v5807, %v6389
      %v6391 = vrot.slane %v5756, %v6390
      %v6392 = vsel %vm5812, %v6391, %v6387
      %v6393 = vlaneseq
      %v6394 = vshrl.u32 %v6393, 7
      %v6395 = vsub.s32 %v5814, %v6394
      %v6396 = vrot.slane %v5759, %v6395
      %v6397 = vsel %vm5819, %v6396, %v6392
      %v6398 = vlaneseq
      %v6399 = vshrl.u32 %v6398, 7
      %v6400 = vsub.s32 %v5821, %v6399
      %v6401 = vrot.slane %v5762, %v6400
      %v6402 = vsel %vm5826, %v6401, %v6397
      %v6403 = vlaneseq
      %v6404 = vshrl.u32 %v6403, 7
      %v6405 = vsub.s32 %v5828, %v6404
      %v6406 = vrot.slane %v5765, %v6405
      %v6407 = vsel %vm5833, %v6406, %v6402
      %v6408 = vlaneseq
      %v6409 = vshrl.u32 %v6408, 7
      %v6410 = vsub.s32 %v5835, %v6409
      %v6411 = vrot.slane %v5768, %v6410
      %v6412 = vsel %vm5840, %v6411, %v6407
      %v6413 = vlaneseq
      %v6414 = vshrl.u32 %v6413, 7
      %v6415 = vsub.s32 %v5842, %v6414
      %v6416 = vrot.slane %v5771, %v6415
      %v6417 = vsel %vm5847, %v6416, %v6412
      %v6418 = vlaneseq
      %v6419 = vshrl.u32 %v6418, 7
      %v6420 = vsub.s32 %v5849, %v6419
      %v6421 = vrot.slane %v5774, %v6420
      %v6422 = vsel %vm5854, %v6421, %v6417
      %v6423 = vlaneseq
      %v6424 = vshrl.u32 %v6423, 7
      %v6425 = vsub.s32 %v5856, %v6424
      %v6426 = vrot.slane %v5777, %v6425
      %v6427 = vsel %vm5861, %v6426, %v6422
      %v6428 = vlaneseq
      %v6429 = vshrl.u32 %v6428, 7
      %v6430 = vsub.s32 %v5863, %v6429
      %v6431 = vrot.slane %v5780, %v6430
      %v6432 = vsel %vm5868, %v6431, %v6427
      %v6433 = vlaneseq
      %v6434 = vshrl.u32 %v6433, 7
      %v6435 = vsub.s32 %v5870, %v6434
      %v6436 = vrot.slane %v5783, %v6435
      %v6437 = vsel %vm5875, %v6436, %v6432
      %v6438 = vlaneseq
      %v6439 = vshrl.u32 %v6438, 7
      %v6440 = vsub.s32 %v5877, %v6439
      %v6441 = vrot.slane %v5786, %v6440
      %v6442 = vsel %vm5882, %v6441, %v6437
      %v6443 = vlaneseq
      %v6444 = vshrl.u32 %v6443, 7
      %v6445 = vsub.s32 %v5884, %v6444
      %v6446 = vrot.slane %v5789, %v6445
      %v6447 = vsel %vm5889, %v6446, %v6442
      %v6448 = vlaneseq
      %v6449 = vshrl.u32 %v6448, 7
      %v6450 = vsub.s32 %v5891, %v6449
      %v6451 = vrot.slane %v5792, %v6450
      %v6452 = vsel %vm5896, %v6451, %v6447
      %v6453 = vlaneseq
      %v6454 = vshrl.u32 %v6453, 7
      %v6455 = vsub.s32 %v5898, %v6454
      %v6456 = vrot.slane %v5795, %v6455
      %v6457 = vsel %vm5903, %v6456, %v6452
      %v6458 = vsel %vm1111, %v5983, %v5904
      %v6459 = vsel %vm1113, %v6062, %v6458
      %v6460 = vsel %vm1115, %v6141, %v6459
      %v6461 = vsel %vm1117, %v6220, %v6460
      %v6462 = vsel %vm1119, %v6299, %v6461
      %v6463 = vsel %vm1121, %v6378, %v6462
      %v6464 = vsel %vm1123, %v6457, %v6463
      %v6465 = vpack.c.b16 %v6464, %v6464
      %v6483 = vunpack.c.l.b16 %v5192
      %v6484 = vunpack.c.h.b16 %v5192
      %v6485 = vunpack.c.l.b16 %v5193
      %v6486 = vunpack.c.h.b16 %v5193
      %v6487 = vunpack.c.l.b16 %v5194
      %v6488 = vunpack.c.h.b16 %v5194
      %v6489 = vunpack.c.l.b16 %v5195
      %v6490 = vunpack.c.h.b16 %v5195
      %v6491 = vunpack.c.l.b16 %v5196
      %v6492 = vunpack.c.h.b16 %v5196
      %v6493 = vunpack.c.l.b16 %v5197
      %v6494 = vunpack.c.h.b16 %v5197
      %v6495 = vunpack.c.l.b16 %v5198
      %v6496 = vunpack.c.h.b16 %v5198
      %v6497 = vunpack.c.l.b16 %v5199
      %v6498 = vunpack.c.h.b16 %v5199
      %v6499 = vunpack.c.l.b16 %v5200
      %v6500 = vunpack.c.h.b16 %v5200
      %v6501 = vunpack.c.l.b16 %v5201
      %v6502 = vunpack.c.h.b16 %v5201
      %v6503 = vunpack.c.l.b16 %v5202
      %v6504 = vunpack.c.h.b16 %v5202
      %v6505 = vunpack.c.l.b16 %v5203
      %v6506 = vunpack.c.h.b16 %v5203
      %v6507 = vunpack.c.l.b16 %v5204
      %v6508 = vunpack.c.h.b16 %v5204
      %v6509 = vunpack.c.l.b16 %v5205
      %v6510 = vunpack.c.h.b16 %v5205
      %v6511 = vunpack.c.l.b16 %v5206
      %v6512 = vunpack.c.h.b16 %v5206
      %v6513 = vunpack.c.l.b16 %v5207
      %v6514 = vunpack.c.h.b16 %v5207
      %v6515 = vpack.c.b16 %v6485, %v6483
      %v6516 = vpack.c.b16 %v6486, %v6484
      %v6517 = vpack.c.b16 %v6489, %v6487
      %v6518 = vpack.c.b16 %v6490, %v6488
      %v6519 = vpack.c.b16 %v6493, %v6491
      %v6520 = vpack.c.b16 %v6494, %v6492
      %v6521 = vpack.c.b16 %v6497, %v6495
      %v6522 = vpack.c.b16 %v6498, %v6496
      %v6523 = vpack.c.b16 %v6501, %v6499
      %v6524 = vpack.c.b16 %v6502, %v6500
      %v6525 = vpack.c.b16 %v6505, %v6503
      %v6526 = vpack.c.b16 %v6506, %v6504
      %v6527 = vpack.c.b16 %v6509, %v6507
      %v6528 = vpack.c.b16 %v6510, %v6508
      %v6529 = vpack.c.b16 %v6513, %v6511
      %v6530 = vpack.c.b16 %v6514, %v6512
      %6547 = vmatprep.subr.bf16.mxu0 %v6530
      %6548 = vmatpush1.bf16.msra.mxu0 %v6529
      %6549 = vmatprep.subr.bf16.mxu0 %v6528
      %6550 = vmatpush1.bf16.msra.mxu0 %v6527
      %6551 = vmatprep.subr.bf16.mxu0 %v6526
      %6552 = vmatpush1.bf16.msra.mxu0 %v6525
      %6553 = vmatprep.subr.bf16.mxu0 %v6524
      %6554 = vmatpush1.bf16.msra.mxu0 %v6523
      %6555 = vmatprep.subr.bf16.mxu0 %v6522
      %6556 = vmatpush1.bf16.msra.mxu0 %v6521
      %6557 = vmatprep.subr.bf16.mxu0 %v6520
      %6558 = vmatpush1.bf16.msra.mxu0 %v6519
      %6559 = vmatprep.subr.bf16.mxu0 %v6518
      %6560 = vmatpush1.bf16.msra.mxu0 %v6517
      %6561 = vmatprep.subr.bf16.mxu0 %v6516
      %6562 = vmatpush1.bf16.msra.mxu0 %v6515
      %6563 = vmatprep.subr.bf16.mxu0 0
      %6564 = vmatpush2.bf16.msra.mxu0 0
      %6565 = vmatprep.subr.bf16.mxu0 0
      %6566 = vmatpush2.bf16.msra.mxu0 0
      %6567 = vmatprep.subr.bf16.mxu0 0
      %6568 = vmatpush2.bf16.msra.mxu0 0
      %6569 = vmatprep.subr.bf16.mxu0 0
      %6570 = vmatpush2.bf16.msra.mxu0 0
      %6571 = vmatprep.subr.bf16.mxu0 0
      %6572 = vmatpush2.bf16.msra.mxu0 0
      %6573 = vmatprep.subr.bf16.mxu0 0
      %6574 = vmatpush2.bf16.msra.mxu0 0
      %6575 = vmatprep.subr.bf16.mxu0 0
      %6576 = vmatpush2.bf16.msra.mxu0 0
      %6577 = vmatprep.subr.bf16.mxu0 0
      %6578 = vmatpush2.bf16.msra.mxu0 0
      %6579 = vmatprep.mubr.bf16.mxu0 0
      %6580 = vmatmul.mubr.bf16.gmra.mxu0 %v6465
      %v6581 = vpop.f32.mrf.mxu0
      %v6582 = vadd.f32 %v5213, %v6581
      %v6583 = vpop.f32.mrf.mxu0
      %v6584 = vadd.f32 %v5217, %v6583
      %v6585 = vpop.f32.mrf.mxu0
      %v6586 = vpop.f32.mrf.mxu0
      %6587 = vdwg.mxu0
      %v6588 = vmax.f32 %v6582, 0.0
      %v6589 = vmax.f32 %v6584, 0.0
      %v6590 = vpack.c.bf16 %v6588, %v6588
      %v6591 = vpack.c.bf16 %v6589, %v6589
      %v6592 = vld [vmem:[%s10] sm:$0xf]
      %v6593 = vld [vmem:[%s10 + $0x4] sm:$0xf]
      %v6594 = vld [vmem:[%s10 + $0x8] sm:$0xf]
      %v6595 = vld [vmem:[%s10 + $0xc] sm:$0xf]
      %v6596 = vld [vmem:[%s10 + $0x10] sm:$0xf]
      %v6597 = vld [vmem:[%s10 + $0x14] sm:$0xf]
      %v6598 = vld [vmem:[%s10 + $0x18] sm:$0xf]
      %v6599 = vld [vmem:[%s10 + $0x1c] sm:$0xf]
      %v6600 = vld [vmem:[%s10 + $0x20] sm:$0xf]
      %v6601 = vld [vmem:[%s10 + $0x24] sm:$0xf]
      %v6602 = vld [vmem:[%s10 + $0x28] sm:$0xf]
      %v6603 = vld [vmem:[%s10 + $0x2c] sm:$0xf]
      %v6604 = vld [vmem:[%s10 + $0x30] sm:$0xf]
      %v6605 = vld [vmem:[%s10 + $0x34] sm:$0xf]
      %v6606 = vld [vmem:[%s10 + $0x38] sm:$0xf]
      %v6607 = vld [vmem:[%s10 + $0x3c] sm:$0xf]
      %v6608 = vld [vmem:[%s10 + $0x40] sm:$0xf]
      %v6609 = vld [vmem:[%s10 + $0x44] sm:$0xf]
      %v6610 = vld [vmem:[%s10 + $0x48] sm:$0xf]
      %v6611 = vld [vmem:[%s10 + $0x4c] sm:$0xf]
      %v6612 = vld [vmem:[%s10 + $0x50] sm:$0xf]
      %v6613 = vld [vmem:[%s10 + $0x54] sm:$0xf]
      %v6614 = vld [vmem:[%s10 + $0x58] sm:$0xf]
      %v6615 = vld [vmem:[%s10 + $0x5c] sm:$0xf]
      %v6616 = vld [vmem:[%s10 + $0x60] sm:$0xf]
      %v6617 = vld [vmem:[%s10 + $0x64] sm:$0xf]
      %v6618 = vld [vmem:[%s10 + $0x68] sm:$0xf]
      %v6619 = vld [vmem:[%s10 + $0x6c] sm:$0xf]
      %v6620 = vld [vmem:[%s10 + $0x70] sm:$0xf]
      %v6621 = vld [vmem:[%s10 + $0x74] sm:$0xf]
      %v6622 = vld [vmem:[%s10 + $0x78] sm:$0xf]
      %v6623 = vld [vmem:[%s10 + $0x7c] sm:$0xf]
      %v6624 = vld [vmem:[%s11] sm:$0x1]
      %v6626 = vlaneseq
      %v6627 = vshrl.u32 %v6626, 7
      %v6628 = vsub.s32 0, %v6627
      %v6629 = vrot.slane %v6624, %v6628
      %v6663 = vunpack.c.l.b16 %v6592
      %v6664 = vunpack.c.l.b16 %v6593
      %v6665 = vunpack.c.l.b16 %v6594
      %v6666 = vunpack.c.l.b16 %v6595
      %v6667 = vunpack.c.l.b16 %v6596
      %v6668 = vunpack.c.l.b16 %v6597
      %v6669 = vunpack.c.l.b16 %v6598
      %v6670 = vunpack.c.l.b16 %v6599
      %v6671 = vunpack.c.l.b16 %v6600
      %v6672 = vunpack.c.l.b16 %v6601
      %v6673 = vunpack.c.l.b16 %v6602
      %v6674 = vunpack.c.l.b16 %v6603
      %v6675 = vunpack.c.l.b16 %v6604
      %v6676 = vunpack.c.l.b16 %v6605
      %v6677 = vunpack.c.l.b16 %v6606
      %v6678 = vunpack.c.l.b16 %v6607
      %v6679 = vunpack.c.l.b16 %v6608
      %v6680 = vunpack.c.l.b16 %v6609
      %v6681 = vunpack.c.l.b16 %v6610
      %v6682 = vunpack.c.l.b16 %v6611
      %v6683 = vunpack.c.l.b16 %v6612
      %v6684 = vunpack.c.l.b16 %v6613
      %v6685 = vunpack.c.l.b16 %v6614
      %v6686 = vunpack.c.l.b16 %v6615
      %v6687 = vunpack.c.l.b16 %v6616
      %v6688 = vunpack.c.l.b16 %v6617
      %v6689 = vunpack.c.l.b16 %v6618
      %v6690 = vunpack.c.l.b16 %v6619
      %v6691 = vunpack.c.l.b16 %v6620
      %v6692 = vunpack.c.l.b16 %v6621
      %v6693 = vunpack.c.l.b16 %v6622
      %v6694 = vunpack.c.l.b16 %v6623
      %v6695 = vpack.c.b16 %v6664, %v6663
      %v6696 = vpack.c.b16 %v6666, %v6665
      %v6697 = vpack.c.b16 %v6668, %v6667
      %v6698 = vpack.c.b16 %v6670, %v6669
      %v6699 = vpack.c.b16 %v6672, %v6671
      %v6700 = vpack.c.b16 %v6674, %v6673
      %v6701 = vpack.c.b16 %v6676, %v6675
      %v6702 = vpack.c.b16 %v6678, %v6677
      %v6703 = vpack.c.b16 %v6680, %v6679
      %v6704 = vpack.c.b16 %v6682, %v6681
      %v6705 = vpack.c.b16 %v6684, %v6683
      %v6706 = vpack.c.b16 %v6686, %v6685
      %v6707 = vpack.c.b16 %v6688, %v6687
      %v6708 = vpack.c.b16 %v6690, %v6689
      %v6709 = vpack.c.b16 %v6692, %v6691
      %v6710 = vpack.c.b16 %v6694, %v6693
      %6727 = vmatprep.subr.bf16.mxu0 0
      %6728 = vmatpush1.bf16.msra.mxu0 %v6702
      %6729 = vmatprep.subr.bf16.mxu0 0
      %6730 = vmatpush1.bf16.msra.mxu0 %v6701
      %6731 = vmatprep.subr.bf16.mxu0 0
      %6732 = vmatpush1.bf16.msra.mxu0 %v6700
      %6733 = vmatprep.subr.bf16.mxu0 0
      %6734 = vmatpush1.bf16.msra.mxu0 %v6699
      %6735 = vmatprep.subr.bf16.mxu0 0
      %6736 = vmatpush1.bf16.msra.mxu0 %v6698
      %6737 = vmatprep.subr.bf16.mxu0 0
      %6738 = vmatpush1.bf16.msra.mxu0 %v6697
      %6739 = vmatprep.subr.bf16.mxu0 0
      %6740 = vmatpush1.bf16.msra.mxu0 %v6696
      %6741 = vmatprep.subr.bf16.mxu0 0
      %6742 = vmatpush1.bf16.msra.mxu0 %v6695
      %6743 = vmatprep.subr.bf16.mxu0 0
      %6744 = vmatpush2.bf16.msra.mxu0 %v6710
      %6745 = vmatprep.subr.bf16.mxu0 0
      %6746 = vmatpush2.bf16.msra.mxu0 %v6709
      %6747 = vmatprep.subr.bf16.mxu0 0
      %6748 = vmatpush2.bf16.msra.mxu0 %v6708
      %6749 = vmatprep.subr.bf16.mxu0 0
      %6750 = vmatpush2.bf16.msra.mxu0 %v6707
      %6751 = vmatprep.subr.bf16.mxu0 0
      %6752 = vmatpush2.bf16.msra.mxu0 %v6706
      %6753 = vmatprep.subr.bf16.mxu0 0
      %6754 = vmatpush2.bf16.msra.mxu0 %v6705
      %6755 = vmatprep.subr.bf16.mxu0 0
      %6756 = vmatpush2.bf16.msra.mxu0 %v6704
      %6757 = vmatprep.subr.bf16.mxu0 0
      %6758 = vmatpush2.bf16.msra.mxu0 %v6703
      %6759 = vmatprep.mubr.bf16.mxu0 %v6591
      %6760 = vmatmul.mubr.bf16.gmra.mxu0 %v6590
      %v6761 = vpop.f32.mrf.mxu0
      %v6762 = vadd.f32 %v6629, %v6761
      %v6763 = vpop.f32.mrf.mxu0
      %v6764 = vpop.f32.mrf.mxu0
      %v6765 = vpop.f32.mrf.mxu0
      %6766 = vdwg.mxu0
      %v6767 = vadd.f32 %v6762, %v603
      %6768 = vadd.xlane.f32.xlu0 %v6767
      %v6769 = vpop.xlane.xlu0 %6768
      %v6770 = vrcp.pop 128.0
      %v6771 = vmul.f32 %v6769, %v6770
      %v6772 = vsub.f32 %v6767, %v6771
      %v6773 = vmul.f32 %v6772, %v6772
      %6774 = vadd.xlane.f32.xlu0 %v6773
      %v6775 = vpop.xlane.xlu0 %6774
      %v6776 = vmul.f32 %v6775, %v6770
      %v6777 = vadd.f32 %v6776, 1e-06
      %v6778 = vrsqrt.pop %v6777
      %v6779 = vmul.f32 %v6772, %v6778
      %v6780 = vld [vmem:[%s12] sm:$0x1]
      %v6782 = vlaneseq
      %v6783 = vshrl.u32 %v6782, 7
      %v6784 = vsub.s32 0, %v6783
      %v6785 = vrot.slane %v6780, %v6784
      %v6787 = vmul.f32 %v6779, %v6785
      %v6788 = vld [vmem:[%s13] sm:$0x1]
      %v6790 = vlaneseq
      %v6791 = vshrl.u32 %v6790, 7
      %v6792 = vsub.s32 0, %v6791
      %v6793 = vrot.slane %v6788, %v6792
      %v6795 = vadd.f32 %v6787, %v6793
      %6796 = vst [vmem:[%s601] sm:$0xff] %v6795
      %p6797 = scmp.lt.s32.totalorder %s29, 1
      %s6798 = scalar_select %p6797, %s29, 1
      %p6799 = scmp.lt.s32.totalorder %s30, 0
      %s6800 = scalar_select %p6799, %s30, 0
      %s6801 = sadd.s32 %s6800, %s6798
      %s6802 = smul.addr %s6801, 8
      %s6803 = scalar_lea.vmem %s14, %s6802
      // Predicated region
      $region77: #{fwd.10} parent=75 // pred_check
        %p6804 = pneg %p379
      $region78: #{fwd.10} parent=75 // pred_check_branch
        %6806 = sbr.rel (%p6804) target = $region80
      $region79: #{fwd.10} parent=75 // pred_region
        _
      $region80: #{fwd.10} parent=75 // pred_fallthru
        _
    $region76: #{fwd.10} parent=5 // pred_fallthru
      _
    %p6807 = scmp.le.s32.totalorder 2, %s20
    // Predicated region
    $region81: #{fwd.10} parent=5 // pred_check
      %p6808 = pneg %p6807
    $region82: #{fwd.10} parent=5 // pred_check_branch
      %6810 = sbr.rel (%p6808) target = $region84
    $region83: #{fwd.10} parent=5 // pred_region
      %s6811 = ssub.s32 %s20, 2
      // Predicated region
      $region85: #{fwd.10} parent=83 // pred_check
        %p6812 = pneg %p385
      $region86: #{fwd.10} parent=83 // pred_check_branch
        %6814 = sbr.rel (%p6812) target = $region88
      $region87: #{fwd.10} parent=83 // pred_region
        %p6815 = scmp.lt.s32.totalorder %s31, 1
        %s6816 = scalar_select %p6815, %s31, 1
        %p6817 = scmp.lt.s32.totalorder %s32, 0
        %s6818 = scalar_select %p6817, %s32, 0
        %s6819 = sadd.s32 %s6818, %s6816
        %s6820 = smul.addr %s6819, 8
        %s6821 = scalar_lea.vmem %s14, %s6820
      $region88: #{fwd.10} parent=83 // pred_fallthru
        _
    $region84: #{fwd.10} parent=5 // pred_fallthru
      _
  $region6: #{fwd.10} parent=0 // loop_footer
    %s24 = sadd.s32 1, %s20
  $region7: #{fwd.10} parent=0 // loop_footer_branch
    %19 = sbr.rel target = $region3
  $region8: #{fwd.10} parent=0 // loop_exit
    _

</llo_original>
